<compile_context>
chip_gen: v5e
topology: v5e:2x2
jax: 0.10.0
libtpu: 0.0.40
codegen_flags: <defaults>
</compile_context>

<pallas_src>
import math

import jax
import jax.numpy as jnp
from jax.experimental import pallas as pl
from jax.experimental.pallas import tpu as pltpu


MATMUL_DTYPE = jnp.bfloat16   # matmul-operand dtype (accumulation is always f32)


# ----------------------------- Pallas kernel -------------------------------- #

def _make_stacked_kernel(nlayers, matmul_dtype):
    dt = matmul_dtype

    def kernel(*refs):
        x_ref, h0_ref, c0_ref, ctx_ref, mask_ref = refs[:5]
        w_refs = refs[5:5 + 7 * nlayers]
        out_ref, hN_ref, cN_ref = refs[5 + 7 * nlayers:]

        T, Bb, Din0 = x_ref.shape
        H = h0_ref.shape[1]
        L = ctx_ref.shape[1]

        # ---- loop-invariant loads / reshapes (shared by all layers) ----
        ctx2 = ctx_ref[...].reshape(Bb * L, H).astype(dt)        # [Bb*L, H]
        masked = mask_ref[...] > 0.5                             # [Bb, L]
        h0 = h0_ref[...]
        c0 = c0_ref[...]
        neg_inf = jnp.float32(-jnp.inf)

        # layer-0 input, time-major rows: row (t*Bb + b) == x[t, b, :]
        inp2d = x_ref[...].reshape(T * Bb, Din0).astype(dt)

        for li in range(nlayers):
            base = 7 * li
            w_ih = w_refs[base + 0][...]
            b_ih = w_refs[base + 1][...]
            w_hh = w_refs[base + 2][...]
            b_hh = w_refs[base + 3][...]
            w_qt = w_refs[base + 4][...]      # W_a   (oriented for keys @ W_a)
            w_oc = w_refs[base + 5][...]      # context half of out_projection
            w_oq = w_refs[base + 6][...]      # query   half of out_projection

            # ---- hoisted, T-independent MXU pre-passes ----
            bias = b_ih + b_hh                                                    # [1, 4H]
            xg = jnp.dot(inp2d, w_ih.astype(dt),
                         preferred_element_type=jnp.float32) + bias               # [T*Bb, 4H]
            ctx_q = jnp.dot(ctx2, w_qt.astype(dt),
                            preferred_element_type=jnp.float32
                            ).reshape(Bb, L, H).astype(dt)                         # keys @ W_a
            ctx_o = jnp.dot(ctx2, w_oc.astype(dt),
                            preferred_element_type=jnp.float32
                            ).reshape(Bb, L, H).astype(dt)                         # keys @ W_oc
            w_hh_c = w_hh.astype(dt)
            w_oq_c = w_oq.astype(dt)

            # ---- serial recurrence (T small -> unrolled Python loop) ----
            h, c = h0, c0
            hs = []
            for t in range(T):
                # nn.LSTMCell, gate order (i, f, g, o); x-projection precomputed.
                gates = xg[t * Bb:(t + 1) * Bb, :] + jnp.dot(
                    h.astype(dt), w_hh_c, preferred_element_type=jnp.float32)      # [Bb, 4H]
                i_g = jax.nn.sigmoid(gates[:, 0 * H:1 * H])
                f_g = jax.nn.sigmoid(gates[:, 1 * H:2 * H])
                g_g = jnp.tanh(gates[:, 2 * H:3 * H])
                o_g = jax.nn.sigmoid(gates[:, 3 * H:4 * H])
                c = f_g * c + i_g * g_g
                hy = o_g * jnp.tanh(c)                                             # [Bb, H]
                hy_c = hy.astype(dt)

                # ---- BilinearAttention, contractions on the MXU ----
                # scores[b, l] = sum_h (keys @ W_a)[b, l, h] * hy[b, h]
                s = jax.lax.dot_general(
                    hy_c[:, None, :], ctx_q, (((2,), (2,)), ((0,), (0,))),
                    preferred_element_type=jnp.float32)[:, 0, :]                   # [Bb, L]
                s = jnp.where(masked, neg_inf, s)
                s = s - jnp.max(s, axis=-1, keepdims=True)
                e = jnp.exp(s)
                # NOTE: a fully-masked srcmask row gives NaN, same as the PyTorch module.
                inv_l = pl.reciprocal(jnp.sum(e, axis=-1, keepdims=True), approx=True)
                p = (e * inv_l).astype(dt)                                         # [Bb, L]
                # context half of out_projection: (probs @ keys) @ W_oc == probs @ (keys @ W_oc)
                attn = jax.lax.dot_general(
                    p[:, None, :], ctx_o, (((2,), (1,)), ((0,), (0,))),
                    preferred_element_type=jnp.float32)[:, 0, :]                   # [Bb, H]
                h = jnp.tanh(attn + jnp.dot(hy_c, w_oq_c,
                                            preferred_element_type=jnp.float32))   # h_tilde
                hs.append(h)

            hN_ref[li, :, :] = h
            cN_ref[li, :, :] = c
            if li + 1 < nlayers:
                inp2d = jnp.concatenate(hs, axis=0).astype(dt)    # next layer input (t-major)
            else:
                out_ref[...] = jnp.concatenate(hs, axis=-1)       # lane-dense [Bb, T*H]

    return kernel


# ------------------------------ Wrappers ------------------------------------ #

def stacked_attentional_lstm(x, h0, c0, ctx, srcmask, layer_params, *,
                             batch_block=8, matmul_dtype=MATMUL_DTYPE):
    """Stack of AttentionalLSTM layers fused into one pallas_call.

    x       : [B, T, Din]  (batch-first, like the PyTorch module's input)
    h0, c0  : [B, H]       (same initial hidden fed to every layer)
    ctx     : [B, L, H]    attention keys/values
    srcmask : [B, L]       float, 1.0 == masked position
    Returns (output [B, T, H], (h_n [nlayers, B, H], c_n [nlayers, B, H])).
    """
    B, T, Din = x.shape
    H = h0.shape[1]
    L = ctx.shape[1]
    nlayers = len(layer_params)

    # Pad batch to a sublane-aligned block so every vreg row / MXU row is used.
    Bp = ((B + batch_block - 1) // batch_block) * batch_block
    pad = Bp - B
    if pad:
        x = jnp.pad(x, ((0, pad), (0, 0), (0, 0)))
        h0 = jnp.pad(h0, ((0, pad), (0, 0)))
        c0 = jnp.pad(c0, ((0, pad), (0, 0)))
        ctx = jnp.pad(ctx, ((0, pad), (0, 0), (0, 0)))
        srcmask = jnp.pad(srcmask, ((0, pad), (0, 0)))   # padded rows stay unmasked -> no NaNs

    x_tm = jnp.transpose(x, (1, 0, 2))   # time-major, == input.transpose(0, 1) in the module

    in_specs = [
        pl.BlockSpec((T, batch_block, Din), lambda i: (0, i, 0)),
        pl.BlockSpec((batch_block, H), lambda i: (i, 0)),
        pl.BlockSpec((batch_block, H), lambda i: (i, 0)),
        pl.BlockSpec((batch_block, L, H), lambda i: (i, 0, 0)),
        pl.BlockSpec((batch_block, L), lambda i: (i, 0)),
    ]
    weight_args = []
    for prm in layer_params:
        for w in (prm["w_ih"], prm["b_ih"], prm["w_hh"], prm["b_hh"],
                  prm["w_q"].T, prm["w_oc"], prm["w_oq"]):
            in_specs.append(pl.BlockSpec(w.shape, lambda i: (0, 0)))
            weight_args.append(w)

    out_shape = (
        jax.ShapeDtypeStruct((Bp, T * H), jnp.float32),
        jax.ShapeDtypeStruct((nlayers, Bp, H), jnp.float32),
        jax.ShapeDtypeStruct((nlayers, Bp, H), jnp.float32),
    )
    out_specs = (
        pl.BlockSpec((batch_block, T * H), lambda i: (i, 0)),
        pl.BlockSpec((nlayers, batch_block, H), lambda i: (0, i, 0)),
        pl.BlockSpec((nlayers, batch_block, H), lambda i: (0, i, 0)),
    )

    out_flat, h_n, c_n = pl.pallas_call(
        _make_stacked_kernel(nlayers, matmul_dtype),
        grid=(Bp // batch_block,),
        in_specs=in_specs,
        out_specs=out_specs,
        out_shape=out_shape,
        compiler_params=pltpu.CompilerParams(
            dimension_semantics=("parallel",)),   # megacore-shardable (v7x); plain loop on v5e
    )(x_tm, h0, c0, ctx, srcmask, *weight_args)

    out = out_flat[:B].reshape(B, T, H)
    return out, (h_n[:, :B, :], c_n[:, :B, :])


def attentional_lstm(x, hidden, ctx, srcmask, params, **kw):
    """Single AttentionalLSTM.forward (the PyTorch module): returns (output, (h, c))."""
    h0, c0 = hidden
    out, (h_n, c_n) = stacked_attentional_lstm(x, h0, c0, ctx, srcmask, [params], **kw)
    return out, (h_n[0], c_n[0])


# ----------------------------- Pure-JAX reference ---------------------------- #

def _reference_layer(x, h0, c0, ctx, mask, p):
    B, T, _ = x.shape
    H = h0.shape[1]
    h, c = h0, c0
    outs = []
    bias = p["b_ih"] + p["b_hh"]
    for t in range(T):
        gates = x[:, t, :] @ p["w_ih"] + h @ p["w_hh"] + bias
        i_g = jax.nn.sigmoid(gates[:, 0 * H:1 * H])
        f_g = jax.nn.sigmoid(gates[:, 1 * H:2 * H])
        g_g = jnp.tanh(gates[:, 2 * H:3 * H])
        o_g = jax.nn.sigmoid(gates[:, 3 * H:4 * H])
        c = f_g * c + i_g * g_g
        hy = o_g * jnp.tanh(c)
        q_proj = hy @ p["w_q"]
        scores = jnp.einsum("blh,bh->bl", ctx, q_proj)
        scores = jnp.where(mask > 0.5, -jnp.inf, scores)
        probs = jax.nn.softmax(scores, axis=-1)
        wctx = jnp.einsum("bl,blh->bh", probs, ctx)
        h = jnp.tanh(wctx @ p["w_oc"] + hy @ p["w_oq"])
        outs.append(h)
    return jnp.stack(outs, axis=1), h, c


def _reference(x, h0, c0, ctx, mask, layer_params):
    h_finals, c_finals = [], []
    inp = x
    for p in layer_params:
        out, h_f, c_f = _reference_layer(inp, h0, c0, ctx, mask, p)
        inp = out
        h_finals.append(h_f)
        c_finals.append(c_f)
    return inp, (jnp.stack(h_finals), jnp.stack(c_finals))


# --------------------------------- Main -------------------------------------- #

if __name__ == "__main__":
    B, T, L = 2, 8, 8        # batch, target seq len, source (ctx) len
    EMB, H = 16, 32          # emb_dim, tgt_hidden_dim
    NLAYERS = 2              # stacked AttentionalLSTM layers

    key = jax.random.PRNGKey(0)
    keys = jax.random.split(key, 8)

    x = jax.random.normal(keys[0], (B, T, EMB), jnp.float32)
    h0 = 0.1 * jax.random.normal(keys[1], (B, H), jnp.float32)
    c0 = 0.1 * jax.random.normal(keys[2], (B, H), jnp.float32)
    ctx = jax.random.normal(keys[3], (B, L, H), jnp.float32)
    # mask out the last 2 source positions of batch element 1
    srcmask = jnp.zeros((B, L), jnp.float32).at[1, L - 2:].set(1.0)

    # Deterministic PyTorch-style uniform(-1/sqrt(H), 1/sqrt(H)) init, weights stored
    # pre-transposed for x @ W layout.
    layer_params = []
    pk = keys[4]
    scale = 1.0 / math.sqrt(H)
    for li in range(NLAYERS):
        din = EMB if li == 0 else H
        pk, *subs = jax.random.split(pk, 8)
        layer_params.append(dict(
            w_ih=jax.random.uniform(subs[0], (din, 4 * H), jnp.float32, -scale, scale),
            b_ih=jax.random.uniform(subs[1], (1, 4 * H), jnp.float32, -scale, scale),
            w_hh=jax.random.uniform(subs[2], (H, 4 * H), jnp.float32, -scale, scale),
            b_hh=jax.random.uniform(subs[3], (1, 4 * H), jnp.float32, -scale, scale),
            w_q=jax.random.uniform(subs[4], (H, H), jnp.float32, -scale, scale),
            w_oc=jax.random.uniform(subs[5], (H, H), jnp.float32, -scale, scale),
            w_oq=jax.random.uniform(subs[6], (H, H), jnp.float32, -scale, scale),
        ))

    out, (h_final, c_final) = stacked_attentional_lstm(x, h0, c0, ctx, srcmask, layer_params)
    jax.block_until_ready((out, h_final, c_final))

    # Correctness check against the pure-f32 JAX reference (kernel uses bf16 MXU inputs).
    ref_out, (ref_h, ref_c) = _reference(x, h0, c0, ctx, srcmask, layer_params)
    assert out.shape == (B, T, H)
    assert h_final.shape == (NLAYERS, B, H) and c_final.shape == (NLAYERS, B, H)
    assert jnp.allclose(out, ref_out, atol=5e-2, rtol=5e-2)
    assert jnp.allclose(h_final, ref_h, atol=5e-2, rtol=5e-2)
    assert jnp.allclose(c_final, ref_c, atol=5e-2, rtol=5e-2)

    # Single-layer path == AttentionalLSTM.forward itself.
    out1, (h1, c1) = attentional_lstm(x, (h0, c0), ctx, srcmask, layer_params[0])
    r_out1, r_h1, r_c1 = _reference_layer(x, h0, c0, ctx, srcmask, layer_params[0])
    assert jnp.allclose(out1, r_out1, atol=5e-2, rtol=5e-2)
    assert jnp.allclose(h1, r_h1, atol=5e-2, rtol=5e-2)
    assert jnp.allclose(c1, r_c1, atol=5e-2, rtol=5e-2)

    print("KERNEL_OK")
</pallas_src>

<mosaic_0001>
module attributes {stable_mosaic.version = 11 : i64} {
  func.func @kernel(%arg0: i32, %arg1: memref<8x8x16xf32, #tpu.memory_space<vmem>>, %arg2: memref<8x32xf32, #tpu.memory_space<vmem>>, %arg3: memref<8x32xf32, #tpu.memory_space<vmem>>, %arg4: memref<8x8x32xf32, #tpu.memory_space<vmem>>, %arg5: memref<8x8xf32, #tpu.memory_space<vmem>>, %arg6: memref<16x128xf32, #tpu.memory_space<vmem>>, %arg7: memref<1x128xf32, #tpu.memory_space<vmem>>, %arg8: memref<32x128xf32, #tpu.memory_space<vmem>>, %arg9: memref<1x128xf32, #tpu.memory_space<vmem>>, %arg10: memref<32x32xf32, #tpu.memory_space<vmem>>, %arg11: memref<32x32xf32, #tpu.memory_space<vmem>>, %arg12: memref<32x32xf32, #tpu.memory_space<vmem>>, %arg13: memref<32x128xf32, #tpu.memory_space<vmem>>, %arg14: memref<1x128xf32, #tpu.memory_space<vmem>>, %arg15: memref<32x128xf32, #tpu.memory_space<vmem>>, %arg16: memref<1x128xf32, #tpu.memory_space<vmem>>, %arg17: memref<32x32xf32, #tpu.memory_space<vmem>>, %arg18: memref<32x32xf32, #tpu.memory_space<vmem>>, %arg19: memref<32x32xf32, #tpu.memory_space<vmem>>, %arg20: memref<8x256xf32, #tpu.memory_space<vmem>>, %arg21: memref<2x8x32xf32, #tpu.memory_space<vmem>>, %arg22: memref<2x8x32xf32, #tpu.memory_space<vmem>>) attributes {dimension_semantics = [#tpu.dimension_semantics<parallel>], iteration_bounds = array<i64: 1>, scalar_prefetch = 0 : i64, scratch_operands = 0 : i64, tpu.core_type = #tpu.core_type<tc>, window_params = [{transform_indices = @transform_0, window_bounds = array<i64: 8, 8, 16>}, {transform_indices = @transform_1, window_bounds = array<i64: 8, 32>}, {transform_indices = @transform_2, window_bounds = array<i64: 8, 32>}, {transform_indices = @transform_3, window_bounds = array<i64: 8, 8, 32>}, {transform_indices = @transform_4, window_bounds = array<i64: 8, 8>}, {pipeline_mode = #tpu.pipeline_mode<synchronous>, transform_indices = @transform_5, window_bounds = array<i64: 16, 128>}, {pipeline_mode = #tpu.pipeline_mode<synchronous>, transform_indices = @transform_6, window_bounds = array<i64: 1, 128>}, {pipeline_mode = #tpu.pipeline_mode<synchronous>, transform_indices = @transform_7, window_bounds = array<i64: 32, 128>}, {pipeline_mode = #tpu.pipeline_mode<synchronous>, transform_indices = @transform_8, window_bounds = array<i64: 1, 128>}, {pipeline_mode = #tpu.pipeline_mode<synchronous>, transform_indices = @transform_9, window_bounds = array<i64: 32, 32>}, {pipeline_mode = #tpu.pipeline_mode<synchronous>, transform_indices = @transform_10, window_bounds = array<i64: 32, 32>}, {pipeline_mode = #tpu.pipeline_mode<synchronous>, transform_indices = @transform_11, window_bounds = array<i64: 32, 32>}, {pipeline_mode = #tpu.pipeline_mode<synchronous>, transform_indices = @transform_12, window_bounds = array<i64: 32, 128>}, {pipeline_mode = #tpu.pipeline_mode<synchronous>, transform_indices = @transform_13, window_bounds = array<i64: 1, 128>}, {pipeline_mode = #tpu.pipeline_mode<synchronous>, transform_indices = @transform_14, window_bounds = array<i64: 32, 128>}, {pipeline_mode = #tpu.pipeline_mode<synchronous>, transform_indices = @transform_15, window_bounds = array<i64: 1, 128>}, {pipeline_mode = #tpu.pipeline_mode<synchronous>, transform_indices = @transform_16, window_bounds = array<i64: 32, 32>}, {pipeline_mode = #tpu.pipeline_mode<synchronous>, transform_indices = @transform_17, window_bounds = array<i64: 32, 32>}, {pipeline_mode = #tpu.pipeline_mode<synchronous>, transform_indices = @transform_18, window_bounds = array<i64: 32, 32>}, {transform_indices = @transform_19, window_bounds = array<i64: 8, 256>}, {transform_indices = @transform_20, window_bounds = array<i64: 2, 8, 32>}, {transform_indices = @transform_21, window_bounds = array<i64: 2, 8, 32>}]} {
    %c0 = arith.constant 0 : index
    %c0_0 = arith.constant 0 : index
    %c0_1 = arith.constant 0 : index
    %0 = vector.load %arg4[%c0, %c0_0, %c0_1] : memref<8x8x32xf32, #tpu.memory_space<vmem>>, vector<8x8x32xf32>
    %1 = vector.shape_cast %0 : vector<8x8x32xf32> to vector<64x32xf32>
    %2 = arith.truncf %1 : vector<64x32xf32> to vector<64x32xbf16>
    %c0_2 = arith.constant 0 : index
    %c0_3 = arith.constant 0 : index
    %3 = vector.load %arg5[%c0_2, %c0_3] : memref<8x8xf32, #tpu.memory_space<vmem>>, vector<8x8xf32>
    %cst = arith.constant 5.000000e-01 : f32
    %4 = vector.broadcast %cst : f32 to vector<8x8xf32>
    %5 = arith.cmpf ogt, %3, %4 : vector<8x8xf32>
    %c0_4 = arith.constant 0 : index
    %c0_5 = arith.constant 0 : index
    %6 = vector.load %arg2[%c0_4, %c0_5] : memref<8x32xf32, #tpu.memory_space<vmem>>, vector<8x32xf32>
    %c0_6 = arith.constant 0 : index
    %c0_7 = arith.constant 0 : index
    %7 = vector.load %arg3[%c0_6, %c0_7] : memref<8x32xf32, #tpu.memory_space<vmem>>, vector<8x32xf32>
    %c0_8 = arith.constant 0 : index
    %c0_9 = arith.constant 0 : index
    %c0_10 = arith.constant 0 : index
    %8 = vector.load %arg1[%c0_8, %c0_9, %c0_10] : memref<8x8x16xf32, #tpu.memory_space<vmem>>, vector<8x8x16xf32>
    %9 = vector.shape_cast %8 : vector<8x8x16xf32> to vector<64x16xf32>
    %10 = arith.truncf %9 : vector<64x16xf32> to vector<64x16xbf16>
    %c0_11 = arith.constant 0 : index
    %c0_12 = arith.constant 0 : index
    %11 = vector.load %arg6[%c0_11, %c0_12] : memref<16x128xf32, #tpu.memory_space<vmem>>, vector<16x128xf32>
    %c0_13 = arith.constant 0 : index
    %c0_14 = arith.constant 0 : index
    %12 = vector.load %arg7[%c0_13, %c0_14] : memref<1x128xf32, #tpu.memory_space<vmem>>, vector<1x128xf32>
    %c0_15 = arith.constant 0 : index
    %c0_16 = arith.constant 0 : index
    %13 = vector.load %arg8[%c0_15, %c0_16] : memref<32x128xf32, #tpu.memory_space<vmem>>, vector<32x128xf32>
    %c0_17 = arith.constant 0 : index
    %c0_18 = arith.constant 0 : index
    %14 = vector.load %arg9[%c0_17, %c0_18] : memref<1x128xf32, #tpu.memory_space<vmem>>, vector<1x128xf32>
    %c0_19 = arith.constant 0 : index
    %c0_20 = arith.constant 0 : index
    %15 = vector.load %arg10[%c0_19, %c0_20] : memref<32x32xf32, #tpu.memory_space<vmem>>, vector<32x32xf32>
    %c0_21 = arith.constant 0 : index
    %c0_22 = arith.constant 0 : index
    %16 = vector.load %arg11[%c0_21, %c0_22] : memref<32x32xf32, #tpu.memory_space<vmem>>, vector<32x32xf32>
    %c0_23 = arith.constant 0 : index
    %c0_24 = arith.constant 0 : index
    %17 = vector.load %arg12[%c0_23, %c0_24] : memref<32x32xf32, #tpu.memory_space<vmem>>, vector<32x32xf32>
    %18 = arith.addf %12, %14 : vector<1x128xf32>
    %19 = arith.truncf %11 : vector<16x128xf32> to vector<16x128xbf16>
    %cst_25 = arith.constant dense<0.000000e+00> : vector<64x128xf32>
    %20 = tpu.matmul %10, %19, %cst_25 {dimension_numbers = #tpu.dot_dimension_numbers<[1], [0], [0], [1], [0, 0, 1, 1], [], []>} : vector<64x16xbf16>, vector<16x128xbf16>, vector<64x128xf32> -> vector<64x128xf32>
    %21 = vector.broadcast %18 : vector<1x128xf32> to vector<64x128xf32>
    %22 = arith.addf %20, %21 : vector<64x128xf32>
    %23 = arith.truncf %15 : vector<32x32xf32> to vector<32x32xbf16>
    %cst_26 = arith.constant dense<0.000000e+00> : vector<64x32xf32>
    %24 = tpu.matmul %2, %23, %cst_26 {dimension_numbers = #tpu.dot_dimension_numbers<[1], [0], [0], [1], [0, 0, 1, 1], [], []>} : vector<64x32xbf16>, vector<32x32xbf16>, vector<64x32xf32> -> vector<64x32xf32>
    %25 = vector.shape_cast %24 : vector<64x32xf32> to vector<8x8x32xf32>
    %26 = arith.truncf %25 : vector<8x8x32xf32> to vector<8x8x32xbf16>
    %27 = arith.truncf %16 : vector<32x32xf32> to vector<32x32xbf16>
    %cst_27 = arith.constant dense<0.000000e+00> : vector<64x32xf32>
    %28 = tpu.matmul %2, %27, %cst_27 {dimension_numbers = #tpu.dot_dimension_numbers<[1], [0], [0], [1], [0, 0, 1, 1], [], []>} : vector<64x32xbf16>, vector<32x32xbf16>, vector<64x32xf32> -> vector<64x32xf32>
    %29 = vector.shape_cast %28 : vector<64x32xf32> to vector<8x8x32xf32>
    %30 = arith.truncf %29 : vector<8x8x32xf32> to vector<8x8x32xbf16>
    %31 = arith.truncf %13 : vector<32x128xf32> to vector<32x128xbf16>
    %32 = arith.truncf %17 : vector<32x32xf32> to vector<32x32xbf16>
    %33 = vector.extract_strided_slice %22 {offsets = [0, 0], sizes = [8, 128], strides = [1, 1]} : vector<64x128xf32> to vector<8x128xf32>
    %34 = arith.truncf %6 : vector<8x32xf32> to vector<8x32xbf16>
    %cst_28 = arith.constant dense<0.000000e+00> : vector<8x128xf32>
    %35 = tpu.matmul %34, %31, %cst_28 {dimension_numbers = #tpu.dot_dimension_numbers<[1], [0], [0], [1], [0, 0, 1, 1], [], []>} : vector<8x32xbf16>, vector<32x128xbf16>, vector<8x128xf32> -> vector<8x128xf32>
    %36 = arith.addf %33, %35 : vector<8x128xf32>
    %37 = vector.extract_strided_slice %36 {offsets = [0, 0], sizes = [8, 32], strides = [1, 1]} : vector<8x128xf32> to vector<8x32xf32>
    %38 = arith.negf %37 : vector<8x32xf32>
    %39 = math.exp %38 : vector<8x32xf32>
    %cst_29 = arith.constant 1.000000e+00 : f32
    %40 = vector.broadcast %cst_29 : f32 to vector<8x32xf32>
    %41 = arith.addf %40, %39 : vector<8x32xf32>
    %42 = arith.divf %40, %41 : vector<8x32xf32>
    %43 = vector.extract_strided_slice %36 {offsets = [0, 32], sizes = [8, 32], strides = [1, 1]} : vector<8x128xf32> to vector<8x32xf32>
    %44 = arith.negf %43 : vector<8x32xf32>
    %45 = math.exp %44 : vector<8x32xf32>
    %cst_30 = arith.constant 1.000000e+00 : f32
    %46 = vector.broadcast %cst_30 : f32 to vector<8x32xf32>
    %47 = arith.addf %46, %45 : vector<8x32xf32>
    %48 = arith.divf %46, %47 : vector<8x32xf32>
    %49 = vector.extract_strided_slice %36 {offsets = [0, 64], sizes = [8, 32], strides = [1, 1]} : vector<8x128xf32> to vector<8x32xf32>
    %50 = math.tanh %49 : vector<8x32xf32>
    %51 = vector.extract_strided_slice %36 {offsets = [0, 96], sizes = [8, 32], strides = [1, 1]} : vector<8x128xf32> to vector<8x32xf32>
    %52 = arith.negf %51 : vector<8x32xf32>
    %53 = math.exp %52 : vector<8x32xf32>
    %cst_31 = arith.constant 1.000000e+00 : f32
    %54 = vector.broadcast %cst_31 : f32 to vector<8x32xf32>
    %55 = arith.addf %54, %53 : vector<8x32xf32>
    %56 = arith.divf %54, %55 : vector<8x32xf32>
    %57 = arith.mulf %48, %7 : vector<8x32xf32>
    %58 = arith.mulf %42, %50 : vector<8x32xf32>
    %59 = arith.addf %57, %58 : vector<8x32xf32>
    %60 = math.tanh %59 : vector<8x32xf32>
    %61 = arith.mulf %56, %60 : vector<8x32xf32>
    %62 = arith.truncf %61 : vector<8x32xf32> to vector<8x32xbf16>
    %63 = vector.shape_cast %62 : vector<8x32xbf16> to vector<8x1x32xbf16>
    %cst_32 = arith.constant dense<0.000000e+00> : vector<8x1x8xf32>
    %64 = tpu.matmul %63, %26, %cst_32 {dimension_numbers = #tpu.dot_dimension_numbers<[2], [2], [1], [1], [0, 0, 0, 1, 1, 1], [0], [0]>} : vector<8x1x32xbf16>, vector<8x8x32xbf16>, vector<8x1x8xf32> -> vector<8x1x8xf32>
    %65 = vector.shape_cast %64 : vector<8x1x8xf32> to vector<8x8xf32>
    %cst_33 = arith.constant 0xFF800000 : f32
    %66 = vector.broadcast %cst_33 : f32 to vector<8x8xf32>
    %67 = arith.select %5, %66, %65 : vector<8x8xi1>, vector<8x8xf32>
    %cst_34 = arith.constant dense<0xFF800000> : vector<8xf32>
    %68 = vector.multi_reduction <maximumf>, %67, %cst_34 [1] : vector<8x8xf32> to vector<8xf32>
    %69 = vector.shape_cast %68 : vector<8xf32> to vector<8x1xf32>
    %70 = vector.broadcast %69 : vector<8x1xf32> to vector<8x8xf32>
    %71 = arith.subf %67, %70 : vector<8x8xf32>
    %72 = math.exp %71 : vector<8x8xf32>
    %cst_35 = arith.constant dense<0.000000e+00> : vector<8xf32>
    %73 = vector.multi_reduction <add>, %72, %cst_35 [1] : vector<8x8xf32> to vector<8xf32>
    %74 = vector.shape_cast %73 : vector<8xf32> to vector<8x1xf32>
    %75 = tpu.reciprocal %74 {approx = true} : vector<8x1xf32> -> vector<8x1xf32>
    %76 = vector.broadcast %75 : vector<8x1xf32> to vector<8x8xf32>
    %77 = arith.mulf %72, %76 : vector<8x8xf32>
    %78 = arith.truncf %77 : vector<8x8xf32> to vector<8x8xbf16>
    %79 = vector.shape_cast %78 : vector<8x8xbf16> to vector<8x1x8xbf16>
    %cst_36 = arith.constant dense<0.000000e+00> : vector<8x1x32xf32>
    %80 = tpu.matmul %79, %30, %cst_36 {dimension_numbers = #tpu.dot_dimension_numbers<[2], [1], [1], [2], [0, 0, 0, 1, 1, 2], [0], [0]>} : vector<8x1x8xbf16>, vector<8x8x32xbf16>, vector<8x1x32xf32> -> vector<8x1x32xf32>
    %81 = vector.shape_cast %80 : vector<8x1x32xf32> to vector<8x32xf32>
    %cst_37 = arith.constant dense<0.000000e+00> : vector<8x32xf32>
    %82 = tpu.matmul %62, %32, %cst_37 {dimension_numbers = #tpu.dot_dimension_numbers<[1], [0], [0], [1], [0, 0, 1, 1], [], []>} : vector<8x32xbf16>, vector<32x32xbf16>, vector<8x32xf32> -> vector<8x32xf32>
    %83 = arith.addf %81, %82 : vector<8x32xf32>
    %84 = math.tanh %83 : vector<8x32xf32>
    %85 = vector.extract_strided_slice %22 {offsets = [8, 0], sizes = [8, 128], strides = [1, 1]} : vector<64x128xf32> to vector<8x128xf32>
    %86 = arith.truncf %84 : vector<8x32xf32> to vector<8x32xbf16>
    %cst_38 = arith.constant dense<0.000000e+00> : vector<8x128xf32>
    %87 = tpu.matmul %86, %31, %cst_38 {dimension_numbers = #tpu.dot_dimension_numbers<[1], [0], [0], [1], [0, 0, 1, 1], [], []>} : vector<8x32xbf16>, vector<32x128xbf16>, vector<8x128xf32> -> vector<8x128xf32>
    %88 = arith.addf %85, %87 : vector<8x128xf32>
    %89 = vector.extract_strided_slice %88 {offsets = [0, 0], sizes = [8, 32], strides = [1, 1]} : vector<8x128xf32> to vector<8x32xf32>
    %90 = arith.negf %89 : vector<8x32xf32>
    %91 = math.exp %90 : vector<8x32xf32>
    %cst_39 = arith.constant 1.000000e+00 : f32
    %92 = vector.broadcast %cst_39 : f32 to vector<8x32xf32>
    %93 = arith.addf %92, %91 : vector<8x32xf32>
    %94 = arith.divf %92, %93 : vector<8x32xf32>
    %95 = vector.extract_strided_slice %88 {offsets = [0, 32], sizes = [8, 32], strides = [1, 1]} : vector<8x128xf32> to vector<8x32xf32>
    %96 = arith.negf %95 : vector<8x32xf32>
    %97 = math.exp %96 : vector<8x32xf32>
    %cst_40 = arith.constant 1.000000e+00 : f32
    %98 = vector.broadcast %cst_40 : f32 to vector<8x32xf32>
    %99 = arith.addf %98, %97 : vector<8x32xf32>
    %100 = arith.divf %98, %99 : vector<8x32xf32>
    %101 = vector.extract_strided_slice %88 {offsets = [0, 64], sizes = [8, 32], strides = [1, 1]} : vector<8x128xf32> to vector<8x32xf32>
    %102 = math.tanh %101 : vector<8x32xf32>
    %103 = vector.extract_strided_slice %88 {offsets = [0, 96], sizes = [8, 32], strides = [1, 1]} : vector<8x128xf32> to vector<8x32xf32>
    %104 = arith.negf %103 : vector<8x32xf32>
    %105 = math.exp %104 : vector<8x32xf32>
    %cst_41 = arith.constant 1.000000e+00 : f32
    %106 = vector.broadcast %cst_41 : f32 to vector<8x32xf32>
    %107 = arith.addf %106, %105 : vector<8x32xf32>
    %108 = arith.divf %106, %107 : vector<8x32xf32>
    %109 = arith.mulf %100, %59 : vector<8x32xf32>
    %110 = arith.mulf %94, %102 : vector<8x32xf32>
    %111 = arith.addf %109, %110 : vector<8x32xf32>
    %112 = math.tanh %111 : vector<8x32xf32>
    %113 = arith.mulf %108, %112 : vector<8x32xf32>
    %114 = arith.truncf %113 : vector<8x32xf32> to vector<8x32xbf16>
    %115 = vector.shape_cast %114 : vector<8x32xbf16> to vector<8x1x32xbf16>
    %cst_42 = arith.constant dense<0.000000e+00> : vector<8x1x8xf32>
    %116 = tpu.matmul %115, %26, %cst_42 {dimension_numbers = #tpu.dot_dimension_numbers<[2], [2], [1], [1], [0, 0, 0, 1, 1, 1], [0], [0]>} : vector<8x1x32xbf16>, vector<8x8x32xbf16>, vector<8x1x8xf32> -> vector<8x1x8xf32>
    %117 = vector.shape_cast %116 : vector<8x1x8xf32> to vector<8x8xf32>
    %cst_43 = arith.constant 0xFF800000 : f32
    %118 = vector.broadcast %cst_43 : f32 to vector<8x8xf32>
    %119 = arith.select %5, %118, %117 : vector<8x8xi1>, vector<8x8xf32>
    %cst_44 = arith.constant dense<0xFF800000> : vector<8xf32>
    %120 = vector.multi_reduction <maximumf>, %119, %cst_44 [1] : vector<8x8xf32> to vector<8xf32>
    %121 = vector.shape_cast %120 : vector<8xf32> to vector<8x1xf32>
    %122 = vector.broadcast %121 : vector<8x1xf32> to vector<8x8xf32>
    %123 = arith.subf %119, %122 : vector<8x8xf32>
    %124 = math.exp %123 : vector<8x8xf32>
    %cst_45 = arith.constant dense<0.000000e+00> : vector<8xf32>
    %125 = vector.multi_reduction <add>, %124, %cst_45 [1] : vector<8x8xf32> to vector<8xf32>
    %126 = vector.shape_cast %125 : vector<8xf32> to vector<8x1xf32>
    %127 = tpu.reciprocal %126 {approx = true} : vector<8x1xf32> -> vector<8x1xf32>
    %128 = vector.broadcast %127 : vector<8x1xf32> to vector<8x8xf32>
    %129 = arith.mulf %124, %128 : vector<8x8xf32>
    %130 = arith.truncf %129 : vector<8x8xf32> to vector<8x8xbf16>
    %131 = vector.shape_cast %130 : vector<8x8xbf16> to vector<8x1x8xbf16>
    %cst_46 = arith.constant dense<0.000000e+00> : vector<8x1x32xf32>
    %132 = tpu.matmul %131, %30, %cst_46 {dimension_numbers = #tpu.dot_dimension_numbers<[2], [1], [1], [2], [0, 0, 0, 1, 1, 2], [0], [0]>} : vector<8x1x8xbf16>, vector<8x8x32xbf16>, vector<8x1x32xf32> -> vector<8x1x32xf32>
    %133 = vector.shape_cast %132 : vector<8x1x32xf32> to vector<8x32xf32>
    %cst_47 = arith.constant dense<0.000000e+00> : vector<8x32xf32>
    %134 = tpu.matmul %114, %32, %cst_47 {dimension_numbers = #tpu.dot_dimension_numbers<[1], [0], [0], [1], [0, 0, 1, 1], [], []>} : vector<8x32xbf16>, vector<32x32xbf16>, vector<8x32xf32> -> vector<8x32xf32>
    %135 = arith.addf %133, %134 : vector<8x32xf32>
    %136 = math.tanh %135 : vector<8x32xf32>
    %137 = vector.extract_strided_slice %22 {offsets = [16, 0], sizes = [8, 128], strides = [1, 1]} : vector<64x128xf32> to vector<8x128xf32>
    %138 = arith.truncf %136 : vector<8x32xf32> to vector<8x32xbf16>
    %cst_48 = arith.constant dense<0.000000e+00> : vector<8x128xf32>
    %139 = tpu.matmul %138, %31, %cst_48 {dimension_numbers = #tpu.dot_dimension_numbers<[1], [0], [0], [1], [0, 0, 1, 1], [], []>} : vector<8x32xbf16>, vector<32x128xbf16>, vector<8x128xf32> -> vector<8x128xf32>
    %140 = arith.addf %137, %139 : vector<8x128xf32>
    %141 = vector.extract_strided_slice %140 {offsets = [0, 0], sizes = [8, 32], strides = [1, 1]} : vector<8x128xf32> to vector<8x32xf32>
    %142 = arith.negf %141 : vector<8x32xf32>
    %143 = math.exp %142 : vector<8x32xf32>
    %cst_49 = arith.constant 1.000000e+00 : f32
    %144 = vector.broadcast %cst_49 : f32 to vector<8x32xf32>
    %145 = arith.addf %144, %143 : vector<8x32xf32>
    %146 = arith.divf %144, %145 : vector<8x32xf32>
    %147 = vector.extract_strided_slice %140 {offsets = [0, 32], sizes = [8, 32], strides = [1, 1]} : vector<8x128xf32> to vector<8x32xf32>
    %148 = arith.negf %147 : vector<8x32xf32>
    %149 = math.exp %148 : vector<8x32xf32>
    %cst_50 = arith.constant 1.000000e+00 : f32
    %150 = vector.broadcast %cst_50 : f32 to vector<8x32xf32>
    %151 = arith.addf %150, %149 : vector<8x32xf32>
    %152 = arith.divf %150, %151 : vector<8x32xf32>
    %153 = vector.extract_strided_slice %140 {offsets = [0, 64], sizes = [8, 32], strides = [1, 1]} : vector<8x128xf32> to vector<8x32xf32>
    %154 = math.tanh %153 : vector<8x32xf32>
    %155 = vector.extract_strided_slice %140 {offsets = [0, 96], sizes = [8, 32], strides = [1, 1]} : vector<8x128xf32> to vector<8x32xf32>
    %156 = arith.negf %155 : vector<8x32xf32>
    %157 = math.exp %156 : vector<8x32xf32>
    %cst_51 = arith.constant 1.000000e+00 : f32
    %158 = vector.broadcast %cst_51 : f32 to vector<8x32xf32>
    %159 = arith.addf %158, %157 : vector<8x32xf32>
    %160 = arith.divf %158, %159 : vector<8x32xf32>
    %161 = arith.mulf %152, %111 : vector<8x32xf32>
    %162 = arith.mulf %146, %154 : vector<8x32xf32>
    %163 = arith.addf %161, %162 : vector<8x32xf32>
    %164 = math.tanh %163 : vector<8x32xf32>
    %165 = arith.mulf %160, %164 : vector<8x32xf32>
    %166 = arith.truncf %165 : vector<8x32xf32> to vector<8x32xbf16>
    %167 = vector.shape_cast %166 : vector<8x32xbf16> to vector<8x1x32xbf16>
    %cst_52 = arith.constant dense<0.000000e+00> : vector<8x1x8xf32>
    %168 = tpu.matmul %167, %26, %cst_52 {dimension_numbers = #tpu.dot_dimension_numbers<[2], [2], [1], [1], [0, 0, 0, 1, 1, 1], [0], [0]>} : vector<8x1x32xbf16>, vector<8x8x32xbf16>, vector<8x1x8xf32> -> vector<8x1x8xf32>
    %169 = vector.shape_cast %168 : vector<8x1x8xf32> to vector<8x8xf32>
    %cst_53 = arith.constant 0xFF800000 : f32
    %170 = vector.broadcast %cst_53 : f32 to vector<8x8xf32>
    %171 = arith.select %5, %170, %169 : vector<8x8xi1>, vector<8x8xf32>
    %cst_54 = arith.constant dense<0xFF800000> : vector<8xf32>
    %172 = vector.multi_reduction <maximumf>, %171, %cst_54 [1] : vector<8x8xf32> to vector<8xf32>
    %173 = vector.shape_cast %172 : vector<8xf32> to vector<8x1xf32>
    %174 = vector.broadcast %173 : vector<8x1xf32> to vector<8x8xf32>
    %175 = arith.subf %171, %174 : vector<8x8xf32>
    %176 = math.exp %175 : vector<8x8xf32>
    %cst_55 = arith.constant dense<0.000000e+00> : vector<8xf32>
    %177 = vector.multi_reduction <add>, %176, %cst_55 [1] : vector<8x8xf32> to vector<8xf32>
    %178 = vector.shape_cast %177 : vector<8xf32> to vector<8x1xf32>
    %179 = tpu.reciprocal %178 {approx = true} : vector<8x1xf32> -> vector<8x1xf32>
    %180 = vector.broadcast %179 : vector<8x1xf32> to vector<8x8xf32>
    %181 = arith.mulf %176, %180 : vector<8x8xf32>
    %182 = arith.truncf %181 : vector<8x8xf32> to vector<8x8xbf16>
    %183 = vector.shape_cast %182 : vector<8x8xbf16> to vector<8x1x8xbf16>
    %cst_56 = arith.constant dense<0.000000e+00> : vector<8x1x32xf32>
    %184 = tpu.matmul %183, %30, %cst_56 {dimension_numbers = #tpu.dot_dimension_numbers<[2], [1], [1], [2], [0, 0, 0, 1, 1, 2], [0], [0]>} : vector<8x1x8xbf16>, vector<8x8x32xbf16>, vector<8x1x32xf32> -> vector<8x1x32xf32>
    %185 = vector.shape_cast %184 : vector<8x1x32xf32> to vector<8x32xf32>
    %cst_57 = arith.constant dense<0.000000e+00> : vector<8x32xf32>
    %186 = tpu.matmul %166, %32, %cst_57 {dimension_numbers = #tpu.dot_dimension_numbers<[1], [0], [0], [1], [0, 0, 1, 1], [], []>} : vector<8x32xbf16>, vector<32x32xbf16>, vector<8x32xf32> -> vector<8x32xf32>
    %187 = arith.addf %185, %186 : vector<8x32xf32>
    %188 = math.tanh %187 : vector<8x32xf32>
    %189 = vector.extract_strided_slice %22 {offsets = [24, 0], sizes = [8, 128], strides = [1, 1]} : vector<64x128xf32> to vector<8x128xf32>
    %190 = arith.truncf %188 : vector<8x32xf32> to vector<8x32xbf16>
    %cst_58 = arith.constant dense<0.000000e+00> : vector<8x128xf32>
    %191 = tpu.matmul %190, %31, %cst_58 {dimension_numbers = #tpu.dot_dimension_numbers<[1], [0], [0], [1], [0, 0, 1, 1], [], []>} : vector<8x32xbf16>, vector<32x128xbf16>, vector<8x128xf32> -> vector<8x128xf32>
    %192 = arith.addf %189, %191 : vector<8x128xf32>
    %193 = vector.extract_strided_slice %192 {offsets = [0, 0], sizes = [8, 32], strides = [1, 1]} : vector<8x128xf32> to vector<8x32xf32>
    %194 = arith.negf %193 : vector<8x32xf32>
    %195 = math.exp %194 : vector<8x32xf32>
    %cst_59 = arith.constant 1.000000e+00 : f32
    %196 = vector.broadcast %cst_59 : f32 to vector<8x32xf32>
    %197 = arith.addf %196, %195 : vector<8x32xf32>
    %198 = arith.divf %196, %197 : vector<8x32xf32>
    %199 = vector.extract_strided_slice %192 {offsets = [0, 32], sizes = [8, 32], strides = [1, 1]} : vector<8x128xf32> to vector<8x32xf32>
    %200 = arith.negf %199 : vector<8x32xf32>
    %201 = math.exp %200 : vector<8x32xf32>
    %cst_60 = arith.constant 1.000000e+00 : f32
    %202 = vector.broadcast %cst_60 : f32 to vector<8x32xf32>
    %203 = arith.addf %202, %201 : vector<8x32xf32>
    %204 = arith.divf %202, %203 : vector<8x32xf32>
    %205 = vector.extract_strided_slice %192 {offsets = [0, 64], sizes = [8, 32], strides = [1, 1]} : vector<8x128xf32> to vector<8x32xf32>
    %206 = math.tanh %205 : vector<8x32xf32>
    %207 = vector.extract_strided_slice %192 {offsets = [0, 96], sizes = [8, 32], strides = [1, 1]} : vector<8x128xf32> to vector<8x32xf32>
    %208 = arith.negf %207 : vector<8x32xf32>
    %209 = math.exp %208 : vector<8x32xf32>
    %cst_61 = arith.constant 1.000000e+00 : f32
    %210 = vector.broadcast %cst_61 : f32 to vector<8x32xf32>
    %211 = arith.addf %210, %209 : vector<8x32xf32>
    %212 = arith.divf %210, %211 : vector<8x32xf32>
    %213 = arith.mulf %204, %163 : vector<8x32xf32>
    %214 = arith.mulf %198, %206 : vector<8x32xf32>
    %215 = arith.addf %213, %214 : vector<8x32xf32>
    %216 = math.tanh %215 : vector<8x32xf32>
    %217 = arith.mulf %212, %216 : vector<8x32xf32>
    %218 = arith.truncf %217 : vector<8x32xf32> to vector<8x32xbf16>
    %219 = vector.shape_cast %218 : vector<8x32xbf16> to vector<8x1x32xbf16>
    %cst_62 = arith.constant dense<0.000000e+00> : vector<8x1x8xf32>
    %220 = tpu.matmul %219, %26, %cst_62 {dimension_numbers = #tpu.dot_dimension_numbers<[2], [2], [1], [1], [0, 0, 0, 1, 1, 1], [0], [0]>} : vector<8x1x32xbf16>, vector<8x8x32xbf16>, vector<8x1x8xf32> -> vector<8x1x8xf32>
    %221 = vector.shape_cast %220 : vector<8x1x8xf32> to vector<8x8xf32>
    %cst_63 = arith.constant 0xFF800000 : f32
    %222 = vector.broadcast %cst_63 : f32 to vector<8x8xf32>
    %223 = arith.select %5, %222, %221 : vector<8x8xi1>, vector<8x8xf32>
    %cst_64 = arith.constant dense<0xFF800000> : vector<8xf32>
    %224 = vector.multi_reduction <maximumf>, %223, %cst_64 [1] : vector<8x8xf32> to vector<8xf32>
    %225 = vector.shape_cast %224 : vector<8xf32> to vector<8x1xf32>
    %226 = vector.broadcast %225 : vector<8x1xf32> to vector<8x8xf32>
    %227 = arith.subf %223, %226 : vector<8x8xf32>
    %228 = math.exp %227 : vector<8x8xf32>
    %cst_65 = arith.constant dense<0.000000e+00> : vector<8xf32>
    %229 = vector.multi_reduction <add>, %228, %cst_65 [1] : vector<8x8xf32> to vector<8xf32>
    %230 = vector.shape_cast %229 : vector<8xf32> to vector<8x1xf32>
    %231 = tpu.reciprocal %230 {approx = true} : vector<8x1xf32> -> vector<8x1xf32>
    %232 = vector.broadcast %231 : vector<8x1xf32> to vector<8x8xf32>
    %233 = arith.mulf %228, %232 : vector<8x8xf32>
    %234 = arith.truncf %233 : vector<8x8xf32> to vector<8x8xbf16>
    %235 = vector.shape_cast %234 : vector<8x8xbf16> to vector<8x1x8xbf16>
    %cst_66 = arith.constant dense<0.000000e+00> : vector<8x1x32xf32>
    %236 = tpu.matmul %235, %30, %cst_66 {dimension_numbers = #tpu.dot_dimension_numbers<[2], [1], [1], [2], [0, 0, 0, 1, 1, 2], [0], [0]>} : vector<8x1x8xbf16>, vector<8x8x32xbf16>, vector<8x1x32xf32> -> vector<8x1x32xf32>
    %237 = vector.shape_cast %236 : vector<8x1x32xf32> to vector<8x32xf32>
    %cst_67 = arith.constant dense<0.000000e+00> : vector<8x32xf32>
    %238 = tpu.matmul %218, %32, %cst_67 {dimension_numbers = #tpu.dot_dimension_numbers<[1], [0], [0], [1], [0, 0, 1, 1], [], []>} : vector<8x32xbf16>, vector<32x32xbf16>, vector<8x32xf32> -> vector<8x32xf32>
    %239 = arith.addf %237, %238 : vector<8x32xf32>
    %240 = math.tanh %239 : vector<8x32xf32>
    %241 = vector.extract_strided_slice %22 {offsets = [32, 0], sizes = [8, 128], strides = [1, 1]} : vector<64x128xf32> to vector<8x128xf32>
    %242 = arith.truncf %240 : vector<8x32xf32> to vector<8x32xbf16>
    %cst_68 = arith.constant dense<0.000000e+00> : vector<8x128xf32>
    %243 = tpu.matmul %242, %31, %cst_68 {dimension_numbers = #tpu.dot_dimension_numbers<[1], [0], [0], [1], [0, 0, 1, 1], [], []>} : vector<8x32xbf16>, vector<32x128xbf16>, vector<8x128xf32> -> vector<8x128xf32>
    %244 = arith.addf %241, %243 : vector<8x128xf32>
    %245 = vector.extract_strided_slice %244 {offsets = [0, 0], sizes = [8, 32], strides = [1, 1]} : vector<8x128xf32> to vector<8x32xf32>
    %246 = arith.negf %245 : vector<8x32xf32>
    %247 = math.exp %246 : vector<8x32xf32>
    %cst_69 = arith.constant 1.000000e+00 : f32
    %248 = vector.broadcast %cst_69 : f32 to vector<8x32xf32>
    %249 = arith.addf %248, %247 : vector<8x32xf32>
    %250 = arith.divf %248, %249 : vector<8x32xf32>
    %251 = vector.extract_strided_slice %244 {offsets = [0, 32], sizes = [8, 32], strides = [1, 1]} : vector<8x128xf32> to vector<8x32xf32>
    %252 = arith.negf %251 : vector<8x32xf32>
    %253 = math.exp %252 : vector<8x32xf32>
    %cst_70 = arith.constant 1.000000e+00 : f32
    %254 = vector.broadcast %cst_70 : f32 to vector<8x32xf32>
    %255 = arith.addf %254, %253 : vector<8x32xf32>
    %256 = arith.divf %254, %255 : vector<8x32xf32>
    %257 = vector.extract_strided_slice %244 {offsets = [0, 64], sizes = [8, 32], strides = [1, 1]} : vector<8x128xf32> to vector<8x32xf32>
    %258 = math.tanh %257 : vector<8x32xf32>
    %259 = vector.extract_strided_slice %244 {offsets = [0, 96], sizes = [8, 32], strides = [1, 1]} : vector<8x128xf32> to vector<8x32xf32>
    %260 = arith.negf %259 : vector<8x32xf32>
    %261 = math.exp %260 : vector<8x32xf32>
    %cst_71 = arith.constant 1.000000e+00 : f32
    %262 = vector.broadcast %cst_71 : f32 to vector<8x32xf32>
    %263 = arith.addf %262, %261 : vector<8x32xf32>
    %264 = arith.divf %262, %263 : vector<8x32xf32>
    %265 = arith.mulf %256, %215 : vector<8x32xf32>
    %266 = arith.mulf %250, %258 : vector<8x32xf32>
    %267 = arith.addf %265, %266 : vector<8x32xf32>
    %268 = math.tanh %267 : vector<8x32xf32>
    %269 = arith.mulf %264, %268 : vector<8x32xf32>
    %270 = arith.truncf %269 : vector<8x32xf32> to vector<8x32xbf16>
    %271 = vector.shape_cast %270 : vector<8x32xbf16> to vector<8x1x32xbf16>
    %cst_72 = arith.constant dense<0.000000e+00> : vector<8x1x8xf32>
    %272 = tpu.matmul %271, %26, %cst_72 {dimension_numbers = #tpu.dot_dimension_numbers<[2], [2], [1], [1], [0, 0, 0, 1, 1, 1], [0], [0]>} : vector<8x1x32xbf16>, vector<8x8x32xbf16>, vector<8x1x8xf32> -> vector<8x1x8xf32>
    %273 = vector.shape_cast %272 : vector<8x1x8xf32> to vector<8x8xf32>
    %cst_73 = arith.constant 0xFF800000 : f32
    %274 = vector.broadcast %cst_73 : f32 to vector<8x8xf32>
    %275 = arith.select %5, %274, %273 : vector<8x8xi1>, vector<8x8xf32>
    %cst_74 = arith.constant dense<0xFF800000> : vector<8xf32>
    %276 = vector.multi_reduction <maximumf>, %275, %cst_74 [1] : vector<8x8xf32> to vector<8xf32>
    %277 = vector.shape_cast %276 : vector<8xf32> to vector<8x1xf32>
    %278 = vector.broadcast %277 : vector<8x1xf32> to vector<8x8xf32>
    %279 = arith.subf %275, %278 : vector<8x8xf32>
    %280 = math.exp %279 : vector<8x8xf32>
    %cst_75 = arith.constant dense<0.000000e+00> : vector<8xf32>
    %281 = vector.multi_reduction <add>, %280, %cst_75 [1] : vector<8x8xf32> to vector<8xf32>
    %282 = vector.shape_cast %281 : vector<8xf32> to vector<8x1xf32>
    %283 = tpu.reciprocal %282 {approx = true} : vector<8x1xf32> -> vector<8x1xf32>
    %284 = vector.broadcast %283 : vector<8x1xf32> to vector<8x8xf32>
    %285 = arith.mulf %280, %284 : vector<8x8xf32>
    %286 = arith.truncf %285 : vector<8x8xf32> to vector<8x8xbf16>
    %287 = vector.shape_cast %286 : vector<8x8xbf16> to vector<8x1x8xbf16>
    %cst_76 = arith.constant dense<0.000000e+00> : vector<8x1x32xf32>
    %288 = tpu.matmul %287, %30, %cst_76 {dimension_numbers = #tpu.dot_dimension_numbers<[2], [1], [1], [2], [0, 0, 0, 1, 1, 2], [0], [0]>} : vector<8x1x8xbf16>, vector<8x8x32xbf16>, vector<8x1x32xf32> -> vector<8x1x32xf32>
    %289 = vector.shape_cast %288 : vector<8x1x32xf32> to vector<8x32xf32>
    %cst_77 = arith.constant dense<0.000000e+00> : vector<8x32xf32>
    %290 = tpu.matmul %270, %32, %cst_77 {dimension_numbers = #tpu.dot_dimension_numbers<[1], [0], [0], [1], [0, 0, 1, 1], [], []>} : vector<8x32xbf16>, vector<32x32xbf16>, vector<8x32xf32> -> vector<8x32xf32>
    %291 = arith.addf %289, %290 : vector<8x32xf32>
    %292 = math.tanh %291 : vector<8x32xf32>
    %293 = vector.extract_strided_slice %22 {offsets = [40, 0], sizes = [8, 128], strides = [1, 1]} : vector<64x128xf32> to vector<8x128xf32>
    %294 = arith.truncf %292 : vector<8x32xf32> to vector<8x32xbf16>
    %cst_78 = arith.constant dense<0.000000e+00> : vector<8x128xf32>
    %295 = tpu.matmul %294, %31, %cst_78 {dimension_numbers = #tpu.dot_dimension_numbers<[1], [0], [0], [1], [0, 0, 1, 1], [], []>} : vector<8x32xbf16>, vector<32x128xbf16>, vector<8x128xf32> -> vector<8x128xf32>
    %296 = arith.addf %293, %295 : vector<8x128xf32>
    %297 = vector.extract_strided_slice %296 {offsets = [0, 0], sizes = [8, 32], strides = [1, 1]} : vector<8x128xf32> to vector<8x32xf32>
    %298 = arith.negf %297 : vector<8x32xf32>
    %299 = math.exp %298 : vector<8x32xf32>
    %cst_79 = arith.constant 1.000000e+00 : f32
    %300 = vector.broadcast %cst_79 : f32 to vector<8x32xf32>
    %301 = arith.addf %300, %299 : vector<8x32xf32>
    %302 = arith.divf %300, %301 : vector<8x32xf32>
    %303 = vector.extract_strided_slice %296 {offsets = [0, 32], sizes = [8, 32], strides = [1, 1]} : vector<8x128xf32> to vector<8x32xf32>
    %304 = arith.negf %303 : vector<8x32xf32>
    %305 = math.exp %304 : vector<8x32xf32>
    %cst_80 = arith.constant 1.000000e+00 : f32
    %306 = vector.broadcast %cst_80 : f32 to vector<8x32xf32>
    %307 = arith.addf %306, %305 : vector<8x32xf32>
    %308 = arith.divf %306, %307 : vector<8x32xf32>
    %309 = vector.extract_strided_slice %296 {offsets = [0, 64], sizes = [8, 32], strides = [1, 1]} : vector<8x128xf32> to vector<8x32xf32>
    %310 = math.tanh %309 : vector<8x32xf32>
    %311 = vector.extract_strided_slice %296 {offsets = [0, 96], sizes = [8, 32], strides = [1, 1]} : vector<8x128xf32> to vector<8x32xf32>
    %312 = arith.negf %311 : vector<8x32xf32>
    %313 = math.exp %312 : vector<8x32xf32>
    %cst_81 = arith.constant 1.000000e+00 : f32
    %314 = vector.broadcast %cst_81 : f32 to vector<8x32xf32>
    %315 = arith.addf %314, %313 : vector<8x32xf32>
    %316 = arith.divf %314, %315 : vector<8x32xf32>
    %317 = arith.mulf %308, %267 : vector<8x32xf32>
    %318 = arith.mulf %302, %310 : vector<8x32xf32>
    %319 = arith.addf %317, %318 : vector<8x32xf32>
    %320 = math.tanh %319 : vector<8x32xf32>
    %321 = arith.mulf %316, %320 : vector<8x32xf32>
    %322 = arith.truncf %321 : vector<8x32xf32> to vector<8x32xbf16>
    %323 = vector.shape_cast %322 : vector<8x32xbf16> to vector<8x1x32xbf16>
    %cst_82 = arith.constant dense<0.000000e+00> : vector<8x1x8xf32>
    %324 = tpu.matmul %323, %26, %cst_82 {dimension_numbers = #tpu.dot_dimension_numbers<[2], [2], [1], [1], [0, 0, 0, 1, 1, 1], [0], [0]>} : vector<8x1x32xbf16>, vector<8x8x32xbf16>, vector<8x1x8xf32> -> vector<8x1x8xf32>
    %325 = vector.shape_cast %324 : vector<8x1x8xf32> to vector<8x8xf32>
    %cst_83 = arith.constant 0xFF800000 : f32
    %326 = vector.broadcast %cst_83 : f32 to vector<8x8xf32>
    %327 = arith.select %5, %326, %325 : vector<8x8xi1>, vector<8x8xf32>
    %cst_84 = arith.constant dense<0xFF800000> : vector<8xf32>
    %328 = vector.multi_reduction <maximumf>, %327, %cst_84 [1] : vector<8x8xf32> to vector<8xf32>
    %329 = vector.shape_cast %328 : vector<8xf32> to vector<8x1xf32>
    %330 = vector.broadcast %329 : vector<8x1xf32> to vector<8x8xf32>
    %331 = arith.subf %327, %330 : vector<8x8xf32>
    %332 = math.exp %331 : vector<8x8xf32>
    %cst_85 = arith.constant dense<0.000000e+00> : vector<8xf32>
    %333 = vector.multi_reduction <add>, %332, %cst_85 [1] : vector<8x8xf32> to vector<8xf32>
    %334 = vector.shape_cast %333 : vector<8xf32> to vector<8x1xf32>
    %335 = tpu.reciprocal %334 {approx = true} : vector<8x1xf32> -> vector<8x1xf32>
    %336 = vector.broadcast %335 : vector<8x1xf32> to vector<8x8xf32>
    %337 = arith.mulf %332, %336 : vector<8x8xf32>
    %338 = arith.truncf %337 : vector<8x8xf32> to vector<8x8xbf16>
    %339 = vector.shape_cast %338 : vector<8x8xbf16> to vector<8x1x8xbf16>
    %cst_86 = arith.constant dense<0.000000e+00> : vector<8x1x32xf32>
    %340 = tpu.matmul %339, %30, %cst_86 {dimension_numbers = #tpu.dot_dimension_numbers<[2], [1], [1], [2], [0, 0, 0, 1, 1, 2], [0], [0]>} : vector<8x1x8xbf16>, vector<8x8x32xbf16>, vector<8x1x32xf32> -> vector<8x1x32xf32>
    %341 = vector.shape_cast %340 : vector<8x1x32xf32> to vector<8x32xf32>
    %cst_87 = arith.constant dense<0.000000e+00> : vector<8x32xf32>
    %342 = tpu.matmul %322, %32, %cst_87 {dimension_numbers = #tpu.dot_dimension_numbers<[1], [0], [0], [1], [0, 0, 1, 1], [], []>} : vector<8x32xbf16>, vector<32x32xbf16>, vector<8x32xf32> -> vector<8x32xf32>
    %343 = arith.addf %341, %342 : vector<8x32xf32>
    %344 = math.tanh %343 : vector<8x32xf32>
    %345 = vector.extract_strided_slice %22 {offsets = [48, 0], sizes = [8, 128], strides = [1, 1]} : vector<64x128xf32> to vector<8x128xf32>
    %346 = arith.truncf %344 : vector<8x32xf32> to vector<8x32xbf16>
    %cst_88 = arith.constant dense<0.000000e+00> : vector<8x128xf32>
    %347 = tpu.matmul %346, %31, %cst_88 {dimension_numbers = #tpu.dot_dimension_numbers<[1], [0], [0], [1], [0, 0, 1, 1], [], []>} : vector<8x32xbf16>, vector<32x128xbf16>, vector<8x128xf32> -> vector<8x128xf32>
    %348 = arith.addf %345, %347 : vector<8x128xf32>
    %349 = vector.extract_strided_slice %348 {offsets = [0, 0], sizes = [8, 32], strides = [1, 1]} : vector<8x128xf32> to vector<8x32xf32>
    %350 = arith.negf %349 : vector<8x32xf32>
    %351 = math.exp %350 : vector<8x32xf32>
    %cst_89 = arith.constant 1.000000e+00 : f32
    %352 = vector.broadcast %cst_89 : f32 to vector<8x32xf32>
    %353 = arith.addf %352, %351 : vector<8x32xf32>
    %354 = arith.divf %352, %353 : vector<8x32xf32>
    %355 = vector.extract_strided_slice %348 {offsets = [0, 32], sizes = [8, 32], strides = [1, 1]} : vector<8x128xf32> to vector<8x32xf32>
    %356 = arith.negf %355 : vector<8x32xf32>
    %357 = math.exp %356 : vector<8x32xf32>
    %cst_90 = arith.constant 1.000000e+00 : f32
    %358 = vector.broadcast %cst_90 : f32 to vector<8x32xf32>
    %359 = arith.addf %358, %357 : vector<8x32xf32>
    %360 = arith.divf %358, %359 : vector<8x32xf32>
    %361 = vector.extract_strided_slice %348 {offsets = [0, 64], sizes = [8, 32], strides = [1, 1]} : vector<8x128xf32> to vector<8x32xf32>
    %362 = math.tanh %361 : vector<8x32xf32>
    %363 = vector.extract_strided_slice %348 {offsets = [0, 96], sizes = [8, 32], strides = [1, 1]} : vector<8x128xf32> to vector<8x32xf32>
    %364 = arith.negf %363 : vector<8x32xf32>
    %365 = math.exp %364 : vector<8x32xf32>
    %cst_91 = arith.constant 1.000000e+00 : f32
    %366 = vector.broadcast %cst_91 : f32 to vector<8x32xf32>
    %367 = arith.addf %366, %365 : vector<8x32xf32>
    %368 = arith.divf %366, %367 : vector<8x32xf32>
    %369 = arith.mulf %360, %319 : vector<8x32xf32>
    %370 = arith.mulf %354, %362 : vector<8x32xf32>
    %371 = arith.addf %369, %370 : vector<8x32xf32>
    %372 = math.tanh %371 : vector<8x32xf32>
    %373 = arith.mulf %368, %372 : vector<8x32xf32>
    %374 = arith.truncf %373 : vector<8x32xf32> to vector<8x32xbf16>
    %375 = vector.shape_cast %374 : vector<8x32xbf16> to vector<8x1x32xbf16>
    %cst_92 = arith.constant dense<0.000000e+00> : vector<8x1x8xf32>
    %376 = tpu.matmul %375, %26, %cst_92 {dimension_numbers = #tpu.dot_dimension_numbers<[2], [2], [1], [1], [0, 0, 0, 1, 1, 1], [0], [0]>} : vector<8x1x32xbf16>, vector<8x8x32xbf16>, vector<8x1x8xf32> -> vector<8x1x8xf32>
    %377 = vector.shape_cast %376 : vector<8x1x8xf32> to vector<8x8xf32>
    %cst_93 = arith.constant 0xFF800000 : f32
    %378 = vector.broadcast %cst_93 : f32 to vector<8x8xf32>
    %379 = arith.select %5, %378, %377 : vector<8x8xi1>, vector<8x8xf32>
    %cst_94 = arith.constant dense<0xFF800000> : vector<8xf32>
    %380 = vector.multi_reduction <maximumf>, %379, %cst_94 [1] : vector<8x8xf32> to vector<8xf32>
    %381 = vector.shape_cast %380 : vector<8xf32> to vector<8x1xf32>
    %382 = vector.broadcast %381 : vector<8x1xf32> to vector<8x8xf32>
    %383 = arith.subf %379, %382 : vector<8x8xf32>
    %384 = math.exp %383 : vector<8x8xf32>
    %cst_95 = arith.constant dense<0.000000e+00> : vector<8xf32>
    %385 = vector.multi_reduction <add>, %384, %cst_95 [1] : vector<8x8xf32> to vector<8xf32>
    %386 = vector.shape_cast %385 : vector<8xf32> to vector<8x1xf32>
    %387 = tpu.reciprocal %386 {approx = true} : vector<8x1xf32> -> vector<8x1xf32>
    %388 = vector.broadcast %387 : vector<8x1xf32> to vector<8x8xf32>
    %389 = arith.mulf %384, %388 : vector<8x8xf32>
    %390 = arith.truncf %389 : vector<8x8xf32> to vector<8x8xbf16>
    %391 = vector.shape_cast %390 : vector<8x8xbf16> to vector<8x1x8xbf16>
    %cst_96 = arith.constant dense<0.000000e+00> : vector<8x1x32xf32>
    %392 = tpu.matmul %391, %30, %cst_96 {dimension_numbers = #tpu.dot_dimension_numbers<[2], [1], [1], [2], [0, 0, 0, 1, 1, 2], [0], [0]>} : vector<8x1x8xbf16>, vector<8x8x32xbf16>, vector<8x1x32xf32> -> vector<8x1x32xf32>
    %393 = vector.shape_cast %392 : vector<8x1x32xf32> to vector<8x32xf32>
    %cst_97 = arith.constant dense<0.000000e+00> : vector<8x32xf32>
    %394 = tpu.matmul %374, %32, %cst_97 {dimension_numbers = #tpu.dot_dimension_numbers<[1], [0], [0], [1], [0, 0, 1, 1], [], []>} : vector<8x32xbf16>, vector<32x32xbf16>, vector<8x32xf32> -> vector<8x32xf32>
    %395 = arith.addf %393, %394 : vector<8x32xf32>
    %396 = math.tanh %395 : vector<8x32xf32>
    %397 = vector.extract_strided_slice %22 {offsets = [56, 0], sizes = [8, 128], strides = [1, 1]} : vector<64x128xf32> to vector<8x128xf32>
    %398 = arith.truncf %396 : vector<8x32xf32> to vector<8x32xbf16>
    %cst_98 = arith.constant dense<0.000000e+00> : vector<8x128xf32>
    %399 = tpu.matmul %398, %31, %cst_98 {dimension_numbers = #tpu.dot_dimension_numbers<[1], [0], [0], [1], [0, 0, 1, 1], [], []>} : vector<8x32xbf16>, vector<32x128xbf16>, vector<8x128xf32> -> vector<8x128xf32>
    %400 = arith.addf %397, %399 : vector<8x128xf32>
    %401 = vector.extract_strided_slice %400 {offsets = [0, 0], sizes = [8, 32], strides = [1, 1]} : vector<8x128xf32> to vector<8x32xf32>
    %402 = arith.negf %401 : vector<8x32xf32>
    %403 = math.exp %402 : vector<8x32xf32>
    %cst_99 = arith.constant 1.000000e+00 : f32
    %404 = vector.broadcast %cst_99 : f32 to vector<8x32xf32>
    %405 = arith.addf %404, %403 : vector<8x32xf32>
    %406 = arith.divf %404, %405 : vector<8x32xf32>
    %407 = vector.extract_strided_slice %400 {offsets = [0, 32], sizes = [8, 32], strides = [1, 1]} : vector<8x128xf32> to vector<8x32xf32>
    %408 = arith.negf %407 : vector<8x32xf32>
    %409 = math.exp %408 : vector<8x32xf32>
    %cst_100 = arith.constant 1.000000e+00 : f32
    %410 = vector.broadcast %cst_100 : f32 to vector<8x32xf32>
    %411 = arith.addf %410, %409 : vector<8x32xf32>
    %412 = arith.divf %410, %411 : vector<8x32xf32>
    %413 = vector.extract_strided_slice %400 {offsets = [0, 64], sizes = [8, 32], strides = [1, 1]} : vector<8x128xf32> to vector<8x32xf32>
    %414 = math.tanh %413 : vector<8x32xf32>
    %415 = vector.extract_strided_slice %400 {offsets = [0, 96], sizes = [8, 32], strides = [1, 1]} : vector<8x128xf32> to vector<8x32xf32>
    %416 = arith.negf %415 : vector<8x32xf32>
    %417 = math.exp %416 : vector<8x32xf32>
    %cst_101 = arith.constant 1.000000e+00 : f32
    %418 = vector.broadcast %cst_101 : f32 to vector<8x32xf32>
    %419 = arith.addf %418, %417 : vector<8x32xf32>
    %420 = arith.divf %418, %419 : vector<8x32xf32>
    %421 = arith.mulf %412, %371 : vector<8x32xf32>
    %422 = arith.mulf %406, %414 : vector<8x32xf32>
    %423 = arith.addf %421, %422 : vector<8x32xf32>
    %424 = math.tanh %423 : vector<8x32xf32>
    %425 = arith.mulf %420, %424 : vector<8x32xf32>
    %426 = arith.truncf %425 : vector<8x32xf32> to vector<8x32xbf16>
    %427 = vector.shape_cast %426 : vector<8x32xbf16> to vector<8x1x32xbf16>
    %cst_102 = arith.constant dense<0.000000e+00> : vector<8x1x8xf32>
    %428 = tpu.matmul %427, %26, %cst_102 {dimension_numbers = #tpu.dot_dimension_numbers<[2], [2], [1], [1], [0, 0, 0, 1, 1, 1], [0], [0]>} : vector<8x1x32xbf16>, vector<8x8x32xbf16>, vector<8x1x8xf32> -> vector<8x1x8xf32>
    %429 = vector.shape_cast %428 : vector<8x1x8xf32> to vector<8x8xf32>
    %cst_103 = arith.constant 0xFF800000 : f32
    %430 = vector.broadcast %cst_103 : f32 to vector<8x8xf32>
    %431 = arith.select %5, %430, %429 : vector<8x8xi1>, vector<8x8xf32>
    %cst_104 = arith.constant dense<0xFF800000> : vector<8xf32>
    %432 = vector.multi_reduction <maximumf>, %431, %cst_104 [1] : vector<8x8xf32> to vector<8xf32>
    %433 = vector.shape_cast %432 : vector<8xf32> to vector<8x1xf32>
    %434 = vector.broadcast %433 : vector<8x1xf32> to vector<8x8xf32>
    %435 = arith.subf %431, %434 : vector<8x8xf32>
    %436 = math.exp %435 : vector<8x8xf32>
    %cst_105 = arith.constant dense<0.000000e+00> : vector<8xf32>
    %437 = vector.multi_reduction <add>, %436, %cst_105 [1] : vector<8x8xf32> to vector<8xf32>
    %438 = vector.shape_cast %437 : vector<8xf32> to vector<8x1xf32>
    %439 = tpu.reciprocal %438 {approx = true} : vector<8x1xf32> -> vector<8x1xf32>
    %440 = vector.broadcast %439 : vector<8x1xf32> to vector<8x8xf32>
    %441 = arith.mulf %436, %440 : vector<8x8xf32>
    %442 = arith.truncf %441 : vector<8x8xf32> to vector<8x8xbf16>
    %443 = vector.shape_cast %442 : vector<8x8xbf16> to vector<8x1x8xbf16>
    %cst_106 = arith.constant dense<0.000000e+00> : vector<8x1x32xf32>
    %444 = tpu.matmul %443, %30, %cst_106 {dimension_numbers = #tpu.dot_dimension_numbers<[2], [1], [1], [2], [0, 0, 0, 1, 1, 2], [0], [0]>} : vector<8x1x8xbf16>, vector<8x8x32xbf16>, vector<8x1x32xf32> -> vector<8x1x32xf32>
    %445 = vector.shape_cast %444 : vector<8x1x32xf32> to vector<8x32xf32>
    %cst_107 = arith.constant dense<0.000000e+00> : vector<8x32xf32>
    %446 = tpu.matmul %426, %32, %cst_107 {dimension_numbers = #tpu.dot_dimension_numbers<[1], [0], [0], [1], [0, 0, 1, 1], [], []>} : vector<8x32xbf16>, vector<32x32xbf16>, vector<8x32xf32> -> vector<8x32xf32>
    %447 = arith.addf %445, %446 : vector<8x32xf32>
    %448 = math.tanh %447 : vector<8x32xf32>
    %c0_108 = arith.constant 0 : index
    %c0_109 = arith.constant 0 : index
    %c0_110 = arith.constant 0 : index
    %449 = vector.load %arg21[%c0_108, %c0_109, %c0_110] : memref<2x8x32xf32, #tpu.memory_space<vmem>>, vector<1x8x32xf32>
    %450 = vector.shape_cast %449 : vector<1x8x32xf32> to vector<8x32xf32>
    %451 = vector.shape_cast %448 : vector<8x32xf32> to vector<1x8x32xf32>
    tpu.vector_store %arg21[%c0_108, %c0_109, %c0_110], %451 {strides = array<i32>} : memref<2x8x32xf32, #tpu.memory_space<vmem>>, vector<1x8x32xf32>,
    %c0_111 = arith.constant 0 : index
    %c0_112 = arith.constant 0 : index
    %c0_113 = arith.constant 0 : index
    %452 = vector.load %arg22[%c0_111, %c0_112, %c0_113] : memref<2x8x32xf32, #tpu.memory_space<vmem>>, vector<1x8x32xf32>
    %453 = vector.shape_cast %452 : vector<1x8x32xf32> to vector<8x32xf32>
    %454 = vector.shape_cast %423 : vector<8x32xf32> to vector<1x8x32xf32>
    tpu.vector_store %arg22[%c0_111, %c0_112, %c0_113], %454 {strides = array<i32>} : memref<2x8x32xf32, #tpu.memory_space<vmem>>, vector<1x8x32xf32>,
    %455 = tpu.concatenate %84, %136, %188, %240, %292, %344, %396, %448 in 0 : vector<8x32xf32>, vector<8x32xf32>, vector<8x32xf32>, vector<8x32xf32>, vector<8x32xf32>, vector<8x32xf32>, vector<8x32xf32>, vector<8x32xf32> -> vector<64x32xf32>
    %456 = arith.truncf %455 : vector<64x32xf32> to vector<64x32xbf16>
    %c0_114 = arith.constant 0 : index
    %c0_115 = arith.constant 0 : index
    %457 = vector.load %arg13[%c0_114, %c0_115] : memref<32x128xf32, #tpu.memory_space<vmem>>, vector<32x128xf32>
    %c0_116 = arith.constant 0 : index
    %c0_117 = arith.constant 0 : index
    %458 = vector.load %arg14[%c0_116, %c0_117] : memref<1x128xf32, #tpu.memory_space<vmem>>, vector<1x128xf32>
    %c0_118 = arith.constant 0 : index
    %c0_119 = arith.constant 0 : index
    %459 = vector.load %arg15[%c0_118, %c0_119] : memref<32x128xf32, #tpu.memory_space<vmem>>, vector<32x128xf32>
    %c0_120 = arith.constant 0 : index
    %c0_121 = arith.constant 0 : index
    %460 = vector.load %arg16[%c0_120, %c0_121] : memref<1x128xf32, #tpu.memory_space<vmem>>, vector<1x128xf32>
    %c0_122 = arith.constant 0 : index
    %c0_123 = arith.constant 0 : index
    %461 = vector.load %arg17[%c0_122, %c0_123] : memref<32x32xf32, #tpu.memory_space<vmem>>, vector<32x32xf32>
    %c0_124 = arith.constant 0 : index
    %c0_125 = arith.constant 0 : index
    %462 = vector.load %arg18[%c0_124, %c0_125] : memref<32x32xf32, #tpu.memory_space<vmem>>, vector<32x32xf32>
    %c0_126 = arith.constant 0 : index
    %c0_127 = arith.constant 0 : index
    %463 = vector.load %arg19[%c0_126, %c0_127] : memref<32x32xf32, #tpu.memory_space<vmem>>, vector<32x32xf32>
    %464 = arith.addf %458, %460 : vector<1x128xf32>
    %465 = arith.truncf %457 : vector<32x128xf32> to vector<32x128xbf16>
    %cst_128 = arith.constant dense<0.000000e+00> : vector<64x128xf32>
    %466 = tpu.matmul %456, %465, %cst_128 {dimension_numbers = #tpu.dot_dimension_numbers<[1], [0], [0], [1], [0, 0, 1, 1], [], []>} : vector<64x32xbf16>, vector<32x128xbf16>, vector<64x128xf32> -> vector<64x128xf32>
    %467 = vector.broadcast %464 : vector<1x128xf32> to vector<64x128xf32>
    %468 = arith.addf %466, %467 : vector<64x128xf32>
    %469 = arith.truncf %461 : vector<32x32xf32> to vector<32x32xbf16>
    %cst_129 = arith.constant dense<0.000000e+00> : vector<64x32xf32>
    %470 = tpu.matmul %2, %469, %cst_129 {dimension_numbers = #tpu.dot_dimension_numbers<[1], [0], [0], [1], [0, 0, 1, 1], [], []>} : vector<64x32xbf16>, vector<32x32xbf16>, vector<64x32xf32> -> vector<64x32xf32>
    %471 = vector.shape_cast %470 : vector<64x32xf32> to vector<8x8x32xf32>
    %472 = arith.truncf %471 : vector<8x8x32xf32> to vector<8x8x32xbf16>
    %473 = arith.truncf %462 : vector<32x32xf32> to vector<32x32xbf16>
    %cst_130 = arith.constant dense<0.000000e+00> : vector<64x32xf32>
    %474 = tpu.matmul %2, %473, %cst_130 {dimension_numbers = #tpu.dot_dimension_numbers<[1], [0], [0], [1], [0, 0, 1, 1], [], []>} : vector<64x32xbf16>, vector<32x32xbf16>, vector<64x32xf32> -> vector<64x32xf32>
    %475 = vector.shape_cast %474 : vector<64x32xf32> to vector<8x8x32xf32>
    %476 = arith.truncf %475 : vector<8x8x32xf32> to vector<8x8x32xbf16>
    %477 = arith.truncf %459 : vector<32x128xf32> to vector<32x128xbf16>
    %478 = arith.truncf %463 : vector<32x32xf32> to vector<32x32xbf16>
    %479 = vector.extract_strided_slice %468 {offsets = [0, 0], sizes = [8, 128], strides = [1, 1]} : vector<64x128xf32> to vector<8x128xf32>
    %480 = arith.truncf %6 : vector<8x32xf32> to vector<8x32xbf16>
    %cst_131 = arith.constant dense<0.000000e+00> : vector<8x128xf32>
    %481 = tpu.matmul %480, %477, %cst_131 {dimension_numbers = #tpu.dot_dimension_numbers<[1], [0], [0], [1], [0, 0, 1, 1], [], []>} : vector<8x32xbf16>, vector<32x128xbf16>, vector<8x128xf32> -> vector<8x128xf32>
    %482 = arith.addf %479, %481 : vector<8x128xf32>
    %483 = vector.extract_strided_slice %482 {offsets = [0, 0], sizes = [8, 32], strides = [1, 1]} : vector<8x128xf32> to vector<8x32xf32>
    %484 = arith.negf %483 : vector<8x32xf32>
    %485 = math.exp %484 : vector<8x32xf32>
    %cst_132 = arith.constant 1.000000e+00 : f32
    %486 = vector.broadcast %cst_132 : f32 to vector<8x32xf32>
    %487 = arith.addf %486, %485 : vector<8x32xf32>
    %488 = arith.divf %486, %487 : vector<8x32xf32>
    %489 = vector.extract_strided_slice %482 {offsets = [0, 32], sizes = [8, 32], strides = [1, 1]} : vector<8x128xf32> to vector<8x32xf32>
    %490 = arith.negf %489 : vector<8x32xf32>
    %491 = math.exp %490 : vector<8x32xf32>
    %cst_133 = arith.constant 1.000000e+00 : f32
    %492 = vector.broadcast %cst_133 : f32 to vector<8x32xf32>
    %493 = arith.addf %492, %491 : vector<8x32xf32>
    %494 = arith.divf %492, %493 : vector<8x32xf32>
    %495 = vector.extract_strided_slice %482 {offsets = [0, 64], sizes = [8, 32], strides = [1, 1]} : vector<8x128xf32> to vector<8x32xf32>
    %496 = math.tanh %495 : vector<8x32xf32>
    %497 = vector.extract_strided_slice %482 {offsets = [0, 96], sizes = [8, 32], strides = [1, 1]} : vector<8x128xf32> to vector<8x32xf32>
    %498 = arith.negf %497 : vector<8x32xf32>
    %499 = math.exp %498 : vector<8x32xf32>
    %cst_134 = arith.constant 1.000000e+00 : f32
    %500 = vector.broadcast %cst_134 : f32 to vector<8x32xf32>
    %501 = arith.addf %500, %499 : vector<8x32xf32>
    %502 = arith.divf %500, %501 : vector<8x32xf32>
    %503 = arith.mulf %494, %7 : vector<8x32xf32>
    %504 = arith.mulf %488, %496 : vector<8x32xf32>
    %505 = arith.addf %503, %504 : vector<8x32xf32>
    %506 = math.tanh %505 : vector<8x32xf32>
    %507 = arith.mulf %502, %506 : vector<8x32xf32>
    %508 = arith.truncf %507 : vector<8x32xf32> to vector<8x32xbf16>
    %509 = vector.shape_cast %508 : vector<8x32xbf16> to vector<8x1x32xbf16>
    %cst_135 = arith.constant dense<0.000000e+00> : vector<8x1x8xf32>
    %510 = tpu.matmul %509, %472, %cst_135 {dimension_numbers = #tpu.dot_dimension_numbers<[2], [2], [1], [1], [0, 0, 0, 1, 1, 1], [0], [0]>} : vector<8x1x32xbf16>, vector<8x8x32xbf16>, vector<8x1x8xf32> -> vector<8x1x8xf32>
    %511 = vector.shape_cast %510 : vector<8x1x8xf32> to vector<8x8xf32>
    %cst_136 = arith.constant 0xFF800000 : f32
    %512 = vector.broadcast %cst_136 : f32 to vector<8x8xf32>
    %513 = arith.select %5, %512, %511 : vector<8x8xi1>, vector<8x8xf32>
    %cst_137 = arith.constant dense<0xFF800000> : vector<8xf32>
    %514 = vector.multi_reduction <maximumf>, %513, %cst_137 [1] : vector<8x8xf32> to vector<8xf32>
    %515 = vector.shape_cast %514 : vector<8xf32> to vector<8x1xf32>
    %516 = vector.broadcast %515 : vector<8x1xf32> to vector<8x8xf32>
    %517 = arith.subf %513, %516 : vector<8x8xf32>
    %518 = math.exp %517 : vector<8x8xf32>
    %cst_138 = arith.constant dense<0.000000e+00> : vector<8xf32>
    %519 = vector.multi_reduction <add>, %518, %cst_138 [1] : vector<8x8xf32> to vector<8xf32>
    %520 = vector.shape_cast %519 : vector<8xf32> to vector<8x1xf32>
    %521 = tpu.reciprocal %520 {approx = true} : vector<8x1xf32> -> vector<8x1xf32>
    %522 = vector.broadcast %521 : vector<8x1xf32> to vector<8x8xf32>
    %523 = arith.mulf %518, %522 : vector<8x8xf32>
    %524 = arith.truncf %523 : vector<8x8xf32> to vector<8x8xbf16>
    %525 = vector.shape_cast %524 : vector<8x8xbf16> to vector<8x1x8xbf16>
    %cst_139 = arith.constant dense<0.000000e+00> : vector<8x1x32xf32>
    %526 = tpu.matmul %525, %476, %cst_139 {dimension_numbers = #tpu.dot_dimension_numbers<[2], [1], [1], [2], [0, 0, 0, 1, 1, 2], [0], [0]>} : vector<8x1x8xbf16>, vector<8x8x32xbf16>, vector<8x1x32xf32> -> vector<8x1x32xf32>
    %527 = vector.shape_cast %526 : vector<8x1x32xf32> to vector<8x32xf32>
    %cst_140 = arith.constant dense<0.000000e+00> : vector<8x32xf32>
    %528 = tpu.matmul %508, %478, %cst_140 {dimension_numbers = #tpu.dot_dimension_numbers<[1], [0], [0], [1], [0, 0, 1, 1], [], []>} : vector<8x32xbf16>, vector<32x32xbf16>, vector<8x32xf32> -> vector<8x32xf32>
    %529 = arith.addf %527, %528 : vector<8x32xf32>
    %530 = math.tanh %529 : vector<8x32xf32>
    %531 = vector.extract_strided_slice %468 {offsets = [8, 0], sizes = [8, 128], strides = [1, 1]} : vector<64x128xf32> to vector<8x128xf32>
    %532 = arith.truncf %530 : vector<8x32xf32> to vector<8x32xbf16>
    %cst_141 = arith.constant dense<0.000000e+00> : vector<8x128xf32>
    %533 = tpu.matmul %532, %477, %cst_141 {dimension_numbers = #tpu.dot_dimension_numbers<[1], [0], [0], [1], [0, 0, 1, 1], [], []>} : vector<8x32xbf16>, vector<32x128xbf16>, vector<8x128xf32> -> vector<8x128xf32>
    %534 = arith.addf %531, %533 : vector<8x128xf32>
    %535 = vector.extract_strided_slice %534 {offsets = [0, 0], sizes = [8, 32], strides = [1, 1]} : vector<8x128xf32> to vector<8x32xf32>
    %536 = arith.negf %535 : vector<8x32xf32>
    %537 = math.exp %536 : vector<8x32xf32>
    %cst_142 = arith.constant 1.000000e+00 : f32
    %538 = vector.broadcast %cst_142 : f32 to vector<8x32xf32>
    %539 = arith.addf %538, %537 : vector<8x32xf32>
    %540 = arith.divf %538, %539 : vector<8x32xf32>
    %541 = vector.extract_strided_slice %534 {offsets = [0, 32], sizes = [8, 32], strides = [1, 1]} : vector<8x128xf32> to vector<8x32xf32>
    %542 = arith.negf %541 : vector<8x32xf32>
    %543 = math.exp %542 : vector<8x32xf32>
    %cst_143 = arith.constant 1.000000e+00 : f32
    %544 = vector.broadcast %cst_143 : f32 to vector<8x32xf32>
    %545 = arith.addf %544, %543 : vector<8x32xf32>
    %546 = arith.divf %544, %545 : vector<8x32xf32>
    %547 = vector.extract_strided_slice %534 {offsets = [0, 64], sizes = [8, 32], strides = [1, 1]} : vector<8x128xf32> to vector<8x32xf32>
    %548 = math.tanh %547 : vector<8x32xf32>
    %549 = vector.extract_strided_slice %534 {offsets = [0, 96], sizes = [8, 32], strides = [1, 1]} : vector<8x128xf32> to vector<8x32xf32>
    %550 = arith.negf %549 : vector<8x32xf32>
    %551 = math.exp %550 : vector<8x32xf32>
    %cst_144 = arith.constant 1.000000e+00 : f32
    %552 = vector.broadcast %cst_144 : f32 to vector<8x32xf32>
    %553 = arith.addf %552, %551 : vector<8x32xf32>
    %554 = arith.divf %552, %553 : vector<8x32xf32>
    %555 = arith.mulf %546, %505 : vector<8x32xf32>
    %556 = arith.mulf %540, %548 : vector<8x32xf32>
    %557 = arith.addf %555, %556 : vector<8x32xf32>
    %558 = math.tanh %557 : vector<8x32xf32>
    %559 = arith.mulf %554, %558 : vector<8x32xf32>
    %560 = arith.truncf %559 : vector<8x32xf32> to vector<8x32xbf16>
    %561 = vector.shape_cast %560 : vector<8x32xbf16> to vector<8x1x32xbf16>
    %cst_145 = arith.constant dense<0.000000e+00> : vector<8x1x8xf32>
    %562 = tpu.matmul %561, %472, %cst_145 {dimension_numbers = #tpu.dot_dimension_numbers<[2], [2], [1], [1], [0, 0, 0, 1, 1, 1], [0], [0]>} : vector<8x1x32xbf16>, vector<8x8x32xbf16>, vector<8x1x8xf32> -> vector<8x1x8xf32>
    %563 = vector.shape_cast %562 : vector<8x1x8xf32> to vector<8x8xf32>
    %cst_146 = arith.constant 0xFF800000 : f32
    %564 = vector.broadcast %cst_146 : f32 to vector<8x8xf32>
    %565 = arith.select %5, %564, %563 : vector<8x8xi1>, vector<8x8xf32>
    %cst_147 = arith.constant dense<0xFF800000> : vector<8xf32>
    %566 = vector.multi_reduction <maximumf>, %565, %cst_147 [1] : vector<8x8xf32> to vector<8xf32>
    %567 = vector.shape_cast %566 : vector<8xf32> to vector<8x1xf32>
    %568 = vector.broadcast %567 : vector<8x1xf32> to vector<8x8xf32>
    %569 = arith.subf %565, %568 : vector<8x8xf32>
    %570 = math.exp %569 : vector<8x8xf32>
    %cst_148 = arith.constant dense<0.000000e+00> : vector<8xf32>
    %571 = vector.multi_reduction <add>, %570, %cst_148 [1] : vector<8x8xf32> to vector<8xf32>
    %572 = vector.shape_cast %571 : vector<8xf32> to vector<8x1xf32>
    %573 = tpu.reciprocal %572 {approx = true} : vector<8x1xf32> -> vector<8x1xf32>
    %574 = vector.broadcast %573 : vector<8x1xf32> to vector<8x8xf32>
    %575 = arith.mulf %570, %574 : vector<8x8xf32>
    %576 = arith.truncf %575 : vector<8x8xf32> to vector<8x8xbf16>
    %577 = vector.shape_cast %576 : vector<8x8xbf16> to vector<8x1x8xbf16>
    %cst_149 = arith.constant dense<0.000000e+00> : vector<8x1x32xf32>
    %578 = tpu.matmul %577, %476, %cst_149 {dimension_numbers = #tpu.dot_dimension_numbers<[2], [1], [1], [2], [0, 0, 0, 1, 1, 2], [0], [0]>} : vector<8x1x8xbf16>, vector<8x8x32xbf16>, vector<8x1x32xf32> -> vector<8x1x32xf32>
    %579 = vector.shape_cast %578 : vector<8x1x32xf32> to vector<8x32xf32>
    %cst_150 = arith.constant dense<0.000000e+00> : vector<8x32xf32>
    %580 = tpu.matmul %560, %478, %cst_150 {dimension_numbers = #tpu.dot_dimension_numbers<[1], [0], [0], [1], [0, 0, 1, 1], [], []>} : vector<8x32xbf16>, vector<32x32xbf16>, vector<8x32xf32> -> vector<8x32xf32>
    %581 = arith.addf %579, %580 : vector<8x32xf32>
    %582 = math.tanh %581 : vector<8x32xf32>
    %583 = vector.extract_strided_slice %468 {offsets = [16, 0], sizes = [8, 128], strides = [1, 1]} : vector<64x128xf32> to vector<8x128xf32>
    %584 = arith.truncf %582 : vector<8x32xf32> to vector<8x32xbf16>
    %cst_151 = arith.constant dense<0.000000e+00> : vector<8x128xf32>
    %585 = tpu.matmul %584, %477, %cst_151 {dimension_numbers = #tpu.dot_dimension_numbers<[1], [0], [0], [1], [0, 0, 1, 1], [], []>} : vector<8x32xbf16>, vector<32x128xbf16>, vector<8x128xf32> -> vector<8x128xf32>
    %586 = arith.addf %583, %585 : vector<8x128xf32>
    %587 = vector.extract_strided_slice %586 {offsets = [0, 0], sizes = [8, 32], strides = [1, 1]} : vector<8x128xf32> to vector<8x32xf32>
    %588 = arith.negf %587 : vector<8x32xf32>
    %589 = math.exp %588 : vector<8x32xf32>
    %cst_152 = arith.constant 1.000000e+00 : f32
    %590 = vector.broadcast %cst_152 : f32 to vector<8x32xf32>
    %591 = arith.addf %590, %589 : vector<8x32xf32>
    %592 = arith.divf %590, %591 : vector<8x32xf32>
    %593 = vector.extract_strided_slice %586 {offsets = [0, 32], sizes = [8, 32], strides = [1, 1]} : vector<8x128xf32> to vector<8x32xf32>
    %594 = arith.negf %593 : vector<8x32xf32>
    %595 = math.exp %594 : vector<8x32xf32>
    %cst_153 = arith.constant 1.000000e+00 : f32
    %596 = vector.broadcast %cst_153 : f32 to vector<8x32xf32>
    %597 = arith.addf %596, %595 : vector<8x32xf32>
    %598 = arith.divf %596, %597 : vector<8x32xf32>
    %599 = vector.extract_strided_slice %586 {offsets = [0, 64], sizes = [8, 32], strides = [1, 1]} : vector<8x128xf32> to vector<8x32xf32>
    %600 = math.tanh %599 : vector<8x32xf32>
    %601 = vector.extract_strided_slice %586 {offsets = [0, 96], sizes = [8, 32], strides = [1, 1]} : vector<8x128xf32> to vector<8x32xf32>
    %602 = arith.negf %601 : vector<8x32xf32>
    %603 = math.exp %602 : vector<8x32xf32>
    %cst_154 = arith.constant 1.000000e+00 : f32
    %604 = vector.broadcast %cst_154 : f32 to vector<8x32xf32>
    %605 = arith.addf %604, %603 : vector<8x32xf32>
    %606 = arith.divf %604, %605 : vector<8x32xf32>
    %607 = arith.mulf %598, %557 : vector<8x32xf32>
    %608 = arith.mulf %592, %600 : vector<8x32xf32>
    %609 = arith.addf %607, %608 : vector<8x32xf32>
    %610 = math.tanh %609 : vector<8x32xf32>
    %611 = arith.mulf %606, %610 : vector<8x32xf32>
    %612 = arith.truncf %611 : vector<8x32xf32> to vector<8x32xbf16>
    %613 = vector.shape_cast %612 : vector<8x32xbf16> to vector<8x1x32xbf16>
    %cst_155 = arith.constant dense<0.000000e+00> : vector<8x1x8xf32>
    %614 = tpu.matmul %613, %472, %cst_155 {dimension_numbers = #tpu.dot_dimension_numbers<[2], [2], [1], [1], [0, 0, 0, 1, 1, 1], [0], [0]>} : vector<8x1x32xbf16>, vector<8x8x32xbf16>, vector<8x1x8xf32> -> vector<8x1x8xf32>
    %615 = vector.shape_cast %614 : vector<8x1x8xf32> to vector<8x8xf32>
    %cst_156 = arith.constant 0xFF800000 : f32
    %616 = vector.broadcast %cst_156 : f32 to vector<8x8xf32>
    %617 = arith.select %5, %616, %615 : vector<8x8xi1>, vector<8x8xf32>
    %cst_157 = arith.constant dense<0xFF800000> : vector<8xf32>
    %618 = vector.multi_reduction <maximumf>, %617, %cst_157 [1] : vector<8x8xf32> to vector<8xf32>
    %619 = vector.shape_cast %618 : vector<8xf32> to vector<8x1xf32>
    %620 = vector.broadcast %619 : vector<8x1xf32> to vector<8x8xf32>
    %621 = arith.subf %617, %620 : vector<8x8xf32>
    %622 = math.exp %621 : vector<8x8xf32>
    %cst_158 = arith.constant dense<0.000000e+00> : vector<8xf32>
    %623 = vector.multi_reduction <add>, %622, %cst_158 [1] : vector<8x8xf32> to vector<8xf32>
    %624 = vector.shape_cast %623 : vector<8xf32> to vector<8x1xf32>
    %625 = tpu.reciprocal %624 {approx = true} : vector<8x1xf32> -> vector<8x1xf32>
    %626 = vector.broadcast %625 : vector<8x1xf32> to vector<8x8xf32>
    %627 = arith.mulf %622, %626 : vector<8x8xf32>
    %628 = arith.truncf %627 : vector<8x8xf32> to vector<8x8xbf16>
    %629 = vector.shape_cast %628 : vector<8x8xbf16> to vector<8x1x8xbf16>
    %cst_159 = arith.constant dense<0.000000e+00> : vector<8x1x32xf32>
    %630 = tpu.matmul %629, %476, %cst_159 {dimension_numbers = #tpu.dot_dimension_numbers<[2], [1], [1], [2], [0, 0, 0, 1, 1, 2], [0], [0]>} : vector<8x1x8xbf16>, vector<8x8x32xbf16>, vector<8x1x32xf32> -> vector<8x1x32xf32>
    %631 = vector.shape_cast %630 : vector<8x1x32xf32> to vector<8x32xf32>
    %cst_160 = arith.constant dense<0.000000e+00> : vector<8x32xf32>
    %632 = tpu.matmul %612, %478, %cst_160 {dimension_numbers = #tpu.dot_dimension_numbers<[1], [0], [0], [1], [0, 0, 1, 1], [], []>} : vector<8x32xbf16>, vector<32x32xbf16>, vector<8x32xf32> -> vector<8x32xf32>
    %633 = arith.addf %631, %632 : vector<8x32xf32>
    %634 = math.tanh %633 : vector<8x32xf32>
    %635 = vector.extract_strided_slice %468 {offsets = [24, 0], sizes = [8, 128], strides = [1, 1]} : vector<64x128xf32> to vector<8x128xf32>
    %636 = arith.truncf %634 : vector<8x32xf32> to vector<8x32xbf16>
    %cst_161 = arith.constant dense<0.000000e+00> : vector<8x128xf32>
    %637 = tpu.matmul %636, %477, %cst_161 {dimension_numbers = #tpu.dot_dimension_numbers<[1], [0], [0], [1], [0, 0, 1, 1], [], []>} : vector<8x32xbf16>, vector<32x128xbf16>, vector<8x128xf32> -> vector<8x128xf32>
    %638 = arith.addf %635, %637 : vector<8x128xf32>
    %639 = vector.extract_strided_slice %638 {offsets = [0, 0], sizes = [8, 32], strides = [1, 1]} : vector<8x128xf32> to vector<8x32xf32>
    %640 = arith.negf %639 : vector<8x32xf32>
    %641 = math.exp %640 : vector<8x32xf32>
    %cst_162 = arith.constant 1.000000e+00 : f32
    %642 = vector.broadcast %cst_162 : f32 to vector<8x32xf32>
    %643 = arith.addf %642, %641 : vector<8x32xf32>
    %644 = arith.divf %642, %643 : vector<8x32xf32>
    %645 = vector.extract_strided_slice %638 {offsets = [0, 32], sizes = [8, 32], strides = [1, 1]} : vector<8x128xf32> to vector<8x32xf32>
    %646 = arith.negf %645 : vector<8x32xf32>
    %647 = math.exp %646 : vector<8x32xf32>
    %cst_163 = arith.constant 1.000000e+00 : f32
    %648 = vector.broadcast %cst_163 : f32 to vector<8x32xf32>
    %649 = arith.addf %648, %647 : vector<8x32xf32>
    %650 = arith.divf %648, %649 : vector<8x32xf32>
    %651 = vector.extract_strided_slice %638 {offsets = [0, 64], sizes = [8, 32], strides = [1, 1]} : vector<8x128xf32> to vector<8x32xf32>
    %652 = math.tanh %651 : vector<8x32xf32>
    %653 = vector.extract_strided_slice %638 {offsets = [0, 96], sizes = [8, 32], strides = [1, 1]} : vector<8x128xf32> to vector<8x32xf32>
    %654 = arith.negf %653 : vector<8x32xf32>
    %655 = math.exp %654 : vector<8x32xf32>
    %cst_164 = arith.constant 1.000000e+00 : f32
    %656 = vector.broadcast %cst_164 : f32 to vector<8x32xf32>
    %657 = arith.addf %656, %655 : vector<8x32xf32>
    %658 = arith.divf %656, %657 : vector<8x32xf32>
    %659 = arith.mulf %650, %609 : vector<8x32xf32>
    %660 = arith.mulf %644, %652 : vector<8x32xf32>
    %661 = arith.addf %659, %660 : vector<8x32xf32>
    %662 = math.tanh %661 : vector<8x32xf32>
    %663 = arith.mulf %658, %662 : vector<8x32xf32>
    %664 = arith.truncf %663 : vector<8x32xf32> to vector<8x32xbf16>
    %665 = vector.shape_cast %664 : vector<8x32xbf16> to vector<8x1x32xbf16>
    %cst_165 = arith.constant dense<0.000000e+00> : vector<8x1x8xf32>
    %666 = tpu.matmul %665, %472, %cst_165 {dimension_numbers = #tpu.dot_dimension_numbers<[2], [2], [1], [1], [0, 0, 0, 1, 1, 1], [0], [0]>} : vector<8x1x32xbf16>, vector<8x8x32xbf16>, vector<8x1x8xf32> -> vector<8x1x8xf32>
    %667 = vector.shape_cast %666 : vector<8x1x8xf32> to vector<8x8xf32>
    %cst_166 = arith.constant 0xFF800000 : f32
    %668 = vector.broadcast %cst_166 : f32 to vector<8x8xf32>
    %669 = arith.select %5, %668, %667 : vector<8x8xi1>, vector<8x8xf32>
    %cst_167 = arith.constant dense<0xFF800000> : vector<8xf32>
    %670 = vector.multi_reduction <maximumf>, %669, %cst_167 [1] : vector<8x8xf32> to vector<8xf32>
    %671 = vector.shape_cast %670 : vector<8xf32> to vector<8x1xf32>
    %672 = vector.broadcast %671 : vector<8x1xf32> to vector<8x8xf32>
    %673 = arith.subf %669, %672 : vector<8x8xf32>
    %674 = math.exp %673 : vector<8x8xf32>
    %cst_168 = arith.constant dense<0.000000e+00> : vector<8xf32>
    %675 = vector.multi_reduction <add>, %674, %cst_168 [1] : vector<8x8xf32> to vector<8xf32>
    %676 = vector.shape_cast %675 : vector<8xf32> to vector<8x1xf32>
    %677 = tpu.reciprocal %676 {approx = true} : vector<8x1xf32> -> vector<8x1xf32>
    %678 = vector.broadcast %677 : vector<8x1xf32> to vector<8x8xf32>
    %679 = arith.mulf %674, %678 : vector<8x8xf32>
    %680 = arith.truncf %679 : vector<8x8xf32> to vector<8x8xbf16>
    %681 = vector.shape_cast %680 : vector<8x8xbf16> to vector<8x1x8xbf16>
    %cst_169 = arith.constant dense<0.000000e+00> : vector<8x1x32xf32>
    %682 = tpu.matmul %681, %476, %cst_169 {dimension_numbers = #tpu.dot_dimension_numbers<[2], [1], [1], [2], [0, 0, 0, 1, 1, 2], [0], [0]>} : vector<8x1x8xbf16>, vector<8x8x32xbf16>, vector<8x1x32xf32> -> vector<8x1x32xf32>
    %683 = vector.shape_cast %682 : vector<8x1x32xf32> to vector<8x32xf32>
    %cst_170 = arith.constant dense<0.000000e+00> : vector<8x32xf32>
    %684 = tpu.matmul %664, %478, %cst_170 {dimension_numbers = #tpu.dot_dimension_numbers<[1], [0], [0], [1], [0, 0, 1, 1], [], []>} : vector<8x32xbf16>, vector<32x32xbf16>, vector<8x32xf32> -> vector<8x32xf32>
    %685 = arith.addf %683, %684 : vector<8x32xf32>
    %686 = math.tanh %685 : vector<8x32xf32>
    %687 = vector.extract_strided_slice %468 {offsets = [32, 0], sizes = [8, 128], strides = [1, 1]} : vector<64x128xf32> to vector<8x128xf32>
    %688 = arith.truncf %686 : vector<8x32xf32> to vector<8x32xbf16>
    %cst_171 = arith.constant dense<0.000000e+00> : vector<8x128xf32>
    %689 = tpu.matmul %688, %477, %cst_171 {dimension_numbers = #tpu.dot_dimension_numbers<[1], [0], [0], [1], [0, 0, 1, 1], [], []>} : vector<8x32xbf16>, vector<32x128xbf16>, vector<8x128xf32> -> vector<8x128xf32>
    %690 = arith.addf %687, %689 : vector<8x128xf32>
    %691 = vector.extract_strided_slice %690 {offsets = [0, 0], sizes = [8, 32], strides = [1, 1]} : vector<8x128xf32> to vector<8x32xf32>
    %692 = arith.negf %691 : vector<8x32xf32>
    %693 = math.exp %692 : vector<8x32xf32>
    %cst_172 = arith.constant 1.000000e+00 : f32
    %694 = vector.broadcast %cst_172 : f32 to vector<8x32xf32>
    %695 = arith.addf %694, %693 : vector<8x32xf32>
    %696 = arith.divf %694, %695 : vector<8x32xf32>
    %697 = vector.extract_strided_slice %690 {offsets = [0, 32], sizes = [8, 32], strides = [1, 1]} : vector<8x128xf32> to vector<8x32xf32>
    %698 = arith.negf %697 : vector<8x32xf32>
    %699 = math.exp %698 : vector<8x32xf32>
    %cst_173 = arith.constant 1.000000e+00 : f32
    %700 = vector.broadcast %cst_173 : f32 to vector<8x32xf32>
    %701 = arith.addf %700, %699 : vector<8x32xf32>
    %702 = arith.divf %700, %701 : vector<8x32xf32>
    %703 = vector.extract_strided_slice %690 {offsets = [0, 64], sizes = [8, 32], strides = [1, 1]} : vector<8x128xf32> to vector<8x32xf32>
    %704 = math.tanh %703 : vector<8x32xf32>
    %705 = vector.extract_strided_slice %690 {offsets = [0, 96], sizes = [8, 32], strides = [1, 1]} : vector<8x128xf32> to vector<8x32xf32>
    %706 = arith.negf %705 : vector<8x32xf32>
    %707 = math.exp %706 : vector<8x32xf32>
    %cst_174 = arith.constant 1.000000e+00 : f32
    %708 = vector.broadcast %cst_174 : f32 to vector<8x32xf32>
    %709 = arith.addf %708, %707 : vector<8x32xf32>
    %710 = arith.divf %708, %709 : vector<8x32xf32>
    %711 = arith.mulf %702, %661 : vector<8x32xf32>
    %712 = arith.mulf %696, %704 : vector<8x32xf32>
    %713 = arith.addf %711, %712 : vector<8x32xf32>
    %714 = math.tanh %713 : vector<8x32xf32>
    %715 = arith.mulf %710, %714 : vector<8x32xf32>
    %716 = arith.truncf %715 : vector<8x32xf32> to vector<8x32xbf16>
    %717 = vector.shape_cast %716 : vector<8x32xbf16> to vector<8x1x32xbf16>
    %cst_175 = arith.constant dense<0.000000e+00> : vector<8x1x8xf32>
    %718 = tpu.matmul %717, %472, %cst_175 {dimension_numbers = #tpu.dot_dimension_numbers<[2], [2], [1], [1], [0, 0, 0, 1, 1, 1], [0], [0]>} : vector<8x1x32xbf16>, vector<8x8x32xbf16>, vector<8x1x8xf32> -> vector<8x1x8xf32>
    %719 = vector.shape_cast %718 : vector<8x1x8xf32> to vector<8x8xf32>
    %cst_176 = arith.constant 0xFF800000 : f32
    %720 = vector.broadcast %cst_176 : f32 to vector<8x8xf32>
    %721 = arith.select %5, %720, %719 : vector<8x8xi1>, vector<8x8xf32>
    %cst_177 = arith.constant dense<0xFF800000> : vector<8xf32>
    %722 = vector.multi_reduction <maximumf>, %721, %cst_177 [1] : vector<8x8xf32> to vector<8xf32>
    %723 = vector.shape_cast %722 : vector<8xf32> to vector<8x1xf32>
    %724 = vector.broadcast %723 : vector<8x1xf32> to vector<8x8xf32>
    %725 = arith.subf %721, %724 : vector<8x8xf32>
    %726 = math.exp %725 : vector<8x8xf32>
    %cst_178 = arith.constant dense<0.000000e+00> : vector<8xf32>
    %727 = vector.multi_reduction <add>, %726, %cst_178 [1] : vector<8x8xf32> to vector<8xf32>
    %728 = vector.shape_cast %727 : vector<8xf32> to vector<8x1xf32>
    %729 = tpu.reciprocal %728 {approx = true} : vector<8x1xf32> -> vector<8x1xf32>
    %730 = vector.broadcast %729 : vector<8x1xf32> to vector<8x8xf32>
    %731 = arith.mulf %726, %730 : vector<8x8xf32>
    %732 = arith.truncf %731 : vector<8x8xf32> to vector<8x8xbf16>
    %733 = vector.shape_cast %732 : vector<8x8xbf16> to vector<8x1x8xbf16>
    %cst_179 = arith.constant dense<0.000000e+00> : vector<8x1x32xf32>
    %734 = tpu.matmul %733, %476, %cst_179 {dimension_numbers = #tpu.dot_dimension_numbers<[2], [1], [1], [2], [0, 0, 0, 1, 1, 2], [0], [0]>} : vector<8x1x8xbf16>, vector<8x8x32xbf16>, vector<8x1x32xf32> -> vector<8x1x32xf32>
    %735 = vector.shape_cast %734 : vector<8x1x32xf32> to vector<8x32xf32>
    %cst_180 = arith.constant dense<0.000000e+00> : vector<8x32xf32>
    %736 = tpu.matmul %716, %478, %cst_180 {dimension_numbers = #tpu.dot_dimension_numbers<[1], [0], [0], [1], [0, 0, 1, 1], [], []>} : vector<8x32xbf16>, vector<32x32xbf16>, vector<8x32xf32> -> vector<8x32xf32>
    %737 = arith.addf %735, %736 : vector<8x32xf32>
    %738 = math.tanh %737 : vector<8x32xf32>
    %739 = vector.extract_strided_slice %468 {offsets = [40, 0], sizes = [8, 128], strides = [1, 1]} : vector<64x128xf32> to vector<8x128xf32>
    %740 = arith.truncf %738 : vector<8x32xf32> to vector<8x32xbf16>
    %cst_181 = arith.constant dense<0.000000e+00> : vector<8x128xf32>
    %741 = tpu.matmul %740, %477, %cst_181 {dimension_numbers = #tpu.dot_dimension_numbers<[1], [0], [0], [1], [0, 0, 1, 1], [], []>} : vector<8x32xbf16>, vector<32x128xbf16>, vector<8x128xf32> -> vector<8x128xf32>
    %742 = arith.addf %739, %741 : vector<8x128xf32>
    %743 = vector.extract_strided_slice %742 {offsets = [0, 0], sizes = [8, 32], strides = [1, 1]} : vector<8x128xf32> to vector<8x32xf32>
    %744 = arith.negf %743 : vector<8x32xf32>
    %745 = math.exp %744 : vector<8x32xf32>
    %cst_182 = arith.constant 1.000000e+00 : f32
    %746 = vector.broadcast %cst_182 : f32 to vector<8x32xf32>
    %747 = arith.addf %746, %745 : vector<8x32xf32>
    %748 = arith.divf %746, %747 : vector<8x32xf32>
    %749 = vector.extract_strided_slice %742 {offsets = [0, 32], sizes = [8, 32], strides = [1, 1]} : vector<8x128xf32> to vector<8x32xf32>
    %750 = arith.negf %749 : vector<8x32xf32>
    %751 = math.exp %750 : vector<8x32xf32>
    %cst_183 = arith.constant 1.000000e+00 : f32
    %752 = vector.broadcast %cst_183 : f32 to vector<8x32xf32>
    %753 = arith.addf %752, %751 : vector<8x32xf32>
    %754 = arith.divf %752, %753 : vector<8x32xf32>
    %755 = vector.extract_strided_slice %742 {offsets = [0, 64], sizes = [8, 32], strides = [1, 1]} : vector<8x128xf32> to vector<8x32xf32>
    %756 = math.tanh %755 : vector<8x32xf32>
    %757 = vector.extract_strided_slice %742 {offsets = [0, 96], sizes = [8, 32], strides = [1, 1]} : vector<8x128xf32> to vector<8x32xf32>
    %758 = arith.negf %757 : vector<8x32xf32>
    %759 = math.exp %758 : vector<8x32xf32>
    %cst_184 = arith.constant 1.000000e+00 : f32
    %760 = vector.broadcast %cst_184 : f32 to vector<8x32xf32>
    %761 = arith.addf %760, %759 : vector<8x32xf32>
    %762 = arith.divf %760, %761 : vector<8x32xf32>
    %763 = arith.mulf %754, %713 : vector<8x32xf32>
    %764 = arith.mulf %748, %756 : vector<8x32xf32>
    %765 = arith.addf %763, %764 : vector<8x32xf32>
    %766 = math.tanh %765 : vector<8x32xf32>
    %767 = arith.mulf %762, %766 : vector<8x32xf32>
    %768 = arith.truncf %767 : vector<8x32xf32> to vector<8x32xbf16>
    %769 = vector.shape_cast %768 : vector<8x32xbf16> to vector<8x1x32xbf16>
    %cst_185 = arith.constant dense<0.000000e+00> : vector<8x1x8xf32>
    %770 = tpu.matmul %769, %472, %cst_185 {dimension_numbers = #tpu.dot_dimension_numbers<[2], [2], [1], [1], [0, 0, 0, 1, 1, 1], [0], [0]>} : vector<8x1x32xbf16>, vector<8x8x32xbf16>, vector<8x1x8xf32> -> vector<8x1x8xf32>
    %771 = vector.shape_cast %770 : vector<8x1x8xf32> to vector<8x8xf32>
    %cst_186 = arith.constant 0xFF800000 : f32
    %772 = vector.broadcast %cst_186 : f32 to vector<8x8xf32>
    %773 = arith.select %5, %772, %771 : vector<8x8xi1>, vector<8x8xf32>
    %cst_187 = arith.constant dense<0xFF800000> : vector<8xf32>
    %774 = vector.multi_reduction <maximumf>, %773, %cst_187 [1] : vector<8x8xf32> to vector<8xf32>
    %775 = vector.shape_cast %774 : vector<8xf32> to vector<8x1xf32>
    %776 = vector.broadcast %775 : vector<8x1xf32> to vector<8x8xf32>
    %777 = arith.subf %773, %776 : vector<8x8xf32>
    %778 = math.exp %777 : vector<8x8xf32>
    %cst_188 = arith.constant dense<0.000000e+00> : vector<8xf32>
    %779 = vector.multi_reduction <add>, %778, %cst_188 [1] : vector<8x8xf32> to vector<8xf32>
    %780 = vector.shape_cast %779 : vector<8xf32> to vector<8x1xf32>
    %781 = tpu.reciprocal %780 {approx = true} : vector<8x1xf32> -> vector<8x1xf32>
    %782 = vector.broadcast %781 : vector<8x1xf32> to vector<8x8xf32>
    %783 = arith.mulf %778, %782 : vector<8x8xf32>
    %784 = arith.truncf %783 : vector<8x8xf32> to vector<8x8xbf16>
    %785 = vector.shape_cast %784 : vector<8x8xbf16> to vector<8x1x8xbf16>
    %cst_189 = arith.constant dense<0.000000e+00> : vector<8x1x32xf32>
    %786 = tpu.matmul %785, %476, %cst_189 {dimension_numbers = #tpu.dot_dimension_numbers<[2], [1], [1], [2], [0, 0, 0, 1, 1, 2], [0], [0]>} : vector<8x1x8xbf16>, vector<8x8x32xbf16>, vector<8x1x32xf32> -> vector<8x1x32xf32>
    %787 = vector.shape_cast %786 : vector<8x1x32xf32> to vector<8x32xf32>
    %cst_190 = arith.constant dense<0.000000e+00> : vector<8x32xf32>
    %788 = tpu.matmul %768, %478, %cst_190 {dimension_numbers = #tpu.dot_dimension_numbers<[1], [0], [0], [1], [0, 0, 1, 1], [], []>} : vector<8x32xbf16>, vector<32x32xbf16>, vector<8x32xf32> -> vector<8x32xf32>
    %789 = arith.addf %787, %788 : vector<8x32xf32>
    %790 = math.tanh %789 : vector<8x32xf32>
    %791 = vector.extract_strided_slice %468 {offsets = [48, 0], sizes = [8, 128], strides = [1, 1]} : vector<64x128xf32> to vector<8x128xf32>
    %792 = arith.truncf %790 : vector<8x32xf32> to vector<8x32xbf16>
    %cst_191 = arith.constant dense<0.000000e+00> : vector<8x128xf32>
    %793 = tpu.matmul %792, %477, %cst_191 {dimension_numbers = #tpu.dot_dimension_numbers<[1], [0], [0], [1], [0, 0, 1, 1], [], []>} : vector<8x32xbf16>, vector<32x128xbf16>, vector<8x128xf32> -> vector<8x128xf32>
    %794 = arith.addf %791, %793 : vector<8x128xf32>
    %795 = vector.extract_strided_slice %794 {offsets = [0, 0], sizes = [8, 32], strides = [1, 1]} : vector<8x128xf32> to vector<8x32xf32>
    %796 = arith.negf %795 : vector<8x32xf32>
    %797 = math.exp %796 : vector<8x32xf32>
    %cst_192 = arith.constant 1.000000e+00 : f32
    %798 = vector.broadcast %cst_192 : f32 to vector<8x32xf32>
    %799 = arith.addf %798, %797 : vector<8x32xf32>
    %800 = arith.divf %798, %799 : vector<8x32xf32>
    %801 = vector.extract_strided_slice %794 {offsets = [0, 32], sizes = [8, 32], strides = [1, 1]} : vector<8x128xf32> to vector<8x32xf32>
    %802 = arith.negf %801 : vector<8x32xf32>
    %803 = math.exp %802 : vector<8x32xf32>
    %cst_193 = arith.constant 1.000000e+00 : f32
    %804 = vector.broadcast %cst_193 : f32 to vector<8x32xf32>
    %805 = arith.addf %804, %803 : vector<8x32xf32>
    %806 = arith.divf %804, %805 : vector<8x32xf32>
    %807 = vector.extract_strided_slice %794 {offsets = [0, 64], sizes = [8, 32], strides = [1, 1]} : vector<8x128xf32> to vector<8x32xf32>
    %808 = math.tanh %807 : vector<8x32xf32>
    %809 = vector.extract_strided_slice %794 {offsets = [0, 96], sizes = [8, 32], strides = [1, 1]} : vector<8x128xf32> to vector<8x32xf32>
    %810 = arith.negf %809 : vector<8x32xf32>
    %811 = math.exp %810 : vector<8x32xf32>
    %cst_194 = arith.constant 1.000000e+00 : f32
    %812 = vector.broadcast %cst_194 : f32 to vector<8x32xf32>
    %813 = arith.addf %812, %811 : vector<8x32xf32>
    %814 = arith.divf %812, %813 : vector<8x32xf32>
    %815 = arith.mulf %806, %765 : vector<8x32xf32>
    %816 = arith.mulf %800, %808 : vector<8x32xf32>
    %817 = arith.addf %815, %816 : vector<8x32xf32>
    %818 = math.tanh %817 : vector<8x32xf32>
    %819 = arith.mulf %814, %818 : vector<8x32xf32>
    %820 = arith.truncf %819 : vector<8x32xf32> to vector<8x32xbf16>
    %821 = vector.shape_cast %820 : vector<8x32xbf16> to vector<8x1x32xbf16>
    %cst_195 = arith.constant dense<0.000000e+00> : vector<8x1x8xf32>
    %822 = tpu.matmul %821, %472, %cst_195 {dimension_numbers = #tpu.dot_dimension_numbers<[2], [2], [1], [1], [0, 0, 0, 1, 1, 1], [0], [0]>} : vector<8x1x32xbf16>, vector<8x8x32xbf16>, vector<8x1x8xf32> -> vector<8x1x8xf32>
    %823 = vector.shape_cast %822 : vector<8x1x8xf32> to vector<8x8xf32>
    %cst_196 = arith.constant 0xFF800000 : f32
    %824 = vector.broadcast %cst_196 : f32 to vector<8x8xf32>
    %825 = arith.select %5, %824, %823 : vector<8x8xi1>, vector<8x8xf32>
    %cst_197 = arith.constant dense<0xFF800000> : vector<8xf32>
    %826 = vector.multi_reduction <maximumf>, %825, %cst_197 [1] : vector<8x8xf32> to vector<8xf32>
    %827 = vector.shape_cast %826 : vector<8xf32> to vector<8x1xf32>
    %828 = vector.broadcast %827 : vector<8x1xf32> to vector<8x8xf32>
    %829 = arith.subf %825, %828 : vector<8x8xf32>
    %830 = math.exp %829 : vector<8x8xf32>
    %cst_198 = arith.constant dense<0.000000e+00> : vector<8xf32>
    %831 = vector.multi_reduction <add>, %830, %cst_198 [1] : vector<8x8xf32> to vector<8xf32>
    %832 = vector.shape_cast %831 : vector<8xf32> to vector<8x1xf32>
    %833 = tpu.reciprocal %832 {approx = true} : vector<8x1xf32> -> vector<8x1xf32>
    %834 = vector.broadcast %833 : vector<8x1xf32> to vector<8x8xf32>
    %835 = arith.mulf %830, %834 : vector<8x8xf32>
    %836 = arith.truncf %835 : vector<8x8xf32> to vector<8x8xbf16>
    %837 = vector.shape_cast %836 : vector<8x8xbf16> to vector<8x1x8xbf16>
    %cst_199 = arith.constant dense<0.000000e+00> : vector<8x1x32xf32>
    %838 = tpu.matmul %837, %476, %cst_199 {dimension_numbers = #tpu.dot_dimension_numbers<[2], [1], [1], [2], [0, 0, 0, 1, 1, 2], [0], [0]>} : vector<8x1x8xbf16>, vector<8x8x32xbf16>, vector<8x1x32xf32> -> vector<8x1x32xf32>
    %839 = vector.shape_cast %838 : vector<8x1x32xf32> to vector<8x32xf32>
    %cst_200 = arith.constant dense<0.000000e+00> : vector<8x32xf32>
    %840 = tpu.matmul %820, %478, %cst_200 {dimension_numbers = #tpu.dot_dimension_numbers<[1], [0], [0], [1], [0, 0, 1, 1], [], []>} : vector<8x32xbf16>, vector<32x32xbf16>, vector<8x32xf32> -> vector<8x32xf32>
    %841 = arith.addf %839, %840 : vector<8x32xf32>
    %842 = math.tanh %841 : vector<8x32xf32>
    %843 = vector.extract_strided_slice %468 {offsets = [56, 0], sizes = [8, 128], strides = [1, 1]} : vector<64x128xf32> to vector<8x128xf32>
    %844 = arith.truncf %842 : vector<8x32xf32> to vector<8x32xbf16>
    %cst_201 = arith.constant dense<0.000000e+00> : vector<8x128xf32>
    %845 = tpu.matmul %844, %477, %cst_201 {dimension_numbers = #tpu.dot_dimension_numbers<[1], [0], [0], [1], [0, 0, 1, 1], [], []>} : vector<8x32xbf16>, vector<32x128xbf16>, vector<8x128xf32> -> vector<8x128xf32>
    %846 = arith.addf %843, %845 : vector<8x128xf32>
    %847 = vector.extract_strided_slice %846 {offsets = [0, 0], sizes = [8, 32], strides = [1, 1]} : vector<8x128xf32> to vector<8x32xf32>
    %848 = arith.negf %847 : vector<8x32xf32>
    %849 = math.exp %848 : vector<8x32xf32>
    %cst_202 = arith.constant 1.000000e+00 : f32
    %850 = vector.broadcast %cst_202 : f32 to vector<8x32xf32>
    %851 = arith.addf %850, %849 : vector<8x32xf32>
    %852 = arith.divf %850, %851 : vector<8x32xf32>
    %853 = vector.extract_strided_slice %846 {offsets = [0, 32], sizes = [8, 32], strides = [1, 1]} : vector<8x128xf32> to vector<8x32xf32>
    %854 = arith.negf %853 : vector<8x32xf32>
    %855 = math.exp %854 : vector<8x32xf32>
    %cst_203 = arith.constant 1.000000e+00 : f32
    %856 = vector.broadcast %cst_203 : f32 to vector<8x32xf32>
    %857 = arith.addf %856, %855 : vector<8x32xf32>
    %858 = arith.divf %856, %857 : vector<8x32xf32>
    %859 = vector.extract_strided_slice %846 {offsets = [0, 64], sizes = [8, 32], strides = [1, 1]} : vector<8x128xf32> to vector<8x32xf32>
    %860 = math.tanh %859 : vector<8x32xf32>
    %861 = vector.extract_strided_slice %846 {offsets = [0, 96], sizes = [8, 32], strides = [1, 1]} : vector<8x128xf32> to vector<8x32xf32>
    %862 = arith.negf %861 : vector<8x32xf32>
    %863 = math.exp %862 : vector<8x32xf32>
    %cst_204 = arith.constant 1.000000e+00 : f32
    %864 = vector.broadcast %cst_204 : f32 to vector<8x32xf32>
    %865 = arith.addf %864, %863 : vector<8x32xf32>
    %866 = arith.divf %864, %865 : vector<8x32xf32>
    %867 = arith.mulf %858, %817 : vector<8x32xf32>
    %868 = arith.mulf %852, %860 : vector<8x32xf32>
    %869 = arith.addf %867, %868 : vector<8x32xf32>
    %870 = math.tanh %869 : vector<8x32xf32>
    %871 = arith.mulf %866, %870 : vector<8x32xf32>
    %872 = arith.truncf %871 : vector<8x32xf32> to vector<8x32xbf16>
    %873 = vector.shape_cast %872 : vector<8x32xbf16> to vector<8x1x32xbf16>
    %cst_205 = arith.constant dense<0.000000e+00> : vector<8x1x8xf32>
    %874 = tpu.matmul %873, %472, %cst_205 {dimension_numbers = #tpu.dot_dimension_numbers<[2], [2], [1], [1], [0, 0, 0, 1, 1, 1], [0], [0]>} : vector<8x1x32xbf16>, vector<8x8x32xbf16>, vector<8x1x8xf32> -> vector<8x1x8xf32>
    %875 = vector.shape_cast %874 : vector<8x1x8xf32> to vector<8x8xf32>
    %cst_206 = arith.constant 0xFF800000 : f32
    %876 = vector.broadcast %cst_206 : f32 to vector<8x8xf32>
    %877 = arith.select %5, %876, %875 : vector<8x8xi1>, vector<8x8xf32>
    %cst_207 = arith.constant dense<0xFF800000> : vector<8xf32>
    %878 = vector.multi_reduction <maximumf>, %877, %cst_207 [1] : vector<8x8xf32> to vector<8xf32>
    %879 = vector.shape_cast %878 : vector<8xf32> to vector<8x1xf32>
    %880 = vector.broadcast %879 : vector<8x1xf32> to vector<8x8xf32>
    %881 = arith.subf %877, %880 : vector<8x8xf32>
    %882 = math.exp %881 : vector<8x8xf32>
    %cst_208 = arith.constant dense<0.000000e+00> : vector<8xf32>
    %883 = vector.multi_reduction <add>, %882, %cst_208 [1] : vector<8x8xf32> to vector<8xf32>
    %884 = vector.shape_cast %883 : vector<8xf32> to vector<8x1xf32>
    %885 = tpu.reciprocal %884 {approx = true} : vector<8x1xf32> -> vector<8x1xf32>
    %886 = vector.broadcast %885 : vector<8x1xf32> to vector<8x8xf32>
    %887 = arith.mulf %882, %886 : vector<8x8xf32>
    %888 = arith.truncf %887 : vector<8x8xf32> to vector<8x8xbf16>
    %889 = vector.shape_cast %888 : vector<8x8xbf16> to vector<8x1x8xbf16>
    %cst_209 = arith.constant dense<0.000000e+00> : vector<8x1x32xf32>
    %890 = tpu.matmul %889, %476, %cst_209 {dimension_numbers = #tpu.dot_dimension_numbers<[2], [1], [1], [2], [0, 0, 0, 1, 1, 2], [0], [0]>} : vector<8x1x8xbf16>, vector<8x8x32xbf16>, vector<8x1x32xf32> -> vector<8x1x32xf32>
    %891 = vector.shape_cast %890 : vector<8x1x32xf32> to vector<8x32xf32>
    %cst_210 = arith.constant dense<0.000000e+00> : vector<8x32xf32>
    %892 = tpu.matmul %872, %478, %cst_210 {dimension_numbers = #tpu.dot_dimension_numbers<[1], [0], [0], [1], [0, 0, 1, 1], [], []>} : vector<8x32xbf16>, vector<32x32xbf16>, vector<8x32xf32> -> vector<8x32xf32>
    %893 = arith.addf %891, %892 : vector<8x32xf32>
    %894 = math.tanh %893 : vector<8x32xf32>
    %c1 = arith.constant 1 : index
    %c0_211 = arith.constant 0 : index
    %c0_212 = arith.constant 0 : index
    %895 = vector.load %arg21[%c1, %c0_211, %c0_212] : memref<2x8x32xf32, #tpu.memory_space<vmem>>, vector<1x8x32xf32>
    %896 = vector.shape_cast %895 : vector<1x8x32xf32> to vector<8x32xf32>
    %897 = vector.shape_cast %894 : vector<8x32xf32> to vector<1x8x32xf32>
    tpu.vector_store %arg21[%c1, %c0_211, %c0_212], %897 {strides = array<i32>} : memref<2x8x32xf32, #tpu.memory_space<vmem>>, vector<1x8x32xf32>,
    %c1_213 = arith.constant 1 : index
    %c0_214 = arith.constant 0 : index
    %c0_215 = arith.constant 0 : index
    %898 = vector.load %arg22[%c1_213, %c0_214, %c0_215] : memref<2x8x32xf32, #tpu.memory_space<vmem>>, vector<1x8x32xf32>
    %899 = vector.shape_cast %898 : vector<1x8x32xf32> to vector<8x32xf32>
    %900 = vector.shape_cast %869 : vector<8x32xf32> to vector<1x8x32xf32>
    tpu.vector_store %arg22[%c1_213, %c0_214, %c0_215], %900 {strides = array<i32>} : memref<2x8x32xf32, #tpu.memory_space<vmem>>, vector<1x8x32xf32>,
    %901 = tpu.concatenate %530, %582, %634, %686, %738, %790, %842, %894 in 1 : vector<8x32xf32>, vector<8x32xf32>, vector<8x32xf32>, vector<8x32xf32>, vector<8x32xf32>, vector<8x32xf32>, vector<8x32xf32>, vector<8x32xf32> -> vector<8x256xf32>
    %c0_216 = arith.constant 0 : index
    %c0_217 = arith.constant 0 : index
    %902 = vector.load %arg20[%c0_216, %c0_217] : memref<8x256xf32, #tpu.memory_space<vmem>>, vector<8x256xf32>
    tpu.vector_store %arg20[%c0_216, %c0_217], %901 {strides = array<i32>} : memref<8x256xf32, #tpu.memory_space<vmem>>, vector<8x256xf32>,
    return
  }
  func.func @transform_0(%arg0: i32) -> (i32, i32, i32) {
    %c0_i32 = arith.constant 0 : i32
    %c0_i32_0 = arith.constant 0 : i32
    %c0_i32_1 = arith.constant 0 : i32
    return %c0_i32, %arg0, %c0_i32_0 : i32, i32, i32
  }
  func.func @transform_1(%arg0: i32) -> (i32, i32) {
    %c0_i32 = arith.constant 0 : i32
    %c0_i32_0 = arith.constant 0 : i32
    return %arg0, %c0_i32 : i32, i32
  }
  func.func @transform_2(%arg0: i32) -> (i32, i32) {
    %c0_i32 = arith.constant 0 : i32
    %c0_i32_0 = arith.constant 0 : i32
    return %arg0, %c0_i32 : i32, i32
  }
  func.func @transform_3(%arg0: i32) -> (i32, i32, i32) {
    %c0_i32 = arith.constant 0 : i32
    %c0_i32_0 = arith.constant 0 : i32
    %c0_i32_1 = arith.constant 0 : i32
    return %arg0, %c0_i32, %c0_i32_0 : i32, i32, i32
  }
  func.func @transform_4(%arg0: i32) -> (i32, i32) {
    %c0_i32 = arith.constant 0 : i32
    %c0_i32_0 = arith.constant 0 : i32
    return %arg0, %c0_i32 : i32, i32
  }
  func.func @transform_5(%arg0: i32) -> (i32, i32) {
    %c0_i32 = arith.constant 0 : i32
    %c0_i32_0 = arith.constant 0 : i32
    %c0_i32_1 = arith.constant 0 : i32
    return %c0_i32, %c0_i32_0 : i32, i32
  }
  func.func @transform_6(%arg0: i32) -> (i32, i32) {
    %c0_i32 = arith.constant 0 : i32
    %c0_i32_0 = arith.constant 0 : i32
    %c0_i32_1 = arith.constant 0 : i32
    return %c0_i32, %c0_i32_0 : i32, i32
  }
  func.func @transform_7(%arg0: i32) -> (i32, i32) {
    %c0_i32 = arith.constant 0 : i32
    %c0_i32_0 = arith.constant 0 : i32
    %c0_i32_1 = arith.constant 0 : i32
    return %c0_i32, %c0_i32_0 : i32, i32
  }
  func.func @transform_8(%arg0: i32) -> (i32, i32) {
    %c0_i32 = arith.constant 0 : i32
    %c0_i32_0 = arith.constant 0 : i32
    %c0_i32_1 = arith.constant 0 : i32
    return %c0_i32, %c0_i32_0 : i32, i32
  }
  func.func @transform_9(%arg0: i32) -> (i32, i32) {
    %c0_i32 = arith.constant 0 : i32
    %c0_i32_0 = arith.constant 0 : i32
    %c0_i32_1 = arith.constant 0 : i32
    return %c0_i32, %c0_i32_0 : i32, i32
  }
  func.func @transform_10(%arg0: i32) -> (i32, i32) {
    %c0_i32 = arith.constant 0 : i32
    %c0_i32_0 = arith.constant 0 : i32
    %c0_i32_1 = arith.constant 0 : i32
    return %c0_i32, %c0_i32_0 : i32, i32
  }
  func.func @transform_11(%arg0: i32) -> (i32, i32) {
    %c0_i32 = arith.constant 0 : i32
    %c0_i32_0 = arith.constant 0 : i32
    %c0_i32_1 = arith.constant 0 : i32
    return %c0_i32, %c0_i32_0 : i32, i32
  }
  func.func @transform_12(%arg0: i32) -> (i32, i32) {
    %c0_i32 = arith.constant 0 : i32
    %c0_i32_0 = arith.constant 0 : i32
    %c0_i32_1 = arith.constant 0 : i32
    return %c0_i32, %c0_i32_0 : i32, i32
  }
  func.func @transform_13(%arg0: i32) -> (i32, i32) {
    %c0_i32 = arith.constant 0 : i32
    %c0_i32_0 = arith.constant 0 : i32
    %c0_i32_1 = arith.constant 0 : i32
    return %c0_i32, %c0_i32_0 : i32, i32
  }
  func.func @transform_14(%arg0: i32) -> (i32, i32) {
    %c0_i32 = arith.constant 0 : i32
    %c0_i32_0 = arith.constant 0 : i32
    %c0_i32_1 = arith.constant 0 : i32
    return %c0_i32, %c0_i32_0 : i32, i32
  }
  func.func @transform_15(%arg0: i32) -> (i32, i32) {
    %c0_i32 = arith.constant 0 : i32
    %c0_i32_0 = arith.constant 0 : i32
    %c0_i32_1 = arith.constant 0 : i32
    return %c0_i32, %c0_i32_0 : i32, i32
  }
  func.func @transform_16(%arg0: i32) -> (i32, i32) {
    %c0_i32 = arith.constant 0 : i32
    %c0_i32_0 = arith.constant 0 : i32
    %c0_i32_1 = arith.constant 0 : i32
    return %c0_i32, %c0_i32_0 : i32, i32
  }
  func.func @transform_17(%arg0: i32) -> (i32, i32) {
    %c0_i32 = arith.constant 0 : i32
    %c0_i32_0 = arith.constant 0 : i32
    %c0_i32_1 = arith.constant 0 : i32
    return %c0_i32, %c0_i32_0 : i32, i32
  }
  func.func @transform_18(%arg0: i32) -> (i32, i32) {
    %c0_i32 = arith.constant 0 : i32
    %c0_i32_0 = arith.constant 0 : i32
    %c0_i32_1 = arith.constant 0 : i32
    return %c0_i32, %c0_i32_0 : i32, i32
  }
  func.func @transform_19(%arg0: i32) -> (i32, i32) {
    %c0_i32 = arith.constant 0 : i32
    %c0_i32_0 = arith.constant 0 : i32
    return %arg0, %c0_i32 : i32, i32
  }
  func.func @transform_20(%arg0: i32) -> (i32, i32, i32) {
    %c0_i32 = arith.constant 0 : i32
    %c0_i32_0 = arith.constant 0 : i32
    %c0_i32_1 = arith.constant 0 : i32
    return %c0_i32, %arg0, %c0_i32_0 : i32, i32, i32
  }
  func.func @transform_21(%arg0: i32) -> (i32, i32, i32) {
    %c0_i32 = arith.constant 0 : i32
    %c0_i32_0 = arith.constant 0 : i32
    %c0_i32_1 = arith.constant 0 : i32
    return %c0_i32, %arg0, %c0_i32_0 : i32, i32, i32
  }
}

</mosaic_0001>

<llo_original>
// kernel: tpu_custom_call.1
$region0: #{tpu_custom_call.1}
  #allocation0 [shape = 'u32[]', space=smem, size = 0x4, offset = 0x4, fixed_abs, tag = 'smem constant byte address 0x4 - core index']
  #allocation1 [shape = 'u32[72,128]{1,0:T(1,128)}', space=vmem, size = 0x9000, scoped, tag = 'internal scratch']
  %s0 = inlined_call_operand.hbm [shape: f32[8,8,16], index: 0, kind: input, shape index: {}]
  %s1 = inlined_call_operand.hbm [shape: f32[8,32], index: 1, kind: input, shape index: {}]
  %s2 = inlined_call_operand.hbm [shape: f32[8,32], index: 2, kind: input, shape index: {}]
  %s3 = inlined_call_operand.hbm [shape: f32[8,8,32], index: 3, kind: input, shape index: {}]
  %s4 = inlined_call_operand.hbm [shape: f32[8,8], index: 4, kind: input, shape index: {}]
  %s5 = inlined_call_operand.hbm [shape: f32[16,128], index: 5, kind: input, shape index: {}]
  %s6 = inlined_call_operand.vmem [shape: f32[1,128], index: 6, kind: input, shape index: {}]
  %s7 = inlined_call_operand.hbm [shape: f32[32,128], index: 7, kind: input, shape index: {}]
  %s8 = inlined_call_operand.vmem [shape: f32[1,128], index: 8, kind: input, shape index: {}]
  %s9 = inlined_call_operand.hbm [shape: f32[32,32], index: 9, kind: input, shape index: {}]
  %s10 = inlined_call_operand.hbm [shape: f32[32,32], index: 10, kind: input, shape index: {}]
  %s11 = inlined_call_operand.hbm [shape: f32[32,32], index: 11, kind: input, shape index: {}]
  %s12 = inlined_call_operand.hbm [shape: f32[32,128], index: 12, kind: input, shape index: {}]
  %s13 = inlined_call_operand.vmem [shape: f32[1,128], index: 13, kind: input, shape index: {}]
  %s14 = inlined_call_operand.hbm [shape: f32[32,128], index: 14, kind: input, shape index: {}]
  %s15 = inlined_call_operand.vmem [shape: f32[1,128], index: 15, kind: input, shape index: {}]
  %s16 = inlined_call_operand.hbm [shape: f32[32,32], index: 16, kind: input, shape index: {}]
  %s17 = inlined_call_operand.hbm [shape: f32[32,32], index: 17, kind: input, shape index: {}]
  %s18 = inlined_call_operand.hbm [shape: f32[32,32], index: 18, kind: input, shape index: {}]
  %s19 = inlined_call_operand.hbm [shape: f32[8,256], index: 19, kind: output, shape index: {0}]
  %s20 = inlined_call_operand.hbm [shape: f32[2,8,32], index: 20, kind: output, shape index: {1}]
  %s21 = inlined_call_operand.hbm [shape: f32[2,8,32], index: 21, kind: output, shape index: {2}]
  %22 = xla_tuple %s19, %s20, %s21
  %s23 = sld [smem:[#allocation0]]
  $region162: #{tpu_custom_call.1} parent=0
    _
  %s25 = ssub.s32 1, %s23
  %s26 = scalar_select 0, %s25, %s23
  $region1: #{tpu_custom_call.1} parent=0
    #allocation2 [shape = 'u8[32768]{0}', space=vmem, size = 0x8000, scoped, tag = 'input window, operand 0, single buffered']
    #allocation3 [shape = 's32[1]{0}', space=sflag, size = 0x4, scoped, tag = 'scoped memory for tpu_custom_call.1']
    #allocation4 [shape = 's32[1]{0}', space=sflag, size = 0x4, scoped, tag = 'scoped memory for tpu_custom_call.1']
    #allocation5 [shape = 'u8[4096]{0}', space=vmem, size = 0x1000, scoped, tag = 'input window, operand 1, single buffered']
    #allocation6 [shape = 's32[1]{0}', space=sflag, size = 0x4, scoped, tag = 'scoped memory for tpu_custom_call.1']
    #allocation7 [shape = 'u8[4096]{0}', space=vmem, size = 0x1000, scoped, tag = 'input window, operand 2, single buffered']
    #allocation8 [shape = 'u8[32768]{0}', space=vmem, size = 0x8000, scoped, tag = 'input window, operand 3, single buffered']
    #allocation9 [shape = 's32[1]{0}', space=sflag, size = 0x4, scoped, tag = 'scoped memory for tpu_custom_call.1']
    #allocation10 [shape = 'u8[4096]{0}', space=vmem, size = 0x1000, scoped, tag = 'input window, operand 4, single buffered']
    #allocation11 [shape = 'u8[8192]{0}', space=vmem, size = 0x2000, scoped, tag = 'input window, operand 5, single buffered']
    #allocation12 [shape = 's32[1]{0}', space=sflag, size = 0x4, scoped, tag = 'scoped memory for tpu_custom_call.1']
    #allocation13 [shape = 'u8[16384]{0}', space=vmem, size = 0x4000, scoped, tag = 'input window, operand 7, single buffered']
    #allocation14 [shape = 'u8[16384]{0}', space=vmem, size = 0x4000, scoped, tag = 'input window, operand 9, single buffered']
    #allocation15 [shape = 's32[1]{0}', space=sflag, size = 0x4, scoped, tag = 'scoped memory for tpu_custom_call.1']
    #allocation16 [shape = 'u8[16384]{0}', space=vmem, size = 0x4000, scoped, tag = 'input window, operand 10, single buffered']
    #allocation17 [shape = 'u8[16384]{0}', space=vmem, size = 0x4000, scoped, tag = 'input window, operand 11, single buffered']
    #allocation18 [shape = 's32[1]{0}', space=sflag, size = 0x4, scoped, tag = 'scoped memory for tpu_custom_call.1']
    #allocation19 [shape = 'u8[16384]{0}', space=vmem, size = 0x4000, scoped, tag = 'input window, operand 12, single buffered']
    #allocation20 [shape = 'u8[16384]{0}', space=vmem, size = 0x4000, scoped, tag = 'input window, operand 14, single buffered']
    #allocation21 [shape = 's32[1]{0}', space=sflag, size = 0x4, scoped, tag = 'scoped memory for tpu_custom_call.1']
    #allocation22 [shape = 'u8[16384]{0}', space=vmem, size = 0x4000, scoped, tag = 'input window, operand 16, single buffered']
    #allocation23 [shape = 'u8[16384]{0}', space=vmem, size = 0x4000, scoped, tag = 'input window, operand 17, single buffered']
    #allocation24 [shape = 's32[1]{0}', space=sflag, size = 0x4, scoped, tag = 'scoped memory for tpu_custom_call.1']
    #allocation25 [shape = 'u8[16384]{0}', space=vmem, size = 0x4000, scoped, tag = 'input window, operand 18, single buffered']
    #allocation26 [shape = 'u8[8192]{0}', space=vmem, size = 0x2000, scoped, tag = 'output window, operand 0, single buffered']
    #allocation27 [shape = 'u8[8192]{0}', space=vmem, size = 0x2000, scoped, tag = 'output window, operand 1, single buffered']
    #allocation28 [shape = 's32[1]{0}', space=sflag, size = 0x4, scoped, tag = 'scoped memory for tpu_custom_call.1']
    #allocation29 [shape = 'u8[8192]{0}', space=vmem, size = 0x2000, scoped, tag = 'output window, operand 2, single buffered']
    %27 = vsyncpa [#allocation3], 0
    %28 = vsyncpa [#allocation6], 0
    %29 = vsyncpa [#allocation9], 0
    %30 = vsyncpa [#allocation12], 0
    %31 = vsyncpa [#allocation15], 0
    %32 = vsyncpa [#allocation18], 0
    %33 = vsyncpa [#allocation21], 0
    %34 = vsyncpa [#allocation24], 0
    %35 = vsyncpa [#allocation4], 0
    %36 = vsyncpa [#allocation28], 0
    // Predicated region
    $region2: #{tpu_custom_call.1} parent=1 // pred_check
      _
    $region3: #{tpu_custom_call.1} parent=1 // pred_check_branch
      %38 = sbr.rel (0) target = $region5
    $region4: #{tpu_custom_call.1} parent=1 // pred_region
      %40 = vsyncadd [#allocation3], 0
      %s41 = sshll.u32 %s0, 4
      %s42 = int_to_ptr.hbm [resolvable:$true] %s41
      %s43 = sshll.u32 [#allocation2], 4
      %s44 = int_to_ptr.vmem [resolvable:$true] %s43
      %49 = dma.hbm_to_vmem [thread:$0]  %s42, 1024, %s44, [#allocation3], 128, 128, 8
    $region5: #{tpu_custom_call.1} parent=1 // pred_fallthru
      _
    // Predicated region
    $region6: #{tpu_custom_call.1} parent=1 // pred_check
      _
    $region7: #{tpu_custom_call.1} parent=1 // pred_check_branch
      %51 = sbr.rel (0) target = $region9
    $region8: #{tpu_custom_call.1} parent=1 // pred_region
      %53 = vsyncadd [#allocation6], 0
      %s55 = sshll.u32 %s1, 4
      %s56 = int_to_ptr.hbm [resolvable:$true] %s55
      %s57 = sshll.u32 [#allocation5], 4
      %s58 = int_to_ptr.vmem [resolvable:$true] %s57
      %60 = dma.hbm_to_vmem [thread:$0]  %s56, 128, %s58, [#allocation6]
    $region9: #{tpu_custom_call.1} parent=1 // pred_fallthru
      _
    // Predicated region
    $region10: #{tpu_custom_call.1} parent=1 // pred_check
      _
    $region11: #{tpu_custom_call.1} parent=1 // pred_check_branch
      %62 = sbr.rel (0) target = $region13
    $region12: #{tpu_custom_call.1} parent=1 // pred_region
      %64 = vsyncadd [#allocation6], 0
      %s66 = sshll.u32 %s2, 4
      %s67 = int_to_ptr.hbm [resolvable:$true] %s66
      %s68 = sshll.u32 [#allocation7], 4
      %s69 = int_to_ptr.vmem [resolvable:$true] %s68
      %71 = dma.hbm_to_vmem [thread:$0]  %s67, 128, %s69, [#allocation6]
    $region13: #{tpu_custom_call.1} parent=1 // pred_fallthru
      _
    // Predicated region
    $region14: #{tpu_custom_call.1} parent=1 // pred_check
      _
    $region15: #{tpu_custom_call.1} parent=1 // pred_check_branch
      %73 = sbr.rel (0) target = $region17
    $region16: #{tpu_custom_call.1} parent=1 // pred_region
      %75 = vsyncadd [#allocation9], 0
      %s76 = sshll.u32 %s3, 4
      %s77 = int_to_ptr.hbm [resolvable:$true] %s76
      %s78 = sshll.u32 [#allocation8], 4
      %s79 = int_to_ptr.vmem [resolvable:$true] %s78
      %84 = dma.hbm_to_vmem [thread:$0]  %s77, 1024, %s79, [#allocation9], 128, 128, 8
    $region17: #{tpu_custom_call.1} parent=1 // pred_fallthru
      _
    // Predicated region
    $region18: #{tpu_custom_call.1} parent=1 // pred_check
      _
    $region19: #{tpu_custom_call.1} parent=1 // pred_check_branch
      %86 = sbr.rel (0) target = $region21
    $region20: #{tpu_custom_call.1} parent=1 // pred_region
      %88 = vsyncadd [#allocation9], 0
      %s90 = sshll.u32 %s4, 4
      %s91 = int_to_ptr.hbm [resolvable:$true] %s90
      %s92 = sshll.u32 [#allocation10], 4
      %s93 = int_to_ptr.vmem [resolvable:$true] %s92
      %95 = dma.hbm_to_vmem [thread:$0]  %s91, 128, %s93, [#allocation9]
    $region21: #{tpu_custom_call.1} parent=1 // pred_fallthru
      _
    // Predicated region
    $region22: #{tpu_custom_call.1} parent=1 // pred_check
      _
    $region23: #{tpu_custom_call.1} parent=1 // pred_check_branch
      %97 = sbr.rel (0) target = $region25
    $region24: #{tpu_custom_call.1} parent=1 // pred_region
      %99 = vsyncadd [#allocation12], 0
      %s100 = sshll.u32 %s5, 4
      %s101 = int_to_ptr.hbm [resolvable:$true] %s100
      %s102 = sshll.u32 [#allocation11], 4
      %s103 = int_to_ptr.vmem [resolvable:$true] %s102
      %108 = dma.hbm_to_vmem [thread:$0]  %s101, 256, %s103, [#allocation12], 128, 128, 8
    $region25: #{tpu_custom_call.1} parent=1 // pred_fallthru
      _
    // Predicated region
    $region26: #{tpu_custom_call.1} parent=1 // pred_check
      _
    $region27: #{tpu_custom_call.1} parent=1 // pred_check_branch
      %110 = sbr.rel (0) target = $region29
    $region28: #{tpu_custom_call.1} parent=1 // pred_region
      _
    $region29: #{tpu_custom_call.1} parent=1 // pred_fallthru
      _
    // Predicated region
    $region30: #{tpu_custom_call.1} parent=1 // pred_check
      _
    $region31: #{tpu_custom_call.1} parent=1 // pred_check_branch
      %112 = sbr.rel (0) target = $region33
    $region32: #{tpu_custom_call.1} parent=1 // pred_region
      %114 = vsyncadd [#allocation12], 0
      %s115 = sshll.u32 %s7, 4
      %s116 = int_to_ptr.hbm [resolvable:$true] %s115
      %s117 = sshll.u32 [#allocation13], 4
      %s118 = int_to_ptr.vmem [resolvable:$true] %s117
      %123 = dma.hbm_to_vmem [thread:$0]  %s116, 512, %s118, [#allocation12], 128, 128, 8
    $region33: #{tpu_custom_call.1} parent=1 // pred_fallthru
      _
    // Predicated region
    $region34: #{tpu_custom_call.1} parent=1 // pred_check
      _
    $region35: #{tpu_custom_call.1} parent=1 // pred_check_branch
      %125 = sbr.rel (0) target = $region37
    $region36: #{tpu_custom_call.1} parent=1 // pred_region
      _
    $region37: #{tpu_custom_call.1} parent=1 // pred_fallthru
      _
    // Predicated region
    $region38: #{tpu_custom_call.1} parent=1 // pred_check
      _
    $region39: #{tpu_custom_call.1} parent=1 // pred_check_branch
      %127 = sbr.rel (0) target = $region41
    $region40: #{tpu_custom_call.1} parent=1 // pred_region
      %129 = vsyncadd [#allocation15], 0
      %s130 = sshll.u32 %s9, 4
      %s131 = int_to_ptr.hbm [resolvable:$true] %s130
      %s132 = sshll.u32 [#allocation14], 4
      %s133 = int_to_ptr.vmem [resolvable:$true] %s132
      %138 = dma.hbm_to_vmem [thread:$0]  %s131, 512, %s133, [#allocation15], 128, 128, 8
    $region41: #{tpu_custom_call.1} parent=1 // pred_fallthru
      _
    // Predicated region
    $region42: #{tpu_custom_call.1} parent=1 // pred_check
      _
    $region43: #{tpu_custom_call.1} parent=1 // pred_check_branch
      %140 = sbr.rel (0) target = $region45
    $region44: #{tpu_custom_call.1} parent=1 // pred_region
      %142 = vsyncadd [#allocation15], 0
      %s143 = sshll.u32 %s10, 4
      %s144 = int_to_ptr.hbm [resolvable:$true] %s143
      %s145 = sshll.u32 [#allocation16], 4
      %s146 = int_to_ptr.vmem [resolvable:$true] %s145
      %151 = dma.hbm_to_vmem [thread:$0]  %s144, 512, %s146, [#allocation15], 128, 128, 8
    $region45: #{tpu_custom_call.1} parent=1 // pred_fallthru
      _
    // Predicated region
    $region46: #{tpu_custom_call.1} parent=1 // pred_check
      _
    $region47: #{tpu_custom_call.1} parent=1 // pred_check_branch
      %153 = sbr.rel (0) target = $region49
    $region48: #{tpu_custom_call.1} parent=1 // pred_region
      %155 = vsyncadd [#allocation18], 0
      %s156 = sshll.u32 %s11, 4
      %s157 = int_to_ptr.hbm [resolvable:$true] %s156
      %s158 = sshll.u32 [#allocation17], 4
      %s159 = int_to_ptr.vmem [resolvable:$true] %s158
      %164 = dma.hbm_to_vmem [thread:$0]  %s157, 512, %s159, [#allocation18], 128, 128, 8
    $region49: #{tpu_custom_call.1} parent=1 // pred_fallthru
      _
    // Predicated region
    $region50: #{tpu_custom_call.1} parent=1 // pred_check
      _
    $region51: #{tpu_custom_call.1} parent=1 // pred_check_branch
      %166 = sbr.rel (0) target = $region53
    $region52: #{tpu_custom_call.1} parent=1 // pred_region
      %168 = vsyncadd [#allocation18], 0
      %s169 = sshll.u32 %s12, 4
      %s170 = int_to_ptr.hbm [resolvable:$true] %s169
      %s171 = sshll.u32 [#allocation19], 4
      %s172 = int_to_ptr.vmem [resolvable:$true] %s171
      %177 = dma.hbm_to_vmem [thread:$0]  %s170, 512, %s172, [#allocation18], 128, 128, 8
    $region53: #{tpu_custom_call.1} parent=1 // pred_fallthru
      _
    // Predicated region
    $region54: #{tpu_custom_call.1} parent=1 // pred_check
      _
    $region55: #{tpu_custom_call.1} parent=1 // pred_check_branch
      %179 = sbr.rel (0) target = $region57
    $region56: #{tpu_custom_call.1} parent=1 // pred_region
      _
    $region57: #{tpu_custom_call.1} parent=1 // pred_fallthru
      _
    // Predicated region
    $region58: #{tpu_custom_call.1} parent=1 // pred_check
      _
    $region59: #{tpu_custom_call.1} parent=1 // pred_check_branch
      %181 = sbr.rel (0) target = $region61
    $region60: #{tpu_custom_call.1} parent=1 // pred_region
      %183 = vsyncadd [#allocation21], 0
      %s184 = sshll.u32 %s14, 4
      %s185 = int_to_ptr.hbm [resolvable:$true] %s184
      %s186 = sshll.u32 [#allocation20], 4
      %s187 = int_to_ptr.vmem [resolvable:$true] %s186
      %192 = dma.hbm_to_vmem [thread:$0]  %s185, 512, %s187, [#allocation21], 128, 128, 8
    $region61: #{tpu_custom_call.1} parent=1 // pred_fallthru
      _
    // Predicated region
    $region62: #{tpu_custom_call.1} parent=1 // pred_check
      _
    $region63: #{tpu_custom_call.1} parent=1 // pred_check_branch
      %194 = sbr.rel (0) target = $region65
    $region64: #{tpu_custom_call.1} parent=1 // pred_region
      _
    $region65: #{tpu_custom_call.1} parent=1 // pred_fallthru
      _
    // Predicated region
    $region66: #{tpu_custom_call.1} parent=1 // pred_check
      _
    $region67: #{tpu_custom_call.1} parent=1 // pred_check_branch
      %196 = sbr.rel (0) target = $region69
    $region68: #{tpu_custom_call.1} parent=1 // pred_region
      %198 = vsyncadd [#allocation21], 0
      %s199 = sshll.u32 %s16, 4
      %s200 = int_to_ptr.hbm [resolvable:$true] %s199
      %s201 = sshll.u32 [#allocation22], 4
      %s202 = int_to_ptr.vmem [resolvable:$true] %s201
      %207 = dma.hbm_to_vmem [thread:$0]  %s200, 512, %s202, [#allocation21], 128, 128, 8
    $region69: #{tpu_custom_call.1} parent=1 // pred_fallthru
      _
    // Predicated region
    $region70: #{tpu_custom_call.1} parent=1 // pred_check
      _
    $region71: #{tpu_custom_call.1} parent=1 // pred_check_branch
      %209 = sbr.rel (0) target = $region73
    $region72: #{tpu_custom_call.1} parent=1 // pred_region
      %211 = vsyncadd [#allocation24], 0
      %s212 = sshll.u32 %s17, 4
      %s213 = int_to_ptr.hbm [resolvable:$true] %s212
      %s214 = sshll.u32 [#allocation23], 4
      %s215 = int_to_ptr.vmem [resolvable:$true] %s214
      %220 = dma.hbm_to_vmem [thread:$0]  %s213, 512, %s215, [#allocation24], 128, 128, 8
    $region73: #{tpu_custom_call.1} parent=1 // pred_fallthru
      _
    // Predicated region
    $region74: #{tpu_custom_call.1} parent=1 // pred_check
      _
    $region75: #{tpu_custom_call.1} parent=1 // pred_check_branch
      %222 = sbr.rel (0) target = $region77
    $region76: #{tpu_custom_call.1} parent=1 // pred_region
      %224 = vsyncadd [#allocation24], 0
      %s225 = sshll.u32 %s18, 4
      %s226 = int_to_ptr.hbm [resolvable:$true] %s225
      %s227 = sshll.u32 [#allocation25], 4
      %s228 = int_to_ptr.vmem [resolvable:$true] %s227
      %233 = dma.hbm_to_vmem [thread:$0]  %s226, 512, %s228, [#allocation24], 128, 128, 8
    $region77: #{tpu_custom_call.1} parent=1 // pred_fallthru
      _
    // Predicated region
    $region78: #{tpu_custom_call.1} parent=1 // pred_check
      _
    $region79: #{tpu_custom_call.1} parent=1 // pred_check_branch
      %235 = sbr.rel (0) target = $region81
    $region80: #{tpu_custom_call.1} parent=1 // pred_region
      %237 = dma.done [#allocation3], 1024
    $region81: #{tpu_custom_call.1} parent=1 // pred_fallthru
      _
    // Predicated region
    $region82: #{tpu_custom_call.1} parent=1 // pred_check
      _
    $region83: #{tpu_custom_call.1} parent=1 // pred_check_branch
      %239 = sbr.rel (0) target = $region85
    $region84: #{tpu_custom_call.1} parent=1 // pred_region
      %241 = dma.done [#allocation6], 128
    $region85: #{tpu_custom_call.1} parent=1 // pred_fallthru
      _
    // Predicated region
    $region86: #{tpu_custom_call.1} parent=1 // pred_check
      _
    $region87: #{tpu_custom_call.1} parent=1 // pred_check_branch
      %243 = sbr.rel (0) target = $region89
    $region88: #{tpu_custom_call.1} parent=1 // pred_region
      %245 = dma.done [#allocation6], 128
    $region89: #{tpu_custom_call.1} parent=1 // pred_fallthru
      _
    // Predicated region
    $region90: #{tpu_custom_call.1} parent=1 // pred_check
      _
    $region91: #{tpu_custom_call.1} parent=1 // pred_check_branch
      %247 = sbr.rel (0) target = $region93
    $region92: #{tpu_custom_call.1} parent=1 // pred_region
      %249 = dma.done [#allocation9], 1024
    $region93: #{tpu_custom_call.1} parent=1 // pred_fallthru
      _
    // Predicated region
    $region94: #{tpu_custom_call.1} parent=1 // pred_check
      _
    $region95: #{tpu_custom_call.1} parent=1 // pred_check_branch
      %251 = sbr.rel (0) target = $region97
    $region96: #{tpu_custom_call.1} parent=1 // pred_region
      %253 = dma.done [#allocation9], 128
    $region97: #{tpu_custom_call.1} parent=1 // pred_fallthru
      _
    // Predicated region
    $region98: #{tpu_custom_call.1} parent=1 // pred_check
      _
    $region99: #{tpu_custom_call.1} parent=1 // pred_check_branch
      %255 = sbr.rel (0) target = $region101
    $region100: #{tpu_custom_call.1} parent=1 // pred_region
      %257 = dma.done [#allocation12], 256
    $region101: #{tpu_custom_call.1} parent=1 // pred_fallthru
      _
    // Predicated region
    $region102: #{tpu_custom_call.1} parent=1 // pred_check
      _
    $region103: #{tpu_custom_call.1} parent=1 // pred_check_branch
      %259 = sbr.rel (0) target = $region105
    $region104: #{tpu_custom_call.1} parent=1 // pred_region
      %261 = dma.done [#allocation12], 512
    $region105: #{tpu_custom_call.1} parent=1 // pred_fallthru
      _
    // Predicated region
    $region106: #{tpu_custom_call.1} parent=1 // pred_check
      _
    $region107: #{tpu_custom_call.1} parent=1 // pred_check_branch
      %263 = sbr.rel (0) target = $region109
    $region108: #{tpu_custom_call.1} parent=1 // pred_region
      %265 = dma.done [#allocation15], 512
    $region109: #{tpu_custom_call.1} parent=1 // pred_fallthru
      _
    // Predicated region
    $region110: #{tpu_custom_call.1} parent=1 // pred_check
      _
    $region111: #{tpu_custom_call.1} parent=1 // pred_check_branch
      %267 = sbr.rel (0) target = $region113
    $region112: #{tpu_custom_call.1} parent=1 // pred_region
      %269 = dma.done [#allocation15], 512
    $region113: #{tpu_custom_call.1} parent=1 // pred_fallthru
      _
    // Predicated region
    $region114: #{tpu_custom_call.1} parent=1 // pred_check
      _
    $region115: #{tpu_custom_call.1} parent=1 // pred_check_branch
      %271 = sbr.rel (0) target = $region117
    $region116: #{tpu_custom_call.1} parent=1 // pred_region
      %273 = dma.done [#allocation18], 512
    $region117: #{tpu_custom_call.1} parent=1 // pred_fallthru
      _
    // Predicated region
    $region118: #{tpu_custom_call.1} parent=1 // pred_check
      _
    $region119: #{tpu_custom_call.1} parent=1 // pred_check_branch
      %275 = sbr.rel (0) target = $region121
    $region120: #{tpu_custom_call.1} parent=1 // pred_region
      %277 = dma.done [#allocation18], 512
    $region121: #{tpu_custom_call.1} parent=1 // pred_fallthru
      _
    // Predicated region
    $region122: #{tpu_custom_call.1} parent=1 // pred_check
      _
    $region123: #{tpu_custom_call.1} parent=1 // pred_check_branch
      %279 = sbr.rel (0) target = $region125
    $region124: #{tpu_custom_call.1} parent=1 // pred_region
      %281 = dma.done [#allocation21], 512
    $region125: #{tpu_custom_call.1} parent=1 // pred_fallthru
      _
    // Predicated region
    $region126: #{tpu_custom_call.1} parent=1 // pred_check
      _
    $region127: #{tpu_custom_call.1} parent=1 // pred_check_branch
      %283 = sbr.rel (0) target = $region129
    $region128: #{tpu_custom_call.1} parent=1 // pred_region
      %285 = dma.done [#allocation21], 512
    $region129: #{tpu_custom_call.1} parent=1 // pred_fallthru
      _
    // Predicated region
    $region130: #{tpu_custom_call.1} parent=1 // pred_check
      _
    $region131: #{tpu_custom_call.1} parent=1 // pred_check_branch
      %287 = sbr.rel (0) target = $region133
    $region132: #{tpu_custom_call.1} parent=1 // pred_region
      %289 = dma.done [#allocation24], 512
    $region133: #{tpu_custom_call.1} parent=1 // pred_fallthru
      _
    // Predicated region
    $region134: #{tpu_custom_call.1} parent=1 // pred_check
      _
    $region135: #{tpu_custom_call.1} parent=1 // pred_check_branch
      %291 = sbr.rel (0) target = $region137
    $region136: #{tpu_custom_call.1} parent=1 // pred_region
      %293 = dma.done [#allocation24], 512
    $region137: #{tpu_custom_call.1} parent=1 // pred_fallthru
      _
    %v295 = vld [vmem:[#allocation8] sm:$0xff]
    %v296 = vld [vmem:[#allocation8 + $0x8] sm:$0xff]
    %v297 = vld [vmem:[#allocation8 + $0x10] sm:$0xff]
    %v298 = vld [vmem:[#allocation8 + $0x18] sm:$0xff]
    %v299 = vld [vmem:[#allocation8 + $0x20] sm:$0xff]
    %v300 = vld [vmem:[#allocation8 + $0x28] sm:$0xff]
    %v301 = vld [vmem:[#allocation8 + $0x30] sm:$0xff]
    %v302 = vld [vmem:[#allocation8 + $0x38] sm:$0xff]
    %v303 = vpack.c.bf16 %v296, %v295
    %v304 = vpack.c.bf16 %v298, %v297
    %v305 = vpack.c.bf16 %v300, %v299
    %v306 = vpack.c.bf16 %v302, %v301
    %v307 = vld [vmem:[#allocation10] sm:$0xff]
    %vm308 = vcmp.gt.f32.partialorder %v307, 0.5
    %v309 = vld [vmem:[#allocation5] sm:$0xff]
    %v310 = vld [vmem:[#allocation7] sm:$0xff]
    %v311 = vld [vmem:[#allocation2] sm:$0xff]
    %v312 = vld [vmem:[#allocation2 + $0x8] sm:$0xff]
    %v313 = vld [vmem:[#allocation2 + $0x10] sm:$0xff]
    %v314 = vld [vmem:[#allocation2 + $0x18] sm:$0xff]
    %v315 = vld [vmem:[#allocation2 + $0x20] sm:$0xff]
    %v316 = vld [vmem:[#allocation2 + $0x28] sm:$0xff]
    %v317 = vld [vmem:[#allocation2 + $0x30] sm:$0xff]
    %v318 = vld [vmem:[#allocation2 + $0x38] sm:$0xff]
    %v319 = vpack.c.bf16 %v312, %v311
    %v320 = vpack.c.bf16 %v314, %v313
    %v321 = vpack.c.bf16 %v316, %v315
    %v322 = vpack.c.bf16 %v318, %v317
    %v323 = vld [vmem:[#allocation11] sm:$0xff]
    %v324 = vld [vmem:[#allocation11 + $0x8] sm:$0xff]
    %v325 = vld [vmem:[%s6] sm:$0x1]
    %v326 = vld [vmem:[#allocation13] sm:$0xff]
    %v327 = vld [vmem:[#allocation13 + $0x8] sm:$0xff]
    %v328 = vld [vmem:[#allocation13 + $0x10] sm:$0xff]
    %v329 = vld [vmem:[#allocation13 + $0x18] sm:$0xff]
    %v330 = vld [vmem:[%s8] sm:$0x1]
    %v331 = vld [vmem:[#allocation14] sm:$0xff]
    %v332 = vld [vmem:[#allocation14 + $0x8] sm:$0xff]
    %v333 = vld [vmem:[#allocation14 + $0x10] sm:$0xff]
    %v334 = vld [vmem:[#allocation14 + $0x18] sm:$0xff]
    %v335 = vld [vmem:[#allocation16] sm:$0xff]
    %v336 = vld [vmem:[#allocation16 + $0x8] sm:$0xff]
    %v337 = vld [vmem:[#allocation16 + $0x10] sm:$0xff]
    %v338 = vld [vmem:[#allocation16 + $0x18] sm:$0xff]
    %v339 = vld [vmem:[#allocation17] sm:$0xff]
    %v340 = vld [vmem:[#allocation17 + $0x8] sm:$0xff]
    %v341 = vld [vmem:[#allocation17 + $0x10] sm:$0xff]
    %v342 = vld [vmem:[#allocation17 + $0x18] sm:$0xff]
    %v343 = vadd.f32 %v325, %v330
    %v344 = vpack.c.bf16 %v324, %v323
    %v346 = vperm.slane %v343, 0
    %vm348 = vcmask 130048
    %v350 = vsel %vm348, %v319, 0
    %v353 = vsel %vm348, %v320, 0
    %v356 = vsel %vm348, %v321, 0
    %v359 = vsel %vm348, %v322, 0
    %361 = vmatpush.bf16.msra.mxu0 0
    %362 = vmatpush.bf16.msra.mxu0 0
    %363 = vmatpush.bf16.msra.mxu0 0
    %364 = vmatpush.bf16.msra.mxu0 0
    %365 = vmatpush.bf16.msra.mxu0 0
    %366 = vmatpush.bf16.msra.mxu0 0
    %367 = vmatpush.bf16.msra.mxu0 0
    %368 = vmatpush.bf16.msra.mxu0 %v344
    %369 = vmatmul.bf16.gmra.mxu0 %v350
    %v370 = vpop.f32.mrf.mxu0
    %v371 = vadd.f32 %v346, %v370
    %v372 = vpop.f32.mrf.mxu0
    %v373 = vadd.f32 %v346, %v372
    %374 = vmatmul.bf16.gmra.mxu0 %v353
    %v375 = vpop.f32.mrf.mxu0
    %v376 = vadd.f32 %v346, %v375
    %v377 = vpop.f32.mrf.mxu0
    %v378 = vadd.f32 %v346, %v377
    %379 = vmatmul.bf16.gmra.mxu0 %v356
    %v380 = vpop.f32.mrf.mxu0
    %v381 = vadd.f32 %v346, %v380
    %v382 = vpop.f32.mrf.mxu0
    %v383 = vadd.f32 %v346, %v382
    %384 = vmatmul.bf16.gmra.mxu0 %v359
    %v385 = vpop.f32.mrf.mxu0
    %v386 = vadd.f32 %v346, %v385
    %v387 = vpop.f32.mrf.mxu0
    %v388 = vadd.f32 %v346, %v387
    %389 = vdwg.mxu0
    %v390 = vpack.c.bf16 %v332, %v331
    %v391 = vpack.c.bf16 %v334, %v333
    %vm392 = vcmask 261120
    %v394 = vsel %vm392, %v303, 0
    %v397 = vsel %vm392, %v304, 0
    %v400 = vsel %vm392, %v305, 0
    %v403 = vsel %vm392, %v306, 0
    %405 = vmatpush.bf16.msra.mxu0 0
    %406 = vmatpush.bf16.msra.mxu0 0
    %407 = vmatpush.bf16.msra.mxu0 0
    %408 = vmatpush.bf16.msra.mxu0 0
    %409 = vmatpush.bf16.msra.mxu0 0
    %410 = vmatpush.bf16.msra.mxu0 0
    %411 = vmatpush.bf16.msra.mxu0 %v391
    %412 = vmatpush.bf16.msra.mxu0 %v390
    %413 = vmatmul.bf16.gmra.mxu0 %v394
    %v414 = vpop.f32.mrf.mxu0
    %v415 = vadd.f32 0.0, %v414
    %v416 = vpop.f32.mrf.mxu0
    %v417 = vadd.f32 0.0, %v416
    %418 = vmatmul.bf16.gmra.mxu0 %v397
    %v419 = vpop.f32.mrf.mxu0
    %v420 = vadd.f32 0.0, %v419
    %v421 = vpop.f32.mrf.mxu0
    %v422 = vadd.f32 0.0, %v421
    %423 = vmatmul.bf16.gmra.mxu0 %v400
    %v424 = vpop.f32.mrf.mxu0
    %v425 = vadd.f32 0.0, %v424
    %v426 = vpop.f32.mrf.mxu0
    %v427 = vadd.f32 0.0, %v426
    %428 = vmatmul.bf16.gmra.mxu0 %v403
    %v429 = vpop.f32.mrf.mxu0
    %v430 = vadd.f32 0.0, %v429
    %v431 = vpop.f32.mrf.mxu0
    %v432 = vadd.f32 0.0, %v431
    %433 = vdwg.mxu0
    %v434 = vpack.c.bf16 %v415, %v415
    %v435 = vpack.c.bf16 %v417, %v417
    %v436 = vpack.c.bf16 %v420, %v420
    %v437 = vpack.c.bf16 %v422, %v422
    %v438 = vpack.c.bf16 %v425, %v425
    %v439 = vpack.c.bf16 %v427, %v427
    %v440 = vpack.c.bf16 %v430, %v430
    %v441 = vpack.c.bf16 %v432, %v432
    %v442 = vpack.c.bf16 %v336, %v335
    %v443 = vpack.c.bf16 %v338, %v337
    %444 = vmatpush.bf16.msra.mxu0 0
    %445 = vmatpush.bf16.msra.mxu0 0
    %446 = vmatpush.bf16.msra.mxu0 0
    %447 = vmatpush.bf16.msra.mxu0 0
    %448 = vmatpush.bf16.msra.mxu0 0
    %449 = vmatpush.bf16.msra.mxu0 0
    %450 = vmatpush.bf16.msra.mxu0 %v443
    %451 = vmatpush.bf16.msra.mxu0 %v442
    %452 = vmatmul.bf16.gmra.mxu0 %v394
    %v453 = vpop.f32.mrf.mxu0
    %v454 = vadd.f32 0.0, %v453
    %v455 = vpop.f32.mrf.mxu0
    %v456 = vadd.f32 0.0, %v455
    %457 = vmatmul.bf16.gmra.mxu0 %v397
    %v458 = vpop.f32.mrf.mxu0
    %v459 = vadd.f32 0.0, %v458
    %v460 = vpop.f32.mrf.mxu0
    %v461 = vadd.f32 0.0, %v460
    %462 = vmatmul.bf16.gmra.mxu0 %v400
    %v463 = vpop.f32.mrf.mxu0
    %v464 = vadd.f32 0.0, %v463
    %v465 = vpop.f32.mrf.mxu0
    %v466 = vadd.f32 0.0, %v465
    %467 = vmatmul.bf16.gmra.mxu0 %v403
    %v468 = vpop.f32.mrf.mxu0
    %v469 = vadd.f32 0.0, %v468
    %v470 = vpop.f32.mrf.mxu0
    %v471 = vadd.f32 0.0, %v470
    %472 = vdwg.mxu0
    %v473 = vpack.c.bf16 %v454, %v454
    %v474 = vpack.c.bf16 %v456, %v456
    %v475 = vpack.c.bf16 %v459, %v459
    %v476 = vpack.c.bf16 %v461, %v461
    %v477 = vpack.c.bf16 %v464, %v464
    %v478 = vpack.c.bf16 %v466, %v466
    %v479 = vpack.c.bf16 %v469, %v469
    %v480 = vpack.c.bf16 %v471, %v471
    %v481 = vpack.c.bf16 %v327, %v326
    %v482 = vpack.c.bf16 %v329, %v328
    %v483 = vpack.c.bf16 %v340, %v339
    %v484 = vpack.c.bf16 %v342, %v341
    %v485 = vpack.c.bf16 %v309, %v309
    %v487 = vsel %vm392, %v485, 0
    %489 = vmatpush.bf16.msra.mxu0 0
    %490 = vmatpush.bf16.msra.mxu0 0
    %491 = vmatpush.bf16.msra.mxu0 0
    %492 = vmatpush.bf16.msra.mxu0 0
    %493 = vmatpush.bf16.msra.mxu0 0
    %494 = vmatpush.bf16.msra.mxu0 0
    %495 = vmatpush.bf16.msra.mxu0 %v482
    %496 = vmatpush.bf16.msra.mxu0 %v481
    %497 = vmatmul.bf16.gmra.mxu0 %v487
    %v498 = vpop.f32.mrf.mxu0
    %v499 = vadd.f32 0.0, %v498
    %v500 = vpop.f32.mrf.mxu0
    %501 = vdwg.mxu0
    %v502 = vadd.f32 %v371, %v499
    %v503 = vxor.u32 %v502, 2147483648
    %v504 = vmul.f32 %v503, 1.442695
    %v505 = vpow.pop %v504
    %v506 = vadd.f32 %v505, 1.0
    %v507 = vrcp.pop %v506
    %v508 = vmul.f32 %v506, %v507
    %v509 = vsub.f32 1.0, %v508
    %v510 = vmul.f32 %v507, %v509
    %v511 = vadd.f32 %v507, %v510
    %vm512 = vweird.f32 %v506
    %vm513 = vweird.f32 %v507
    %vm514 = vmor %vm512, %vm513
    %v515 = vsel %vm514, %v507, %v511
    %v516 = vand.u32 2147483647, %v506
    %vm517 = vcmp.eq.f32.partialorder %v516, 8.507059e+37
    %v518 = vand.u32 %v506, 2147483648
    %v519 = vor.u32 1.1754944e-38, %v518
    %v520 = vsel %vm517, %v519, %v515
    %v521 = vmul.f32 1.0, %v520
    %v522 = vtanh.pop %v502
    %524 = vrot.lane.b32.xlu0 %v310, 32
    %v525 = vpop.permute.xlu0 %524
    %v527 = vmul.f32 %v521, %v525
    %529 = vrot.lane.b32.xlu0 %v522, 64
    %v530 = vpop.permute.xlu0 %529
    %v532 = vmul.f32 %v521, %v530
    %534 = vrot.lane.b32.xlu0 %v532, 32
    %v535 = vpop.permute.xlu0 %534
    %v537 = vadd.f32 %v527, %v535
    %v538 = vtanh.pop %v537
    %540 = vrot.lane.b32.xlu0 %v538, 64
    %v541 = vpop.permute.xlu0 %540
    %v543 = vmul.f32 %v521, %v541
    %v544 = vpack.c.bf16 %v543, %v543
    %v546 = vrot.slane %v544, 3
    %vm547 = vcmask 1040384
    %v550 = vsel %vm547, %v544, %v546
    %vm552 = vcmask 1041409
    %v553 = vsel %vm552, %v544, %v546
    %v555 = vrot.slane %v553, 1
    %vm556 = vcmask 1042434
    %v557 = vsel %vm556, %v544, %v546
    %v559 = vrot.slane %v557, 2
    %vm560 = vcmask 1043459
    %v561 = vsel %vm560, %v544, %v546
    %v563 = vrot.slane %v561, 3
    %v564 = vunpack.i.l.s16 %v550
    %v565 = vunpack.i.h.s16 %v550
    %v566 = vunpack.i.l.s16 %v555
    %v567 = vunpack.i.h.s16 %v555
    %v568 = vunpack.i.l.s16 %v559
    %v569 = vunpack.i.h.s16 %v559
    %v570 = vunpack.i.l.s16 %v563
    %v571 = vunpack.i.h.s16 %v563
    %v572 = vpack.i.b16 %v564, %v564
    %v573 = vperm.slane %v572, 0
    %574 = vrot.lane.b32.xlu0 %v573, 32
    %v575 = vpop.permute.xlu0 %574
    %v577 = vsel %vm392, %v575, 0
    %v580 = vsel %vm392, %v434, 0
    %582 = vmatpush.bf16.xpose.msra.mxu0 0
    %583 = vmatpush.bf16.xpose.msra.mxu0 0
    %584 = vmatpush.bf16.xpose.msra.mxu0 0
    %585 = vmatpush.bf16.xpose.msra.mxu0 0
    %586 = vmatpush.bf16.xpose.msra.mxu0 0
    %587 = vmatpush.bf16.xpose.msra.mxu0 0
    %588 = vmatpush.bf16.xpose.msra.mxu0 0
    %589 = vmatpush.bf16.xpose.msra.mxu0 %v580
    %590 = vmatmul.bf16.gmra.mxu0 %v577
    %v591 = vpop.f32.mrf.mxu0
    %v592 = vadd.f32 0.0, %v591
    %v593 = vpop.f32.mrf.mxu0
    %594 = vdwg.mxu0
    %v595 = vpack.i.b16 %v565, %v565
    %v596 = vperm.slane %v595, 0
    %597 = vrot.lane.b32.xlu0 %v596, 32
    %v598 = vpop.permute.xlu0 %597
    %v600 = vsel %vm392, %v598, 0
    %v603 = vsel %vm392, %v435, 0
    %605 = vmatpush.bf16.xpose.msra.mxu0 0
    %606 = vmatpush.bf16.xpose.msra.mxu0 0
    %607 = vmatpush.bf16.xpose.msra.mxu0 0
    %608 = vmatpush.bf16.xpose.msra.mxu0 0
    %609 = vmatpush.bf16.xpose.msra.mxu0 0
    %610 = vmatpush.bf16.xpose.msra.mxu0 0
    %611 = vmatpush.bf16.xpose.msra.mxu0 0
    %612 = vmatpush.bf16.xpose.msra.mxu0 %v603
    %613 = vmatmul.bf16.gmra.mxu0 %v600
    %v614 = vpop.f32.mrf.mxu0
    %v615 = vadd.f32 0.0, %v614
    %v616 = vpop.f32.mrf.mxu0
    %617 = vdwg.mxu0
    %v618 = vpack.i.b16 %v566, %v566
    %v619 = vperm.slane %v618, 0
    %620 = vrot.lane.b32.xlu0 %v619, 32
    %v621 = vpop.permute.xlu0 %620
    %v623 = vsel %vm392, %v621, 0
    %v626 = vsel %vm392, %v436, 0
    %628 = vmatpush.bf16.xpose.msra.mxu0 0
    %629 = vmatpush.bf16.xpose.msra.mxu0 0
    %630 = vmatpush.bf16.xpose.msra.mxu0 0
    %631 = vmatpush.bf16.xpose.msra.mxu0 0
    %632 = vmatpush.bf16.xpose.msra.mxu0 0
    %633 = vmatpush.bf16.xpose.msra.mxu0 0
    %634 = vmatpush.bf16.xpose.msra.mxu0 0
    %635 = vmatpush.bf16.xpose.msra.mxu0 %v626
    %636 = vmatmul.bf16.gmra.mxu0 %v623
    %v637 = vpop.f32.mrf.mxu0
    %v638 = vadd.f32 0.0, %v637
    %v639 = vpop.f32.mrf.mxu0
    %640 = vdwg.mxu0
    %v641 = vpack.i.b16 %v567, %v567
    %v642 = vperm.slane %v641, 0
    %643 = vrot.lane.b32.xlu0 %v642, 32
    %v644 = vpop.permute.xlu0 %643
    %v646 = vsel %vm392, %v644, 0
    %v649 = vsel %vm392, %v437, 0
    %651 = vmatpush.bf16.xpose.msra.mxu0 0
    %652 = vmatpush.bf16.xpose.msra.mxu0 0
    %653 = vmatpush.bf16.xpose.msra.mxu0 0
    %654 = vmatpush.bf16.xpose.msra.mxu0 0
    %655 = vmatpush.bf16.xpose.msra.mxu0 0
    %656 = vmatpush.bf16.xpose.msra.mxu0 0
    %657 = vmatpush.bf16.xpose.msra.mxu0 0
    %658 = vmatpush.bf16.xpose.msra.mxu0 %v649
    %659 = vmatmul.bf16.gmra.mxu0 %v646
    %v660 = vpop.f32.mrf.mxu0
    %v661 = vadd.f32 0.0, %v660
    %v662 = vpop.f32.mrf.mxu0
    %663 = vdwg.mxu0
    %v664 = vpack.i.b16 %v568, %v568
    %v665 = vperm.slane %v664, 0
    %666 = vrot.lane.b32.xlu0 %v665, 32
    %v667 = vpop.permute.xlu0 %666
    %v669 = vsel %vm392, %v667, 0
    %v672 = vsel %vm392, %v438, 0
    %674 = vmatpush.bf16.xpose.msra.mxu0 0
    %675 = vmatpush.bf16.xpose.msra.mxu0 0
    %676 = vmatpush.bf16.xpose.msra.mxu0 0
    %677 = vmatpush.bf16.xpose.msra.mxu0 0
    %678 = vmatpush.bf16.xpose.msra.mxu0 0
    %679 = vmatpush.bf16.xpose.msra.mxu0 0
    %680 = vmatpush.bf16.xpose.msra.mxu0 0
    %681 = vmatpush.bf16.xpose.msra.mxu0 %v672
    %682 = vmatmul.bf16.gmra.mxu0 %v669
    %v683 = vpop.f32.mrf.mxu0
    %v684 = vadd.f32 0.0, %v683
    %v685 = vpop.f32.mrf.mxu0
    %686 = vdwg.mxu0
    %v687 = vpack.i.b16 %v569, %v569
    %v688 = vperm.slane %v687, 0
    %689 = vrot.lane.b32.xlu0 %v688, 32
    %v690 = vpop.permute.xlu0 %689
    %v692 = vsel %vm392, %v690, 0
    %v695 = vsel %vm392, %v439, 0
    %697 = vmatpush.bf16.xpose.msra.mxu0 0
    %698 = vmatpush.bf16.xpose.msra.mxu0 0
    %699 = vmatpush.bf16.xpose.msra.mxu0 0
    %700 = vmatpush.bf16.xpose.msra.mxu0 0
    %701 = vmatpush.bf16.xpose.msra.mxu0 0
    %702 = vmatpush.bf16.xpose.msra.mxu0 0
    %703 = vmatpush.bf16.xpose.msra.mxu0 0
    %704 = vmatpush.bf16.xpose.msra.mxu0 %v695
    %705 = vmatmul.bf16.gmra.mxu0 %v692
    %v706 = vpop.f32.mrf.mxu0
    %v707 = vadd.f32 0.0, %v706
    %v708 = vpop.f32.mrf.mxu0
    %709 = vdwg.mxu0
    %v710 = vpack.i.b16 %v570, %v570
    %v711 = vperm.slane %v710, 0
    %712 = vrot.lane.b32.xlu0 %v711, 32
    %v713 = vpop.permute.xlu0 %712
    %v715 = vsel %vm392, %v713, 0
    %v718 = vsel %vm392, %v440, 0
    %720 = vmatpush.bf16.xpose.msra.mxu0 0
    %721 = vmatpush.bf16.xpose.msra.mxu0 0
    %722 = vmatpush.bf16.xpose.msra.mxu0 0
    %723 = vmatpush.bf16.xpose.msra.mxu0 0
    %724 = vmatpush.bf16.xpose.msra.mxu0 0
    %725 = vmatpush.bf16.xpose.msra.mxu0 0
    %726 = vmatpush.bf16.xpose.msra.mxu0 0
    %727 = vmatpush.bf16.xpose.msra.mxu0 %v718
    %728 = vmatmul.bf16.gmra.mxu0 %v715
    %v729 = vpop.f32.mrf.mxu0
    %v730 = vadd.f32 0.0, %v729
    %v731 = vpop.f32.mrf.mxu0
    %732 = vdwg.mxu0
    %v733 = vpack.i.b16 %v571, %v571
    %v734 = vperm.slane %v733, 0
    %735 = vrot.lane.b32.xlu0 %v734, 32
    %v736 = vpop.permute.xlu0 %735
    %v738 = vsel %vm392, %v736, 0
    %v741 = vsel %vm392, %v441, 0
    %743 = vmatpush.bf16.xpose.msra.mxu0 0
    %744 = vmatpush.bf16.xpose.msra.mxu0 0
    %745 = vmatpush.bf16.xpose.msra.mxu0 0
    %746 = vmatpush.bf16.xpose.msra.mxu0 0
    %747 = vmatpush.bf16.xpose.msra.mxu0 0
    %748 = vmatpush.bf16.xpose.msra.mxu0 0
    %749 = vmatpush.bf16.xpose.msra.mxu0 0
    %750 = vmatpush.bf16.xpose.msra.mxu0 %v741
    %751 = vmatmul.bf16.gmra.mxu0 %v738
    %v752 = vpop.f32.mrf.mxu0
    %v753 = vadd.f32 0.0, %v752
    %v754 = vpop.f32.mrf.mxu0
    %755 = vdwg.mxu0
    %v764 = vrot.slane %v615, 7
    %v765 = vsel %vm552, %v764, %v592
    %v766 = vrot.slane %v638, 6
    %v767 = vsel %vm556, %v766, %v765
    %v768 = vrot.slane %v661, 5
    %v769 = vsel %vm560, %v768, %v767
    %v770 = vrot.slane %v684, 4
    %vm771 = vcmask 1044484
    %v772 = vsel %vm771, %v770, %v769
    %v773 = vrot.slane %v707, 3
    %vm774 = vcmask 1045509
    %v775 = vsel %vm774, %v773, %v772
    %v776 = vrot.slane %v730, 2
    %vm777 = vcmask 1046534
    %v778 = vsel %vm777, %v776, %v775
    %v779 = vrot.slane %v753, 1
    %vm780 = vcmask 1047559
    %v781 = vsel %vm780, %v779, %v778
    %v783 = vsel %vm308, -inf, %v781
    %vm784 = vcmask 64512
    %v785 = vsel %vm784, %v783, -inf
    %786 = vmax.xlane.f32.xlu0 %v785
    %v787 = vpop.xlane.xlu0 %786
    %v788 = vsub.f32 %v783, %v787
    %v789 = vmul.f32 %v788, 1.442695
    %v790 = vpow.pop %v789
    %v791 = vsel %vm784, %v790, 0.0
    %792 = vadd.xlane.f32.xlu0 %v791
    %v793 = vpop.xlane.xlu0 %792
    %v794 = vrcp.pop %v793
    %v795 = vmul.f32 %v790, %v794
    %v796 = vpack.c.bf16 %v795, %v795
    %v798 = vrot.slane %v796, 3
    %v801 = vsel %vm547, %v796, %v798
    %v803 = vsel %vm552, %v796, %v798
    %v805 = vrot.slane %v803, 1
    %v806 = vsel %vm556, %v796, %v798
    %v808 = vrot.slane %v806, 2
    %v809 = vsel %vm560, %v796, %v798
    %v811 = vrot.slane %v809, 3
    %v812 = vunpack.i.l.s16 %v801
    %v813 = vunpack.i.h.s16 %v801
    %v814 = vunpack.i.l.s16 %v805
    %v815 = vunpack.i.h.s16 %v805
    %v816 = vunpack.i.l.s16 %v808
    %v817 = vunpack.i.h.s16 %v808
    %v818 = vunpack.i.l.s16 %v811
    %v819 = vunpack.i.h.s16 %v811
    %v820 = vpack.i.b16 %v812, %v812
    %v821 = vperm.slane %v820, 0
    %v823 = vsel %vm784, %v821, 0
    %vm825 = vcmask 1043456
    %v827 = vsel %vm825, %v473, 0
    %829 = vmatpush.bf16.msra.mxu0 0
    %830 = vmatpush.bf16.msra.mxu0 0
    %831 = vmatpush.bf16.msra.mxu0 0
    %832 = vmatpush.bf16.msra.mxu0 0
    %833 = vmatpush.bf16.msra.mxu0 0
    %834 = vmatpush.bf16.msra.mxu0 0
    %835 = vmatpush.bf16.msra.mxu0 0
    %836 = vmatpush.bf16.msra.mxu0 %v827
    %837 = vmatmul.bf16.gmra.mxu0 %v823
    %v838 = vpop.f32.mrf.mxu0
    %v839 = vadd.f32 0.0, %v838
    %v840 = vpop.f32.mrf.mxu0
    %841 = vdwg.mxu0
    %v842 = vpack.i.b16 %v813, %v813
    %v843 = vperm.slane %v842, 0
    %v845 = vsel %vm784, %v843, 0
    %v848 = vsel %vm825, %v474, 0
    %850 = vmatpush.bf16.msra.mxu0 0
    %851 = vmatpush.bf16.msra.mxu0 0
    %852 = vmatpush.bf16.msra.mxu0 0
    %853 = vmatpush.bf16.msra.mxu0 0
    %854 = vmatpush.bf16.msra.mxu0 0
    %855 = vmatpush.bf16.msra.mxu0 0
    %856 = vmatpush.bf16.msra.mxu0 0
    %857 = vmatpush.bf16.msra.mxu0 %v848
    %858 = vmatmul.bf16.gmra.mxu0 %v845
    %v859 = vpop.f32.mrf.mxu0
    %v860 = vadd.f32 0.0, %v859
    %v861 = vpop.f32.mrf.mxu0
    %862 = vdwg.mxu0
    %v863 = vpack.i.b16 %v814, %v814
    %v864 = vperm.slane %v863, 0
    %v866 = vsel %vm784, %v864, 0
    %v869 = vsel %vm825, %v475, 0
    %871 = vmatpush.bf16.msra.mxu0 0
    %872 = vmatpush.bf16.msra.mxu0 0
    %873 = vmatpush.bf16.msra.mxu0 0
    %874 = vmatpush.bf16.msra.mxu0 0
    %875 = vmatpush.bf16.msra.mxu0 0
    %876 = vmatpush.bf16.msra.mxu0 0
    %877 = vmatpush.bf16.msra.mxu0 0
    %878 = vmatpush.bf16.msra.mxu0 %v869
    %879 = vmatmul.bf16.gmra.mxu0 %v866
    %v880 = vpop.f32.mrf.mxu0
    %v881 = vadd.f32 0.0, %v880
    %v882 = vpop.f32.mrf.mxu0
    %883 = vdwg.mxu0
    %v884 = vpack.i.b16 %v815, %v815
    %v885 = vperm.slane %v884, 0
    %v887 = vsel %vm784, %v885, 0
    %v890 = vsel %vm825, %v476, 0
    %892 = vmatpush.bf16.msra.mxu0 0
    %893 = vmatpush.bf16.msra.mxu0 0
    %894 = vmatpush.bf16.msra.mxu0 0
    %895 = vmatpush.bf16.msra.mxu0 0
    %896 = vmatpush.bf16.msra.mxu0 0
    %897 = vmatpush.bf16.msra.mxu0 0
    %898 = vmatpush.bf16.msra.mxu0 0
    %899 = vmatpush.bf16.msra.mxu0 %v890
    %900 = vmatmul.bf16.gmra.mxu0 %v887
    %v901 = vpop.f32.mrf.mxu0
    %v902 = vadd.f32 0.0, %v901
    %v903 = vpop.f32.mrf.mxu0
    %904 = vdwg.mxu0
    %v905 = vpack.i.b16 %v816, %v816
    %v906 = vperm.slane %v905, 0
    %v908 = vsel %vm784, %v906, 0
    %v911 = vsel %vm825, %v477, 0
    %913 = vmatpush.bf16.msra.mxu0 0
    %914 = vmatpush.bf16.msra.mxu0 0
    %915 = vmatpush.bf16.msra.mxu0 0
    %916 = vmatpush.bf16.msra.mxu0 0
    %917 = vmatpush.bf16.msra.mxu0 0
    %918 = vmatpush.bf16.msra.mxu0 0
    %919 = vmatpush.bf16.msra.mxu0 0
    %920 = vmatpush.bf16.msra.mxu0 %v911
    %921 = vmatmul.bf16.gmra.mxu0 %v908
    %v922 = vpop.f32.mrf.mxu0
    %v923 = vadd.f32 0.0, %v922
    %v924 = vpop.f32.mrf.mxu0
    %925 = vdwg.mxu0
    %v926 = vpack.i.b16 %v817, %v817
    %v927 = vperm.slane %v926, 0
    %v929 = vsel %vm784, %v927, 0
    %v932 = vsel %vm825, %v478, 0
    %934 = vmatpush.bf16.msra.mxu0 0
    %935 = vmatpush.bf16.msra.mxu0 0
    %936 = vmatpush.bf16.msra.mxu0 0
    %937 = vmatpush.bf16.msra.mxu0 0
    %938 = vmatpush.bf16.msra.mxu0 0
    %939 = vmatpush.bf16.msra.mxu0 0
    %940 = vmatpush.bf16.msra.mxu0 0
    %941 = vmatpush.bf16.msra.mxu0 %v932
    %942 = vmatmul.bf16.gmra.mxu0 %v929
    %v943 = vpop.f32.mrf.mxu0
    %v944 = vadd.f32 0.0, %v943
    %v945 = vpop.f32.mrf.mxu0
    %946 = vdwg.mxu0
    %v947 = vpack.i.b16 %v818, %v818
    %v948 = vperm.slane %v947, 0
    %v950 = vsel %vm784, %v948, 0
    %v953 = vsel %vm825, %v479, 0
    %955 = vmatpush.bf16.msra.mxu0 0
    %956 = vmatpush.bf16.msra.mxu0 0
    %957 = vmatpush.bf16.msra.mxu0 0
    %958 = vmatpush.bf16.msra.mxu0 0
    %959 = vmatpush.bf16.msra.mxu0 0
    %960 = vmatpush.bf16.msra.mxu0 0
    %961 = vmatpush.bf16.msra.mxu0 0
    %962 = vmatpush.bf16.msra.mxu0 %v953
    %963 = vmatmul.bf16.gmra.mxu0 %v950
    %v964 = vpop.f32.mrf.mxu0
    %v965 = vadd.f32 0.0, %v964
    %v966 = vpop.f32.mrf.mxu0
    %967 = vdwg.mxu0
    %v968 = vpack.i.b16 %v819, %v819
    %v969 = vperm.slane %v968, 0
    %v971 = vsel %vm784, %v969, 0
    %v974 = vsel %vm825, %v480, 0
    %976 = vmatpush.bf16.msra.mxu0 0
    %977 = vmatpush.bf16.msra.mxu0 0
    %978 = vmatpush.bf16.msra.mxu0 0
    %979 = vmatpush.bf16.msra.mxu0 0
    %980 = vmatpush.bf16.msra.mxu0 0
    %981 = vmatpush.bf16.msra.mxu0 0
    %982 = vmatpush.bf16.msra.mxu0 0
    %983 = vmatpush.bf16.msra.mxu0 %v974
    %984 = vmatmul.bf16.gmra.mxu0 %v971
    %v985 = vpop.f32.mrf.mxu0
    %v986 = vadd.f32 0.0, %v985
    %v987 = vpop.f32.mrf.mxu0
    %988 = vdwg.mxu0
    %v989 = vunpack.c.l.b16 %v544
    %v990 = vpack.c.b16 %v989, %v989
    %991 = vrot.lane.b32.xlu0 %v990, 32
    %v992 = vpop.permute.xlu0 %991
    %v994 = vsel %vm392, %v992, 0
    %996 = vmatpush.bf16.msra.mxu0 0
    %997 = vmatpush.bf16.msra.mxu0 0
    %998 = vmatpush.bf16.msra.mxu0 0
    %999 = vmatpush.bf16.msra.mxu0 0
    %1000 = vmatpush.bf16.msra.mxu0 0
    %1001 = vmatpush.bf16.msra.mxu0 0
    %1002 = vmatpush.bf16.msra.mxu0 %v484
    %1003 = vmatpush.bf16.msra.mxu0 %v483
    %1004 = vmatmul.bf16.gmra.mxu0 %v994
    %v1005 = vpop.f32.mrf.mxu0
    %v1006 = vadd.f32 0.0, %v1005
    %v1007 = vpop.f32.mrf.mxu0
    %1008 = vdwg.mxu0
    %v1010 = vrot.slane %v1006, 1
    %v1011 = vrot.slane %v1006, 2
    %v1012 = vrot.slane %v1006, 3
    %v1013 = vrot.slane %v1006, 4
    %v1014 = vrot.slane %v1006, 5
    %v1015 = vrot.slane %v1006, 6
    %v1016 = vrot.slane %v1006, 7
    %v1025 = vadd.f32 %v839, %v1006
    %v1026 = vadd.f32 %v860, %v1010
    %v1027 = vadd.f32 %v881, %v1011
    %v1028 = vadd.f32 %v902, %v1012
    %v1029 = vadd.f32 %v923, %v1013
    %v1030 = vadd.f32 %v944, %v1014
    %v1031 = vadd.f32 %v965, %v1015
    %v1032 = vadd.f32 %v986, %v1016
    %v1033 = vtanh.pop %v1025
    %v1034 = vtanh.pop %v1026
    %v1035 = vtanh.pop %v1027
    %v1036 = vtanh.pop %v1028
    %v1037 = vtanh.pop %v1029
    %v1038 = vtanh.pop %v1030
    %v1039 = vtanh.pop %v1031
    %v1040 = vtanh.pop %v1032
    %v1041 = vpack.c.bf16 %v1033, %v1033
    %v1042 = vpack.c.bf16 %v1034, %v1034
    %v1043 = vpack.c.bf16 %v1035, %v1035
    %v1044 = vpack.c.bf16 %v1036, %v1036
    %v1045 = vpack.c.bf16 %v1037, %v1037
    %v1046 = vpack.c.bf16 %v1038, %v1038
    %v1047 = vpack.c.bf16 %v1039, %v1039
    %v1048 = vpack.c.bf16 %v1040, %v1040
    %v1057 = vunpack.c.l.b16 %v1041
    %v1058 = vunpack.c.l.b16 %v1042
    %v1059 = vunpack.c.l.b16 %v1043
    %v1060 = vunpack.c.l.b16 %v1044
    %v1061 = vunpack.c.l.b16 %v1045
    %v1062 = vunpack.c.l.b16 %v1046
    %v1063 = vunpack.c.l.b16 %v1047
    %v1064 = vunpack.c.l.b16 %v1048
    %v1065 = vrot.slane %v1058, 7
    %v1066 = vsel %vm552, %v1065, %v1057
    %v1067 = vrot.slane %v1059, 6
    %v1068 = vsel %vm556, %v1067, %v1066
    %v1069 = vrot.slane %v1060, 5
    %v1070 = vsel %vm560, %v1069, %v1068
    %v1071 = vrot.slane %v1061, 4
    %v1072 = vsel %vm771, %v1071, %v1070
    %v1073 = vrot.slane %v1062, 3
    %v1074 = vsel %vm774, %v1073, %v1072
    %v1075 = vrot.slane %v1063, 2
    %v1076 = vsel %vm777, %v1075, %v1074
    %v1077 = vrot.slane %v1064, 1
    %v1078 = vsel %vm780, %v1077, %v1076
    %v1079 = vpack.c.b16 %v1078, %v1078
    %v1081 = vsel %vm392, %v1079, 0
    %1083 = vmatpush.bf16.msra.mxu0 0
    %1084 = vmatpush.bf16.msra.mxu0 0
    %1085 = vmatpush.bf16.msra.mxu0 0
    %1086 = vmatpush.bf16.msra.mxu0 0
    %1087 = vmatpush.bf16.msra.mxu0 0
    %1088 = vmatpush.bf16.msra.mxu0 0
    %1089 = vmatpush.bf16.msra.mxu0 %v482
    %1090 = vmatpush.bf16.msra.mxu0 %v481
    %1091 = vmatmul.bf16.gmra.mxu0 %v1081
    %v1092 = vpop.f32.mrf.mxu0
    %v1093 = vadd.f32 0.0, %v1092
    %v1094 = vpop.f32.mrf.mxu0
    %1095 = vdwg.mxu0
    %v1096 = vadd.f32 %v373, %v1093
    %v1097 = vxor.u32 %v1096, 2147483648
    %v1098 = vmul.f32 %v1097, 1.442695
    %v1099 = vpow.pop %v1098
    %v1100 = vadd.f32 %v1099, 1.0
    %v1101 = vrcp.pop %v1100
    %v1102 = vmul.f32 %v1100, %v1101
    %v1103 = vsub.f32 1.0, %v1102
    %v1104 = vmul.f32 %v1101, %v1103
    %v1105 = vadd.f32 %v1101, %v1104
    %vm1106 = vweird.f32 %v1100
    %vm1107 = vweird.f32 %v1101
    %vm1108 = vmor %vm1106, %vm1107
    %v1109 = vsel %vm1108, %v1101, %v1105
    %v1110 = vand.u32 2147483647, %v1100
    %vm1111 = vcmp.eq.f32.partialorder %v1110, 8.507059e+37
    %v1112 = vand.u32 %v1100, 2147483648
    %v1113 = vor.u32 1.1754944e-38, %v1112
    %v1114 = vsel %vm1111, %v1113, %v1109
    %v1115 = vmul.f32 1.0, %v1114
    %v1116 = vtanh.pop %v1096
    %v1117 = vmul.f32 %v1115, %v537
    %1119 = vrot.lane.b32.xlu0 %v1116, 64
    %v1120 = vpop.permute.xlu0 %1119
    %v1122 = vmul.f32 %v1115, %v1120
    %1124 = vrot.lane.b32.xlu0 %v1122, 32
    %v1125 = vpop.permute.xlu0 %1124
    %v1127 = vadd.f32 %v1117, %v1125
    %v1128 = vtanh.pop %v1127
    %1130 = vrot.lane.b32.xlu0 %v1128, 64
    %v1131 = vpop.permute.xlu0 %1130
    %v1133 = vmul.f32 %v1115, %v1131
    %v1134 = vpack.c.bf16 %v1133, %v1133
    %v1136 = vrot.slane %v1134, 3
    %v1139 = vsel %vm547, %v1134, %v1136
    %v1141 = vsel %vm552, %v1134, %v1136
    %v1143 = vrot.slane %v1141, 1
    %v1144 = vsel %vm556, %v1134, %v1136
    %v1146 = vrot.slane %v1144, 2
    %v1147 = vsel %vm560, %v1134, %v1136
    %v1149 = vrot.slane %v1147, 3
    %v1150 = vunpack.i.l.s16 %v1139
    %v1151 = vunpack.i.h.s16 %v1139
    %v1152 = vunpack.i.l.s16 %v1143
    %v1153 = vunpack.i.h.s16 %v1143
    %v1154 = vunpack.i.l.s16 %v1146
    %v1155 = vunpack.i.h.s16 %v1146
    %v1156 = vunpack.i.l.s16 %v1149
    %v1157 = vunpack.i.h.s16 %v1149
    %v1158 = vpack.i.b16 %v1150, %v1150
    %v1159 = vperm.slane %v1158, 0
    %1160 = vrot.lane.b32.xlu0 %v1159, 32
    %v1161 = vpop.permute.xlu0 %1160
    %v1163 = vsel %vm392, %v1161, 0
    %1165 = vmatpush.bf16.xpose.msra.mxu0 0
    %1166 = vmatpush.bf16.xpose.msra.mxu0 0
    %1167 = vmatpush.bf16.xpose.msra.mxu0 0
    %1168 = vmatpush.bf16.xpose.msra.mxu0 0
    %1169 = vmatpush.bf16.xpose.msra.mxu0 0
    %1170 = vmatpush.bf16.xpose.msra.mxu0 0
    %1171 = vmatpush.bf16.xpose.msra.mxu0 0
    %1172 = vmatpush.bf16.xpose.msra.mxu0 %v580
    %1173 = vmatmul.bf16.gmra.mxu0 %v1163
    %v1174 = vpop.f32.mrf.mxu0
    %v1175 = vadd.f32 0.0, %v1174
    %v1176 = vpop.f32.mrf.mxu0
    %1177 = vdwg.mxu0
    %v1178 = vpack.i.b16 %v1151, %v1151
    %v1179 = vperm.slane %v1178, 0
    %1180 = vrot.lane.b32.xlu0 %v1179, 32
    %v1181 = vpop.permute.xlu0 %1180
    %v1183 = vsel %vm392, %v1181, 0
    %1185 = vmatpush.bf16.xpose.msra.mxu0 0
    %1186 = vmatpush.bf16.xpose.msra.mxu0 0
    %1187 = vmatpush.bf16.xpose.msra.mxu0 0
    %1188 = vmatpush.bf16.xpose.msra.mxu0 0
    %1189 = vmatpush.bf16.xpose.msra.mxu0 0
    %1190 = vmatpush.bf16.xpose.msra.mxu0 0
    %1191 = vmatpush.bf16.xpose.msra.mxu0 0
    %1192 = vmatpush.bf16.xpose.msra.mxu0 %v603
    %1193 = vmatmul.bf16.gmra.mxu0 %v1183
    %v1194 = vpop.f32.mrf.mxu0
    %v1195 = vadd.f32 0.0, %v1194
    %v1196 = vpop.f32.mrf.mxu0
    %1197 = vdwg.mxu0
    %v1198 = vpack.i.b16 %v1152, %v1152
    %v1199 = vperm.slane %v1198, 0
    %1200 = vrot.lane.b32.xlu0 %v1199, 32
    %v1201 = vpop.permute.xlu0 %1200
    %v1203 = vsel %vm392, %v1201, 0
    %1205 = vmatpush.bf16.xpose.msra.mxu0 0
    %1206 = vmatpush.bf16.xpose.msra.mxu0 0
    %1207 = vmatpush.bf16.xpose.msra.mxu0 0
    %1208 = vmatpush.bf16.xpose.msra.mxu0 0
    %1209 = vmatpush.bf16.xpose.msra.mxu0 0
    %1210 = vmatpush.bf16.xpose.msra.mxu0 0
    %1211 = vmatpush.bf16.xpose.msra.mxu0 0
    %1212 = vmatpush.bf16.xpose.msra.mxu0 %v626
    %1213 = vmatmul.bf16.gmra.mxu0 %v1203
    %v1214 = vpop.f32.mrf.mxu0
    %v1215 = vadd.f32 0.0, %v1214
    %v1216 = vpop.f32.mrf.mxu0
    %1217 = vdwg.mxu0
    %v1218 = vpack.i.b16 %v1153, %v1153
    %v1219 = vperm.slane %v1218, 0
    %1220 = vrot.lane.b32.xlu0 %v1219, 32
    %v1221 = vpop.permute.xlu0 %1220
    %v1223 = vsel %vm392, %v1221, 0
    %1225 = vmatpush.bf16.xpose.msra.mxu0 0
    %1226 = vmatpush.bf16.xpose.msra.mxu0 0
    %1227 = vmatpush.bf16.xpose.msra.mxu0 0
    %1228 = vmatpush.bf16.xpose.msra.mxu0 0
    %1229 = vmatpush.bf16.xpose.msra.mxu0 0
    %1230 = vmatpush.bf16.xpose.msra.mxu0 0
    %1231 = vmatpush.bf16.xpose.msra.mxu0 0
    %1232 = vmatpush.bf16.xpose.msra.mxu0 %v649
    %1233 = vmatmul.bf16.gmra.mxu0 %v1223
    %v1234 = vpop.f32.mrf.mxu0
    %v1235 = vadd.f32 0.0, %v1234
    %v1236 = vpop.f32.mrf.mxu0
    %1237 = vdwg.mxu0
    %v1238 = vpack.i.b16 %v1154, %v1154
    %v1239 = vperm.slane %v1238, 0
    %1240 = vrot.lane.b32.xlu0 %v1239, 32
    %v1241 = vpop.permute.xlu0 %1240
    %v1243 = vsel %vm392, %v1241, 0
    %1245 = vmatpush.bf16.xpose.msra.mxu0 0
    %1246 = vmatpush.bf16.xpose.msra.mxu0 0
    %1247 = vmatpush.bf16.xpose.msra.mxu0 0
    %1248 = vmatpush.bf16.xpose.msra.mxu0 0
    %1249 = vmatpush.bf16.xpose.msra.mxu0 0
    %1250 = vmatpush.bf16.xpose.msra.mxu0 0
    %1251 = vmatpush.bf16.xpose.msra.mxu0 0
    %1252 = vmatpush.bf16.xpose.msra.mxu0 %v672
    %1253 = vmatmul.bf16.gmra.mxu0 %v1243
    %v1254 = vpop.f32.mrf.mxu0
    %v1255 = vadd.f32 0.0, %v1254
    %v1256 = vpop.f32.mrf.mxu0
    %1257 = vdwg.mxu0
    %v1258 = vpack.i.b16 %v1155, %v1155
    %v1259 = vperm.slane %v1258, 0
    %1260 = vrot.lane.b32.xlu0 %v1259, 32
    %v1261 = vpop.permute.xlu0 %1260
    %v1263 = vsel %vm392, %v1261, 0
    %1265 = vmatpush.bf16.xpose.msra.mxu0 0
    %1266 = vmatpush.bf16.xpose.msra.mxu0 0
    %1267 = vmatpush.bf16.xpose.msra.mxu0 0
    %1268 = vmatpush.bf16.xpose.msra.mxu0 0
    %1269 = vmatpush.bf16.xpose.msra.mxu0 0
    %1270 = vmatpush.bf16.xpose.msra.mxu0 0
    %1271 = vmatpush.bf16.xpose.msra.mxu0 0
    %1272 = vmatpush.bf16.xpose.msra.mxu0 %v695
    %1273 = vmatmul.bf16.gmra.mxu0 %v1263
    %v1274 = vpop.f32.mrf.mxu0
    %v1275 = vadd.f32 0.0, %v1274
    %v1276 = vpop.f32.mrf.mxu0
    %1277 = vdwg.mxu0
    %v1278 = vpack.i.b16 %v1156, %v1156
    %v1279 = vperm.slane %v1278, 0
    %1280 = vrot.lane.b32.xlu0 %v1279, 32
    %v1281 = vpop.permute.xlu0 %1280
    %v1283 = vsel %vm392, %v1281, 0
    %1285 = vmatpush.bf16.xpose.msra.mxu0 0
    %1286 = vmatpush.bf16.xpose.msra.mxu0 0
    %1287 = vmatpush.bf16.xpose.msra.mxu0 0
    %1288 = vmatpush.bf16.xpose.msra.mxu0 0
    %1289 = vmatpush.bf16.xpose.msra.mxu0 0
    %1290 = vmatpush.bf16.xpose.msra.mxu0 0
    %1291 = vmatpush.bf16.xpose.msra.mxu0 0
    %1292 = vmatpush.bf16.xpose.msra.mxu0 %v718
    %1293 = vmatmul.bf16.gmra.mxu0 %v1283
    %v1294 = vpop.f32.mrf.mxu0
    %v1295 = vadd.f32 0.0, %v1294
    %v1296 = vpop.f32.mrf.mxu0
    %1297 = vdwg.mxu0
    %v1298 = vpack.i.b16 %v1157, %v1157
    %v1299 = vperm.slane %v1298, 0
    %1300 = vrot.lane.b32.xlu0 %v1299, 32
    %v1301 = vpop.permute.xlu0 %1300
    %v1303 = vsel %vm392, %v1301, 0
    %1305 = vmatpush.bf16.xpose.msra.mxu0 0
    %1306 = vmatpush.bf16.xpose.msra.mxu0 0
    %1307 = vmatpush.bf16.xpose.msra.mxu0 0
    %1308 = vmatpush.bf16.xpose.msra.mxu0 0
    %1309 = vmatpush.bf16.xpose.msra.mxu0 0
    %1310 = vmatpush.bf16.xpose.msra.mxu0 0
    %1311 = vmatpush.bf16.xpose.msra.mxu0 0
    %1312 = vmatpush.bf16.xpose.msra.mxu0 %v741
    %1313 = vmatmul.bf16.gmra.mxu0 %v1303
    %v1314 = vpop.f32.mrf.mxu0
    %v1315 = vadd.f32 0.0, %v1314
    %v1316 = vpop.f32.mrf.mxu0
    %1317 = vdwg.mxu0
    %v1326 = vrot.slane %v1195, 7
    %v1327 = vsel %vm552, %v1326, %v1175
    %v1328 = vrot.slane %v1215, 6
    %v1329 = vsel %vm556, %v1328, %v1327
    %v1330 = vrot.slane %v1235, 5
    %v1331 = vsel %vm560, %v1330, %v1329
    %v1332 = vrot.slane %v1255, 4
    %v1333 = vsel %vm771, %v1332, %v1331
    %v1334 = vrot.slane %v1275, 3
    %v1335 = vsel %vm774, %v1334, %v1333
    %v1336 = vrot.slane %v1295, 2
    %v1337 = vsel %vm777, %v1336, %v1335
    %v1338 = vrot.slane %v1315, 1
    %v1339 = vsel %vm780, %v1338, %v1337
    %v1341 = vsel %vm308, -inf, %v1339
    %v1342 = vsel %vm784, %v1341, -inf
    %1343 = vmax.xlane.f32.xlu0 %v1342
    %v1344 = vpop.xlane.xlu0 %1343
    %v1345 = vsub.f32 %v1341, %v1344
    %v1346 = vmul.f32 %v1345, 1.442695
    %v1347 = vpow.pop %v1346
    %v1348 = vsel %vm784, %v1347, 0.0
    %1349 = vadd.xlane.f32.xlu0 %v1348
    %v1350 = vpop.xlane.xlu0 %1349
    %v1351 = vrcp.pop %v1350
    %v1352 = vmul.f32 %v1347, %v1351
    %v1353 = vpack.c.bf16 %v1352, %v1352
    %v1355 = vrot.slane %v1353, 3
    %v1358 = vsel %vm547, %v1353, %v1355
    %v1360 = vsel %vm552, %v1353, %v1355
    %v1362 = vrot.slane %v1360, 1
    %v1363 = vsel %vm556, %v1353, %v1355
    %v1365 = vrot.slane %v1363, 2
    %v1366 = vsel %vm560, %v1353, %v1355
    %v1368 = vrot.slane %v1366, 3
    %v1369 = vunpack.i.l.s16 %v1358
    %v1370 = vunpack.i.h.s16 %v1358
    %v1371 = vunpack.i.l.s16 %v1362
    %v1372 = vunpack.i.h.s16 %v1362
    %v1373 = vunpack.i.l.s16 %v1365
    %v1374 = vunpack.i.h.s16 %v1365
    %v1375 = vunpack.i.l.s16 %v1368
    %v1376 = vunpack.i.h.s16 %v1368
    %v1377 = vpack.i.b16 %v1369, %v1369
    %v1378 = vperm.slane %v1377, 0
    %v1380 = vsel %vm784, %v1378, 0
    %1382 = vmatpush.bf16.msra.mxu0 0
    %1383 = vmatpush.bf16.msra.mxu0 0
    %1384 = vmatpush.bf16.msra.mxu0 0
    %1385 = vmatpush.bf16.msra.mxu0 0
    %1386 = vmatpush.bf16.msra.mxu0 0
    %1387 = vmatpush.bf16.msra.mxu0 0
    %1388 = vmatpush.bf16.msra.mxu0 0
    %1389 = vmatpush.bf16.msra.mxu0 %v827
    %1390 = vmatmul.bf16.gmra.mxu0 %v1380
    %v1391 = vpop.f32.mrf.mxu0
    %v1392 = vadd.f32 0.0, %v1391
    %v1393 = vpop.f32.mrf.mxu0
    %1394 = vdwg.mxu0
    %v1395 = vpack.i.b16 %v1370, %v1370
    %v1396 = vperm.slane %v1395, 0
    %v1398 = vsel %vm784, %v1396, 0
    %1400 = vmatpush.bf16.msra.mxu0 0
    %1401 = vmatpush.bf16.msra.mxu0 0
    %1402 = vmatpush.bf16.msra.mxu0 0
    %1403 = vmatpush.bf16.msra.mxu0 0
    %1404 = vmatpush.bf16.msra.mxu0 0
    %1405 = vmatpush.bf16.msra.mxu0 0
    %1406 = vmatpush.bf16.msra.mxu0 0
    %1407 = vmatpush.bf16.msra.mxu0 %v848
    %1408 = vmatmul.bf16.gmra.mxu0 %v1398
    %v1409 = vpop.f32.mrf.mxu0
    %v1410 = vadd.f32 0.0, %v1409
    %v1411 = vpop.f32.mrf.mxu0
    %1412 = vdwg.mxu0
    %v1413 = vpack.i.b16 %v1371, %v1371
    %v1414 = vperm.slane %v1413, 0
    %v1416 = vsel %vm784, %v1414, 0
    %1418 = vmatpush.bf16.msra.mxu0 0
    %1419 = vmatpush.bf16.msra.mxu0 0
    %1420 = vmatpush.bf16.msra.mxu0 0
    %1421 = vmatpush.bf16.msra.mxu0 0
    %1422 = vmatpush.bf16.msra.mxu0 0
    %1423 = vmatpush.bf16.msra.mxu0 0
    %1424 = vmatpush.bf16.msra.mxu0 0
    %1425 = vmatpush.bf16.msra.mxu0 %v869
    %1426 = vmatmul.bf16.gmra.mxu0 %v1416
    %v1427 = vpop.f32.mrf.mxu0
    %v1428 = vadd.f32 0.0, %v1427
    %v1429 = vpop.f32.mrf.mxu0
    %1430 = vdwg.mxu0
    %v1431 = vpack.i.b16 %v1372, %v1372
    %v1432 = vperm.slane %v1431, 0
    %v1434 = vsel %vm784, %v1432, 0
    %1436 = vmatpush.bf16.msra.mxu0 0
    %1437 = vmatpush.bf16.msra.mxu0 0
    %1438 = vmatpush.bf16.msra.mxu0 0
    %1439 = vmatpush.bf16.msra.mxu0 0
    %1440 = vmatpush.bf16.msra.mxu0 0
    %1441 = vmatpush.bf16.msra.mxu0 0
    %1442 = vmatpush.bf16.msra.mxu0 0
    %1443 = vmatpush.bf16.msra.mxu0 %v890
    %1444 = vmatmul.bf16.gmra.mxu0 %v1434
    %v1445 = vpop.f32.mrf.mxu0
    %v1446 = vadd.f32 0.0, %v1445
    %v1447 = vpop.f32.mrf.mxu0
    %1448 = vdwg.mxu0
    %v1449 = vpack.i.b16 %v1373, %v1373
    %v1450 = vperm.slane %v1449, 0
    %v1452 = vsel %vm784, %v1450, 0
    %1454 = vmatpush.bf16.msra.mxu0 0
    %1455 = vmatpush.bf16.msra.mxu0 0
    %1456 = vmatpush.bf16.msra.mxu0 0
    %1457 = vmatpush.bf16.msra.mxu0 0
    %1458 = vmatpush.bf16.msra.mxu0 0
    %1459 = vmatpush.bf16.msra.mxu0 0
    %1460 = vmatpush.bf16.msra.mxu0 0
    %1461 = vmatpush.bf16.msra.mxu0 %v911
    %1462 = vmatmul.bf16.gmra.mxu0 %v1452
    %v1463 = vpop.f32.mrf.mxu0
    %v1464 = vadd.f32 0.0, %v1463
    %v1465 = vpop.f32.mrf.mxu0
    %1466 = vdwg.mxu0
    %v1467 = vpack.i.b16 %v1374, %v1374
    %v1468 = vperm.slane %v1467, 0
    %v1470 = vsel %vm784, %v1468, 0
    %1472 = vmatpush.bf16.msra.mxu0 0
    %1473 = vmatpush.bf16.msra.mxu0 0
    %1474 = vmatpush.bf16.msra.mxu0 0
    %1475 = vmatpush.bf16.msra.mxu0 0
    %1476 = vmatpush.bf16.msra.mxu0 0
    %1477 = vmatpush.bf16.msra.mxu0 0
    %1478 = vmatpush.bf16.msra.mxu0 0
    %1479 = vmatpush.bf16.msra.mxu0 %v932
    %1480 = vmatmul.bf16.gmra.mxu0 %v1470
    %v1481 = vpop.f32.mrf.mxu0
    %v1482 = vadd.f32 0.0, %v1481
    %v1483 = vpop.f32.mrf.mxu0
    %1484 = vdwg.mxu0
    %v1485 = vpack.i.b16 %v1375, %v1375
    %v1486 = vperm.slane %v1485, 0
    %v1488 = vsel %vm784, %v1486, 0
    %1490 = vmatpush.bf16.msra.mxu0 0
    %1491 = vmatpush.bf16.msra.mxu0 0
    %1492 = vmatpush.bf16.msra.mxu0 0
    %1493 = vmatpush.bf16.msra.mxu0 0
    %1494 = vmatpush.bf16.msra.mxu0 0
    %1495 = vmatpush.bf16.msra.mxu0 0
    %1496 = vmatpush.bf16.msra.mxu0 0
    %1497 = vmatpush.bf16.msra.mxu0 %v953
    %1498 = vmatmul.bf16.gmra.mxu0 %v1488
    %v1499 = vpop.f32.mrf.mxu0
    %v1500 = vadd.f32 0.0, %v1499
    %v1501 = vpop.f32.mrf.mxu0
    %1502 = vdwg.mxu0
    %v1503 = vpack.i.b16 %v1376, %v1376
    %v1504 = vperm.slane %v1503, 0
    %v1506 = vsel %vm784, %v1504, 0
    %1508 = vmatpush.bf16.msra.mxu0 0
    %1509 = vmatpush.bf16.msra.mxu0 0
    %1510 = vmatpush.bf16.msra.mxu0 0
    %1511 = vmatpush.bf16.msra.mxu0 0
    %1512 = vmatpush.bf16.msra.mxu0 0
    %1513 = vmatpush.bf16.msra.mxu0 0
    %1514 = vmatpush.bf16.msra.mxu0 0
    %1515 = vmatpush.bf16.msra.mxu0 %v974
    %1516 = vmatmul.bf16.gmra.mxu0 %v1506
    %v1517 = vpop.f32.mrf.mxu0
    %v1518 = vadd.f32 0.0, %v1517
    %v1519 = vpop.f32.mrf.mxu0
    %1520 = vdwg.mxu0
    %v1521 = vunpack.c.l.b16 %v1134
    %v1522 = vpack.c.b16 %v1521, %v1521
    %1523 = vrot.lane.b32.xlu0 %v1522, 32
    %v1524 = vpop.permute.xlu0 %1523
    %v1526 = vsel %vm392, %v1524, 0
    %1528 = vmatpush.bf16.msra.mxu0 0
    %1529 = vmatpush.bf16.msra.mxu0 0
    %1530 = vmatpush.bf16.msra.mxu0 0
    %1531 = vmatpush.bf16.msra.mxu0 0
    %1532 = vmatpush.bf16.msra.mxu0 0
    %1533 = vmatpush.bf16.msra.mxu0 0
    %1534 = vmatpush.bf16.msra.mxu0 %v484
    %1535 = vmatpush.bf16.msra.mxu0 %v483
    %1536 = vmatmul.bf16.gmra.mxu0 %v1526
    %v1537 = vpop.f32.mrf.mxu0
    %v1538 = vadd.f32 0.0, %v1537
    %v1539 = vpop.f32.mrf.mxu0
    %1540 = vdwg.mxu0
    %v1542 = vrot.slane %v1538, 1
    %v1543 = vrot.slane %v1538, 2
    %v1544 = vrot.slane %v1538, 3
    %v1545 = vrot.slane %v1538, 4
    %v1546 = vrot.slane %v1538, 5
    %v1547 = vrot.slane %v1538, 6
    %v1548 = vrot.slane %v1538, 7
    %v1557 = vadd.f32 %v1392, %v1538
    %v1558 = vadd.f32 %v1410, %v1542
    %v1559 = vadd.f32 %v1428, %v1543
    %v1560 = vadd.f32 %v1446, %v1544
    %v1561 = vadd.f32 %v1464, %v1545
    %v1562 = vadd.f32 %v1482, %v1546
    %v1563 = vadd.f32 %v1500, %v1547
    %v1564 = vadd.f32 %v1518, %v1548
    %v1565 = vtanh.pop %v1557
    %v1566 = vtanh.pop %v1558
    %v1567 = vtanh.pop %v1559
    %v1568 = vtanh.pop %v1560
    %v1569 = vtanh.pop %v1561
    %v1570 = vtanh.pop %v1562
    %v1571 = vtanh.pop %v1563
    %v1572 = vtanh.pop %v1564
    %v1573 = vpack.c.bf16 %v1565, %v1565
    %v1574 = vpack.c.bf16 %v1566, %v1566
    %v1575 = vpack.c.bf16 %v1567, %v1567
    %v1576 = vpack.c.bf16 %v1568, %v1568
    %v1577 = vpack.c.bf16 %v1569, %v1569
    %v1578 = vpack.c.bf16 %v1570, %v1570
    %v1579 = vpack.c.bf16 %v1571, %v1571
    %v1580 = vpack.c.bf16 %v1572, %v1572
    %v1589 = vunpack.c.l.b16 %v1573
    %v1590 = vunpack.c.l.b16 %v1574
    %v1591 = vunpack.c.l.b16 %v1575
    %v1592 = vunpack.c.l.b16 %v1576
    %v1593 = vunpack.c.l.b16 %v1577
    %v1594 = vunpack.c.l.b16 %v1578
    %v1595 = vunpack.c.l.b16 %v1579
    %v1596 = vunpack.c.l.b16 %v1580
    %v1597 = vrot.slane %v1590, 7
    %v1598 = vsel %vm552, %v1597, %v1589
    %v1599 = vrot.slane %v1591, 6
    %v1600 = vsel %vm556, %v1599, %v1598
    %v1601 = vrot.slane %v1592, 5
    %v1602 = vsel %vm560, %v1601, %v1600
    %v1603 = vrot.slane %v1593, 4
    %v1604 = vsel %vm771, %v1603, %v1602
    %v1605 = vrot.slane %v1594, 3
    %v1606 = vsel %vm774, %v1605, %v1604
    %v1607 = vrot.slane %v1595, 2
    %v1608 = vsel %vm777, %v1607, %v1606
    %v1609 = vrot.slane %v1596, 1
    %v1610 = vsel %vm780, %v1609, %v1608
    %v1611 = vpack.c.b16 %v1610, %v1610
    %v1613 = vsel %vm392, %v1611, 0
    %1615 = vmatpush.bf16.msra.mxu0 0
    %1616 = vmatpush.bf16.msra.mxu0 0
    %1617 = vmatpush.bf16.msra.mxu0 0
    %1618 = vmatpush.bf16.msra.mxu0 0
    %1619 = vmatpush.bf16.msra.mxu0 0
    %1620 = vmatpush.bf16.msra.mxu0 0
    %1621 = vmatpush.bf16.msra.mxu0 %v482
    %1622 = vmatpush.bf16.msra.mxu0 %v481
    %1623 = vmatmul.bf16.gmra.mxu0 %v1613
    %v1624 = vpop.f32.mrf.mxu0
    %v1625 = vadd.f32 0.0, %v1624
    %v1626 = vpop.f32.mrf.mxu0
    %1627 = vdwg.mxu0
    %v1628 = vadd.f32 %v376, %v1625
    %v1629 = vxor.u32 %v1628, 2147483648
    %v1630 = vmul.f32 %v1629, 1.442695
    %v1631 = vpow.pop %v1630
    %v1632 = vadd.f32 %v1631, 1.0
    %v1633 = vrcp.pop %v1632
    %v1634 = vmul.f32 %v1632, %v1633
    %v1635 = vsub.f32 1.0, %v1634
    %v1636 = vmul.f32 %v1633, %v1635
    %v1637 = vadd.f32 %v1633, %v1636
    %vm1638 = vweird.f32 %v1632
    %vm1639 = vweird.f32 %v1633
    %vm1640 = vmor %vm1638, %vm1639
    %v1641 = vsel %vm1640, %v1633, %v1637
    %v1642 = vand.u32 2147483647, %v1632
    %vm1643 = vcmp.eq.f32.partialorder %v1642, 8.507059e+37
    %v1644 = vand.u32 %v1632, 2147483648
    %v1645 = vor.u32 1.1754944e-38, %v1644
    %v1646 = vsel %vm1643, %v1645, %v1641
    %v1647 = vmul.f32 1.0, %v1646
    %v1648 = vtanh.pop %v1628
    %v1649 = vmul.f32 %v1647, %v1127
    %1651 = vrot.lane.b32.xlu0 %v1648, 64
    %v1652 = vpop.permute.xlu0 %1651
    %v1654 = vmul.f32 %v1647, %v1652
    %1656 = vrot.lane.b32.xlu0 %v1654, 32
    %v1657 = vpop.permute.xlu0 %1656
    %v1659 = vadd.f32 %v1649, %v1657
    %v1660 = vtanh.pop %v1659
    %1662 = vrot.lane.b32.xlu0 %v1660, 64
    %v1663 = vpop.permute.xlu0 %1662
    %v1665 = vmul.f32 %v1647, %v1663
    %v1666 = vpack.c.bf16 %v1665, %v1665
    %v1668 = vrot.slane %v1666, 3
    %v1671 = vsel %vm547, %v1666, %v1668
    %v1673 = vsel %vm552, %v1666, %v1668
    %v1675 = vrot.slane %v1673, 1
    %v1676 = vsel %vm556, %v1666, %v1668
    %v1678 = vrot.slane %v1676, 2
    %v1679 = vsel %vm560, %v1666, %v1668
    %v1681 = vrot.slane %v1679, 3
    %v1682 = vunpack.i.l.s16 %v1671
    %v1683 = vunpack.i.h.s16 %v1671
    %v1684 = vunpack.i.l.s16 %v1675
    %v1685 = vunpack.i.h.s16 %v1675
    %v1686 = vunpack.i.l.s16 %v1678
    %v1687 = vunpack.i.h.s16 %v1678
    %v1688 = vunpack.i.l.s16 %v1681
    %v1689 = vunpack.i.h.s16 %v1681
    %v1690 = vpack.i.b16 %v1682, %v1682
    %v1691 = vperm.slane %v1690, 0
    %1692 = vrot.lane.b32.xlu0 %v1691, 32
    %v1693 = vpop.permute.xlu0 %1692
    %v1695 = vsel %vm392, %v1693, 0
    %1697 = vmatpush.bf16.xpose.msra.mxu0 0
    %1698 = vmatpush.bf16.xpose.msra.mxu0 0
    %1699 = vmatpush.bf16.xpose.msra.mxu0 0
    %1700 = vmatpush.bf16.xpose.msra.mxu0 0
    %1701 = vmatpush.bf16.xpose.msra.mxu0 0
    %1702 = vmatpush.bf16.xpose.msra.mxu0 0
    %1703 = vmatpush.bf16.xpose.msra.mxu0 0
    %1704 = vmatpush.bf16.xpose.msra.mxu0 %v580
    %1705 = vmatmul.bf16.gmra.mxu0 %v1695
    %v1706 = vpop.f32.mrf.mxu0
    %v1707 = vadd.f32 0.0, %v1706
    %v1708 = vpop.f32.mrf.mxu0
    %1709 = vdwg.mxu0
    %v1710 = vpack.i.b16 %v1683, %v1683
    %v1711 = vperm.slane %v1710, 0
    %1712 = vrot.lane.b32.xlu0 %v1711, 32
    %v1713 = vpop.permute.xlu0 %1712
    %v1715 = vsel %vm392, %v1713, 0
    %1717 = vmatpush.bf16.xpose.msra.mxu0 0
    %1718 = vmatpush.bf16.xpose.msra.mxu0 0
    %1719 = vmatpush.bf16.xpose.msra.mxu0 0
    %1720 = vmatpush.bf16.xpose.msra.mxu0 0
    %1721 = vmatpush.bf16.xpose.msra.mxu0 0
    %1722 = vmatpush.bf16.xpose.msra.mxu0 0
    %1723 = vmatpush.bf16.xpose.msra.mxu0 0
    %1724 = vmatpush.bf16.xpose.msra.mxu0 %v603
    %1725 = vmatmul.bf16.gmra.mxu0 %v1715
    %v1726 = vpop.f32.mrf.mxu0
    %v1727 = vadd.f32 0.0, %v1726
    %v1728 = vpop.f32.mrf.mxu0
    %1729 = vdwg.mxu0
    %v1730 = vpack.i.b16 %v1684, %v1684
    %v1731 = vperm.slane %v1730, 0
    %1732 = vrot.lane.b32.xlu0 %v1731, 32
    %v1733 = vpop.permute.xlu0 %1732
    %v1735 = vsel %vm392, %v1733, 0
    %1737 = vmatpush.bf16.xpose.msra.mxu0 0
    %1738 = vmatpush.bf16.xpose.msra.mxu0 0
    %1739 = vmatpush.bf16.xpose.msra.mxu0 0
    %1740 = vmatpush.bf16.xpose.msra.mxu0 0
    %1741 = vmatpush.bf16.xpose.msra.mxu0 0
    %1742 = vmatpush.bf16.xpose.msra.mxu0 0
    %1743 = vmatpush.bf16.xpose.msra.mxu0 0
    %1744 = vmatpush.bf16.xpose.msra.mxu0 %v626
    %1745 = vmatmul.bf16.gmra.mxu0 %v1735
    %v1746 = vpop.f32.mrf.mxu0
    %v1747 = vadd.f32 0.0, %v1746
    %v1748 = vpop.f32.mrf.mxu0
    %1749 = vdwg.mxu0
    %v1750 = vpack.i.b16 %v1685, %v1685
    %v1751 = vperm.slane %v1750, 0
    %1752 = vrot.lane.b32.xlu0 %v1751, 32
    %v1753 = vpop.permute.xlu0 %1752
    %v1755 = vsel %vm392, %v1753, 0
    %1757 = vmatpush.bf16.xpose.msra.mxu0 0
    %1758 = vmatpush.bf16.xpose.msra.mxu0 0
    %1759 = vmatpush.bf16.xpose.msra.mxu0 0
    %1760 = vmatpush.bf16.xpose.msra.mxu0 0
    %1761 = vmatpush.bf16.xpose.msra.mxu0 0
    %1762 = vmatpush.bf16.xpose.msra.mxu0 0
    %1763 = vmatpush.bf16.xpose.msra.mxu0 0
    %1764 = vmatpush.bf16.xpose.msra.mxu0 %v649
    %1765 = vmatmul.bf16.gmra.mxu0 %v1755
    %v1766 = vpop.f32.mrf.mxu0
    %v1767 = vadd.f32 0.0, %v1766
    %v1768 = vpop.f32.mrf.mxu0
    %1769 = vdwg.mxu0
    %v1770 = vpack.i.b16 %v1686, %v1686
    %v1771 = vperm.slane %v1770, 0
    %1772 = vrot.lane.b32.xlu0 %v1771, 32
    %v1773 = vpop.permute.xlu0 %1772
    %v1775 = vsel %vm392, %v1773, 0
    %1777 = vmatpush.bf16.xpose.msra.mxu0 0
    %1778 = vmatpush.bf16.xpose.msra.mxu0 0
    %1779 = vmatpush.bf16.xpose.msra.mxu0 0
    %1780 = vmatpush.bf16.xpose.msra.mxu0 0
    %1781 = vmatpush.bf16.xpose.msra.mxu0 0
    %1782 = vmatpush.bf16.xpose.msra.mxu0 0
    %1783 = vmatpush.bf16.xpose.msra.mxu0 0
    %1784 = vmatpush.bf16.xpose.msra.mxu0 %v672
    %1785 = vmatmul.bf16.gmra.mxu0 %v1775
    %v1786 = vpop.f32.mrf.mxu0
    %v1787 = vadd.f32 0.0, %v1786
    %v1788 = vpop.f32.mrf.mxu0
    %1789 = vdwg.mxu0
    %v1790 = vpack.i.b16 %v1687, %v1687
    %v1791 = vperm.slane %v1790, 0
    %1792 = vrot.lane.b32.xlu0 %v1791, 32
    %v1793 = vpop.permute.xlu0 %1792
    %v1795 = vsel %vm392, %v1793, 0
    %1797 = vmatpush.bf16.xpose.msra.mxu0 0
    %1798 = vmatpush.bf16.xpose.msra.mxu0 0
    %1799 = vmatpush.bf16.xpose.msra.mxu0 0
    %1800 = vmatpush.bf16.xpose.msra.mxu0 0
    %1801 = vmatpush.bf16.xpose.msra.mxu0 0
    %1802 = vmatpush.bf16.xpose.msra.mxu0 0
    %1803 = vmatpush.bf16.xpose.msra.mxu0 0
    %1804 = vmatpush.bf16.xpose.msra.mxu0 %v695
    %1805 = vmatmul.bf16.gmra.mxu0 %v1795
    %v1806 = vpop.f32.mrf.mxu0
    %v1807 = vadd.f32 0.0, %v1806
    %v1808 = vpop.f32.mrf.mxu0
    %1809 = vdwg.mxu0
    %v1810 = vpack.i.b16 %v1688, %v1688
    %v1811 = vperm.slane %v1810, 0
    %1812 = vrot.lane.b32.xlu0 %v1811, 32
    %v1813 = vpop.permute.xlu0 %1812
    %v1815 = vsel %vm392, %v1813, 0
    %1817 = vmatpush.bf16.xpose.msra.mxu0 0
    %1818 = vmatpush.bf16.xpose.msra.mxu0 0
    %1819 = vmatpush.bf16.xpose.msra.mxu0 0
    %1820 = vmatpush.bf16.xpose.msra.mxu0 0
    %1821 = vmatpush.bf16.xpose.msra.mxu0 0
    %1822 = vmatpush.bf16.xpose.msra.mxu0 0
    %1823 = vmatpush.bf16.xpose.msra.mxu0 0
    %1824 = vmatpush.bf16.xpose.msra.mxu0 %v718
    %1825 = vmatmul.bf16.gmra.mxu0 %v1815
    %v1826 = vpop.f32.mrf.mxu0
    %v1827 = vadd.f32 0.0, %v1826
    %v1828 = vpop.f32.mrf.mxu0
    %1829 = vdwg.mxu0
    %v1830 = vpack.i.b16 %v1689, %v1689
    %v1831 = vperm.slane %v1830, 0
    %1832 = vrot.lane.b32.xlu0 %v1831, 32
    %v1833 = vpop.permute.xlu0 %1832
    %v1835 = vsel %vm392, %v1833, 0
    %1837 = vmatpush.bf16.xpose.msra.mxu0 0
    %1838 = vmatpush.bf16.xpose.msra.mxu0 0
    %1839 = vmatpush.bf16.xpose.msra.mxu0 0
    %1840 = vmatpush.bf16.xpose.msra.mxu0 0
    %1841 = vmatpush.bf16.xpose.msra.mxu0 0
    %1842 = vmatpush.bf16.xpose.msra.mxu0 0
    %1843 = vmatpush.bf16.xpose.msra.mxu0 0
    %1844 = vmatpush.bf16.xpose.msra.mxu0 %v741
    %1845 = vmatmul.bf16.gmra.mxu0 %v1835
    %v1846 = vpop.f32.mrf.mxu0
    %v1847 = vadd.f32 0.0, %v1846
    %v1848 = vpop.f32.mrf.mxu0
    %1849 = vdwg.mxu0
    %v1858 = vrot.slane %v1727, 7
    %v1859 = vsel %vm552, %v1858, %v1707
    %v1860 = vrot.slane %v1747, 6
    %v1861 = vsel %vm556, %v1860, %v1859
    %v1862 = vrot.slane %v1767, 5
    %v1863 = vsel %vm560, %v1862, %v1861
    %v1864 = vrot.slane %v1787, 4
    %v1865 = vsel %vm771, %v1864, %v1863
    %v1866 = vrot.slane %v1807, 3
    %v1867 = vsel %vm774, %v1866, %v1865
    %v1868 = vrot.slane %v1827, 2
    %v1869 = vsel %vm777, %v1868, %v1867
    %v1870 = vrot.slane %v1847, 1
    %v1871 = vsel %vm780, %v1870, %v1869
    %v1873 = vsel %vm308, -inf, %v1871
    %v1874 = vsel %vm784, %v1873, -inf
    %1875 = vmax.xlane.f32.xlu0 %v1874
    %v1876 = vpop.xlane.xlu0 %1875
    %v1877 = vsub.f32 %v1873, %v1876
    %v1878 = vmul.f32 %v1877, 1.442695
    %v1879 = vpow.pop %v1878
    %v1880 = vsel %vm784, %v1879, 0.0
    %1881 = vadd.xlane.f32.xlu0 %v1880
    %v1882 = vpop.xlane.xlu0 %1881
    %v1883 = vrcp.pop %v1882
    %v1884 = vmul.f32 %v1879, %v1883
    %v1885 = vpack.c.bf16 %v1884, %v1884
    %v1887 = vrot.slane %v1885, 3
    %v1890 = vsel %vm547, %v1885, %v1887
    %v1892 = vsel %vm552, %v1885, %v1887
    %v1894 = vrot.slane %v1892, 1
    %v1895 = vsel %vm556, %v1885, %v1887
    %v1897 = vrot.slane %v1895, 2
    %v1898 = vsel %vm560, %v1885, %v1887
    %v1900 = vrot.slane %v1898, 3
    %v1901 = vunpack.i.l.s16 %v1890
    %v1902 = vunpack.i.h.s16 %v1890
    %v1903 = vunpack.i.l.s16 %v1894
    %v1904 = vunpack.i.h.s16 %v1894
    %v1905 = vunpack.i.l.s16 %v1897
    %v1906 = vunpack.i.h.s16 %v1897
    %v1907 = vunpack.i.l.s16 %v1900
    %v1908 = vunpack.i.h.s16 %v1900
    %v1909 = vpack.i.b16 %v1901, %v1901
    %v1910 = vperm.slane %v1909, 0
    %v1912 = vsel %vm784, %v1910, 0
    %1914 = vmatpush.bf16.msra.mxu0 0
    %1915 = vmatpush.bf16.msra.mxu0 0
    %1916 = vmatpush.bf16.msra.mxu0 0
    %1917 = vmatpush.bf16.msra.mxu0 0
    %1918 = vmatpush.bf16.msra.mxu0 0
    %1919 = vmatpush.bf16.msra.mxu0 0
    %1920 = vmatpush.bf16.msra.mxu0 0
    %1921 = vmatpush.bf16.msra.mxu0 %v827
    %1922 = vmatmul.bf16.gmra.mxu0 %v1912
    %v1923 = vpop.f32.mrf.mxu0
    %v1924 = vadd.f32 0.0, %v1923
    %v1925 = vpop.f32.mrf.mxu0
    %1926 = vdwg.mxu0
    %v1927 = vpack.i.b16 %v1902, %v1902
    %v1928 = vperm.slane %v1927, 0
    %v1930 = vsel %vm784, %v1928, 0
    %1932 = vmatpush.bf16.msra.mxu0 0
    %1933 = vmatpush.bf16.msra.mxu0 0
    %1934 = vmatpush.bf16.msra.mxu0 0
    %1935 = vmatpush.bf16.msra.mxu0 0
    %1936 = vmatpush.bf16.msra.mxu0 0
    %1937 = vmatpush.bf16.msra.mxu0 0
    %1938 = vmatpush.bf16.msra.mxu0 0
    %1939 = vmatpush.bf16.msra.mxu0 %v848
    %1940 = vmatmul.bf16.gmra.mxu0 %v1930
    %v1941 = vpop.f32.mrf.mxu0
    %v1942 = vadd.f32 0.0, %v1941
    %v1943 = vpop.f32.mrf.mxu0
    %1944 = vdwg.mxu0
    %v1945 = vpack.i.b16 %v1903, %v1903
    %v1946 = vperm.slane %v1945, 0
    %v1948 = vsel %vm784, %v1946, 0
    %1950 = vmatpush.bf16.msra.mxu0 0
    %1951 = vmatpush.bf16.msra.mxu0 0
    %1952 = vmatpush.bf16.msra.mxu0 0
    %1953 = vmatpush.bf16.msra.mxu0 0
    %1954 = vmatpush.bf16.msra.mxu0 0
    %1955 = vmatpush.bf16.msra.mxu0 0
    %1956 = vmatpush.bf16.msra.mxu0 0
    %1957 = vmatpush.bf16.msra.mxu0 %v869
    %1958 = vmatmul.bf16.gmra.mxu0 %v1948
    %v1959 = vpop.f32.mrf.mxu0
    %v1960 = vadd.f32 0.0, %v1959
    %v1961 = vpop.f32.mrf.mxu0
    %1962 = vdwg.mxu0
    %v1963 = vpack.i.b16 %v1904, %v1904
    %v1964 = vperm.slane %v1963, 0
    %v1966 = vsel %vm784, %v1964, 0
    %1968 = vmatpush.bf16.msra.mxu0 0
    %1969 = vmatpush.bf16.msra.mxu0 0
    %1970 = vmatpush.bf16.msra.mxu0 0
    %1971 = vmatpush.bf16.msra.mxu0 0
    %1972 = vmatpush.bf16.msra.mxu0 0
    %1973 = vmatpush.bf16.msra.mxu0 0
    %1974 = vmatpush.bf16.msra.mxu0 0
    %1975 = vmatpush.bf16.msra.mxu0 %v890
    %1976 = vmatmul.bf16.gmra.mxu0 %v1966
    %v1977 = vpop.f32.mrf.mxu0
    %v1978 = vadd.f32 0.0, %v1977
    %v1979 = vpop.f32.mrf.mxu0
    %1980 = vdwg.mxu0
    %v1981 = vpack.i.b16 %v1905, %v1905
    %v1982 = vperm.slane %v1981, 0
    %v1984 = vsel %vm784, %v1982, 0
    %1986 = vmatpush.bf16.msra.mxu0 0
    %1987 = vmatpush.bf16.msra.mxu0 0
    %1988 = vmatpush.bf16.msra.mxu0 0
    %1989 = vmatpush.bf16.msra.mxu0 0
    %1990 = vmatpush.bf16.msra.mxu0 0
    %1991 = vmatpush.bf16.msra.mxu0 0
    %1992 = vmatpush.bf16.msra.mxu0 0
    %1993 = vmatpush.bf16.msra.mxu0 %v911
    %1994 = vmatmul.bf16.gmra.mxu0 %v1984
    %v1995 = vpop.f32.mrf.mxu0
    %v1996 = vadd.f32 0.0, %v1995
    %v1997 = vpop.f32.mrf.mxu0
    %1998 = vdwg.mxu0
    %v1999 = vpack.i.b16 %v1906, %v1906
    %v2000 = vperm.slane %v1999, 0
    %v2002 = vsel %vm784, %v2000, 0
    %2004 = vmatpush.bf16.msra.mxu0 0
    %2005 = vmatpush.bf16.msra.mxu0 0
    %2006 = vmatpush.bf16.msra.mxu0 0
    %2007 = vmatpush.bf16.msra.mxu0 0
    %2008 = vmatpush.bf16.msra.mxu0 0
    %2009 = vmatpush.bf16.msra.mxu0 0
    %2010 = vmatpush.bf16.msra.mxu0 0
    %2011 = vmatpush.bf16.msra.mxu0 %v932
    %2012 = vmatmul.bf16.gmra.mxu0 %v2002
    %v2013 = vpop.f32.mrf.mxu0
    %v2014 = vadd.f32 0.0, %v2013
    %v2015 = vpop.f32.mrf.mxu0
    %2016 = vdwg.mxu0
    %v2017 = vpack.i.b16 %v1907, %v1907
    %v2018 = vperm.slane %v2017, 0
    %v2020 = vsel %vm784, %v2018, 0
    %2022 = vmatpush.bf16.msra.mxu0 0
    %2023 = vmatpush.bf16.msra.mxu0 0
    %2024 = vmatpush.bf16.msra.mxu0 0
    %2025 = vmatpush.bf16.msra.mxu0 0
    %2026 = vmatpush.bf16.msra.mxu0 0
    %2027 = vmatpush.bf16.msra.mxu0 0
    %2028 = vmatpush.bf16.msra.mxu0 0
    %2029 = vmatpush.bf16.msra.mxu0 %v953
    %2030 = vmatmul.bf16.gmra.mxu0 %v2020
    %v2031 = vpop.f32.mrf.mxu0
    %v2032 = vadd.f32 0.0, %v2031
    %v2033 = vpop.f32.mrf.mxu0
    %2034 = vdwg.mxu0
    %v2035 = vpack.i.b16 %v1908, %v1908
    %v2036 = vperm.slane %v2035, 0
    %v2038 = vsel %vm784, %v2036, 0
    %2040 = vmatpush.bf16.msra.mxu0 0
    %2041 = vmatpush.bf16.msra.mxu0 0
    %2042 = vmatpush.bf16.msra.mxu0 0
    %2043 = vmatpush.bf16.msra.mxu0 0
    %2044 = vmatpush.bf16.msra.mxu0 0
    %2045 = vmatpush.bf16.msra.mxu0 0
    %2046 = vmatpush.bf16.msra.mxu0 0
    %2047 = vmatpush.bf16.msra.mxu0 %v974
    %2048 = vmatmul.bf16.gmra.mxu0 %v2038
    %v2049 = vpop.f32.mrf.mxu0
    %v2050 = vadd.f32 0.0, %v2049
    %v2051 = vpop.f32.mrf.mxu0
    %2052 = vdwg.mxu0
    %v2053 = vunpack.c.l.b16 %v1666
    %v2054 = vpack.c.b16 %v2053, %v2053
    %2055 = vrot.lane.b32.xlu0 %v2054, 32
    %v2056 = vpop.permute.xlu0 %2055
    %v2058 = vsel %vm392, %v2056, 0
    %2060 = vmatpush.bf16.msra.mxu0 0
    %2061 = vmatpush.bf16.msra.mxu0 0
    %2062 = vmatpush.bf16.msra.mxu0 0
    %2063 = vmatpush.bf16.msra.mxu0 0
    %2064 = vmatpush.bf16.msra.mxu0 0
    %2065 = vmatpush.bf16.msra.mxu0 0
    %2066 = vmatpush.bf16.msra.mxu0 %v484
    %2067 = vmatpush.bf16.msra.mxu0 %v483
    %2068 = vmatmul.bf16.gmra.mxu0 %v2058
    %v2069 = vpop.f32.mrf.mxu0
    %v2070 = vadd.f32 0.0, %v2069
    %v2071 = vpop.f32.mrf.mxu0
    %2072 = vdwg.mxu0
    %v2074 = vrot.slane %v2070, 1
    %v2075 = vrot.slane %v2070, 2
    %v2076 = vrot.slane %v2070, 3
    %v2077 = vrot.slane %v2070, 4
    %v2078 = vrot.slane %v2070, 5
    %v2079 = vrot.slane %v2070, 6
    %v2080 = vrot.slane %v2070, 7
    %v2089 = vadd.f32 %v1924, %v2070
    %v2090 = vadd.f32 %v1942, %v2074
    %v2091 = vadd.f32 %v1960, %v2075
    %v2092 = vadd.f32 %v1978, %v2076
    %v2093 = vadd.f32 %v1996, %v2077
    %v2094 = vadd.f32 %v2014, %v2078
    %v2095 = vadd.f32 %v2032, %v2079
    %v2096 = vadd.f32 %v2050, %v2080
    %v2097 = vtanh.pop %v2089
    %v2098 = vtanh.pop %v2090
    %v2099 = vtanh.pop %v2091
    %v2100 = vtanh.pop %v2092
    %v2101 = vtanh.pop %v2093
    %v2102 = vtanh.pop %v2094
    %v2103 = vtanh.pop %v2095
    %v2104 = vtanh.pop %v2096
    %v2105 = vpack.c.bf16 %v2097, %v2097
    %v2106 = vpack.c.bf16 %v2098, %v2098
    %v2107 = vpack.c.bf16 %v2099, %v2099
    %v2108 = vpack.c.bf16 %v2100, %v2100
    %v2109 = vpack.c.bf16 %v2101, %v2101
    %v2110 = vpack.c.bf16 %v2102, %v2102
    %v2111 = vpack.c.bf16 %v2103, %v2103
    %v2112 = vpack.c.bf16 %v2104, %v2104
    %v2121 = vunpack.c.l.b16 %v2105
    %v2122 = vunpack.c.l.b16 %v2106
    %v2123 = vunpack.c.l.b16 %v2107
    %v2124 = vunpack.c.l.b16 %v2108
    %v2125 = vunpack.c.l.b16 %v2109
    %v2126 = vunpack.c.l.b16 %v2110
    %v2127 = vunpack.c.l.b16 %v2111
    %v2128 = vunpack.c.l.b16 %v2112
    %v2129 = vrot.slane %v2122, 7
    %v2130 = vsel %vm552, %v2129, %v2121
    %v2131 = vrot.slane %v2123, 6
    %v2132 = vsel %vm556, %v2131, %v2130
    %v2133 = vrot.slane %v2124, 5
    %v2134 = vsel %vm560, %v2133, %v2132
    %v2135 = vrot.slane %v2125, 4
    %v2136 = vsel %vm771, %v2135, %v2134
    %v2137 = vrot.slane %v2126, 3
    %v2138 = vsel %vm774, %v2137, %v2136
    %v2139 = vrot.slane %v2127, 2
    %v2140 = vsel %vm777, %v2139, %v2138
    %v2141 = vrot.slane %v2128, 1
    %v2142 = vsel %vm780, %v2141, %v2140
    %v2143 = vpack.c.b16 %v2142, %v2142
    %v2145 = vsel %vm392, %v2143, 0
    %2147 = vmatpush.bf16.msra.mxu0 0
    %2148 = vmatpush.bf16.msra.mxu0 0
    %2149 = vmatpush.bf16.msra.mxu0 0
    %2150 = vmatpush.bf16.msra.mxu0 0
    %2151 = vmatpush.bf16.msra.mxu0 0
    %2152 = vmatpush.bf16.msra.mxu0 0
    %2153 = vmatpush.bf16.msra.mxu0 %v482
    %2154 = vmatpush.bf16.msra.mxu0 %v481
    %2155 = vmatmul.bf16.gmra.mxu0 %v2145
    %v2156 = vpop.f32.mrf.mxu0
    %v2157 = vadd.f32 0.0, %v2156
    %v2158 = vpop.f32.mrf.mxu0
    %2159 = vdwg.mxu0
    %v2160 = vadd.f32 %v378, %v2157
    %v2161 = vxor.u32 %v2160, 2147483648
    %v2162 = vmul.f32 %v2161, 1.442695
    %v2163 = vpow.pop %v2162
    %v2164 = vadd.f32 %v2163, 1.0
    %v2165 = vrcp.pop %v2164
    %v2166 = vmul.f32 %v2164, %v2165
    %v2167 = vsub.f32 1.0, %v2166
    %v2168 = vmul.f32 %v2165, %v2167
    %v2169 = vadd.f32 %v2165, %v2168
    %vm2170 = vweird.f32 %v2164
    %vm2171 = vweird.f32 %v2165
    %vm2172 = vmor %vm2170, %vm2171
    %v2173 = vsel %vm2172, %v2165, %v2169
    %v2174 = vand.u32 2147483647, %v2164
    %vm2175 = vcmp.eq.f32.partialorder %v2174, 8.507059e+37
    %v2176 = vand.u32 %v2164, 2147483648
    %v2177 = vor.u32 1.1754944e-38, %v2176
    %v2178 = vsel %vm2175, %v2177, %v2173
    %v2179 = vmul.f32 1.0, %v2178
    %v2180 = vtanh.pop %v2160
    %v2181 = vmul.f32 %v2179, %v1659
    %2183 = vrot.lane.b32.xlu0 %v2180, 64
    %v2184 = vpop.permute.xlu0 %2183
    %v2186 = vmul.f32 %v2179, %v2184
    %2188 = vrot.lane.b32.xlu0 %v2186, 32
    %v2189 = vpop.permute.xlu0 %2188
    %v2191 = vadd.f32 %v2181, %v2189
    %v2192 = vtanh.pop %v2191
    %2194 = vrot.lane.b32.xlu0 %v2192, 64
    %v2195 = vpop.permute.xlu0 %2194
    %v2197 = vmul.f32 %v2179, %v2195
    %v2198 = vpack.c.bf16 %v2197, %v2197
    %v2200 = vrot.slane %v2198, 3
    %v2203 = vsel %vm547, %v2198, %v2200
    %v2205 = vsel %vm552, %v2198, %v2200
    %v2207 = vrot.slane %v2205, 1
    %v2208 = vsel %vm556, %v2198, %v2200
    %v2210 = vrot.slane %v2208, 2
    %v2211 = vsel %vm560, %v2198, %v2200
    %v2213 = vrot.slane %v2211, 3
    %v2214 = vunpack.i.l.s16 %v2203
    %v2215 = vunpack.i.h.s16 %v2203
    %v2216 = vunpack.i.l.s16 %v2207
    %v2217 = vunpack.i.h.s16 %v2207
    %v2218 = vunpack.i.l.s16 %v2210
    %v2219 = vunpack.i.h.s16 %v2210
    %v2220 = vunpack.i.l.s16 %v2213
    %v2221 = vunpack.i.h.s16 %v2213
    %v2222 = vpack.i.b16 %v2214, %v2214
    %v2223 = vperm.slane %v2222, 0
    %2224 = vrot.lane.b32.xlu0 %v2223, 32
    %v2225 = vpop.permute.xlu0 %2224
    %v2227 = vsel %vm392, %v2225, 0
    %2229 = vmatpush.bf16.xpose.msra.mxu0 0
    %2230 = vmatpush.bf16.xpose.msra.mxu0 0
    %2231 = vmatpush.bf16.xpose.msra.mxu0 0
    %2232 = vmatpush.bf16.xpose.msra.mxu0 0
    %2233 = vmatpush.bf16.xpose.msra.mxu0 0
    %2234 = vmatpush.bf16.xpose.msra.mxu0 0
    %2235 = vmatpush.bf16.xpose.msra.mxu0 0
    %2236 = vmatpush.bf16.xpose.msra.mxu0 %v580
    %2237 = vmatmul.bf16.gmra.mxu0 %v2227
    %v2238 = vpop.f32.mrf.mxu0
    %v2239 = vadd.f32 0.0, %v2238
    %v2240 = vpop.f32.mrf.mxu0
    %2241 = vdwg.mxu0
    %v2242 = vpack.i.b16 %v2215, %v2215
    %v2243 = vperm.slane %v2242, 0
    %2244 = vrot.lane.b32.xlu0 %v2243, 32
    %v2245 = vpop.permute.xlu0 %2244
    %v2247 = vsel %vm392, %v2245, 0
    %2249 = vmatpush.bf16.xpose.msra.mxu0 0
    %2250 = vmatpush.bf16.xpose.msra.mxu0 0
    %2251 = vmatpush.bf16.xpose.msra.mxu0 0
    %2252 = vmatpush.bf16.xpose.msra.mxu0 0
    %2253 = vmatpush.bf16.xpose.msra.mxu0 0
    %2254 = vmatpush.bf16.xpose.msra.mxu0 0
    %2255 = vmatpush.bf16.xpose.msra.mxu0 0
    %2256 = vmatpush.bf16.xpose.msra.mxu0 %v603
    %2257 = vmatmul.bf16.gmra.mxu0 %v2247
    %v2258 = vpop.f32.mrf.mxu0
    %v2259 = vadd.f32 0.0, %v2258
    %v2260 = vpop.f32.mrf.mxu0
    %2261 = vdwg.mxu0
    %v2262 = vpack.i.b16 %v2216, %v2216
    %v2263 = vperm.slane %v2262, 0
    %2264 = vrot.lane.b32.xlu0 %v2263, 32
    %v2265 = vpop.permute.xlu0 %2264
    %v2267 = vsel %vm392, %v2265, 0
    %2269 = vmatpush.bf16.xpose.msra.mxu0 0
    %2270 = vmatpush.bf16.xpose.msra.mxu0 0
    %2271 = vmatpush.bf16.xpose.msra.mxu0 0
    %2272 = vmatpush.bf16.xpose.msra.mxu0 0
    %2273 = vmatpush.bf16.xpose.msra.mxu0 0
    %2274 = vmatpush.bf16.xpose.msra.mxu0 0
    %2275 = vmatpush.bf16.xpose.msra.mxu0 0
    %2276 = vmatpush.bf16.xpose.msra.mxu0 %v626
    %2277 = vmatmul.bf16.gmra.mxu0 %v2267
    %v2278 = vpop.f32.mrf.mxu0
    %v2279 = vadd.f32 0.0, %v2278
    %v2280 = vpop.f32.mrf.mxu0
    %2281 = vdwg.mxu0
    %v2282 = vpack.i.b16 %v2217, %v2217
    %v2283 = vperm.slane %v2282, 0
    %2284 = vrot.lane.b32.xlu0 %v2283, 32
    %v2285 = vpop.permute.xlu0 %2284
    %v2287 = vsel %vm392, %v2285, 0
    %2289 = vmatpush.bf16.xpose.msra.mxu0 0
    %2290 = vmatpush.bf16.xpose.msra.mxu0 0
    %2291 = vmatpush.bf16.xpose.msra.mxu0 0
    %2292 = vmatpush.bf16.xpose.msra.mxu0 0
    %2293 = vmatpush.bf16.xpose.msra.mxu0 0
    %2294 = vmatpush.bf16.xpose.msra.mxu0 0
    %2295 = vmatpush.bf16.xpose.msra.mxu0 0
    %2296 = vmatpush.bf16.xpose.msra.mxu0 %v649
    %2297 = vmatmul.bf16.gmra.mxu0 %v2287
    %v2298 = vpop.f32.mrf.mxu0
    %v2299 = vadd.f32 0.0, %v2298
    %v2300 = vpop.f32.mrf.mxu0
    %2301 = vdwg.mxu0
    %v2302 = vpack.i.b16 %v2218, %v2218
    %v2303 = vperm.slane %v2302, 0
    %2304 = vrot.lane.b32.xlu0 %v2303, 32
    %v2305 = vpop.permute.xlu0 %2304
    %v2307 = vsel %vm392, %v2305, 0
    %2309 = vmatpush.bf16.xpose.msra.mxu0 0
    %2310 = vmatpush.bf16.xpose.msra.mxu0 0
    %2311 = vmatpush.bf16.xpose.msra.mxu0 0
    %2312 = vmatpush.bf16.xpose.msra.mxu0 0
    %2313 = vmatpush.bf16.xpose.msra.mxu0 0
    %2314 = vmatpush.bf16.xpose.msra.mxu0 0
    %2315 = vmatpush.bf16.xpose.msra.mxu0 0
    %2316 = vmatpush.bf16.xpose.msra.mxu0 %v672
    %2317 = vmatmul.bf16.gmra.mxu0 %v2307
    %v2318 = vpop.f32.mrf.mxu0
    %v2319 = vadd.f32 0.0, %v2318
    %v2320 = vpop.f32.mrf.mxu0
    %2321 = vdwg.mxu0
    %v2322 = vpack.i.b16 %v2219, %v2219
    %v2323 = vperm.slane %v2322, 0
    %2324 = vrot.lane.b32.xlu0 %v2323, 32
    %v2325 = vpop.permute.xlu0 %2324
    %v2327 = vsel %vm392, %v2325, 0
    %2329 = vmatpush.bf16.xpose.msra.mxu0 0
    %2330 = vmatpush.bf16.xpose.msra.mxu0 0
    %2331 = vmatpush.bf16.xpose.msra.mxu0 0
    %2332 = vmatpush.bf16.xpose.msra.mxu0 0
    %2333 = vmatpush.bf16.xpose.msra.mxu0 0
    %2334 = vmatpush.bf16.xpose.msra.mxu0 0
    %2335 = vmatpush.bf16.xpose.msra.mxu0 0
    %2336 = vmatpush.bf16.xpose.msra.mxu0 %v695
    %2337 = vmatmul.bf16.gmra.mxu0 %v2327
    %v2338 = vpop.f32.mrf.mxu0
    %v2339 = vadd.f32 0.0, %v2338
    %v2340 = vpop.f32.mrf.mxu0
    %2341 = vdwg.mxu0
    %v2342 = vpack.i.b16 %v2220, %v2220
    %v2343 = vperm.slane %v2342, 0
    %2344 = vrot.lane.b32.xlu0 %v2343, 32
    %v2345 = vpop.permute.xlu0 %2344
    %v2347 = vsel %vm392, %v2345, 0
    %2349 = vmatpush.bf16.xpose.msra.mxu0 0
    %2350 = vmatpush.bf16.xpose.msra.mxu0 0
    %2351 = vmatpush.bf16.xpose.msra.mxu0 0
    %2352 = vmatpush.bf16.xpose.msra.mxu0 0
    %2353 = vmatpush.bf16.xpose.msra.mxu0 0
    %2354 = vmatpush.bf16.xpose.msra.mxu0 0
    %2355 = vmatpush.bf16.xpose.msra.mxu0 0
    %2356 = vmatpush.bf16.xpose.msra.mxu0 %v718
    %2357 = vmatmul.bf16.gmra.mxu0 %v2347
    %v2358 = vpop.f32.mrf.mxu0
    %v2359 = vadd.f32 0.0, %v2358
    %v2360 = vpop.f32.mrf.mxu0
    %2361 = vdwg.mxu0
    %v2362 = vpack.i.b16 %v2221, %v2221
    %v2363 = vperm.slane %v2362, 0
    %2364 = vrot.lane.b32.xlu0 %v2363, 32
    %v2365 = vpop.permute.xlu0 %2364
    %v2367 = vsel %vm392, %v2365, 0
    %2369 = vmatpush.bf16.xpose.msra.mxu0 0
    %2370 = vmatpush.bf16.xpose.msra.mxu0 0
    %2371 = vmatpush.bf16.xpose.msra.mxu0 0
    %2372 = vmatpush.bf16.xpose.msra.mxu0 0
    %2373 = vmatpush.bf16.xpose.msra.mxu0 0
    %2374 = vmatpush.bf16.xpose.msra.mxu0 0
    %2375 = vmatpush.bf16.xpose.msra.mxu0 0
    %2376 = vmatpush.bf16.xpose.msra.mxu0 %v741
    %2377 = vmatmul.bf16.gmra.mxu0 %v2367
    %v2378 = vpop.f32.mrf.mxu0
    %v2379 = vadd.f32 0.0, %v2378
    %v2380 = vpop.f32.mrf.mxu0
    %2381 = vdwg.mxu0
    %v2390 = vrot.slane %v2259, 7
    %v2391 = vsel %vm552, %v2390, %v2239
    %v2392 = vrot.slane %v2279, 6
    %v2393 = vsel %vm556, %v2392, %v2391
    %v2394 = vrot.slane %v2299, 5
    %v2395 = vsel %vm560, %v2394, %v2393
    %v2396 = vrot.slane %v2319, 4
    %v2397 = vsel %vm771, %v2396, %v2395
    %v2398 = vrot.slane %v2339, 3
    %v2399 = vsel %vm774, %v2398, %v2397
    %v2400 = vrot.slane %v2359, 2
    %v2401 = vsel %vm777, %v2400, %v2399
    %v2402 = vrot.slane %v2379, 1
    %v2403 = vsel %vm780, %v2402, %v2401
    %v2405 = vsel %vm308, -inf, %v2403
    %v2406 = vsel %vm784, %v2405, -inf
    %2407 = vmax.xlane.f32.xlu0 %v2406
    %v2408 = vpop.xlane.xlu0 %2407
    %v2409 = vsub.f32 %v2405, %v2408
    %v2410 = vmul.f32 %v2409, 1.442695
    %v2411 = vpow.pop %v2410
    %v2412 = vsel %vm784, %v2411, 0.0
    %2413 = vadd.xlane.f32.xlu0 %v2412
    %v2414 = vpop.xlane.xlu0 %2413
    %v2415 = vrcp.pop %v2414
    %v2416 = vmul.f32 %v2411, %v2415
    %v2417 = vpack.c.bf16 %v2416, %v2416
    %v2419 = vrot.slane %v2417, 3
    %v2422 = vsel %vm547, %v2417, %v2419
    %v2424 = vsel %vm552, %v2417, %v2419
    %v2426 = vrot.slane %v2424, 1
    %v2427 = vsel %vm556, %v2417, %v2419
    %v2429 = vrot.slane %v2427, 2
    %v2430 = vsel %vm560, %v2417, %v2419
    %v2432 = vrot.slane %v2430, 3
    %v2433 = vunpack.i.l.s16 %v2422
    %v2434 = vunpack.i.h.s16 %v2422
    %v2435 = vunpack.i.l.s16 %v2426
    %v2436 = vunpack.i.h.s16 %v2426
    %v2437 = vunpack.i.l.s16 %v2429
    %v2438 = vunpack.i.h.s16 %v2429
    %v2439 = vunpack.i.l.s16 %v2432
    %v2440 = vunpack.i.h.s16 %v2432
    %v2441 = vpack.i.b16 %v2433, %v2433
    %v2442 = vperm.slane %v2441, 0
    %v2444 = vsel %vm784, %v2442, 0
    %2446 = vmatpush.bf16.msra.mxu0 0
    %2447 = vmatpush.bf16.msra.mxu0 0
    %2448 = vmatpush.bf16.msra.mxu0 0
    %2449 = vmatpush.bf16.msra.mxu0 0
    %2450 = vmatpush.bf16.msra.mxu0 0
    %2451 = vmatpush.bf16.msra.mxu0 0
    %2452 = vmatpush.bf16.msra.mxu0 0
    %2453 = vmatpush.bf16.msra.mxu0 %v827
    %2454 = vmatmul.bf16.gmra.mxu0 %v2444
    %v2455 = vpop.f32.mrf.mxu0
    %v2456 = vadd.f32 0.0, %v2455
    %v2457 = vpop.f32.mrf.mxu0
    %2458 = vdwg.mxu0
    %v2459 = vpack.i.b16 %v2434, %v2434
    %v2460 = vperm.slane %v2459, 0
    %v2462 = vsel %vm784, %v2460, 0
    %2464 = vmatpush.bf16.msra.mxu0 0
    %2465 = vmatpush.bf16.msra.mxu0 0
    %2466 = vmatpush.bf16.msra.mxu0 0
    %2467 = vmatpush.bf16.msra.mxu0 0
    %2468 = vmatpush.bf16.msra.mxu0 0
    %2469 = vmatpush.bf16.msra.mxu0 0
    %2470 = vmatpush.bf16.msra.mxu0 0
    %2471 = vmatpush.bf16.msra.mxu0 %v848
    %2472 = vmatmul.bf16.gmra.mxu0 %v2462
    %v2473 = vpop.f32.mrf.mxu0
    %v2474 = vadd.f32 0.0, %v2473
    %v2475 = vpop.f32.mrf.mxu0
    %2476 = vdwg.mxu0
    %v2477 = vpack.i.b16 %v2435, %v2435
    %v2478 = vperm.slane %v2477, 0
    %v2480 = vsel %vm784, %v2478, 0
    %2482 = vmatpush.bf16.msra.mxu0 0
    %2483 = vmatpush.bf16.msra.mxu0 0
    %2484 = vmatpush.bf16.msra.mxu0 0
    %2485 = vmatpush.bf16.msra.mxu0 0
    %2486 = vmatpush.bf16.msra.mxu0 0
    %2487 = vmatpush.bf16.msra.mxu0 0
    %2488 = vmatpush.bf16.msra.mxu0 0
    %2489 = vmatpush.bf16.msra.mxu0 %v869
    %2490 = vmatmul.bf16.gmra.mxu0 %v2480
    %v2491 = vpop.f32.mrf.mxu0
    %v2492 = vadd.f32 0.0, %v2491
    %v2493 = vpop.f32.mrf.mxu0
    %2494 = vdwg.mxu0
    %v2495 = vpack.i.b16 %v2436, %v2436
    %v2496 = vperm.slane %v2495, 0
    %v2498 = vsel %vm784, %v2496, 0
    %2500 = vmatpush.bf16.msra.mxu0 0
    %2501 = vmatpush.bf16.msra.mxu0 0
    %2502 = vmatpush.bf16.msra.mxu0 0
    %2503 = vmatpush.bf16.msra.mxu0 0
    %2504 = vmatpush.bf16.msra.mxu0 0
    %2505 = vmatpush.bf16.msra.mxu0 0
    %2506 = vmatpush.bf16.msra.mxu0 0
    %2507 = vmatpush.bf16.msra.mxu0 %v890
    %2508 = vmatmul.bf16.gmra.mxu0 %v2498
    %v2509 = vpop.f32.mrf.mxu0
    %v2510 = vadd.f32 0.0, %v2509
    %v2511 = vpop.f32.mrf.mxu0
    %2512 = vdwg.mxu0
    %v2513 = vpack.i.b16 %v2437, %v2437
    %v2514 = vperm.slane %v2513, 0
    %v2516 = vsel %vm784, %v2514, 0
    %2518 = vmatpush.bf16.msra.mxu0 0
    %2519 = vmatpush.bf16.msra.mxu0 0
    %2520 = vmatpush.bf16.msra.mxu0 0
    %2521 = vmatpush.bf16.msra.mxu0 0
    %2522 = vmatpush.bf16.msra.mxu0 0
    %2523 = vmatpush.bf16.msra.mxu0 0
    %2524 = vmatpush.bf16.msra.mxu0 0
    %2525 = vmatpush.bf16.msra.mxu0 %v911
    %2526 = vmatmul.bf16.gmra.mxu0 %v2516
    %v2527 = vpop.f32.mrf.mxu0
    %v2528 = vadd.f32 0.0, %v2527
    %v2529 = vpop.f32.mrf.mxu0
    %2530 = vdwg.mxu0
    %v2531 = vpack.i.b16 %v2438, %v2438
    %v2532 = vperm.slane %v2531, 0
    %v2534 = vsel %vm784, %v2532, 0
    %2536 = vmatpush.bf16.msra.mxu0 0
    %2537 = vmatpush.bf16.msra.mxu0 0
    %2538 = vmatpush.bf16.msra.mxu0 0
    %2539 = vmatpush.bf16.msra.mxu0 0
    %2540 = vmatpush.bf16.msra.mxu0 0
    %2541 = vmatpush.bf16.msra.mxu0 0
    %2542 = vmatpush.bf16.msra.mxu0 0
    %2543 = vmatpush.bf16.msra.mxu0 %v932
    %2544 = vmatmul.bf16.gmra.mxu0 %v2534
    %v2545 = vpop.f32.mrf.mxu0
    %v2546 = vadd.f32 0.0, %v2545
    %v2547 = vpop.f32.mrf.mxu0
    %2548 = vdwg.mxu0
    %v2549 = vpack.i.b16 %v2439, %v2439
    %v2550 = vperm.slane %v2549, 0
    %v2552 = vsel %vm784, %v2550, 0
    %2554 = vmatpush.bf16.msra.mxu0 0
    %2555 = vmatpush.bf16.msra.mxu0 0
    %2556 = vmatpush.bf16.msra.mxu0 0
    %2557 = vmatpush.bf16.msra.mxu0 0
    %2558 = vmatpush.bf16.msra.mxu0 0
    %2559 = vmatpush.bf16.msra.mxu0 0
    %2560 = vmatpush.bf16.msra.mxu0 0
    %2561 = vmatpush.bf16.msra.mxu0 %v953
    %2562 = vmatmul.bf16.gmra.mxu0 %v2552
    %v2563 = vpop.f32.mrf.mxu0
    %v2564 = vadd.f32 0.0, %v2563
    %v2565 = vpop.f32.mrf.mxu0
    %2566 = vdwg.mxu0
    %v2567 = vpack.i.b16 %v2440, %v2440
    %v2568 = vperm.slane %v2567, 0
    %v2570 = vsel %vm784, %v2568, 0
    %2572 = vmatpush.bf16.msra.mxu0 0
    %2573 = vmatpush.bf16.msra.mxu0 0
    %2574 = vmatpush.bf16.msra.mxu0 0
    %2575 = vmatpush.bf16.msra.mxu0 0
    %2576 = vmatpush.bf16.msra.mxu0 0
    %2577 = vmatpush.bf16.msra.mxu0 0
    %2578 = vmatpush.bf16.msra.mxu0 0
    %2579 = vmatpush.bf16.msra.mxu0 %v974
    %2580 = vmatmul.bf16.gmra.mxu0 %v2570
    %v2581 = vpop.f32.mrf.mxu0
    %v2582 = vadd.f32 0.0, %v2581
    %v2583 = vpop.f32.mrf.mxu0
    %2584 = vdwg.mxu0
    %v2585 = vunpack.c.l.b16 %v2198
    %v2586 = vpack.c.b16 %v2585, %v2585
    %2587 = vrot.lane.b32.xlu0 %v2586, 32
    %v2588 = vpop.permute.xlu0 %2587
    %v2590 = vsel %vm392, %v2588, 0
    %2592 = vmatpush.bf16.msra.mxu0 0
    %2593 = vmatpush.bf16.msra.mxu0 0
    %2594 = vmatpush.bf16.msra.mxu0 0
    %2595 = vmatpush.bf16.msra.mxu0 0
    %2596 = vmatpush.bf16.msra.mxu0 0
    %2597 = vmatpush.bf16.msra.mxu0 0
    %2598 = vmatpush.bf16.msra.mxu0 %v484
    %2599 = vmatpush.bf16.msra.mxu0 %v483
    %2600 = vmatmul.bf16.gmra.mxu0 %v2590
    %v2601 = vpop.f32.mrf.mxu0
    %v2602 = vadd.f32 0.0, %v2601
    %v2603 = vpop.f32.mrf.mxu0
    %2604 = vdwg.mxu0
    %v2606 = vrot.slane %v2602, 1
    %v2607 = vrot.slane %v2602, 2
    %v2608 = vrot.slane %v2602, 3
    %v2609 = vrot.slane %v2602, 4
    %v2610 = vrot.slane %v2602, 5
    %v2611 = vrot.slane %v2602, 6
    %v2612 = vrot.slane %v2602, 7
    %v2621 = vadd.f32 %v2456, %v2602
    %v2622 = vadd.f32 %v2474, %v2606
    %v2623 = vadd.f32 %v2492, %v2607
    %v2624 = vadd.f32 %v2510, %v2608
    %v2625 = vadd.f32 %v2528, %v2609
    %v2626 = vadd.f32 %v2546, %v2610
    %v2627 = vadd.f32 %v2564, %v2611
    %v2628 = vadd.f32 %v2582, %v2612
    %v2629 = vtanh.pop %v2621
    %v2630 = vtanh.pop %v2622
    %v2631 = vtanh.pop %v2623
    %v2632 = vtanh.pop %v2624
    %v2633 = vtanh.pop %v2625
    %v2634 = vtanh.pop %v2626
    %v2635 = vtanh.pop %v2627
    %v2636 = vtanh.pop %v2628
    %v2637 = vpack.c.bf16 %v2629, %v2629
    %v2638 = vpack.c.bf16 %v2630, %v2630
    %v2639 = vpack.c.bf16 %v2631, %v2631
    %v2640 = vpack.c.bf16 %v2632, %v2632
    %v2641 = vpack.c.bf16 %v2633, %v2633
    %v2642 = vpack.c.bf16 %v2634, %v2634
    %v2643 = vpack.c.bf16 %v2635, %v2635
    %v2644 = vpack.c.bf16 %v2636, %v2636
    %v2653 = vunpack.c.l.b16 %v2637
    %v2654 = vunpack.c.l.b16 %v2638
    %v2655 = vunpack.c.l.b16 %v2639
    %v2656 = vunpack.c.l.b16 %v2640
    %v2657 = vunpack.c.l.b16 %v2641
    %v2658 = vunpack.c.l.b16 %v2642
    %v2659 = vunpack.c.l.b16 %v2643
    %v2660 = vunpack.c.l.b16 %v2644
    %v2661 = vrot.slane %v2654, 7
    %v2662 = vsel %vm552, %v2661, %v2653
    %v2663 = vrot.slane %v2655, 6
    %v2664 = vsel %vm556, %v2663, %v2662
    %v2665 = vrot.slane %v2656, 5
    %v2666 = vsel %vm560, %v2665, %v2664
    %v2667 = vrot.slane %v2657, 4
    %v2668 = vsel %vm771, %v2667, %v2666
    %v2669 = vrot.slane %v2658, 3
    %v2670 = vsel %vm774, %v2669, %v2668
    %v2671 = vrot.slane %v2659, 2
    %v2672 = vsel %vm777, %v2671, %v2670
    %v2673 = vrot.slane %v2660, 1
    %v2674 = vsel %vm780, %v2673, %v2672
    %v2675 = vpack.c.b16 %v2674, %v2674
    %v2677 = vsel %vm392, %v2675, 0
    %2679 = vmatpush.bf16.msra.mxu0 0
    %2680 = vmatpush.bf16.msra.mxu0 0
    %2681 = vmatpush.bf16.msra.mxu0 0
    %2682 = vmatpush.bf16.msra.mxu0 0
    %2683 = vmatpush.bf16.msra.mxu0 0
    %2684 = vmatpush.bf16.msra.mxu0 0
    %2685 = vmatpush.bf16.msra.mxu0 %v482
    %2686 = vmatpush.bf16.msra.mxu0 %v481
    %2687 = vmatmul.bf16.gmra.mxu0 %v2677
    %v2688 = vpop.f32.mrf.mxu0
    %v2689 = vadd.f32 0.0, %v2688
    %v2690 = vpop.f32.mrf.mxu0
    %2691 = vdwg.mxu0
    %v2692 = vadd.f32 %v381, %v2689
    %v2693 = vxor.u32 %v2692, 2147483648
    %v2694 = vmul.f32 %v2693, 1.442695
    %v2695 = vpow.pop %v2694
    %v2696 = vadd.f32 %v2695, 1.0
    %v2697 = vrcp.pop %v2696
    %v2698 = vmul.f32 %v2696, %v2697
    %v2699 = vsub.f32 1.0, %v2698
    %v2700 = vmul.f32 %v2697, %v2699
    %v2701 = vadd.f32 %v2697, %v2700
    %vm2702 = vweird.f32 %v2696
    %vm2703 = vweird.f32 %v2697
    %vm2704 = vmor %vm2702, %vm2703
    %v2705 = vsel %vm2704, %v2697, %v2701
    %v2706 = vand.u32 2147483647, %v2696
    %vm2707 = vcmp.eq.f32.partialorder %v2706, 8.507059e+37
    %v2708 = vand.u32 %v2696, 2147483648
    %v2709 = vor.u32 1.1754944e-38, %v2708
    %v2710 = vsel %vm2707, %v2709, %v2705
    %v2711 = vmul.f32 1.0, %v2710
    %v2712 = vtanh.pop %v2692
    %v2713 = vmul.f32 %v2711, %v2191
    %2715 = vrot.lane.b32.xlu0 %v2712, 64
    %v2716 = vpop.permute.xlu0 %2715
    %v2718 = vmul.f32 %v2711, %v2716
    %2720 = vrot.lane.b32.xlu0 %v2718, 32
    %v2721 = vpop.permute.xlu0 %2720
    %v2723 = vadd.f32 %v2713, %v2721
    %v2724 = vtanh.pop %v2723
    %2726 = vrot.lane.b32.xlu0 %v2724, 64
    %v2727 = vpop.permute.xlu0 %2726
    %v2729 = vmul.f32 %v2711, %v2727
    %v2730 = vpack.c.bf16 %v2729, %v2729
    %v2732 = vrot.slane %v2730, 3
    %v2735 = vsel %vm547, %v2730, %v2732
    %v2737 = vsel %vm552, %v2730, %v2732
    %v2739 = vrot.slane %v2737, 1
    %v2740 = vsel %vm556, %v2730, %v2732
    %v2742 = vrot.slane %v2740, 2
    %v2743 = vsel %vm560, %v2730, %v2732
    %v2745 = vrot.slane %v2743, 3
    %v2746 = vunpack.i.l.s16 %v2735
    %v2747 = vunpack.i.h.s16 %v2735
    %v2748 = vunpack.i.l.s16 %v2739
    %v2749 = vunpack.i.h.s16 %v2739
    %v2750 = vunpack.i.l.s16 %v2742
    %v2751 = vunpack.i.h.s16 %v2742
    %v2752 = vunpack.i.l.s16 %v2745
    %v2753 = vunpack.i.h.s16 %v2745
    %v2754 = vpack.i.b16 %v2746, %v2746
    %v2755 = vperm.slane %v2754, 0
    %2756 = vrot.lane.b32.xlu0 %v2755, 32
    %v2757 = vpop.permute.xlu0 %2756
    %v2759 = vsel %vm392, %v2757, 0
    %2761 = vmatpush.bf16.xpose.msra.mxu0 0
    %2762 = vmatpush.bf16.xpose.msra.mxu0 0
    %2763 = vmatpush.bf16.xpose.msra.mxu0 0
    %2764 = vmatpush.bf16.xpose.msra.mxu0 0
    %2765 = vmatpush.bf16.xpose.msra.mxu0 0
    %2766 = vmatpush.bf16.xpose.msra.mxu0 0
    %2767 = vmatpush.bf16.xpose.msra.mxu0 0
    %2768 = vmatpush.bf16.xpose.msra.mxu0 %v580
    %2769 = vmatmul.bf16.gmra.mxu0 %v2759
    %v2770 = vpop.f32.mrf.mxu0
    %v2771 = vadd.f32 0.0, %v2770
    %v2772 = vpop.f32.mrf.mxu0
    %2773 = vdwg.mxu0
    %v2774 = vpack.i.b16 %v2747, %v2747
    %v2775 = vperm.slane %v2774, 0
    %2776 = vrot.lane.b32.xlu0 %v2775, 32
    %v2777 = vpop.permute.xlu0 %2776
    %v2779 = vsel %vm392, %v2777, 0
    %2781 = vmatpush.bf16.xpose.msra.mxu0 0
    %2782 = vmatpush.bf16.xpose.msra.mxu0 0
    %2783 = vmatpush.bf16.xpose.msra.mxu0 0
    %2784 = vmatpush.bf16.xpose.msra.mxu0 0
    %2785 = vmatpush.bf16.xpose.msra.mxu0 0
    %2786 = vmatpush.bf16.xpose.msra.mxu0 0
    %2787 = vmatpush.bf16.xpose.msra.mxu0 0
    %2788 = vmatpush.bf16.xpose.msra.mxu0 %v603
    %2789 = vmatmul.bf16.gmra.mxu0 %v2779
    %v2790 = vpop.f32.mrf.mxu0
    %v2791 = vadd.f32 0.0, %v2790
    %v2792 = vpop.f32.mrf.mxu0
    %2793 = vdwg.mxu0
    %v2794 = vpack.i.b16 %v2748, %v2748
    %v2795 = vperm.slane %v2794, 0
    %2796 = vrot.lane.b32.xlu0 %v2795, 32
    %v2797 = vpop.permute.xlu0 %2796
    %v2799 = vsel %vm392, %v2797, 0
    %2801 = vmatpush.bf16.xpose.msra.mxu0 0
    %2802 = vmatpush.bf16.xpose.msra.mxu0 0
    %2803 = vmatpush.bf16.xpose.msra.mxu0 0
    %2804 = vmatpush.bf16.xpose.msra.mxu0 0
    %2805 = vmatpush.bf16.xpose.msra.mxu0 0
    %2806 = vmatpush.bf16.xpose.msra.mxu0 0
    %2807 = vmatpush.bf16.xpose.msra.mxu0 0
    %2808 = vmatpush.bf16.xpose.msra.mxu0 %v626
    %2809 = vmatmul.bf16.gmra.mxu0 %v2799
    %v2810 = vpop.f32.mrf.mxu0
    %v2811 = vadd.f32 0.0, %v2810
    %v2812 = vpop.f32.mrf.mxu0
    %2813 = vdwg.mxu0
    %v2814 = vpack.i.b16 %v2749, %v2749
    %v2815 = vperm.slane %v2814, 0
    %2816 = vrot.lane.b32.xlu0 %v2815, 32
    %v2817 = vpop.permute.xlu0 %2816
    %v2819 = vsel %vm392, %v2817, 0
    %2821 = vmatpush.bf16.xpose.msra.mxu0 0
    %2822 = vmatpush.bf16.xpose.msra.mxu0 0
    %2823 = vmatpush.bf16.xpose.msra.mxu0 0
    %2824 = vmatpush.bf16.xpose.msra.mxu0 0
    %2825 = vmatpush.bf16.xpose.msra.mxu0 0
    %2826 = vmatpush.bf16.xpose.msra.mxu0 0
    %2827 = vmatpush.bf16.xpose.msra.mxu0 0
    %2828 = vmatpush.bf16.xpose.msra.mxu0 %v649
    %2829 = vmatmul.bf16.gmra.mxu0 %v2819
    %v2830 = vpop.f32.mrf.mxu0
    %v2831 = vadd.f32 0.0, %v2830
    %v2832 = vpop.f32.mrf.mxu0
    %2833 = vdwg.mxu0
    %v2834 = vpack.i.b16 %v2750, %v2750
    %v2835 = vperm.slane %v2834, 0
    %2836 = vrot.lane.b32.xlu0 %v2835, 32
    %v2837 = vpop.permute.xlu0 %2836
    %v2839 = vsel %vm392, %v2837, 0
    %2841 = vmatpush.bf16.xpose.msra.mxu0 0
    %2842 = vmatpush.bf16.xpose.msra.mxu0 0
    %2843 = vmatpush.bf16.xpose.msra.mxu0 0
    %2844 = vmatpush.bf16.xpose.msra.mxu0 0
    %2845 = vmatpush.bf16.xpose.msra.mxu0 0
    %2846 = vmatpush.bf16.xpose.msra.mxu0 0
    %2847 = vmatpush.bf16.xpose.msra.mxu0 0
    %2848 = vmatpush.bf16.xpose.msra.mxu0 %v672
    %2849 = vmatmul.bf16.gmra.mxu0 %v2839
    %v2850 = vpop.f32.mrf.mxu0
    %v2851 = vadd.f32 0.0, %v2850
    %v2852 = vpop.f32.mrf.mxu0
    %2853 = vdwg.mxu0
    %v2854 = vpack.i.b16 %v2751, %v2751
    %v2855 = vperm.slane %v2854, 0
    %2856 = vrot.lane.b32.xlu0 %v2855, 32
    %v2857 = vpop.permute.xlu0 %2856
    %v2859 = vsel %vm392, %v2857, 0
    %2861 = vmatpush.bf16.xpose.msra.mxu0 0
    %2862 = vmatpush.bf16.xpose.msra.mxu0 0
    %2863 = vmatpush.bf16.xpose.msra.mxu0 0
    %2864 = vmatpush.bf16.xpose.msra.mxu0 0
    %2865 = vmatpush.bf16.xpose.msra.mxu0 0
    %2866 = vmatpush.bf16.xpose.msra.mxu0 0
    %2867 = vmatpush.bf16.xpose.msra.mxu0 0
    %2868 = vmatpush.bf16.xpose.msra.mxu0 %v695
    %2869 = vmatmul.bf16.gmra.mxu0 %v2859
    %v2870 = vpop.f32.mrf.mxu0
    %v2871 = vadd.f32 0.0, %v2870
    %v2872 = vpop.f32.mrf.mxu0
    %2873 = vdwg.mxu0
    %v2874 = vpack.i.b16 %v2752, %v2752
    %v2875 = vperm.slane %v2874, 0
    %2876 = vrot.lane.b32.xlu0 %v2875, 32
    %v2877 = vpop.permute.xlu0 %2876
    %v2879 = vsel %vm392, %v2877, 0
    %2881 = vmatpush.bf16.xpose.msra.mxu0 0
    %2882 = vmatpush.bf16.xpose.msra.mxu0 0
    %2883 = vmatpush.bf16.xpose.msra.mxu0 0
    %2884 = vmatpush.bf16.xpose.msra.mxu0 0
    %2885 = vmatpush.bf16.xpose.msra.mxu0 0
    %2886 = vmatpush.bf16.xpose.msra.mxu0 0
    %2887 = vmatpush.bf16.xpose.msra.mxu0 0
    %2888 = vmatpush.bf16.xpose.msra.mxu0 %v718
    %2889 = vmatmul.bf16.gmra.mxu0 %v2879
    %v2890 = vpop.f32.mrf.mxu0
    %v2891 = vadd.f32 0.0, %v2890
    %v2892 = vpop.f32.mrf.mxu0
    %2893 = vdwg.mxu0
    %v2894 = vpack.i.b16 %v2753, %v2753
    %v2895 = vperm.slane %v2894, 0
    %2896 = vrot.lane.b32.xlu0 %v2895, 32
    %v2897 = vpop.permute.xlu0 %2896
    %v2899 = vsel %vm392, %v2897, 0
    %2901 = vmatpush.bf16.xpose.msra.mxu0 0
    %2902 = vmatpush.bf16.xpose.msra.mxu0 0
    %2903 = vmatpush.bf16.xpose.msra.mxu0 0
    %2904 = vmatpush.bf16.xpose.msra.mxu0 0
    %2905 = vmatpush.bf16.xpose.msra.mxu0 0
    %2906 = vmatpush.bf16.xpose.msra.mxu0 0
    %2907 = vmatpush.bf16.xpose.msra.mxu0 0
    %2908 = vmatpush.bf16.xpose.msra.mxu0 %v741
    %2909 = vmatmul.bf16.gmra.mxu0 %v2899
    %v2910 = vpop.f32.mrf.mxu0
    %v2911 = vadd.f32 0.0, %v2910
    %v2912 = vpop.f32.mrf.mxu0
    %2913 = vdwg.mxu0
    %v2922 = vrot.slane %v2791, 7
    %v2923 = vsel %vm552, %v2922, %v2771
    %v2924 = vrot.slane %v2811, 6
    %v2925 = vsel %vm556, %v2924, %v2923
    %v2926 = vrot.slane %v2831, 5
    %v2927 = vsel %vm560, %v2926, %v2925
    %v2928 = vrot.slane %v2851, 4
    %v2929 = vsel %vm771, %v2928, %v2927
    %v2930 = vrot.slane %v2871, 3
    %v2931 = vsel %vm774, %v2930, %v2929
    %v2932 = vrot.slane %v2891, 2
    %v2933 = vsel %vm777, %v2932, %v2931
    %v2934 = vrot.slane %v2911, 1
    %v2935 = vsel %vm780, %v2934, %v2933
    %v2937 = vsel %vm308, -inf, %v2935
    %v2938 = vsel %vm784, %v2937, -inf
    %2939 = vmax.xlane.f32.xlu0 %v2938
    %v2940 = vpop.xlane.xlu0 %2939
    %v2941 = vsub.f32 %v2937, %v2940
    %v2942 = vmul.f32 %v2941, 1.442695
    %v2943 = vpow.pop %v2942
    %v2944 = vsel %vm784, %v2943, 0.0
    %2945 = vadd.xlane.f32.xlu0 %v2944
    %v2946 = vpop.xlane.xlu0 %2945
    %v2947 = vrcp.pop %v2946
    %v2948 = vmul.f32 %v2943, %v2947
    %v2949 = vpack.c.bf16 %v2948, %v2948
    %v2951 = vrot.slane %v2949, 3
    %v2954 = vsel %vm547, %v2949, %v2951
    %v2956 = vsel %vm552, %v2949, %v2951
    %v2958 = vrot.slane %v2956, 1
    %v2959 = vsel %vm556, %v2949, %v2951
    %v2961 = vrot.slane %v2959, 2
    %v2962 = vsel %vm560, %v2949, %v2951
    %v2964 = vrot.slane %v2962, 3
    %v2965 = vunpack.i.l.s16 %v2954
    %v2966 = vunpack.i.h.s16 %v2954
    %v2967 = vunpack.i.l.s16 %v2958
    %v2968 = vunpack.i.h.s16 %v2958
    %v2969 = vunpack.i.l.s16 %v2961
    %v2970 = vunpack.i.h.s16 %v2961
    %v2971 = vunpack.i.l.s16 %v2964
    %v2972 = vunpack.i.h.s16 %v2964
    %v2973 = vpack.i.b16 %v2965, %v2965
    %v2974 = vperm.slane %v2973, 0
    %v2976 = vsel %vm784, %v2974, 0
    %2978 = vmatpush.bf16.msra.mxu0 0
    %2979 = vmatpush.bf16.msra.mxu0 0
    %2980 = vmatpush.bf16.msra.mxu0 0
    %2981 = vmatpush.bf16.msra.mxu0 0
    %2982 = vmatpush.bf16.msra.mxu0 0
    %2983 = vmatpush.bf16.msra.mxu0 0
    %2984 = vmatpush.bf16.msra.mxu0 0
    %2985 = vmatpush.bf16.msra.mxu0 %v827
    %2986 = vmatmul.bf16.gmra.mxu0 %v2976
    %v2987 = vpop.f32.mrf.mxu0
    %v2988 = vadd.f32 0.0, %v2987
    %v2989 = vpop.f32.mrf.mxu0
    %2990 = vdwg.mxu0
    %v2991 = vpack.i.b16 %v2966, %v2966
    %v2992 = vperm.slane %v2991, 0
    %v2994 = vsel %vm784, %v2992, 0
    %2996 = vmatpush.bf16.msra.mxu0 0
    %2997 = vmatpush.bf16.msra.mxu0 0
    %2998 = vmatpush.bf16.msra.mxu0 0
    %2999 = vmatpush.bf16.msra.mxu0 0
    %3000 = vmatpush.bf16.msra.mxu0 0
    %3001 = vmatpush.bf16.msra.mxu0 0
    %3002 = vmatpush.bf16.msra.mxu0 0
    %3003 = vmatpush.bf16.msra.mxu0 %v848
    %3004 = vmatmul.bf16.gmra.mxu0 %v2994
    %v3005 = vpop.f32.mrf.mxu0
    %v3006 = vadd.f32 0.0, %v3005
    %v3007 = vpop.f32.mrf.mxu0
    %3008 = vdwg.mxu0
    %v3009 = vpack.i.b16 %v2967, %v2967
    %v3010 = vperm.slane %v3009, 0
    %v3012 = vsel %vm784, %v3010, 0
    %3014 = vmatpush.bf16.msra.mxu0 0
    %3015 = vmatpush.bf16.msra.mxu0 0
    %3016 = vmatpush.bf16.msra.mxu0 0
    %3017 = vmatpush.bf16.msra.mxu0 0
    %3018 = vmatpush.bf16.msra.mxu0 0
    %3019 = vmatpush.bf16.msra.mxu0 0
    %3020 = vmatpush.bf16.msra.mxu0 0
    %3021 = vmatpush.bf16.msra.mxu0 %v869
    %3022 = vmatmul.bf16.gmra.mxu0 %v3012
    %v3023 = vpop.f32.mrf.mxu0
    %v3024 = vadd.f32 0.0, %v3023
    %v3025 = vpop.f32.mrf.mxu0
    %3026 = vdwg.mxu0
    %v3027 = vpack.i.b16 %v2968, %v2968
    %v3028 = vperm.slane %v3027, 0
    %v3030 = vsel %vm784, %v3028, 0
    %3032 = vmatpush.bf16.msra.mxu0 0
    %3033 = vmatpush.bf16.msra.mxu0 0
    %3034 = vmatpush.bf16.msra.mxu0 0
    %3035 = vmatpush.bf16.msra.mxu0 0
    %3036 = vmatpush.bf16.msra.mxu0 0
    %3037 = vmatpush.bf16.msra.mxu0 0
    %3038 = vmatpush.bf16.msra.mxu0 0
    %3039 = vmatpush.bf16.msra.mxu0 %v890
    %3040 = vmatmul.bf16.gmra.mxu0 %v3030
    %v3041 = vpop.f32.mrf.mxu0
    %v3042 = vadd.f32 0.0, %v3041
    %v3043 = vpop.f32.mrf.mxu0
    %3044 = vdwg.mxu0
    %v3045 = vpack.i.b16 %v2969, %v2969
    %v3046 = vperm.slane %v3045, 0
    %v3048 = vsel %vm784, %v3046, 0
    %3050 = vmatpush.bf16.msra.mxu0 0
    %3051 = vmatpush.bf16.msra.mxu0 0
    %3052 = vmatpush.bf16.msra.mxu0 0
    %3053 = vmatpush.bf16.msra.mxu0 0
    %3054 = vmatpush.bf16.msra.mxu0 0
    %3055 = vmatpush.bf16.msra.mxu0 0
    %3056 = vmatpush.bf16.msra.mxu0 0
    %3057 = vmatpush.bf16.msra.mxu0 %v911
    %3058 = vmatmul.bf16.gmra.mxu0 %v3048
    %v3059 = vpop.f32.mrf.mxu0
    %v3060 = vadd.f32 0.0, %v3059
    %v3061 = vpop.f32.mrf.mxu0
    %3062 = vdwg.mxu0
    %v3063 = vpack.i.b16 %v2970, %v2970
    %v3064 = vperm.slane %v3063, 0
    %v3066 = vsel %vm784, %v3064, 0
    %3068 = vmatpush.bf16.msra.mxu0 0
    %3069 = vmatpush.bf16.msra.mxu0 0
    %3070 = vmatpush.bf16.msra.mxu0 0
    %3071 = vmatpush.bf16.msra.mxu0 0
    %3072 = vmatpush.bf16.msra.mxu0 0
    %3073 = vmatpush.bf16.msra.mxu0 0
    %3074 = vmatpush.bf16.msra.mxu0 0
    %3075 = vmatpush.bf16.msra.mxu0 %v932
    %3076 = vmatmul.bf16.gmra.mxu0 %v3066
    %v3077 = vpop.f32.mrf.mxu0
    %v3078 = vadd.f32 0.0, %v3077
    %v3079 = vpop.f32.mrf.mxu0
    %3080 = vdwg.mxu0
    %v3081 = vpack.i.b16 %v2971, %v2971
    %v3082 = vperm.slane %v3081, 0
    %v3084 = vsel %vm784, %v3082, 0
    %3086 = vmatpush.bf16.msra.mxu0 0
    %3087 = vmatpush.bf16.msra.mxu0 0
    %3088 = vmatpush.bf16.msra.mxu0 0
    %3089 = vmatpush.bf16.msra.mxu0 0
    %3090 = vmatpush.bf16.msra.mxu0 0
    %3091 = vmatpush.bf16.msra.mxu0 0
    %3092 = vmatpush.bf16.msra.mxu0 0
    %3093 = vmatpush.bf16.msra.mxu0 %v953
    %3094 = vmatmul.bf16.gmra.mxu0 %v3084
    %v3095 = vpop.f32.mrf.mxu0
    %v3096 = vadd.f32 0.0, %v3095
    %v3097 = vpop.f32.mrf.mxu0
    %3098 = vdwg.mxu0
    %v3099 = vpack.i.b16 %v2972, %v2972
    %v3100 = vperm.slane %v3099, 0
    %v3102 = vsel %vm784, %v3100, 0
    %3104 = vmatpush.bf16.msra.mxu0 0
    %3105 = vmatpush.bf16.msra.mxu0 0
    %3106 = vmatpush.bf16.msra.mxu0 0
    %3107 = vmatpush.bf16.msra.mxu0 0
    %3108 = vmatpush.bf16.msra.mxu0 0
    %3109 = vmatpush.bf16.msra.mxu0 0
    %3110 = vmatpush.bf16.msra.mxu0 0
    %3111 = vmatpush.bf16.msra.mxu0 %v974
    %3112 = vmatmul.bf16.gmra.mxu0 %v3102
    %v3113 = vpop.f32.mrf.mxu0
    %v3114 = vadd.f32 0.0, %v3113
    %v3115 = vpop.f32.mrf.mxu0
    %3116 = vdwg.mxu0
    %v3117 = vunpack.c.l.b16 %v2730
    %v3118 = vpack.c.b16 %v3117, %v3117
    %3119 = vrot.lane.b32.xlu0 %v3118, 32
    %v3120 = vpop.permute.xlu0 %3119
    %v3122 = vsel %vm392, %v3120, 0
    %3124 = vmatpush.bf16.msra.mxu0 0
    %3125 = vmatpush.bf16.msra.mxu0 0
    %3126 = vmatpush.bf16.msra.mxu0 0
    %3127 = vmatpush.bf16.msra.mxu0 0
    %3128 = vmatpush.bf16.msra.mxu0 0
    %3129 = vmatpush.bf16.msra.mxu0 0
    %3130 = vmatpush.bf16.msra.mxu0 %v484
    %3131 = vmatpush.bf16.msra.mxu0 %v483
    %3132 = vmatmul.bf16.gmra.mxu0 %v3122
    %v3133 = vpop.f32.mrf.mxu0
    %v3134 = vadd.f32 0.0, %v3133
    %v3135 = vpop.f32.mrf.mxu0
    %3136 = vdwg.mxu0
    %v3138 = vrot.slane %v3134, 1
    %v3139 = vrot.slane %v3134, 2
    %v3140 = vrot.slane %v3134, 3
    %v3141 = vrot.slane %v3134, 4
    %v3142 = vrot.slane %v3134, 5
    %v3143 = vrot.slane %v3134, 6
    %v3144 = vrot.slane %v3134, 7
    %v3153 = vadd.f32 %v2988, %v3134
    %v3154 = vadd.f32 %v3006, %v3138
    %v3155 = vadd.f32 %v3024, %v3139
    %v3156 = vadd.f32 %v3042, %v3140
    %v3157 = vadd.f32 %v3060, %v3141
    %v3158 = vadd.f32 %v3078, %v3142
    %v3159 = vadd.f32 %v3096, %v3143
    %v3160 = vadd.f32 %v3114, %v3144
    %v3161 = vtanh.pop %v3153
    %v3162 = vtanh.pop %v3154
    %v3163 = vtanh.pop %v3155
    %v3164 = vtanh.pop %v3156
    %v3165 = vtanh.pop %v3157
    %v3166 = vtanh.pop %v3158
    %v3167 = vtanh.pop %v3159
    %v3168 = vtanh.pop %v3160
    %v3169 = vpack.c.bf16 %v3161, %v3161
    %v3170 = vpack.c.bf16 %v3162, %v3162
    %v3171 = vpack.c.bf16 %v3163, %v3163
    %v3172 = vpack.c.bf16 %v3164, %v3164
    %v3173 = vpack.c.bf16 %v3165, %v3165
    %v3174 = vpack.c.bf16 %v3166, %v3166
    %v3175 = vpack.c.bf16 %v3167, %v3167
    %v3176 = vpack.c.bf16 %v3168, %v3168
    %v3185 = vunpack.c.l.b16 %v3169
    %v3186 = vunpack.c.l.b16 %v3170
    %v3187 = vunpack.c.l.b16 %v3171
    %v3188 = vunpack.c.l.b16 %v3172
    %v3189 = vunpack.c.l.b16 %v3173
    %v3190 = vunpack.c.l.b16 %v3174
    %v3191 = vunpack.c.l.b16 %v3175
    %v3192 = vunpack.c.l.b16 %v3176
    %v3193 = vrot.slane %v3186, 7
    %v3194 = vsel %vm552, %v3193, %v3185
    %v3195 = vrot.slane %v3187, 6
    %v3196 = vsel %vm556, %v3195, %v3194
    %v3197 = vrot.slane %v3188, 5
    %v3198 = vsel %vm560, %v3197, %v3196
    %v3199 = vrot.slane %v3189, 4
    %v3200 = vsel %vm771, %v3199, %v3198
    %v3201 = vrot.slane %v3190, 3
    %v3202 = vsel %vm774, %v3201, %v3200
    %v3203 = vrot.slane %v3191, 2
    %v3204 = vsel %vm777, %v3203, %v3202
    %v3205 = vrot.slane %v3192, 1
    %v3206 = vsel %vm780, %v3205, %v3204
    %v3207 = vpack.c.b16 %v3206, %v3206
    %v3209 = vsel %vm392, %v3207, 0
    %3211 = vmatpush.bf16.msra.mxu0 0
    %3212 = vmatpush.bf16.msra.mxu0 0
    %3213 = vmatpush.bf16.msra.mxu0 0
    %3214 = vmatpush.bf16.msra.mxu0 0
    %3215 = vmatpush.bf16.msra.mxu0 0
    %3216 = vmatpush.bf16.msra.mxu0 0
    %3217 = vmatpush.bf16.msra.mxu0 %v482
    %3218 = vmatpush.bf16.msra.mxu0 %v481
    %3219 = vmatmul.bf16.gmra.mxu0 %v3209
    %v3220 = vpop.f32.mrf.mxu0
    %v3221 = vadd.f32 0.0, %v3220
    %v3222 = vpop.f32.mrf.mxu0
    %3223 = vdwg.mxu0
    %v3224 = vadd.f32 %v383, %v3221
    %v3225 = vxor.u32 %v3224, 2147483648
    %v3226 = vmul.f32 %v3225, 1.442695
    %v3227 = vpow.pop %v3226
    %v3228 = vadd.f32 %v3227, 1.0
    %v3229 = vrcp.pop %v3228
    %v3230 = vmul.f32 %v3228, %v3229
    %v3231 = vsub.f32 1.0, %v3230
    %v3232 = vmul.f32 %v3229, %v3231
    %v3233 = vadd.f32 %v3229, %v3232
    %vm3234 = vweird.f32 %v3228
    %vm3235 = vweird.f32 %v3229
    %vm3236 = vmor %vm3234, %vm3235
    %v3237 = vsel %vm3236, %v3229, %v3233
    %v3238 = vand.u32 2147483647, %v3228
    %vm3239 = vcmp.eq.f32.partialorder %v3238, 8.507059e+37
    %v3240 = vand.u32 %v3228, 2147483648
    %v3241 = vor.u32 1.1754944e-38, %v3240
    %v3242 = vsel %vm3239, %v3241, %v3237
    %v3243 = vmul.f32 1.0, %v3242
    %v3244 = vtanh.pop %v3224
    %v3245 = vmul.f32 %v3243, %v2723
    %3247 = vrot.lane.b32.xlu0 %v3244, 64
    %v3248 = vpop.permute.xlu0 %3247
    %v3250 = vmul.f32 %v3243, %v3248
    %3252 = vrot.lane.b32.xlu0 %v3250, 32
    %v3253 = vpop.permute.xlu0 %3252
    %v3255 = vadd.f32 %v3245, %v3253
    %v3256 = vtanh.pop %v3255
    %3258 = vrot.lane.b32.xlu0 %v3256, 64
    %v3259 = vpop.permute.xlu0 %3258
    %v3261 = vmul.f32 %v3243, %v3259
    %v3262 = vpack.c.bf16 %v3261, %v3261
    %v3264 = vrot.slane %v3262, 3
    %v3267 = vsel %vm547, %v3262, %v3264
    %v3269 = vsel %vm552, %v3262, %v3264
    %v3271 = vrot.slane %v3269, 1
    %v3272 = vsel %vm556, %v3262, %v3264
    %v3274 = vrot.slane %v3272, 2
    %v3275 = vsel %vm560, %v3262, %v3264
    %v3277 = vrot.slane %v3275, 3
    %v3278 = vunpack.i.l.s16 %v3267
    %v3279 = vunpack.i.h.s16 %v3267
    %v3280 = vunpack.i.l.s16 %v3271
    %v3281 = vunpack.i.h.s16 %v3271
    %v3282 = vunpack.i.l.s16 %v3274
    %v3283 = vunpack.i.h.s16 %v3274
    %v3284 = vunpack.i.l.s16 %v3277
    %v3285 = vunpack.i.h.s16 %v3277
    %v3286 = vpack.i.b16 %v3278, %v3278
    %v3287 = vperm.slane %v3286, 0
    %3288 = vrot.lane.b32.xlu0 %v3287, 32
    %v3289 = vpop.permute.xlu0 %3288
    %v3291 = vsel %vm392, %v3289, 0
    %3293 = vmatpush.bf16.xpose.msra.mxu0 0
    %3294 = vmatpush.bf16.xpose.msra.mxu0 0
    %3295 = vmatpush.bf16.xpose.msra.mxu0 0
    %3296 = vmatpush.bf16.xpose.msra.mxu0 0
    %3297 = vmatpush.bf16.xpose.msra.mxu0 0
    %3298 = vmatpush.bf16.xpose.msra.mxu0 0
    %3299 = vmatpush.bf16.xpose.msra.mxu0 0
    %3300 = vmatpush.bf16.xpose.msra.mxu0 %v580
    %3301 = vmatmul.bf16.gmra.mxu0 %v3291
    %v3302 = vpop.f32.mrf.mxu0
    %v3303 = vadd.f32 0.0, %v3302
    %v3304 = vpop.f32.mrf.mxu0
    %3305 = vdwg.mxu0
    %v3306 = vpack.i.b16 %v3279, %v3279
    %v3307 = vperm.slane %v3306, 0
    %3308 = vrot.lane.b32.xlu0 %v3307, 32
    %v3309 = vpop.permute.xlu0 %3308
    %v3311 = vsel %vm392, %v3309, 0
    %3313 = vmatpush.bf16.xpose.msra.mxu0 0
    %3314 = vmatpush.bf16.xpose.msra.mxu0 0
    %3315 = vmatpush.bf16.xpose.msra.mxu0 0
    %3316 = vmatpush.bf16.xpose.msra.mxu0 0
    %3317 = vmatpush.bf16.xpose.msra.mxu0 0
    %3318 = vmatpush.bf16.xpose.msra.mxu0 0
    %3319 = vmatpush.bf16.xpose.msra.mxu0 0
    %3320 = vmatpush.bf16.xpose.msra.mxu0 %v603
    %3321 = vmatmul.bf16.gmra.mxu0 %v3311
    %v3322 = vpop.f32.mrf.mxu0
    %v3323 = vadd.f32 0.0, %v3322
    %v3324 = vpop.f32.mrf.mxu0
    %3325 = vdwg.mxu0
    %v3326 = vpack.i.b16 %v3280, %v3280
    %v3327 = vperm.slane %v3326, 0
    %3328 = vrot.lane.b32.xlu0 %v3327, 32
    %v3329 = vpop.permute.xlu0 %3328
    %v3331 = vsel %vm392, %v3329, 0
    %3333 = vmatpush.bf16.xpose.msra.mxu0 0
    %3334 = vmatpush.bf16.xpose.msra.mxu0 0
    %3335 = vmatpush.bf16.xpose.msra.mxu0 0
    %3336 = vmatpush.bf16.xpose.msra.mxu0 0
    %3337 = vmatpush.bf16.xpose.msra.mxu0 0
    %3338 = vmatpush.bf16.xpose.msra.mxu0 0
    %3339 = vmatpush.bf16.xpose.msra.mxu0 0
    %3340 = vmatpush.bf16.xpose.msra.mxu0 %v626
    %3341 = vmatmul.bf16.gmra.mxu0 %v3331
    %v3342 = vpop.f32.mrf.mxu0
    %v3343 = vadd.f32 0.0, %v3342
    %v3344 = vpop.f32.mrf.mxu0
    %3345 = vdwg.mxu0
    %v3346 = vpack.i.b16 %v3281, %v3281
    %v3347 = vperm.slane %v3346, 0
    %3348 = vrot.lane.b32.xlu0 %v3347, 32
    %v3349 = vpop.permute.xlu0 %3348
    %v3351 = vsel %vm392, %v3349, 0
    %3353 = vmatpush.bf16.xpose.msra.mxu0 0
    %3354 = vmatpush.bf16.xpose.msra.mxu0 0
    %3355 = vmatpush.bf16.xpose.msra.mxu0 0
    %3356 = vmatpush.bf16.xpose.msra.mxu0 0
    %3357 = vmatpush.bf16.xpose.msra.mxu0 0
    %3358 = vmatpush.bf16.xpose.msra.mxu0 0
    %3359 = vmatpush.bf16.xpose.msra.mxu0 0
    %3360 = vmatpush.bf16.xpose.msra.mxu0 %v649
    %3361 = vmatmul.bf16.gmra.mxu0 %v3351
    %v3362 = vpop.f32.mrf.mxu0
    %v3363 = vadd.f32 0.0, %v3362
    %v3364 = vpop.f32.mrf.mxu0
    %3365 = vdwg.mxu0
    %v3366 = vpack.i.b16 %v3282, %v3282
    %v3367 = vperm.slane %v3366, 0
    %3368 = vrot.lane.b32.xlu0 %v3367, 32
    %v3369 = vpop.permute.xlu0 %3368
    %v3371 = vsel %vm392, %v3369, 0
    %3373 = vmatpush.bf16.xpose.msra.mxu0 0
    %3374 = vmatpush.bf16.xpose.msra.mxu0 0
    %3375 = vmatpush.bf16.xpose.msra.mxu0 0
    %3376 = vmatpush.bf16.xpose.msra.mxu0 0
    %3377 = vmatpush.bf16.xpose.msra.mxu0 0
    %3378 = vmatpush.bf16.xpose.msra.mxu0 0
    %3379 = vmatpush.bf16.xpose.msra.mxu0 0
    %3380 = vmatpush.bf16.xpose.msra.mxu0 %v672
    %3381 = vmatmul.bf16.gmra.mxu0 %v3371
    %v3382 = vpop.f32.mrf.mxu0
    %v3383 = vadd.f32 0.0, %v3382
    %v3384 = vpop.f32.mrf.mxu0
    %3385 = vdwg.mxu0
    %v3386 = vpack.i.b16 %v3283, %v3283
    %v3387 = vperm.slane %v3386, 0
    %3388 = vrot.lane.b32.xlu0 %v3387, 32
    %v3389 = vpop.permute.xlu0 %3388
    %v3391 = vsel %vm392, %v3389, 0
    %3393 = vmatpush.bf16.xpose.msra.mxu0 0
    %3394 = vmatpush.bf16.xpose.msra.mxu0 0
    %3395 = vmatpush.bf16.xpose.msra.mxu0 0
    %3396 = vmatpush.bf16.xpose.msra.mxu0 0
    %3397 = vmatpush.bf16.xpose.msra.mxu0 0
    %3398 = vmatpush.bf16.xpose.msra.mxu0 0
    %3399 = vmatpush.bf16.xpose.msra.mxu0 0
    %3400 = vmatpush.bf16.xpose.msra.mxu0 %v695
    %3401 = vmatmul.bf16.gmra.mxu0 %v3391
    %v3402 = vpop.f32.mrf.mxu0
    %v3403 = vadd.f32 0.0, %v3402
    %v3404 = vpop.f32.mrf.mxu0
    %3405 = vdwg.mxu0
    %v3406 = vpack.i.b16 %v3284, %v3284
    %v3407 = vperm.slane %v3406, 0
    %3408 = vrot.lane.b32.xlu0 %v3407, 32
    %v3409 = vpop.permute.xlu0 %3408
    %v3411 = vsel %vm392, %v3409, 0
    %3413 = vmatpush.bf16.xpose.msra.mxu0 0
    %3414 = vmatpush.bf16.xpose.msra.mxu0 0
    %3415 = vmatpush.bf16.xpose.msra.mxu0 0
    %3416 = vmatpush.bf16.xpose.msra.mxu0 0
    %3417 = vmatpush.bf16.xpose.msra.mxu0 0
    %3418 = vmatpush.bf16.xpose.msra.mxu0 0
    %3419 = vmatpush.bf16.xpose.msra.mxu0 0
    %3420 = vmatpush.bf16.xpose.msra.mxu0 %v718
    %3421 = vmatmul.bf16.gmra.mxu0 %v3411
    %v3422 = vpop.f32.mrf.mxu0
    %v3423 = vadd.f32 0.0, %v3422
    %v3424 = vpop.f32.mrf.mxu0
    %3425 = vdwg.mxu0
    %v3426 = vpack.i.b16 %v3285, %v3285
    %v3427 = vperm.slane %v3426, 0
    %3428 = vrot.lane.b32.xlu0 %v3427, 32
    %v3429 = vpop.permute.xlu0 %3428
    %v3431 = vsel %vm392, %v3429, 0
    %3433 = vmatpush.bf16.xpose.msra.mxu0 0
    %3434 = vmatpush.bf16.xpose.msra.mxu0 0
    %3435 = vmatpush.bf16.xpose.msra.mxu0 0
    %3436 = vmatpush.bf16.xpose.msra.mxu0 0
    %3437 = vmatpush.bf16.xpose.msra.mxu0 0
    %3438 = vmatpush.bf16.xpose.msra.mxu0 0
    %3439 = vmatpush.bf16.xpose.msra.mxu0 0
    %3440 = vmatpush.bf16.xpose.msra.mxu0 %v741
    %3441 = vmatmul.bf16.gmra.mxu0 %v3431
    %v3442 = vpop.f32.mrf.mxu0
    %v3443 = vadd.f32 0.0, %v3442
    %v3444 = vpop.f32.mrf.mxu0
    %3445 = vdwg.mxu0
    %v3454 = vrot.slane %v3323, 7
    %v3455 = vsel %vm552, %v3454, %v3303
    %v3456 = vrot.slane %v3343, 6
    %v3457 = vsel %vm556, %v3456, %v3455
    %v3458 = vrot.slane %v3363, 5
    %v3459 = vsel %vm560, %v3458, %v3457
    %v3460 = vrot.slane %v3383, 4
    %v3461 = vsel %vm771, %v3460, %v3459
    %v3462 = vrot.slane %v3403, 3
    %v3463 = vsel %vm774, %v3462, %v3461
    %v3464 = vrot.slane %v3423, 2
    %v3465 = vsel %vm777, %v3464, %v3463
    %v3466 = vrot.slane %v3443, 1
    %v3467 = vsel %vm780, %v3466, %v3465
    %v3469 = vsel %vm308, -inf, %v3467
    %v3470 = vsel %vm784, %v3469, -inf
    %3471 = vmax.xlane.f32.xlu0 %v3470
    %v3472 = vpop.xlane.xlu0 %3471
    %v3473 = vsub.f32 %v3469, %v3472
    %v3474 = vmul.f32 %v3473, 1.442695
    %v3475 = vpow.pop %v3474
    %v3476 = vsel %vm784, %v3475, 0.0
    %3477 = vadd.xlane.f32.xlu0 %v3476
    %v3478 = vpop.xlane.xlu0 %3477
    %v3479 = vrcp.pop %v3478
    %v3480 = vmul.f32 %v3475, %v3479
    %v3481 = vpack.c.bf16 %v3480, %v3480
    %v3483 = vrot.slane %v3481, 3
    %v3486 = vsel %vm547, %v3481, %v3483
    %v3488 = vsel %vm552, %v3481, %v3483
    %v3490 = vrot.slane %v3488, 1
    %v3491 = vsel %vm556, %v3481, %v3483
    %v3493 = vrot.slane %v3491, 2
    %v3494 = vsel %vm560, %v3481, %v3483
    %v3496 = vrot.slane %v3494, 3
    %v3497 = vunpack.i.l.s16 %v3486
    %v3498 = vunpack.i.h.s16 %v3486
    %v3499 = vunpack.i.l.s16 %v3490
    %v3500 = vunpack.i.h.s16 %v3490
    %v3501 = vunpack.i.l.s16 %v3493
    %v3502 = vunpack.i.h.s16 %v3493
    %v3503 = vunpack.i.l.s16 %v3496
    %v3504 = vunpack.i.h.s16 %v3496
    %v3505 = vpack.i.b16 %v3497, %v3497
    %v3506 = vperm.slane %v3505, 0
    %v3508 = vsel %vm784, %v3506, 0
    %3510 = vmatpush.bf16.msra.mxu0 0
    %3511 = vmatpush.bf16.msra.mxu0 0
    %3512 = vmatpush.bf16.msra.mxu0 0
    %3513 = vmatpush.bf16.msra.mxu0 0
    %3514 = vmatpush.bf16.msra.mxu0 0
    %3515 = vmatpush.bf16.msra.mxu0 0
    %3516 = vmatpush.bf16.msra.mxu0 0
    %3517 = vmatpush.bf16.msra.mxu0 %v827
    %3518 = vmatmul.bf16.gmra.mxu0 %v3508
    %v3519 = vpop.f32.mrf.mxu0
    %v3520 = vadd.f32 0.0, %v3519
    %v3521 = vpop.f32.mrf.mxu0
    %3522 = vdwg.mxu0
    %v3523 = vpack.i.b16 %v3498, %v3498
    %v3524 = vperm.slane %v3523, 0
    %v3526 = vsel %vm784, %v3524, 0
    %3528 = vmatpush.bf16.msra.mxu0 0
    %3529 = vmatpush.bf16.msra.mxu0 0
    %3530 = vmatpush.bf16.msra.mxu0 0
    %3531 = vmatpush.bf16.msra.mxu0 0
    %3532 = vmatpush.bf16.msra.mxu0 0
    %3533 = vmatpush.bf16.msra.mxu0 0
    %3534 = vmatpush.bf16.msra.mxu0 0
    %3535 = vmatpush.bf16.msra.mxu0 %v848
    %3536 = vmatmul.bf16.gmra.mxu0 %v3526
    %v3537 = vpop.f32.mrf.mxu0
    %v3538 = vadd.f32 0.0, %v3537
    %v3539 = vpop.f32.mrf.mxu0
    %3540 = vdwg.mxu0
    %v3541 = vpack.i.b16 %v3499, %v3499
    %v3542 = vperm.slane %v3541, 0
    %v3544 = vsel %vm784, %v3542, 0
    %3546 = vmatpush.bf16.msra.mxu0 0
    %3547 = vmatpush.bf16.msra.mxu0 0
    %3548 = vmatpush.bf16.msra.mxu0 0
    %3549 = vmatpush.bf16.msra.mxu0 0
    %3550 = vmatpush.bf16.msra.mxu0 0
    %3551 = vmatpush.bf16.msra.mxu0 0
    %3552 = vmatpush.bf16.msra.mxu0 0
    %3553 = vmatpush.bf16.msra.mxu0 %v869
    %3554 = vmatmul.bf16.gmra.mxu0 %v3544
    %v3555 = vpop.f32.mrf.mxu0
    %v3556 = vadd.f32 0.0, %v3555
    %v3557 = vpop.f32.mrf.mxu0
    %3558 = vdwg.mxu0
    %v3559 = vpack.i.b16 %v3500, %v3500
    %v3560 = vperm.slane %v3559, 0
    %v3562 = vsel %vm784, %v3560, 0
    %3564 = vmatpush.bf16.msra.mxu0 0
    %3565 = vmatpush.bf16.msra.mxu0 0
    %3566 = vmatpush.bf16.msra.mxu0 0
    %3567 = vmatpush.bf16.msra.mxu0 0
    %3568 = vmatpush.bf16.msra.mxu0 0
    %3569 = vmatpush.bf16.msra.mxu0 0
    %3570 = vmatpush.bf16.msra.mxu0 0
    %3571 = vmatpush.bf16.msra.mxu0 %v890
    %3572 = vmatmul.bf16.gmra.mxu0 %v3562
    %v3573 = vpop.f32.mrf.mxu0
    %v3574 = vadd.f32 0.0, %v3573
    %v3575 = vpop.f32.mrf.mxu0
    %3576 = vdwg.mxu0
    %v3577 = vpack.i.b16 %v3501, %v3501
    %v3578 = vperm.slane %v3577, 0
    %v3580 = vsel %vm784, %v3578, 0
    %3582 = vmatpush.bf16.msra.mxu0 0
    %3583 = vmatpush.bf16.msra.mxu0 0
    %3584 = vmatpush.bf16.msra.mxu0 0
    %3585 = vmatpush.bf16.msra.mxu0 0
    %3586 = vmatpush.bf16.msra.mxu0 0
    %3587 = vmatpush.bf16.msra.mxu0 0
    %3588 = vmatpush.bf16.msra.mxu0 0
    %3589 = vmatpush.bf16.msra.mxu0 %v911
    %3590 = vmatmul.bf16.gmra.mxu0 %v3580
    %v3591 = vpop.f32.mrf.mxu0
    %v3592 = vadd.f32 0.0, %v3591
    %v3593 = vpop.f32.mrf.mxu0
    %3594 = vdwg.mxu0
    %v3595 = vpack.i.b16 %v3502, %v3502
    %v3596 = vperm.slane %v3595, 0
    %v3598 = vsel %vm784, %v3596, 0
    %3600 = vmatpush.bf16.msra.mxu0 0
    %3601 = vmatpush.bf16.msra.mxu0 0
    %3602 = vmatpush.bf16.msra.mxu0 0
    %3603 = vmatpush.bf16.msra.mxu0 0
    %3604 = vmatpush.bf16.msra.mxu0 0
    %3605 = vmatpush.bf16.msra.mxu0 0
    %3606 = vmatpush.bf16.msra.mxu0 0
    %3607 = vmatpush.bf16.msra.mxu0 %v932
    %3608 = vmatmul.bf16.gmra.mxu0 %v3598
    %v3609 = vpop.f32.mrf.mxu0
    %v3610 = vadd.f32 0.0, %v3609
    %v3611 = vpop.f32.mrf.mxu0
    %3612 = vdwg.mxu0
    %v3613 = vpack.i.b16 %v3503, %v3503
    %v3614 = vperm.slane %v3613, 0
    %v3616 = vsel %vm784, %v3614, 0
    %3618 = vmatpush.bf16.msra.mxu0 0
    %3619 = vmatpush.bf16.msra.mxu0 0
    %3620 = vmatpush.bf16.msra.mxu0 0
    %3621 = vmatpush.bf16.msra.mxu0 0
    %3622 = vmatpush.bf16.msra.mxu0 0
    %3623 = vmatpush.bf16.msra.mxu0 0
    %3624 = vmatpush.bf16.msra.mxu0 0
    %3625 = vmatpush.bf16.msra.mxu0 %v953
    %3626 = vmatmul.bf16.gmra.mxu0 %v3616
    %v3627 = vpop.f32.mrf.mxu0
    %v3628 = vadd.f32 0.0, %v3627
    %v3629 = vpop.f32.mrf.mxu0
    %3630 = vdwg.mxu0
    %v3631 = vpack.i.b16 %v3504, %v3504
    %v3632 = vperm.slane %v3631, 0
    %v3634 = vsel %vm784, %v3632, 0
    %3636 = vmatpush.bf16.msra.mxu0 0
    %3637 = vmatpush.bf16.msra.mxu0 0
    %3638 = vmatpush.bf16.msra.mxu0 0
    %3639 = vmatpush.bf16.msra.mxu0 0
    %3640 = vmatpush.bf16.msra.mxu0 0
    %3641 = vmatpush.bf16.msra.mxu0 0
    %3642 = vmatpush.bf16.msra.mxu0 0
    %3643 = vmatpush.bf16.msra.mxu0 %v974
    %3644 = vmatmul.bf16.gmra.mxu0 %v3634
    %v3645 = vpop.f32.mrf.mxu0
    %v3646 = vadd.f32 0.0, %v3645
    %v3647 = vpop.f32.mrf.mxu0
    %3648 = vdwg.mxu0
    %v3649 = vunpack.c.l.b16 %v3262
    %v3650 = vpack.c.b16 %v3649, %v3649
    %3651 = vrot.lane.b32.xlu0 %v3650, 32
    %v3652 = vpop.permute.xlu0 %3651
    %v3654 = vsel %vm392, %v3652, 0
    %3656 = vmatpush.bf16.msra.mxu0 0
    %3657 = vmatpush.bf16.msra.mxu0 0
    %3658 = vmatpush.bf16.msra.mxu0 0
    %3659 = vmatpush.bf16.msra.mxu0 0
    %3660 = vmatpush.bf16.msra.mxu0 0
    %3661 = vmatpush.bf16.msra.mxu0 0
    %3662 = vmatpush.bf16.msra.mxu0 %v484
    %3663 = vmatpush.bf16.msra.mxu0 %v483
    %3664 = vmatmul.bf16.gmra.mxu0 %v3654
    %v3665 = vpop.f32.mrf.mxu0
    %v3666 = vadd.f32 0.0, %v3665
    %v3667 = vpop.f32.mrf.mxu0
    %3668 = vdwg.mxu0
    %v3670 = vrot.slane %v3666, 1
    %v3671 = vrot.slane %v3666, 2
    %v3672 = vrot.slane %v3666, 3
    %v3673 = vrot.slane %v3666, 4
    %v3674 = vrot.slane %v3666, 5
    %v3675 = vrot.slane %v3666, 6
    %v3676 = vrot.slane %v3666, 7
    %v3685 = vadd.f32 %v3520, %v3666
    %v3686 = vadd.f32 %v3538, %v3670
    %v3687 = vadd.f32 %v3556, %v3671
    %v3688 = vadd.f32 %v3574, %v3672
    %v3689 = vadd.f32 %v3592, %v3673
    %v3690 = vadd.f32 %v3610, %v3674
    %v3691 = vadd.f32 %v3628, %v3675
    %v3692 = vadd.f32 %v3646, %v3676
    %v3693 = vtanh.pop %v3685
    %v3694 = vtanh.pop %v3686
    %v3695 = vtanh.pop %v3687
    %v3696 = vtanh.pop %v3688
    %v3697 = vtanh.pop %v3689
    %v3698 = vtanh.pop %v3690
    %v3699 = vtanh.pop %v3691
    %v3700 = vtanh.pop %v3692
    %v3701 = vpack.c.bf16 %v3693, %v3693
    %v3702 = vpack.c.bf16 %v3694, %v3694
    %v3703 = vpack.c.bf16 %v3695, %v3695
    %v3704 = vpack.c.bf16 %v3696, %v3696
    %v3705 = vpack.c.bf16 %v3697, %v3697
    %v3706 = vpack.c.bf16 %v3698, %v3698
    %v3707 = vpack.c.bf16 %v3699, %v3699
    %v3708 = vpack.c.bf16 %v3700, %v3700
    %v3717 = vunpack.c.l.b16 %v3701
    %v3718 = vunpack.c.l.b16 %v3702
    %v3719 = vunpack.c.l.b16 %v3703
    %v3720 = vunpack.c.l.b16 %v3704
    %v3721 = vunpack.c.l.b16 %v3705
    %v3722 = vunpack.c.l.b16 %v3706
    %v3723 = vunpack.c.l.b16 %v3707
    %v3724 = vunpack.c.l.b16 %v3708
    %v3725 = vrot.slane %v3718, 7
    %v3726 = vsel %vm552, %v3725, %v3717
    %v3727 = vrot.slane %v3719, 6
    %v3728 = vsel %vm556, %v3727, %v3726
    %v3729 = vrot.slane %v3720, 5
    %v3730 = vsel %vm560, %v3729, %v3728
    %v3731 = vrot.slane %v3721, 4
    %v3732 = vsel %vm771, %v3731, %v3730
    %v3733 = vrot.slane %v3722, 3
    %v3734 = vsel %vm774, %v3733, %v3732
    %v3735 = vrot.slane %v3723, 2
    %v3736 = vsel %vm777, %v3735, %v3734
    %v3737 = vrot.slane %v3724, 1
    %v3738 = vsel %vm780, %v3737, %v3736
    %v3739 = vpack.c.b16 %v3738, %v3738
    %v3741 = vsel %vm392, %v3739, 0
    %3743 = vmatpush.bf16.msra.mxu0 0
    %3744 = vmatpush.bf16.msra.mxu0 0
    %3745 = vmatpush.bf16.msra.mxu0 0
    %3746 = vmatpush.bf16.msra.mxu0 0
    %3747 = vmatpush.bf16.msra.mxu0 0
    %3748 = vmatpush.bf16.msra.mxu0 0
    %3749 = vmatpush.bf16.msra.mxu0 %v482
    %3750 = vmatpush.bf16.msra.mxu0 %v481
    %3751 = vmatmul.bf16.gmra.mxu0 %v3741
    %v3752 = vpop.f32.mrf.mxu0
    %v3753 = vadd.f32 0.0, %v3752
    %v3754 = vpop.f32.mrf.mxu0
    %3755 = vdwg.mxu0
    %v3756 = vadd.f32 %v386, %v3753
    %v3757 = vxor.u32 %v3756, 2147483648
    %v3758 = vmul.f32 %v3757, 1.442695
    %v3759 = vpow.pop %v3758
    %v3760 = vadd.f32 %v3759, 1.0
    %v3761 = vrcp.pop %v3760
    %v3762 = vmul.f32 %v3760, %v3761
    %v3763 = vsub.f32 1.0, %v3762
    %v3764 = vmul.f32 %v3761, %v3763
    %v3765 = vadd.f32 %v3761, %v3764
    %vm3766 = vweird.f32 %v3760
    %vm3767 = vweird.f32 %v3761
    %vm3768 = vmor %vm3766, %vm3767
    %v3769 = vsel %vm3768, %v3761, %v3765
    %v3770 = vand.u32 2147483647, %v3760
    %vm3771 = vcmp.eq.f32.partialorder %v3770, 8.507059e+37
    %v3772 = vand.u32 %v3760, 2147483648
    %v3773 = vor.u32 1.1754944e-38, %v3772
    %v3774 = vsel %vm3771, %v3773, %v3769
    %v3775 = vmul.f32 1.0, %v3774
    %v3776 = vtanh.pop %v3756
    %v3777 = vmul.f32 %v3775, %v3255
    %3779 = vrot.lane.b32.xlu0 %v3776, 64
    %v3780 = vpop.permute.xlu0 %3779
    %v3782 = vmul.f32 %v3775, %v3780
    %3784 = vrot.lane.b32.xlu0 %v3782, 32
    %v3785 = vpop.permute.xlu0 %3784
    %v3787 = vadd.f32 %v3777, %v3785
    %v3788 = vtanh.pop %v3787
    %3790 = vrot.lane.b32.xlu0 %v3788, 64
    %v3791 = vpop.permute.xlu0 %3790
    %v3793 = vmul.f32 %v3775, %v3791
    %v3794 = vpack.c.bf16 %v3793, %v3793
    %v3796 = vrot.slane %v3794, 3
    %v3799 = vsel %vm547, %v3794, %v3796
    %v3801 = vsel %vm552, %v3794, %v3796
    %v3803 = vrot.slane %v3801, 1
    %v3804 = vsel %vm556, %v3794, %v3796
    %v3806 = vrot.slane %v3804, 2
    %v3807 = vsel %vm560, %v3794, %v3796
    %v3809 = vrot.slane %v3807, 3
    %v3810 = vunpack.i.l.s16 %v3799
    %v3811 = vunpack.i.h.s16 %v3799
    %v3812 = vunpack.i.l.s16 %v3803
    %v3813 = vunpack.i.h.s16 %v3803
    %v3814 = vunpack.i.l.s16 %v3806
    %v3815 = vunpack.i.h.s16 %v3806
    %v3816 = vunpack.i.l.s16 %v3809
    %v3817 = vunpack.i.h.s16 %v3809
    %v3818 = vpack.i.b16 %v3810, %v3810
    %v3819 = vperm.slane %v3818, 0
    %3820 = vrot.lane.b32.xlu0 %v3819, 32
    %v3821 = vpop.permute.xlu0 %3820
    %v3823 = vsel %vm392, %v3821, 0
    %3825 = vmatpush.bf16.xpose.msra.mxu0 0
    %3826 = vmatpush.bf16.xpose.msra.mxu0 0
    %3827 = vmatpush.bf16.xpose.msra.mxu0 0
    %3828 = vmatpush.bf16.xpose.msra.mxu0 0
    %3829 = vmatpush.bf16.xpose.msra.mxu0 0
    %3830 = vmatpush.bf16.xpose.msra.mxu0 0
    %3831 = vmatpush.bf16.xpose.msra.mxu0 0
    %3832 = vmatpush.bf16.xpose.msra.mxu0 %v580
    %3833 = vmatmul.bf16.gmra.mxu0 %v3823
    %v3834 = vpop.f32.mrf.mxu0
    %v3835 = vadd.f32 0.0, %v3834
    %v3836 = vpop.f32.mrf.mxu0
    %3837 = vdwg.mxu0
    %v3838 = vpack.i.b16 %v3811, %v3811
    %v3839 = vperm.slane %v3838, 0
    %3840 = vrot.lane.b32.xlu0 %v3839, 32
    %v3841 = vpop.permute.xlu0 %3840
    %v3843 = vsel %vm392, %v3841, 0
    %3845 = vmatpush.bf16.xpose.msra.mxu0 0
    %3846 = vmatpush.bf16.xpose.msra.mxu0 0
    %3847 = vmatpush.bf16.xpose.msra.mxu0 0
    %3848 = vmatpush.bf16.xpose.msra.mxu0 0
    %3849 = vmatpush.bf16.xpose.msra.mxu0 0
    %3850 = vmatpush.bf16.xpose.msra.mxu0 0
    %3851 = vmatpush.bf16.xpose.msra.mxu0 0
    %3852 = vmatpush.bf16.xpose.msra.mxu0 %v603
    %3853 = vmatmul.bf16.gmra.mxu0 %v3843
    %v3854 = vpop.f32.mrf.mxu0
    %v3855 = vadd.f32 0.0, %v3854
    %v3856 = vpop.f32.mrf.mxu0
    %3857 = vdwg.mxu0
    %v3858 = vpack.i.b16 %v3812, %v3812
    %v3859 = vperm.slane %v3858, 0
    %3860 = vrot.lane.b32.xlu0 %v3859, 32
    %v3861 = vpop.permute.xlu0 %3860
    %v3863 = vsel %vm392, %v3861, 0
    %3865 = vmatpush.bf16.xpose.msra.mxu0 0
    %3866 = vmatpush.bf16.xpose.msra.mxu0 0
    %3867 = vmatpush.bf16.xpose.msra.mxu0 0
    %3868 = vmatpush.bf16.xpose.msra.mxu0 0
    %3869 = vmatpush.bf16.xpose.msra.mxu0 0
    %3870 = vmatpush.bf16.xpose.msra.mxu0 0
    %3871 = vmatpush.bf16.xpose.msra.mxu0 0
    %3872 = vmatpush.bf16.xpose.msra.mxu0 %v626
    %3873 = vmatmul.bf16.gmra.mxu0 %v3863
    %v3874 = vpop.f32.mrf.mxu0
    %v3875 = vadd.f32 0.0, %v3874
    %v3876 = vpop.f32.mrf.mxu0
    %3877 = vdwg.mxu0
    %v3878 = vpack.i.b16 %v3813, %v3813
    %v3879 = vperm.slane %v3878, 0
    %3880 = vrot.lane.b32.xlu0 %v3879, 32
    %v3881 = vpop.permute.xlu0 %3880
    %v3883 = vsel %vm392, %v3881, 0
    %3885 = vmatpush.bf16.xpose.msra.mxu0 0
    %3886 = vmatpush.bf16.xpose.msra.mxu0 0
    %3887 = vmatpush.bf16.xpose.msra.mxu0 0
    %3888 = vmatpush.bf16.xpose.msra.mxu0 0
    %3889 = vmatpush.bf16.xpose.msra.mxu0 0
    %3890 = vmatpush.bf16.xpose.msra.mxu0 0
    %3891 = vmatpush.bf16.xpose.msra.mxu0 0
    %3892 = vmatpush.bf16.xpose.msra.mxu0 %v649
    %3893 = vmatmul.bf16.gmra.mxu0 %v3883
    %v3894 = vpop.f32.mrf.mxu0
    %v3895 = vadd.f32 0.0, %v3894
    %v3896 = vpop.f32.mrf.mxu0
    %3897 = vdwg.mxu0
    %v3898 = vpack.i.b16 %v3814, %v3814
    %v3899 = vperm.slane %v3898, 0
    %3900 = vrot.lane.b32.xlu0 %v3899, 32
    %v3901 = vpop.permute.xlu0 %3900
    %v3903 = vsel %vm392, %v3901, 0
    %3905 = vmatpush.bf16.xpose.msra.mxu0 0
    %3906 = vmatpush.bf16.xpose.msra.mxu0 0
    %3907 = vmatpush.bf16.xpose.msra.mxu0 0
    %3908 = vmatpush.bf16.xpose.msra.mxu0 0
    %3909 = vmatpush.bf16.xpose.msra.mxu0 0
    %3910 = vmatpush.bf16.xpose.msra.mxu0 0
    %3911 = vmatpush.bf16.xpose.msra.mxu0 0
    %3912 = vmatpush.bf16.xpose.msra.mxu0 %v672
    %3913 = vmatmul.bf16.gmra.mxu0 %v3903
    %v3914 = vpop.f32.mrf.mxu0
    %v3915 = vadd.f32 0.0, %v3914
    %v3916 = vpop.f32.mrf.mxu0
    %3917 = vdwg.mxu0
    %v3918 = vpack.i.b16 %v3815, %v3815
    %v3919 = vperm.slane %v3918, 0
    %3920 = vrot.lane.b32.xlu0 %v3919, 32
    %v3921 = vpop.permute.xlu0 %3920
    %v3923 = vsel %vm392, %v3921, 0
    %3925 = vmatpush.bf16.xpose.msra.mxu0 0
    %3926 = vmatpush.bf16.xpose.msra.mxu0 0
    %3927 = vmatpush.bf16.xpose.msra.mxu0 0
    %3928 = vmatpush.bf16.xpose.msra.mxu0 0
    %3929 = vmatpush.bf16.xpose.msra.mxu0 0
    %3930 = vmatpush.bf16.xpose.msra.mxu0 0
    %3931 = vmatpush.bf16.xpose.msra.mxu0 0
    %3932 = vmatpush.bf16.xpose.msra.mxu0 %v695
    %3933 = vmatmul.bf16.gmra.mxu0 %v3923
    %v3934 = vpop.f32.mrf.mxu0
    %v3935 = vadd.f32 0.0, %v3934
    %v3936 = vpop.f32.mrf.mxu0
    %3937 = vdwg.mxu0
    %v3938 = vpack.i.b16 %v3816, %v3816
    %v3939 = vperm.slane %v3938, 0
    %3940 = vrot.lane.b32.xlu0 %v3939, 32
    %v3941 = vpop.permute.xlu0 %3940
    %v3943 = vsel %vm392, %v3941, 0
    %3945 = vmatpush.bf16.xpose.msra.mxu0 0
    %3946 = vmatpush.bf16.xpose.msra.mxu0 0
    %3947 = vmatpush.bf16.xpose.msra.mxu0 0
    %3948 = vmatpush.bf16.xpose.msra.mxu0 0
    %3949 = vmatpush.bf16.xpose.msra.mxu0 0
    %3950 = vmatpush.bf16.xpose.msra.mxu0 0
    %3951 = vmatpush.bf16.xpose.msra.mxu0 0
    %3952 = vmatpush.bf16.xpose.msra.mxu0 %v718
    %3953 = vmatmul.bf16.gmra.mxu0 %v3943
    %v3954 = vpop.f32.mrf.mxu0
    %v3955 = vadd.f32 0.0, %v3954
    %v3956 = vpop.f32.mrf.mxu0
    %3957 = vdwg.mxu0
    %v3958 = vpack.i.b16 %v3817, %v3817
    %v3959 = vperm.slane %v3958, 0
    %3960 = vrot.lane.b32.xlu0 %v3959, 32
    %v3961 = vpop.permute.xlu0 %3960
    %v3963 = vsel %vm392, %v3961, 0
    %3965 = vmatpush.bf16.xpose.msra.mxu0 0
    %3966 = vmatpush.bf16.xpose.msra.mxu0 0
    %3967 = vmatpush.bf16.xpose.msra.mxu0 0
    %3968 = vmatpush.bf16.xpose.msra.mxu0 0
    %3969 = vmatpush.bf16.xpose.msra.mxu0 0
    %3970 = vmatpush.bf16.xpose.msra.mxu0 0
    %3971 = vmatpush.bf16.xpose.msra.mxu0 0
    %3972 = vmatpush.bf16.xpose.msra.mxu0 %v741
    %3973 = vmatmul.bf16.gmra.mxu0 %v3963
    %v3974 = vpop.f32.mrf.mxu0
    %v3975 = vadd.f32 0.0, %v3974
    %v3976 = vpop.f32.mrf.mxu0
    %3977 = vdwg.mxu0
    %v3986 = vrot.slane %v3855, 7
    %v3987 = vsel %vm552, %v3986, %v3835
    %v3988 = vrot.slane %v3875, 6
    %v3989 = vsel %vm556, %v3988, %v3987
    %v3990 = vrot.slane %v3895, 5
    %v3991 = vsel %vm560, %v3990, %v3989
    %v3992 = vrot.slane %v3915, 4
    %v3993 = vsel %vm771, %v3992, %v3991
    %v3994 = vrot.slane %v3935, 3
    %v3995 = vsel %vm774, %v3994, %v3993
    %v3996 = vrot.slane %v3955, 2
    %v3997 = vsel %vm777, %v3996, %v3995
    %v3998 = vrot.slane %v3975, 1
    %v3999 = vsel %vm780, %v3998, %v3997
    %v4001 = vsel %vm308, -inf, %v3999
    %v4002 = vsel %vm784, %v4001, -inf
    %4003 = vmax.xlane.f32.xlu0 %v4002
    %v4004 = vpop.xlane.xlu0 %4003
    %v4005 = vsub.f32 %v4001, %v4004
    %v4006 = vmul.f32 %v4005, 1.442695
    %v4007 = vpow.pop %v4006
    %v4008 = vsel %vm784, %v4007, 0.0
    %4009 = vadd.xlane.f32.xlu0 %v4008
    %v4010 = vpop.xlane.xlu0 %4009
    %v4011 = vrcp.pop %v4010
    %v4012 = vmul.f32 %v4007, %v4011
    %v4013 = vpack.c.bf16 %v4012, %v4012
    %v4015 = vrot.slane %v4013, 3
    %v4018 = vsel %vm547, %v4013, %v4015
    %v4020 = vsel %vm552, %v4013, %v4015
    %v4022 = vrot.slane %v4020, 1
    %v4023 = vsel %vm556, %v4013, %v4015
    %v4025 = vrot.slane %v4023, 2
    %v4026 = vsel %vm560, %v4013, %v4015
    %v4028 = vrot.slane %v4026, 3
    %v4029 = vunpack.i.l.s16 %v4018
    %v4030 = vunpack.i.h.s16 %v4018
    %v4031 = vunpack.i.l.s16 %v4022
    %v4032 = vunpack.i.h.s16 %v4022
    %v4033 = vunpack.i.l.s16 %v4025
    %v4034 = vunpack.i.h.s16 %v4025
    %v4035 = vunpack.i.l.s16 %v4028
    %v4036 = vunpack.i.h.s16 %v4028
    %v4037 = vpack.i.b16 %v4029, %v4029
    %v4038 = vperm.slane %v4037, 0
    %v4040 = vsel %vm784, %v4038, 0
    %4042 = vmatpush.bf16.msra.mxu0 0
    %4043 = vmatpush.bf16.msra.mxu0 0
    %4044 = vmatpush.bf16.msra.mxu0 0
    %4045 = vmatpush.bf16.msra.mxu0 0
    %4046 = vmatpush.bf16.msra.mxu0 0
    %4047 = vmatpush.bf16.msra.mxu0 0
    %4048 = vmatpush.bf16.msra.mxu0 0
    %4049 = vmatpush.bf16.msra.mxu0 %v827
    %4050 = vmatmul.bf16.gmra.mxu0 %v4040
    %v4051 = vpop.f32.mrf.mxu0
    %v4052 = vadd.f32 0.0, %v4051
    %v4053 = vpop.f32.mrf.mxu0
    %4054 = vdwg.mxu0
    %v4055 = vpack.i.b16 %v4030, %v4030
    %v4056 = vperm.slane %v4055, 0
    %v4058 = vsel %vm784, %v4056, 0
    %4060 = vmatpush.bf16.msra.mxu0 0
    %4061 = vmatpush.bf16.msra.mxu0 0
    %4062 = vmatpush.bf16.msra.mxu0 0
    %4063 = vmatpush.bf16.msra.mxu0 0
    %4064 = vmatpush.bf16.msra.mxu0 0
    %4065 = vmatpush.bf16.msra.mxu0 0
    %4066 = vmatpush.bf16.msra.mxu0 0
    %4067 = vmatpush.bf16.msra.mxu0 %v848
    %4068 = vmatmul.bf16.gmra.mxu0 %v4058
    %v4069 = vpop.f32.mrf.mxu0
    %v4070 = vadd.f32 0.0, %v4069
    %v4071 = vpop.f32.mrf.mxu0
    %4072 = vdwg.mxu0
    %v4073 = vpack.i.b16 %v4031, %v4031
    %v4074 = vperm.slane %v4073, 0
    %v4076 = vsel %vm784, %v4074, 0
    %4078 = vmatpush.bf16.msra.mxu0 0
    %4079 = vmatpush.bf16.msra.mxu0 0
    %4080 = vmatpush.bf16.msra.mxu0 0
    %4081 = vmatpush.bf16.msra.mxu0 0
    %4082 = vmatpush.bf16.msra.mxu0 0
    %4083 = vmatpush.bf16.msra.mxu0 0
    %4084 = vmatpush.bf16.msra.mxu0 0
    %4085 = vmatpush.bf16.msra.mxu0 %v869
    %4086 = vmatmul.bf16.gmra.mxu0 %v4076
    %v4087 = vpop.f32.mrf.mxu0
    %v4088 = vadd.f32 0.0, %v4087
    %v4089 = vpop.f32.mrf.mxu0
    %4090 = vdwg.mxu0
    %v4091 = vpack.i.b16 %v4032, %v4032
    %v4092 = vperm.slane %v4091, 0
    %v4094 = vsel %vm784, %v4092, 0
    %4096 = vmatpush.bf16.msra.mxu0 0
    %4097 = vmatpush.bf16.msra.mxu0 0
    %4098 = vmatpush.bf16.msra.mxu0 0
    %4099 = vmatpush.bf16.msra.mxu0 0
    %4100 = vmatpush.bf16.msra.mxu0 0
    %4101 = vmatpush.bf16.msra.mxu0 0
    %4102 = vmatpush.bf16.msra.mxu0 0
    %4103 = vmatpush.bf16.msra.mxu0 %v890
    %4104 = vmatmul.bf16.gmra.mxu0 %v4094
    %v4105 = vpop.f32.mrf.mxu0
    %v4106 = vadd.f32 0.0, %v4105
    %v4107 = vpop.f32.mrf.mxu0
    %4108 = vdwg.mxu0
    %v4109 = vpack.i.b16 %v4033, %v4033
    %v4110 = vperm.slane %v4109, 0
    %v4112 = vsel %vm784, %v4110, 0
    %4114 = vmatpush.bf16.msra.mxu0 0
    %4115 = vmatpush.bf16.msra.mxu0 0
    %4116 = vmatpush.bf16.msra.mxu0 0
    %4117 = vmatpush.bf16.msra.mxu0 0
    %4118 = vmatpush.bf16.msra.mxu0 0
    %4119 = vmatpush.bf16.msra.mxu0 0
    %4120 = vmatpush.bf16.msra.mxu0 0
    %4121 = vmatpush.bf16.msra.mxu0 %v911
    %4122 = vmatmul.bf16.gmra.mxu0 %v4112
    %v4123 = vpop.f32.mrf.mxu0
    %v4124 = vadd.f32 0.0, %v4123
    %v4125 = vpop.f32.mrf.mxu0
    %4126 = vdwg.mxu0
    %v4127 = vpack.i.b16 %v4034, %v4034
    %v4128 = vperm.slane %v4127, 0
    %v4130 = vsel %vm784, %v4128, 0
    %4132 = vmatpush.bf16.msra.mxu0 0
    %4133 = vmatpush.bf16.msra.mxu0 0
    %4134 = vmatpush.bf16.msra.mxu0 0
    %4135 = vmatpush.bf16.msra.mxu0 0
    %4136 = vmatpush.bf16.msra.mxu0 0
    %4137 = vmatpush.bf16.msra.mxu0 0
    %4138 = vmatpush.bf16.msra.mxu0 0
    %4139 = vmatpush.bf16.msra.mxu0 %v932
    %4140 = vmatmul.bf16.gmra.mxu0 %v4130
    %v4141 = vpop.f32.mrf.mxu0
    %v4142 = vadd.f32 0.0, %v4141
    %v4143 = vpop.f32.mrf.mxu0
    %4144 = vdwg.mxu0
    %v4145 = vpack.i.b16 %v4035, %v4035
    %v4146 = vperm.slane %v4145, 0
    %v4148 = vsel %vm784, %v4146, 0
    %4150 = vmatpush.bf16.msra.mxu0 0
    %4151 = vmatpush.bf16.msra.mxu0 0
    %4152 = vmatpush.bf16.msra.mxu0 0
    %4153 = vmatpush.bf16.msra.mxu0 0
    %4154 = vmatpush.bf16.msra.mxu0 0
    %4155 = vmatpush.bf16.msra.mxu0 0
    %4156 = vmatpush.bf16.msra.mxu0 0
    %4157 = vmatpush.bf16.msra.mxu0 %v953
    %4158 = vmatmul.bf16.gmra.mxu0 %v4148
    %v4159 = vpop.f32.mrf.mxu0
    %v4160 = vadd.f32 0.0, %v4159
    %v4161 = vpop.f32.mrf.mxu0
    %4162 = vdwg.mxu0
    %v4163 = vpack.i.b16 %v4036, %v4036
    %v4164 = vperm.slane %v4163, 0
    %v4166 = vsel %vm784, %v4164, 0
    %4168 = vmatpush.bf16.msra.mxu0 0
    %4169 = vmatpush.bf16.msra.mxu0 0
    %4170 = vmatpush.bf16.msra.mxu0 0
    %4171 = vmatpush.bf16.msra.mxu0 0
    %4172 = vmatpush.bf16.msra.mxu0 0
    %4173 = vmatpush.bf16.msra.mxu0 0
    %4174 = vmatpush.bf16.msra.mxu0 0
    %4175 = vmatpush.bf16.msra.mxu0 %v974
    %4176 = vmatmul.bf16.gmra.mxu0 %v4166
    %v4177 = vpop.f32.mrf.mxu0
    %v4178 = vadd.f32 0.0, %v4177
    %v4179 = vpop.f32.mrf.mxu0
    %4180 = vdwg.mxu0
    %v4181 = vunpack.c.l.b16 %v3794
    %v4182 = vpack.c.b16 %v4181, %v4181
    %4183 = vrot.lane.b32.xlu0 %v4182, 32
    %v4184 = vpop.permute.xlu0 %4183
    %v4186 = vsel %vm392, %v4184, 0
    %4188 = vmatpush.bf16.msra.mxu0 0
    %4189 = vmatpush.bf16.msra.mxu0 0
    %4190 = vmatpush.bf16.msra.mxu0 0
    %4191 = vmatpush.bf16.msra.mxu0 0
    %4192 = vmatpush.bf16.msra.mxu0 0
    %4193 = vmatpush.bf16.msra.mxu0 0
    %4194 = vmatpush.bf16.msra.mxu0 %v484
    %4195 = vmatpush.bf16.msra.mxu0 %v483
    %4196 = vmatmul.bf16.gmra.mxu0 %v4186
    %v4197 = vpop.f32.mrf.mxu0
    %v4198 = vadd.f32 0.0, %v4197
    %v4199 = vpop.f32.mrf.mxu0
    %4200 = vdwg.mxu0
    %v4202 = vrot.slane %v4198, 1
    %v4203 = vrot.slane %v4198, 2
    %v4204 = vrot.slane %v4198, 3
    %v4205 = vrot.slane %v4198, 4
    %v4206 = vrot.slane %v4198, 5
    %v4207 = vrot.slane %v4198, 6
    %v4208 = vrot.slane %v4198, 7
    %v4217 = vadd.f32 %v4052, %v4198
    %v4218 = vadd.f32 %v4070, %v4202
    %v4219 = vadd.f32 %v4088, %v4203
    %v4220 = vadd.f32 %v4106, %v4204
    %v4221 = vadd.f32 %v4124, %v4205
    %v4222 = vadd.f32 %v4142, %v4206
    %v4223 = vadd.f32 %v4160, %v4207
    %v4224 = vadd.f32 %v4178, %v4208
    %v4225 = vtanh.pop %v4217
    %v4226 = vtanh.pop %v4218
    %v4227 = vtanh.pop %v4219
    %v4228 = vtanh.pop %v4220
    %v4229 = vtanh.pop %v4221
    %v4230 = vtanh.pop %v4222
    %v4231 = vtanh.pop %v4223
    %v4232 = vtanh.pop %v4224
    %v4233 = vpack.c.bf16 %v4225, %v4225
    %v4234 = vpack.c.bf16 %v4226, %v4226
    %v4235 = vpack.c.bf16 %v4227, %v4227
    %v4236 = vpack.c.bf16 %v4228, %v4228
    %v4237 = vpack.c.bf16 %v4229, %v4229
    %v4238 = vpack.c.bf16 %v4230, %v4230
    %v4239 = vpack.c.bf16 %v4231, %v4231
    %v4240 = vpack.c.bf16 %v4232, %v4232
    %v4249 = vunpack.c.l.b16 %v4233
    %v4250 = vunpack.c.l.b16 %v4234
    %v4251 = vunpack.c.l.b16 %v4235
    %v4252 = vunpack.c.l.b16 %v4236
    %v4253 = vunpack.c.l.b16 %v4237
    %v4254 = vunpack.c.l.b16 %v4238
    %v4255 = vunpack.c.l.b16 %v4239
    %v4256 = vunpack.c.l.b16 %v4240
    %v4257 = vrot.slane %v4250, 7
    %v4258 = vsel %vm552, %v4257, %v4249
    %v4259 = vrot.slane %v4251, 6
    %v4260 = vsel %vm556, %v4259, %v4258
    %v4261 = vrot.slane %v4252, 5
    %v4262 = vsel %vm560, %v4261, %v4260
    %v4263 = vrot.slane %v4253, 4
    %v4264 = vsel %vm771, %v4263, %v4262
    %v4265 = vrot.slane %v4254, 3
    %v4266 = vsel %vm774, %v4265, %v4264
    %v4267 = vrot.slane %v4255, 2
    %v4268 = vsel %vm777, %v4267, %v4266
    %v4269 = vrot.slane %v4256, 1
    %v4270 = vsel %vm780, %v4269, %v4268
    %v4271 = vpack.c.b16 %v4270, %v4270
    %v4273 = vsel %vm392, %v4271, 0
    %4275 = vmatpush.bf16.msra.mxu0 0
    %4276 = vmatpush.bf16.msra.mxu0 0
    %4277 = vmatpush.bf16.msra.mxu0 0
    %4278 = vmatpush.bf16.msra.mxu0 0
    %4279 = vmatpush.bf16.msra.mxu0 0
    %4280 = vmatpush.bf16.msra.mxu0 0
    %4281 = vmatpush.bf16.msra.mxu0 %v482
    %4282 = vmatpush.bf16.msra.mxu0 %v481
    %4283 = vmatmul.bf16.gmra.mxu0 %v4273
    %v4284 = vpop.f32.mrf.mxu0
    %v4285 = vadd.f32 0.0, %v4284
    %v4286 = vpop.f32.mrf.mxu0
    %4287 = vdwg.mxu0
    %v4288 = vadd.f32 %v388, %v4285
    %v4289 = vxor.u32 %v4288, 2147483648
    %v4290 = vmul.f32 %v4289, 1.442695
    %v4291 = vpow.pop %v4290
    %v4292 = vadd.f32 %v4291, 1.0
    %v4293 = vrcp.pop %v4292
    %v4294 = vmul.f32 %v4292, %v4293
    %v4295 = vsub.f32 1.0, %v4294
    %v4296 = vmul.f32 %v4293, %v4295
    %v4297 = vadd.f32 %v4293, %v4296
    %vm4298 = vweird.f32 %v4292
    %vm4299 = vweird.f32 %v4293
    %vm4300 = vmor %vm4298, %vm4299
    %v4301 = vsel %vm4300, %v4293, %v4297
    %v4302 = vand.u32 2147483647, %v4292
    %vm4303 = vcmp.eq.f32.partialorder %v4302, 8.507059e+37
    %v4304 = vand.u32 %v4292, 2147483648
    %v4305 = vor.u32 1.1754944e-38, %v4304
    %v4306 = vsel %vm4303, %v4305, %v4301
    %v4307 = vmul.f32 1.0, %v4306
    %v4308 = vtanh.pop %v4288
    %v4309 = vmul.f32 %v4307, %v3787
    %4311 = vrot.lane.b32.xlu0 %v4308, 64
    %v4312 = vpop.permute.xlu0 %4311
    %v4314 = vmul.f32 %v4307, %v4312
    %4316 = vrot.lane.b32.xlu0 %v4314, 32
    %v4317 = vpop.permute.xlu0 %4316
    %v4319 = vadd.f32 %v4309, %v4317
    %v4320 = vtanh.pop %v4319
    %4322 = vrot.lane.b32.xlu0 %v4320, 64
    %v4323 = vpop.permute.xlu0 %4322
    %v4325 = vmul.f32 %v4307, %v4323
    %v4326 = vpack.c.bf16 %v4325, %v4325
    %v4328 = vrot.slane %v4326, 3
    %v4331 = vsel %vm547, %v4326, %v4328
    %v4333 = vsel %vm552, %v4326, %v4328
    %v4335 = vrot.slane %v4333, 1
    %v4336 = vsel %vm556, %v4326, %v4328
    %v4338 = vrot.slane %v4336, 2
    %v4339 = vsel %vm560, %v4326, %v4328
    %v4341 = vrot.slane %v4339, 3
    %v4342 = vunpack.i.l.s16 %v4331
    %v4343 = vunpack.i.h.s16 %v4331
    %v4344 = vunpack.i.l.s16 %v4335
    %v4345 = vunpack.i.h.s16 %v4335
    %v4346 = vunpack.i.l.s16 %v4338
    %v4347 = vunpack.i.h.s16 %v4338
    %v4348 = vunpack.i.l.s16 %v4341
    %v4349 = vunpack.i.h.s16 %v4341
    %v4350 = vpack.i.b16 %v4342, %v4342
    %v4351 = vperm.slane %v4350, 0
    %4352 = vrot.lane.b32.xlu0 %v4351, 32
    %v4353 = vpop.permute.xlu0 %4352
    %v4355 = vsel %vm392, %v4353, 0
    %4357 = vmatpush.bf16.xpose.msra.mxu0 0
    %4358 = vmatpush.bf16.xpose.msra.mxu0 0
    %4359 = vmatpush.bf16.xpose.msra.mxu0 0
    %4360 = vmatpush.bf16.xpose.msra.mxu0 0
    %4361 = vmatpush.bf16.xpose.msra.mxu0 0
    %4362 = vmatpush.bf16.xpose.msra.mxu0 0
    %4363 = vmatpush.bf16.xpose.msra.mxu0 0
    %4364 = vmatpush.bf16.xpose.msra.mxu0 %v580
    %4365 = vmatmul.bf16.gmra.mxu0 %v4355
    %v4366 = vpop.f32.mrf.mxu0
    %v4367 = vadd.f32 0.0, %v4366
    %v4368 = vpop.f32.mrf.mxu0
    %4369 = vdwg.mxu0
    %v4370 = vpack.i.b16 %v4343, %v4343
    %v4371 = vperm.slane %v4370, 0
    %4372 = vrot.lane.b32.xlu0 %v4371, 32
    %v4373 = vpop.permute.xlu0 %4372
    %v4375 = vsel %vm392, %v4373, 0
    %4377 = vmatpush.bf16.xpose.msra.mxu0 0
    %4378 = vmatpush.bf16.xpose.msra.mxu0 0
    %4379 = vmatpush.bf16.xpose.msra.mxu0 0
    %4380 = vmatpush.bf16.xpose.msra.mxu0 0
    %4381 = vmatpush.bf16.xpose.msra.mxu0 0
    %4382 = vmatpush.bf16.xpose.msra.mxu0 0
    %4383 = vmatpush.bf16.xpose.msra.mxu0 0
    %4384 = vmatpush.bf16.xpose.msra.mxu0 %v603
    %4385 = vmatmul.bf16.gmra.mxu0 %v4375
    %v4386 = vpop.f32.mrf.mxu0
    %v4387 = vadd.f32 0.0, %v4386
    %v4388 = vpop.f32.mrf.mxu0
    %4389 = vdwg.mxu0
    %v4390 = vpack.i.b16 %v4344, %v4344
    %v4391 = vperm.slane %v4390, 0
    %4392 = vrot.lane.b32.xlu0 %v4391, 32
    %v4393 = vpop.permute.xlu0 %4392
    %v4395 = vsel %vm392, %v4393, 0
    %4397 = vmatpush.bf16.xpose.msra.mxu0 0
    %4398 = vmatpush.bf16.xpose.msra.mxu0 0
    %4399 = vmatpush.bf16.xpose.msra.mxu0 0
    %4400 = vmatpush.bf16.xpose.msra.mxu0 0
    %4401 = vmatpush.bf16.xpose.msra.mxu0 0
    %4402 = vmatpush.bf16.xpose.msra.mxu0 0
    %4403 = vmatpush.bf16.xpose.msra.mxu0 0
    %4404 = vmatpush.bf16.xpose.msra.mxu0 %v626
    %4405 = vmatmul.bf16.gmra.mxu0 %v4395
    %v4406 = vpop.f32.mrf.mxu0
    %v4407 = vadd.f32 0.0, %v4406
    %v4408 = vpop.f32.mrf.mxu0
    %4409 = vdwg.mxu0
    %v4410 = vpack.i.b16 %v4345, %v4345
    %v4411 = vperm.slane %v4410, 0
    %4412 = vrot.lane.b32.xlu0 %v4411, 32
    %v4413 = vpop.permute.xlu0 %4412
    %v4415 = vsel %vm392, %v4413, 0
    %4417 = vmatpush.bf16.xpose.msra.mxu0 0
    %4418 = vmatpush.bf16.xpose.msra.mxu0 0
    %4419 = vmatpush.bf16.xpose.msra.mxu0 0
    %4420 = vmatpush.bf16.xpose.msra.mxu0 0
    %4421 = vmatpush.bf16.xpose.msra.mxu0 0
    %4422 = vmatpush.bf16.xpose.msra.mxu0 0
    %4423 = vmatpush.bf16.xpose.msra.mxu0 0
    %4424 = vmatpush.bf16.xpose.msra.mxu0 %v649
    %4425 = vmatmul.bf16.gmra.mxu0 %v4415
    %v4426 = vpop.f32.mrf.mxu0
    %v4427 = vadd.f32 0.0, %v4426
    %v4428 = vpop.f32.mrf.mxu0
    %4429 = vdwg.mxu0
    %v4430 = vpack.i.b16 %v4346, %v4346
    %v4431 = vperm.slane %v4430, 0
    %4432 = vrot.lane.b32.xlu0 %v4431, 32
    %v4433 = vpop.permute.xlu0 %4432
    %v4435 = vsel %vm392, %v4433, 0
    %4437 = vmatpush.bf16.xpose.msra.mxu0 0
    %4438 = vmatpush.bf16.xpose.msra.mxu0 0
    %4439 = vmatpush.bf16.xpose.msra.mxu0 0
    %4440 = vmatpush.bf16.xpose.msra.mxu0 0
    %4441 = vmatpush.bf16.xpose.msra.mxu0 0
    %4442 = vmatpush.bf16.xpose.msra.mxu0 0
    %4443 = vmatpush.bf16.xpose.msra.mxu0 0
    %4444 = vmatpush.bf16.xpose.msra.mxu0 %v672
    %4445 = vmatmul.bf16.gmra.mxu0 %v4435
    %v4446 = vpop.f32.mrf.mxu0
    %v4447 = vadd.f32 0.0, %v4446
    %v4448 = vpop.f32.mrf.mxu0
    %4449 = vdwg.mxu0
    %v4450 = vpack.i.b16 %v4347, %v4347
    %v4451 = vperm.slane %v4450, 0
    %4452 = vrot.lane.b32.xlu0 %v4451, 32
    %v4453 = vpop.permute.xlu0 %4452
    %v4455 = vsel %vm392, %v4453, 0
    %4457 = vmatpush.bf16.xpose.msra.mxu0 0
    %4458 = vmatpush.bf16.xpose.msra.mxu0 0
    %4459 = vmatpush.bf16.xpose.msra.mxu0 0
    %4460 = vmatpush.bf16.xpose.msra.mxu0 0
    %4461 = vmatpush.bf16.xpose.msra.mxu0 0
    %4462 = vmatpush.bf16.xpose.msra.mxu0 0
    %4463 = vmatpush.bf16.xpose.msra.mxu0 0
    %4464 = vmatpush.bf16.xpose.msra.mxu0 %v695
    %4465 = vmatmul.bf16.gmra.mxu0 %v4455
    %v4466 = vpop.f32.mrf.mxu0
    %v4467 = vadd.f32 0.0, %v4466
    %v4468 = vpop.f32.mrf.mxu0
    %4469 = vdwg.mxu0
    %v4470 = vpack.i.b16 %v4348, %v4348
    %v4471 = vperm.slane %v4470, 0
    %4472 = vrot.lane.b32.xlu0 %v4471, 32
    %v4473 = vpop.permute.xlu0 %4472
    %v4475 = vsel %vm392, %v4473, 0
    %4477 = vmatpush.bf16.xpose.msra.mxu0 0
    %4478 = vmatpush.bf16.xpose.msra.mxu0 0
    %4479 = vmatpush.bf16.xpose.msra.mxu0 0
    %4480 = vmatpush.bf16.xpose.msra.mxu0 0
    %4481 = vmatpush.bf16.xpose.msra.mxu0 0
    %4482 = vmatpush.bf16.xpose.msra.mxu0 0
    %4483 = vmatpush.bf16.xpose.msra.mxu0 0
    %4484 = vmatpush.bf16.xpose.msra.mxu0 %v718
    %4485 = vmatmul.bf16.gmra.mxu0 %v4475
    %v4486 = vpop.f32.mrf.mxu0
    %v4487 = vadd.f32 0.0, %v4486
    %v4488 = vpop.f32.mrf.mxu0
    %4489 = vdwg.mxu0
    %v4490 = vpack.i.b16 %v4349, %v4349
    %v4491 = vperm.slane %v4490, 0
    %4492 = vrot.lane.b32.xlu0 %v4491, 32
    %v4493 = vpop.permute.xlu0 %4492
    %v4495 = vsel %vm392, %v4493, 0
    %4497 = vmatpush.bf16.xpose.msra.mxu0 0
    %4498 = vmatpush.bf16.xpose.msra.mxu0 0
    %4499 = vmatpush.bf16.xpose.msra.mxu0 0
    %4500 = vmatpush.bf16.xpose.msra.mxu0 0
    %4501 = vmatpush.bf16.xpose.msra.mxu0 0
    %4502 = vmatpush.bf16.xpose.msra.mxu0 0
    %4503 = vmatpush.bf16.xpose.msra.mxu0 0
    %4504 = vmatpush.bf16.xpose.msra.mxu0 %v741
    %4505 = vmatmul.bf16.gmra.mxu0 %v4495
    %v4506 = vpop.f32.mrf.mxu0
    %v4507 = vadd.f32 0.0, %v4506
    %v4508 = vpop.f32.mrf.mxu0
    %4509 = vdwg.mxu0
    %v4518 = vrot.slane %v4387, 7
    %v4519 = vsel %vm552, %v4518, %v4367
    %v4520 = vrot.slane %v4407, 6
    %v4521 = vsel %vm556, %v4520, %v4519
    %v4522 = vrot.slane %v4427, 5
    %v4523 = vsel %vm560, %v4522, %v4521
    %v4524 = vrot.slane %v4447, 4
    %v4525 = vsel %vm771, %v4524, %v4523
    %v4526 = vrot.slane %v4467, 3
    %v4527 = vsel %vm774, %v4526, %v4525
    %v4528 = vrot.slane %v4487, 2
    %v4529 = vsel %vm777, %v4528, %v4527
    %v4530 = vrot.slane %v4507, 1
    %v4531 = vsel %vm780, %v4530, %v4529
    %v4533 = vsel %vm308, -inf, %v4531
    %v4534 = vsel %vm784, %v4533, -inf
    %4535 = vmax.xlane.f32.xlu0 %v4534
    %v4536 = vpop.xlane.xlu0 %4535
    %v4537 = vsub.f32 %v4533, %v4536
    %v4538 = vmul.f32 %v4537, 1.442695
    %v4539 = vpow.pop %v4538
    %v4540 = vsel %vm784, %v4539, 0.0
    %4541 = vadd.xlane.f32.xlu0 %v4540
    %v4542 = vpop.xlane.xlu0 %4541
    %v4543 = vrcp.pop %v4542
    %v4544 = vmul.f32 %v4539, %v4543
    %v4545 = vpack.c.bf16 %v4544, %v4544
    %v4547 = vrot.slane %v4545, 3
    %v4550 = vsel %vm547, %v4545, %v4547
    %v4552 = vsel %vm552, %v4545, %v4547
    %v4554 = vrot.slane %v4552, 1
    %v4555 = vsel %vm556, %v4545, %v4547
    %v4557 = vrot.slane %v4555, 2
    %v4558 = vsel %vm560, %v4545, %v4547
    %v4560 = vrot.slane %v4558, 3
    %v4561 = vunpack.i.l.s16 %v4550
    %v4562 = vunpack.i.h.s16 %v4550
    %v4563 = vunpack.i.l.s16 %v4554
    %v4564 = vunpack.i.h.s16 %v4554
    %v4565 = vunpack.i.l.s16 %v4557
    %v4566 = vunpack.i.h.s16 %v4557
    %v4567 = vunpack.i.l.s16 %v4560
    %v4568 = vunpack.i.h.s16 %v4560
    %v4569 = vpack.i.b16 %v4561, %v4561
    %v4570 = vperm.slane %v4569, 0
    %v4572 = vsel %vm784, %v4570, 0
    %4574 = vmatpush.bf16.msra.mxu0 0
    %4575 = vmatpush.bf16.msra.mxu0 0
    %4576 = vmatpush.bf16.msra.mxu0 0
    %4577 = vmatpush.bf16.msra.mxu0 0
    %4578 = vmatpush.bf16.msra.mxu0 0
    %4579 = vmatpush.bf16.msra.mxu0 0
    %4580 = vmatpush.bf16.msra.mxu0 0
    %4581 = vmatpush.bf16.msra.mxu0 %v827
    %4582 = vmatmul.bf16.gmra.mxu0 %v4572
    %v4583 = vpop.f32.mrf.mxu0
    %v4584 = vadd.f32 0.0, %v4583
    %v4585 = vpop.f32.mrf.mxu0
    %4586 = vdwg.mxu0
    %v4587 = vpack.i.b16 %v4562, %v4562
    %v4588 = vperm.slane %v4587, 0
    %v4590 = vsel %vm784, %v4588, 0
    %4592 = vmatpush.bf16.msra.mxu0 0
    %4593 = vmatpush.bf16.msra.mxu0 0
    %4594 = vmatpush.bf16.msra.mxu0 0
    %4595 = vmatpush.bf16.msra.mxu0 0
    %4596 = vmatpush.bf16.msra.mxu0 0
    %4597 = vmatpush.bf16.msra.mxu0 0
    %4598 = vmatpush.bf16.msra.mxu0 0
    %4599 = vmatpush.bf16.msra.mxu0 %v848
    %4600 = vmatmul.bf16.gmra.mxu0 %v4590
    %v4601 = vpop.f32.mrf.mxu0
    %v4602 = vadd.f32 0.0, %v4601
    %v4603 = vpop.f32.mrf.mxu0
    %4604 = vdwg.mxu0
    %v4605 = vpack.i.b16 %v4563, %v4563
    %v4606 = vperm.slane %v4605, 0
    %v4608 = vsel %vm784, %v4606, 0
    %4610 = vmatpush.bf16.msra.mxu0 0
    %4611 = vmatpush.bf16.msra.mxu0 0
    %4612 = vmatpush.bf16.msra.mxu0 0
    %4613 = vmatpush.bf16.msra.mxu0 0
    %4614 = vmatpush.bf16.msra.mxu0 0
    %4615 = vmatpush.bf16.msra.mxu0 0
    %4616 = vmatpush.bf16.msra.mxu0 0
    %4617 = vmatpush.bf16.msra.mxu0 %v869
    %4618 = vmatmul.bf16.gmra.mxu0 %v4608
    %v4619 = vpop.f32.mrf.mxu0
    %v4620 = vadd.f32 0.0, %v4619
    %v4621 = vpop.f32.mrf.mxu0
    %4622 = vdwg.mxu0
    %v4623 = vpack.i.b16 %v4564, %v4564
    %v4624 = vperm.slane %v4623, 0
    %v4626 = vsel %vm784, %v4624, 0
    %4628 = vmatpush.bf16.msra.mxu0 0
    %4629 = vmatpush.bf16.msra.mxu0 0
    %4630 = vmatpush.bf16.msra.mxu0 0
    %4631 = vmatpush.bf16.msra.mxu0 0
    %4632 = vmatpush.bf16.msra.mxu0 0
    %4633 = vmatpush.bf16.msra.mxu0 0
    %4634 = vmatpush.bf16.msra.mxu0 0
    %4635 = vmatpush.bf16.msra.mxu0 %v890
    %4636 = vmatmul.bf16.gmra.mxu0 %v4626
    %v4637 = vpop.f32.mrf.mxu0
    %v4638 = vadd.f32 0.0, %v4637
    %v4639 = vpop.f32.mrf.mxu0
    %4640 = vdwg.mxu0
    %v4641 = vpack.i.b16 %v4565, %v4565
    %v4642 = vperm.slane %v4641, 0
    %v4644 = vsel %vm784, %v4642, 0
    %4646 = vmatpush.bf16.msra.mxu0 0
    %4647 = vmatpush.bf16.msra.mxu0 0
    %4648 = vmatpush.bf16.msra.mxu0 0
    %4649 = vmatpush.bf16.msra.mxu0 0
    %4650 = vmatpush.bf16.msra.mxu0 0
    %4651 = vmatpush.bf16.msra.mxu0 0
    %4652 = vmatpush.bf16.msra.mxu0 0
    %4653 = vmatpush.bf16.msra.mxu0 %v911
    %4654 = vmatmul.bf16.gmra.mxu0 %v4644
    %v4655 = vpop.f32.mrf.mxu0
    %v4656 = vadd.f32 0.0, %v4655
    %v4657 = vpop.f32.mrf.mxu0
    %4658 = vdwg.mxu0
    %v4659 = vpack.i.b16 %v4566, %v4566
    %v4660 = vperm.slane %v4659, 0
    %v4662 = vsel %vm784, %v4660, 0
    %4664 = vmatpush.bf16.msra.mxu0 0
    %4665 = vmatpush.bf16.msra.mxu0 0
    %4666 = vmatpush.bf16.msra.mxu0 0
    %4667 = vmatpush.bf16.msra.mxu0 0
    %4668 = vmatpush.bf16.msra.mxu0 0
    %4669 = vmatpush.bf16.msra.mxu0 0
    %4670 = vmatpush.bf16.msra.mxu0 0
    %4671 = vmatpush.bf16.msra.mxu0 %v932
    %4672 = vmatmul.bf16.gmra.mxu0 %v4662
    %v4673 = vpop.f32.mrf.mxu0
    %v4674 = vadd.f32 0.0, %v4673
    %v4675 = vpop.f32.mrf.mxu0
    %4676 = vdwg.mxu0
    %v4677 = vpack.i.b16 %v4567, %v4567
    %v4678 = vperm.slane %v4677, 0
    %v4680 = vsel %vm784, %v4678, 0
    %4682 = vmatpush.bf16.msra.mxu0 0
    %4683 = vmatpush.bf16.msra.mxu0 0
    %4684 = vmatpush.bf16.msra.mxu0 0
    %4685 = vmatpush.bf16.msra.mxu0 0
    %4686 = vmatpush.bf16.msra.mxu0 0
    %4687 = vmatpush.bf16.msra.mxu0 0
    %4688 = vmatpush.bf16.msra.mxu0 0
    %4689 = vmatpush.bf16.msra.mxu0 %v953
    %4690 = vmatmul.bf16.gmra.mxu0 %v4680
    %v4691 = vpop.f32.mrf.mxu0
    %v4692 = vadd.f32 0.0, %v4691
    %v4693 = vpop.f32.mrf.mxu0
    %4694 = vdwg.mxu0
    %v4695 = vpack.i.b16 %v4568, %v4568
    %v4696 = vperm.slane %v4695, 0
    %v4698 = vsel %vm784, %v4696, 0
    %4700 = vmatpush.bf16.msra.mxu0 0
    %4701 = vmatpush.bf16.msra.mxu0 0
    %4702 = vmatpush.bf16.msra.mxu0 0
    %4703 = vmatpush.bf16.msra.mxu0 0
    %4704 = vmatpush.bf16.msra.mxu0 0
    %4705 = vmatpush.bf16.msra.mxu0 0
    %4706 = vmatpush.bf16.msra.mxu0 0
    %4707 = vmatpush.bf16.msra.mxu0 %v974
    %4708 = vmatmul.bf16.gmra.mxu0 %v4698
    %v4709 = vpop.f32.mrf.mxu0
    %v4710 = vadd.f32 0.0, %v4709
    %v4711 = vpop.f32.mrf.mxu0
    %4712 = vdwg.mxu0
    %v4713 = vunpack.c.l.b16 %v4326
    %v4714 = vpack.c.b16 %v4713, %v4713
    %4715 = vrot.lane.b32.xlu0 %v4714, 32
    %v4716 = vpop.permute.xlu0 %4715
    %v4718 = vsel %vm392, %v4716, 0
    %4720 = vmatpush.bf16.msra.mxu0 0
    %4721 = vmatpush.bf16.msra.mxu0 0
    %4722 = vmatpush.bf16.msra.mxu0 0
    %4723 = vmatpush.bf16.msra.mxu0 0
    %4724 = vmatpush.bf16.msra.mxu0 0
    %4725 = vmatpush.bf16.msra.mxu0 0
    %4726 = vmatpush.bf16.msra.mxu0 %v484
    %4727 = vmatpush.bf16.msra.mxu0 %v483
    %4728 = vmatmul.bf16.gmra.mxu0 %v4718
    %v4729 = vpop.f32.mrf.mxu0
    %v4730 = vadd.f32 0.0, %v4729
    %v4731 = vpop.f32.mrf.mxu0
    %4732 = vdwg.mxu0
    %v4734 = vrot.slane %v4730, 1
    %v4735 = vrot.slane %v4730, 2
    %v4736 = vrot.slane %v4730, 3
    %v4737 = vrot.slane %v4730, 4
    %v4738 = vrot.slane %v4730, 5
    %v4739 = vrot.slane %v4730, 6
    %v4740 = vrot.slane %v4730, 7
    %v4749 = vadd.f32 %v4584, %v4730
    %v4750 = vadd.f32 %v4602, %v4734
    %v4751 = vadd.f32 %v4620, %v4735
    %v4752 = vadd.f32 %v4638, %v4736
    %v4753 = vadd.f32 %v4656, %v4737
    %v4754 = vadd.f32 %v4674, %v4738
    %v4755 = vadd.f32 %v4692, %v4739
    %v4756 = vadd.f32 %v4710, %v4740
    %v4757 = vtanh.pop %v4749
    %v4758 = vtanh.pop %v4750
    %v4759 = vtanh.pop %v4751
    %v4760 = vtanh.pop %v4752
    %v4761 = vtanh.pop %v4753
    %v4762 = vtanh.pop %v4754
    %v4763 = vtanh.pop %v4755
    %v4764 = vtanh.pop %v4756
    %v4773 = vrot.slane %v4758, 7
    %v4774 = vsel %vm552, %v4773, %v4757
    %v4775 = vrot.slane %v4759, 6
    %v4776 = vsel %vm556, %v4775, %v4774
    %v4777 = vrot.slane %v4760, 5
    %v4778 = vsel %vm560, %v4777, %v4776
    %v4779 = vrot.slane %v4761, 4
    %v4780 = vsel %vm771, %v4779, %v4778
    %v4781 = vrot.slane %v4762, 3
    %v4782 = vsel %vm774, %v4781, %v4780
    %v4783 = vrot.slane %v4763, 2
    %v4784 = vsel %vm777, %v4783, %v4782
    %v4785 = vrot.slane %v4764, 1
    %v4786 = vsel %vm780, %v4785, %v4784
    %4788 = vst.msk [vmem:[#allocation27] sm:$0xff] %vm392, %v4786
    %4790 = vrot.lane.b32.xlu0 %v4319, 96
    %v4791 = vpop.permute.xlu0 %4790
    %4793 = vst.msk [vmem:[#allocation29] sm:$0xff] %vm392, %v4791
    %v4802 = vrot.slane %v1034, 7
    %v4803 = vsel %vm552, %v4802, %v1033
    %v4804 = vrot.slane %v1035, 6
    %v4805 = vsel %vm556, %v4804, %v4803
    %v4806 = vrot.slane %v1036, 5
    %v4807 = vsel %vm560, %v4806, %v4805
    %v4808 = vrot.slane %v1037, 4
    %v4809 = vsel %vm771, %v4808, %v4807
    %v4810 = vrot.slane %v1038, 3
    %v4811 = vsel %vm774, %v4810, %v4809
    %v4812 = vrot.slane %v1039, 2
    %v4813 = vsel %vm777, %v4812, %v4811
    %v4814 = vrot.slane %v1040, 1
    %v4815 = vsel %vm780, %v4814, %v4813
    %v4825 = vrot.slane %v1566, 7
    %v4826 = vsel %vm552, %v4825, %v1565
    %v4827 = vrot.slane %v1567, 6
    %v4828 = vsel %vm556, %v4827, %v4826
    %v4829 = vrot.slane %v1568, 5
    %v4830 = vsel %vm560, %v4829, %v4828
    %v4831 = vrot.slane %v1569, 4
    %v4832 = vsel %vm771, %v4831, %v4830
    %v4833 = vrot.slane %v1570, 3
    %v4834 = vsel %vm774, %v4833, %v4832
    %v4835 = vrot.slane %v1571, 2
    %v4836 = vsel %vm777, %v4835, %v4834
    %v4837 = vrot.slane %v1572, 1
    %v4838 = vsel %vm780, %v4837, %v4836
    %v4848 = vrot.slane %v2098, 7
    %v4849 = vsel %vm552, %v4848, %v2097
    %v4850 = vrot.slane %v2099, 6
    %v4851 = vsel %vm556, %v4850, %v4849
    %v4852 = vrot.slane %v2100, 5
    %v4853 = vsel %vm560, %v4852, %v4851
    %v4854 = vrot.slane %v2101, 4
    %v4855 = vsel %vm771, %v4854, %v4853
    %v4856 = vrot.slane %v2102, 3
    %v4857 = vsel %vm774, %v4856, %v4855
    %v4858 = vrot.slane %v2103, 2
    %v4859 = vsel %vm777, %v4858, %v4857
    %v4860 = vrot.slane %v2104, 1
    %v4861 = vsel %vm780, %v4860, %v4859
    %v4871 = vrot.slane %v2630, 7
    %v4872 = vsel %vm552, %v4871, %v2629
    %v4873 = vrot.slane %v2631, 6
    %v4874 = vsel %vm556, %v4873, %v4872
    %v4875 = vrot.slane %v2632, 5
    %v4876 = vsel %vm560, %v4875, %v4874
    %v4877 = vrot.slane %v2633, 4
    %v4878 = vsel %vm771, %v4877, %v4876
    %v4879 = vrot.slane %v2634, 3
    %v4880 = vsel %vm774, %v4879, %v4878
    %v4881 = vrot.slane %v2635, 2
    %v4882 = vsel %vm777, %v4881, %v4880
    %v4883 = vrot.slane %v2636, 1
    %v4884 = vsel %vm780, %v4883, %v4882
    %v4894 = vrot.slane %v3162, 7
    %v4895 = vsel %vm552, %v4894, %v3161
    %v4896 = vrot.slane %v3163, 6
    %v4897 = vsel %vm556, %v4896, %v4895
    %v4898 = vrot.slane %v3164, 5
    %v4899 = vsel %vm560, %v4898, %v4897
    %v4900 = vrot.slane %v3165, 4
    %v4901 = vsel %vm771, %v4900, %v4899
    %v4902 = vrot.slane %v3166, 3
    %v4903 = vsel %vm774, %v4902, %v4901
    %v4904 = vrot.slane %v3167, 2
    %v4905 = vsel %vm777, %v4904, %v4903
    %v4906 = vrot.slane %v3168, 1
    %v4907 = vsel %vm780, %v4906, %v4905
    %v4917 = vrot.slane %v3694, 7
    %v4918 = vsel %vm552, %v4917, %v3693
    %v4919 = vrot.slane %v3695, 6
    %v4920 = vsel %vm556, %v4919, %v4918
    %v4921 = vrot.slane %v3696, 5
    %v4922 = vsel %vm560, %v4921, %v4920
    %v4923 = vrot.slane %v3697, 4
    %v4924 = vsel %vm771, %v4923, %v4922
    %v4925 = vrot.slane %v3698, 3
    %v4926 = vsel %vm774, %v4925, %v4924
    %v4927 = vrot.slane %v3699, 2
    %v4928 = vsel %vm777, %v4927, %v4926
    %v4929 = vrot.slane %v3700, 1
    %v4930 = vsel %vm780, %v4929, %v4928
    %v4940 = vrot.slane %v4226, 7
    %v4941 = vsel %vm552, %v4940, %v4225
    %v4942 = vrot.slane %v4227, 6
    %v4943 = vsel %vm556, %v4942, %v4941
    %v4944 = vrot.slane %v4228, 5
    %v4945 = vsel %vm560, %v4944, %v4943
    %v4946 = vrot.slane %v4229, 4
    %v4947 = vsel %vm771, %v4946, %v4945
    %v4948 = vrot.slane %v4230, 3
    %v4949 = vsel %vm774, %v4948, %v4947
    %v4950 = vrot.slane %v4231, 2
    %v4951 = vsel %vm777, %v4950, %v4949
    %v4952 = vrot.slane %v4232, 1
    %v4953 = vsel %vm780, %v4952, %v4951
    %v4955 = vpack.c.bf16 %v4838, %v4815
    %v4956 = vpack.c.bf16 %v4884, %v4861
    %v4957 = vpack.c.bf16 %v4930, %v4907
    %v4958 = vpack.c.bf16 %v4786, %v4953
    %v4959 = vld [vmem:[#allocation19] sm:$0xff]
    %v4960 = vld [vmem:[#allocation19 + $0x8] sm:$0xff]
    %v4961 = vld [vmem:[#allocation19 + $0x10] sm:$0xff]
    %v4962 = vld [vmem:[#allocation19 + $0x18] sm:$0xff]
    %v4963 = vld [vmem:[%s13] sm:$0x1]
    %v4964 = vld [vmem:[#allocation20] sm:$0xff]
    %v4965 = vld [vmem:[#allocation20 + $0x8] sm:$0xff]
    %v4966 = vld [vmem:[#allocation20 + $0x10] sm:$0xff]
    %v4967 = vld [vmem:[#allocation20 + $0x18] sm:$0xff]
    %v4968 = vld [vmem:[%s15] sm:$0x1]
    %v4969 = vld [vmem:[#allocation22] sm:$0xff]
    %v4970 = vld [vmem:[#allocation22 + $0x8] sm:$0xff]
    %v4971 = vld [vmem:[#allocation22 + $0x10] sm:$0xff]
    %v4972 = vld [vmem:[#allocation22 + $0x18] sm:$0xff]
    %v4973 = vld [vmem:[#allocation23] sm:$0xff]
    %v4974 = vld [vmem:[#allocation23 + $0x8] sm:$0xff]
    %v4975 = vld [vmem:[#allocation23 + $0x10] sm:$0xff]
    %v4976 = vld [vmem:[#allocation23 + $0x18] sm:$0xff]
    %v4977 = vld [vmem:[#allocation25] sm:$0xff]
    %v4978 = vld [vmem:[#allocation25 + $0x8] sm:$0xff]
    %v4979 = vld [vmem:[#allocation25 + $0x10] sm:$0xff]
    %v4980 = vld [vmem:[#allocation25 + $0x18] sm:$0xff]
    %v4981 = vadd.f32 %v4963, %v4968
    %v4982 = vpack.c.bf16 %v4960, %v4959
    %v4983 = vpack.c.bf16 %v4962, %v4961
    %v4985 = vperm.slane %v4981, 0
    %v4988 = vsel %vm392, %v4955, 0
    %v4991 = vsel %vm392, %v4956, 0
    %v4994 = vsel %vm392, %v4957, 0
    %v4997 = vsel %vm392, %v4958, 0
    %4999 = vmatpush.bf16.msra.mxu0 0
    %5000 = vmatpush.bf16.msra.mxu0 0
    %5001 = vmatpush.bf16.msra.mxu0 0
    %5002 = vmatpush.bf16.msra.mxu0 0
    %5003 = vmatpush.bf16.msra.mxu0 0
    %5004 = vmatpush.bf16.msra.mxu0 0
    %5005 = vmatpush.bf16.msra.mxu0 %v4983
    %5006 = vmatpush.bf16.msra.mxu0 %v4982
    %5007 = vmatmul.bf16.gmra.mxu0 %v4988
    %v5008 = vpop.f32.mrf.mxu0
    %v5009 = vadd.f32 %v4985, %v5008
    %v5010 = vpop.f32.mrf.mxu0
    %v5011 = vadd.f32 %v4985, %v5010
    %5012 = vmatmul.bf16.gmra.mxu0 %v4991
    %v5013 = vpop.f32.mrf.mxu0
    %v5014 = vadd.f32 %v4985, %v5013
    %v5015 = vpop.f32.mrf.mxu0
    %v5016 = vadd.f32 %v4985, %v5015
    %5017 = vmatmul.bf16.gmra.mxu0 %v4994
    %v5018 = vpop.f32.mrf.mxu0
    %v5019 = vadd.f32 %v4985, %v5018
    %v5020 = vpop.f32.mrf.mxu0
    %v5021 = vadd.f32 %v4985, %v5020
    %5022 = vmatmul.bf16.gmra.mxu0 %v4997
    %v5023 = vpop.f32.mrf.mxu0
    %v5024 = vadd.f32 %v4985, %v5023
    %v5025 = vpop.f32.mrf.mxu0
    %v5026 = vadd.f32 %v4985, %v5025
    %5027 = vdwg.mxu0
    %v5028 = vpack.c.bf16 %v4970, %v4969
    %v5029 = vpack.c.bf16 %v4972, %v4971
    %5030 = vmatpush.bf16.msra.mxu0 0
    %5031 = vmatpush.bf16.msra.mxu0 0
    %5032 = vmatpush.bf16.msra.mxu0 0
    %5033 = vmatpush.bf16.msra.mxu0 0
    %5034 = vmatpush.bf16.msra.mxu0 0
    %5035 = vmatpush.bf16.msra.mxu0 0
    %5036 = vmatpush.bf16.msra.mxu0 %v5029
    %5037 = vmatpush.bf16.msra.mxu0 %v5028
    %5038 = vmatmul.bf16.gmra.mxu0 %v394
    %v5039 = vpop.f32.mrf.mxu0
    %v5040 = vadd.f32 0.0, %v5039
    %v5041 = vpop.f32.mrf.mxu0
    %v5042 = vadd.f32 0.0, %v5041
    %5043 = vmatmul.bf16.gmra.mxu0 %v397
    %v5044 = vpop.f32.mrf.mxu0
    %v5045 = vadd.f32 0.0, %v5044
    %v5046 = vpop.f32.mrf.mxu0
    %v5047 = vadd.f32 0.0, %v5046
    %5048 = vmatmul.bf16.gmra.mxu0 %v400
    %v5049 = vpop.f32.mrf.mxu0
    %v5050 = vadd.f32 0.0, %v5049
    %v5051 = vpop.f32.mrf.mxu0
    %v5052 = vadd.f32 0.0, %v5051
    %5053 = vmatmul.bf16.gmra.mxu0 %v403
    %v5054 = vpop.f32.mrf.mxu0
    %v5055 = vadd.f32 0.0, %v5054
    %v5056 = vpop.f32.mrf.mxu0
    %v5057 = vadd.f32 0.0, %v5056
    %5058 = vdwg.mxu0
    %v5059 = vpack.c.bf16 %v5040, %v5040
    %v5060 = vpack.c.bf16 %v5042, %v5042
    %v5061 = vpack.c.bf16 %v5045, %v5045
    %v5062 = vpack.c.bf16 %v5047, %v5047
    %v5063 = vpack.c.bf16 %v5050, %v5050
    %v5064 = vpack.c.bf16 %v5052, %v5052
    %v5065 = vpack.c.bf16 %v5055, %v5055
    %v5066 = vpack.c.bf16 %v5057, %v5057
    %v5067 = vpack.c.bf16 %v4974, %v4973
    %v5068 = vpack.c.bf16 %v4976, %v4975
    %5069 = vmatpush.bf16.msra.mxu0 0
    %5070 = vmatpush.bf16.msra.mxu0 0
    %5071 = vmatpush.bf16.msra.mxu0 0
    %5072 = vmatpush.bf16.msra.mxu0 0
    %5073 = vmatpush.bf16.msra.mxu0 0
    %5074 = vmatpush.bf16.msra.mxu0 0
    %5075 = vmatpush.bf16.msra.mxu0 %v5068
    %5076 = vmatpush.bf16.msra.mxu0 %v5067
    %5077 = vmatmul.bf16.gmra.mxu0 %v394
    %v5078 = vpop.f32.mrf.mxu0
    %v5079 = vadd.f32 0.0, %v5078
    %v5080 = vpop.f32.mrf.mxu0
    %v5081 = vadd.f32 0.0, %v5080
    %5082 = vmatmul.bf16.gmra.mxu0 %v397
    %v5083 = vpop.f32.mrf.mxu0
    %v5084 = vadd.f32 0.0, %v5083
    %v5085 = vpop.f32.mrf.mxu0
    %v5086 = vadd.f32 0.0, %v5085
    %5087 = vmatmul.bf16.gmra.mxu0 %v400
    %v5088 = vpop.f32.mrf.mxu0
    %v5089 = vadd.f32 0.0, %v5088
    %v5090 = vpop.f32.mrf.mxu0
    %v5091 = vadd.f32 0.0, %v5090
    %5092 = vmatmul.bf16.gmra.mxu0 %v403
    %v5093 = vpop.f32.mrf.mxu0
    %v5094 = vadd.f32 0.0, %v5093
    %v5095 = vpop.f32.mrf.mxu0
    %v5096 = vadd.f32 0.0, %v5095
    %5097 = vdwg.mxu0
    %v5098 = vpack.c.bf16 %v5079, %v5079
    %v5099 = vpack.c.bf16 %v5081, %v5081
    %v5100 = vpack.c.bf16 %v5084, %v5084
    %v5101 = vpack.c.bf16 %v5086, %v5086
    %v5102 = vpack.c.bf16 %v5089, %v5089
    %v5103 = vpack.c.bf16 %v5091, %v5091
    %v5104 = vpack.c.bf16 %v5094, %v5094
    %v5105 = vpack.c.bf16 %v5096, %v5096
    %v5106 = vpack.c.bf16 %v4965, %v4964
    %v5107 = vpack.c.bf16 %v4967, %v4966
    %v5108 = vpack.c.bf16 %v4978, %v4977
    %v5109 = vpack.c.bf16 %v4980, %v4979
    %5110 = vmatpush.bf16.msra.mxu0 0
    %5111 = vmatpush.bf16.msra.mxu0 0
    %5112 = vmatpush.bf16.msra.mxu0 0
    %5113 = vmatpush.bf16.msra.mxu0 0
    %5114 = vmatpush.bf16.msra.mxu0 0
    %5115 = vmatpush.bf16.msra.mxu0 0
    %5116 = vmatpush.bf16.msra.mxu0 %v5107
    %5117 = vmatpush.bf16.msra.mxu0 %v5106
    %5118 = vmatmul.bf16.gmra.mxu0 %v487
    %v5119 = vpop.f32.mrf.mxu0
    %v5120 = vadd.f32 0.0, %v5119
    %v5121 = vpop.f32.mrf.mxu0
    %5122 = vdwg.mxu0
    %v5123 = vadd.f32 %v5009, %v5120
    %v5124 = vxor.u32 %v5123, 2147483648
    %v5125 = vmul.f32 %v5124, 1.442695
    %v5126 = vpow.pop %v5125
    %v5127 = vadd.f32 %v5126, 1.0
    %v5128 = vrcp.pop %v5127
    %v5129 = vmul.f32 %v5127, %v5128
    %v5130 = vsub.f32 1.0, %v5129
    %v5131 = vmul.f32 %v5128, %v5130
    %v5132 = vadd.f32 %v5128, %v5131
    %vm5133 = vweird.f32 %v5127
    %vm5134 = vweird.f32 %v5128
    %vm5135 = vmor %vm5133, %vm5134
    %v5136 = vsel %vm5135, %v5128, %v5132
    %v5137 = vand.u32 2147483647, %v5127
    %vm5138 = vcmp.eq.f32.partialorder %v5137, 8.507059e+37
    %v5139 = vand.u32 %v5127, 2147483648
    %v5140 = vor.u32 1.1754944e-38, %v5139
    %v5141 = vsel %vm5138, %v5140, %v5136
    %v5142 = vmul.f32 1.0, %v5141
    %v5143 = vtanh.pop %v5123
    %v5144 = vmul.f32 %v5142, %v525
    %5146 = vrot.lane.b32.xlu0 %v5143, 64
    %v5147 = vpop.permute.xlu0 %5146
    %v5149 = vmul.f32 %v5142, %v5147
    %5151 = vrot.lane.b32.xlu0 %v5149, 32
    %v5152 = vpop.permute.xlu0 %5151
    %v5154 = vadd.f32 %v5144, %v5152
    %v5155 = vtanh.pop %v5154
    %5157 = vrot.lane.b32.xlu0 %v5155, 64
    %v5158 = vpop.permute.xlu0 %5157
    %v5160 = vmul.f32 %v5142, %v5158
    %v5161 = vpack.c.bf16 %v5160, %v5160
    %v5163 = vrot.slane %v5161, 3
    %v5166 = vsel %vm547, %v5161, %v5163
    %v5168 = vsel %vm552, %v5161, %v5163
    %v5170 = vrot.slane %v5168, 1
    %v5171 = vsel %vm556, %v5161, %v5163
    %v5173 = vrot.slane %v5171, 2
    %v5174 = vsel %vm560, %v5161, %v5163
    %v5176 = vrot.slane %v5174, 3
    %v5177 = vunpack.i.l.s16 %v5166
    %v5178 = vunpack.i.h.s16 %v5166
    %v5179 = vunpack.i.l.s16 %v5170
    %v5180 = vunpack.i.h.s16 %v5170
    %v5181 = vunpack.i.l.s16 %v5173
    %v5182 = vunpack.i.h.s16 %v5173
    %v5183 = vunpack.i.l.s16 %v5176
    %v5184 = vunpack.i.h.s16 %v5176
    %v5185 = vpack.i.b16 %v5177, %v5177
    %v5186 = vperm.slane %v5185, 0
    %5187 = vrot.lane.b32.xlu0 %v5186, 32
    %v5188 = vpop.permute.xlu0 %5187
    %v5190 = vsel %vm392, %v5188, 0
    %v5193 = vsel %vm392, %v5059, 0
    %5195 = vmatpush.bf16.xpose.msra.mxu0 0
    %5196 = vmatpush.bf16.xpose.msra.mxu0 0
    %5197 = vmatpush.bf16.xpose.msra.mxu0 0
    %5198 = vmatpush.bf16.xpose.msra.mxu0 0
    %5199 = vmatpush.bf16.xpose.msra.mxu0 0
    %5200 = vmatpush.bf16.xpose.msra.mxu0 0
    %5201 = vmatpush.bf16.xpose.msra.mxu0 0
    %5202 = vmatpush.bf16.xpose.msra.mxu0 %v5193
    %5203 = vmatmul.bf16.gmra.mxu0 %v5190
    %v5204 = vpop.f32.mrf.mxu0
    %v5205 = vadd.f32 0.0, %v5204
    %v5206 = vpop.f32.mrf.mxu0
    %5207 = vdwg.mxu0
    %v5208 = vpack.i.b16 %v5178, %v5178
    %v5209 = vperm.slane %v5208, 0
    %5210 = vrot.lane.b32.xlu0 %v5209, 32
    %v5211 = vpop.permute.xlu0 %5210
    %v5213 = vsel %vm392, %v5211, 0
    %v5216 = vsel %vm392, %v5060, 0
    %5218 = vmatpush.bf16.xpose.msra.mxu0 0
    %5219 = vmatpush.bf16.xpose.msra.mxu0 0
    %5220 = vmatpush.bf16.xpose.msra.mxu0 0
    %5221 = vmatpush.bf16.xpose.msra.mxu0 0
    %5222 = vmatpush.bf16.xpose.msra.mxu0 0
    %5223 = vmatpush.bf16.xpose.msra.mxu0 0
    %5224 = vmatpush.bf16.xpose.msra.mxu0 0
    %5225 = vmatpush.bf16.xpose.msra.mxu0 %v5216
    %5226 = vmatmul.bf16.gmra.mxu0 %v5213
    %v5227 = vpop.f32.mrf.mxu0
    %v5228 = vadd.f32 0.0, %v5227
    %v5229 = vpop.f32.mrf.mxu0
    %5230 = vdwg.mxu0
    %v5231 = vpack.i.b16 %v5179, %v5179
    %v5232 = vperm.slane %v5231, 0
    %5233 = vrot.lane.b32.xlu0 %v5232, 32
    %v5234 = vpop.permute.xlu0 %5233
    %v5236 = vsel %vm392, %v5234, 0
    %v5239 = vsel %vm392, %v5061, 0
    %5241 = vmatpush.bf16.xpose.msra.mxu0 0
    %5242 = vmatpush.bf16.xpose.msra.mxu0 0
    %5243 = vmatpush.bf16.xpose.msra.mxu0 0
    %5244 = vmatpush.bf16.xpose.msra.mxu0 0
    %5245 = vmatpush.bf16.xpose.msra.mxu0 0
    %5246 = vmatpush.bf16.xpose.msra.mxu0 0
    %5247 = vmatpush.bf16.xpose.msra.mxu0 0
    %5248 = vmatpush.bf16.xpose.msra.mxu0 %v5239
    %5249 = vmatmul.bf16.gmra.mxu0 %v5236
    %v5250 = vpop.f32.mrf.mxu0
    %v5251 = vadd.f32 0.0, %v5250
    %v5252 = vpop.f32.mrf.mxu0
    %5253 = vdwg.mxu0
    %v5254 = vpack.i.b16 %v5180, %v5180
    %v5255 = vperm.slane %v5254, 0
    %5256 = vrot.lane.b32.xlu0 %v5255, 32
    %v5257 = vpop.permute.xlu0 %5256
    %v5259 = vsel %vm392, %v5257, 0
    %v5262 = vsel %vm392, %v5062, 0
    %5264 = vmatpush.bf16.xpose.msra.mxu0 0
    %5265 = vmatpush.bf16.xpose.msra.mxu0 0
    %5266 = vmatpush.bf16.xpose.msra.mxu0 0
    %5267 = vmatpush.bf16.xpose.msra.mxu0 0
    %5268 = vmatpush.bf16.xpose.msra.mxu0 0
    %5269 = vmatpush.bf16.xpose.msra.mxu0 0
    %5270 = vmatpush.bf16.xpose.msra.mxu0 0
    %5271 = vmatpush.bf16.xpose.msra.mxu0 %v5262
    %5272 = vmatmul.bf16.gmra.mxu0 %v5259
    %v5273 = vpop.f32.mrf.mxu0
    %v5274 = vadd.f32 0.0, %v5273
    %v5275 = vpop.f32.mrf.mxu0
    %5276 = vdwg.mxu0
    %v5277 = vpack.i.b16 %v5181, %v5181
    %v5278 = vperm.slane %v5277, 0
    %5279 = vrot.lane.b32.xlu0 %v5278, 32
    %v5280 = vpop.permute.xlu0 %5279
    %v5282 = vsel %vm392, %v5280, 0
    %v5285 = vsel %vm392, %v5063, 0
    %5287 = vmatpush.bf16.xpose.msra.mxu0 0
    %5288 = vmatpush.bf16.xpose.msra.mxu0 0
    %5289 = vmatpush.bf16.xpose.msra.mxu0 0
    %5290 = vmatpush.bf16.xpose.msra.mxu0 0
    %5291 = vmatpush.bf16.xpose.msra.mxu0 0
    %5292 = vmatpush.bf16.xpose.msra.mxu0 0
    %5293 = vmatpush.bf16.xpose.msra.mxu0 0
    %5294 = vmatpush.bf16.xpose.msra.mxu0 %v5285
    %5295 = vmatmul.bf16.gmra.mxu0 %v5282
    %v5296 = vpop.f32.mrf.mxu0
    %v5297 = vadd.f32 0.0, %v5296
    %v5298 = vpop.f32.mrf.mxu0
    %5299 = vdwg.mxu0
    %v5300 = vpack.i.b16 %v5182, %v5182
    %v5301 = vperm.slane %v5300, 0
    %5302 = vrot.lane.b32.xlu0 %v5301, 32
    %v5303 = vpop.permute.xlu0 %5302
    %v5305 = vsel %vm392, %v5303, 0
    %v5308 = vsel %vm392, %v5064, 0
    %5310 = vmatpush.bf16.xpose.msra.mxu0 0
    %5311 = vmatpush.bf16.xpose.msra.mxu0 0
    %5312 = vmatpush.bf16.xpose.msra.mxu0 0
    %5313 = vmatpush.bf16.xpose.msra.mxu0 0
    %5314 = vmatpush.bf16.xpose.msra.mxu0 0
    %5315 = vmatpush.bf16.xpose.msra.mxu0 0
    %5316 = vmatpush.bf16.xpose.msra.mxu0 0
    %5317 = vmatpush.bf16.xpose.msra.mxu0 %v5308
    %5318 = vmatmul.bf16.gmra.mxu0 %v5305
    %v5319 = vpop.f32.mrf.mxu0
    %v5320 = vadd.f32 0.0, %v5319
    %v5321 = vpop.f32.mrf.mxu0
    %5322 = vdwg.mxu0
    %v5323 = vpack.i.b16 %v5183, %v5183
    %v5324 = vperm.slane %v5323, 0
    %5325 = vrot.lane.b32.xlu0 %v5324, 32
    %v5326 = vpop.permute.xlu0 %5325
    %v5328 = vsel %vm392, %v5326, 0
    %v5331 = vsel %vm392, %v5065, 0
    %5333 = vmatpush.bf16.xpose.msra.mxu0 0
    %5334 = vmatpush.bf16.xpose.msra.mxu0 0
    %5335 = vmatpush.bf16.xpose.msra.mxu0 0
    %5336 = vmatpush.bf16.xpose.msra.mxu0 0
    %5337 = vmatpush.bf16.xpose.msra.mxu0 0
    %5338 = vmatpush.bf16.xpose.msra.mxu0 0
    %5339 = vmatpush.bf16.xpose.msra.mxu0 0
    %5340 = vmatpush.bf16.xpose.msra.mxu0 %v5331
    %5341 = vmatmul.bf16.gmra.mxu0 %v5328
    %v5342 = vpop.f32.mrf.mxu0
    %v5343 = vadd.f32 0.0, %v5342
    %v5344 = vpop.f32.mrf.mxu0
    %5345 = vdwg.mxu0
    %v5346 = vpack.i.b16 %v5184, %v5184
    %v5347 = vperm.slane %v5346, 0
    %5348 = vrot.lane.b32.xlu0 %v5347, 32
    %v5349 = vpop.permute.xlu0 %5348
    %v5351 = vsel %vm392, %v5349, 0
    %v5354 = vsel %vm392, %v5066, 0
    %5356 = vmatpush.bf16.xpose.msra.mxu0 0
    %5357 = vmatpush.bf16.xpose.msra.mxu0 0
    %5358 = vmatpush.bf16.xpose.msra.mxu0 0
    %5359 = vmatpush.bf16.xpose.msra.mxu0 0
    %5360 = vmatpush.bf16.xpose.msra.mxu0 0
    %5361 = vmatpush.bf16.xpose.msra.mxu0 0
    %5362 = vmatpush.bf16.xpose.msra.mxu0 0
    %5363 = vmatpush.bf16.xpose.msra.mxu0 %v5354
    %5364 = vmatmul.bf16.gmra.mxu0 %v5351
    %v5365 = vpop.f32.mrf.mxu0
    %v5366 = vadd.f32 0.0, %v5365
    %v5367 = vpop.f32.mrf.mxu0
    %5368 = vdwg.mxu0
    %v5377 = vrot.slane %v5228, 7
    %v5378 = vsel %vm552, %v5377, %v5205
    %v5379 = vrot.slane %v5251, 6
    %v5380 = vsel %vm556, %v5379, %v5378
    %v5381 = vrot.slane %v5274, 5
    %v5382 = vsel %vm560, %v5381, %v5380
    %v5383 = vrot.slane %v5297, 4
    %v5384 = vsel %vm771, %v5383, %v5382
    %v5385 = vrot.slane %v5320, 3
    %v5386 = vsel %vm774, %v5385, %v5384
    %v5387 = vrot.slane %v5343, 2
    %v5388 = vsel %vm777, %v5387, %v5386
    %v5389 = vrot.slane %v5366, 1
    %v5390 = vsel %vm780, %v5389, %v5388
    %v5392 = vsel %vm308, -inf, %v5390
    %v5393 = vsel %vm784, %v5392, -inf
    %5394 = vmax.xlane.f32.xlu0 %v5393
    %v5395 = vpop.xlane.xlu0 %5394
    %v5396 = vsub.f32 %v5392, %v5395
    %v5397 = vmul.f32 %v5396, 1.442695
    %v5398 = vpow.pop %v5397
    %v5399 = vsel %vm784, %v5398, 0.0
    %5400 = vadd.xlane.f32.xlu0 %v5399
    %v5401 = vpop.xlane.xlu0 %5400
    %v5402 = vrcp.pop %v5401
    %v5403 = vmul.f32 %v5398, %v5402
    %v5404 = vpack.c.bf16 %v5403, %v5403
    %v5406 = vrot.slane %v5404, 3
    %v5409 = vsel %vm547, %v5404, %v5406
    %v5411 = vsel %vm552, %v5404, %v5406
    %v5413 = vrot.slane %v5411, 1
    %v5414 = vsel %vm556, %v5404, %v5406
    %v5416 = vrot.slane %v5414, 2
    %v5417 = vsel %vm560, %v5404, %v5406
    %v5419 = vrot.slane %v5417, 3
    %v5420 = vunpack.i.l.s16 %v5409
    %v5421 = vunpack.i.h.s16 %v5409
    %v5422 = vunpack.i.l.s16 %v5413
    %v5423 = vunpack.i.h.s16 %v5413
    %v5424 = vunpack.i.l.s16 %v5416
    %v5425 = vunpack.i.h.s16 %v5416
    %v5426 = vunpack.i.l.s16 %v5419
    %v5427 = vunpack.i.h.s16 %v5419
    %v5428 = vpack.i.b16 %v5420, %v5420
    %v5429 = vperm.slane %v5428, 0
    %v5431 = vsel %vm784, %v5429, 0
    %v5434 = vsel %vm825, %v5098, 0
    %5436 = vmatpush.bf16.msra.mxu0 0
    %5437 = vmatpush.bf16.msra.mxu0 0
    %5438 = vmatpush.bf16.msra.mxu0 0
    %5439 = vmatpush.bf16.msra.mxu0 0
    %5440 = vmatpush.bf16.msra.mxu0 0
    %5441 = vmatpush.bf16.msra.mxu0 0
    %5442 = vmatpush.bf16.msra.mxu0 0
    %5443 = vmatpush.bf16.msra.mxu0 %v5434
    %5444 = vmatmul.bf16.gmra.mxu0 %v5431
    %v5445 = vpop.f32.mrf.mxu0
    %v5446 = vadd.f32 0.0, %v5445
    %v5447 = vpop.f32.mrf.mxu0
    %5448 = vdwg.mxu0
    %v5449 = vpack.i.b16 %v5421, %v5421
    %v5450 = vperm.slane %v5449, 0
    %v5452 = vsel %vm784, %v5450, 0
    %v5455 = vsel %vm825, %v5099, 0
    %5457 = vmatpush.bf16.msra.mxu0 0
    %5458 = vmatpush.bf16.msra.mxu0 0
    %5459 = vmatpush.bf16.msra.mxu0 0
    %5460 = vmatpush.bf16.msra.mxu0 0
    %5461 = vmatpush.bf16.msra.mxu0 0
    %5462 = vmatpush.bf16.msra.mxu0 0
    %5463 = vmatpush.bf16.msra.mxu0 0
    %5464 = vmatpush.bf16.msra.mxu0 %v5455
    %5465 = vmatmul.bf16.gmra.mxu0 %v5452
    %v5466 = vpop.f32.mrf.mxu0
    %v5467 = vadd.f32 0.0, %v5466
    %v5468 = vpop.f32.mrf.mxu0
    %5469 = vdwg.mxu0
    %v5470 = vpack.i.b16 %v5422, %v5422
    %v5471 = vperm.slane %v5470, 0
    %v5473 = vsel %vm784, %v5471, 0
    %v5476 = vsel %vm825, %v5100, 0
    %5478 = vmatpush.bf16.msra.mxu0 0
    %5479 = vmatpush.bf16.msra.mxu0 0
    %5480 = vmatpush.bf16.msra.mxu0 0
    %5481 = vmatpush.bf16.msra.mxu0 0
    %5482 = vmatpush.bf16.msra.mxu0 0
    %5483 = vmatpush.bf16.msra.mxu0 0
    %5484 = vmatpush.bf16.msra.mxu0 0
    %5485 = vmatpush.bf16.msra.mxu0 %v5476
    %5486 = vmatmul.bf16.gmra.mxu0 %v5473
    %v5487 = vpop.f32.mrf.mxu0
    %v5488 = vadd.f32 0.0, %v5487
    %v5489 = vpop.f32.mrf.mxu0
    %5490 = vdwg.mxu0
    %v5491 = vpack.i.b16 %v5423, %v5423
    %v5492 = vperm.slane %v5491, 0
    %v5494 = vsel %vm784, %v5492, 0
    %v5497 = vsel %vm825, %v5101, 0
    %5499 = vmatpush.bf16.msra.mxu0 0
    %5500 = vmatpush.bf16.msra.mxu0 0
    %5501 = vmatpush.bf16.msra.mxu0 0
    %5502 = vmatpush.bf16.msra.mxu0 0
    %5503 = vmatpush.bf16.msra.mxu0 0
    %5504 = vmatpush.bf16.msra.mxu0 0
    %5505 = vmatpush.bf16.msra.mxu0 0
    %5506 = vmatpush.bf16.msra.mxu0 %v5497
    %5507 = vmatmul.bf16.gmra.mxu0 %v5494
    %v5508 = vpop.f32.mrf.mxu0
    %v5509 = vadd.f32 0.0, %v5508
    %v5510 = vpop.f32.mrf.mxu0
    %5511 = vdwg.mxu0
    %v5512 = vpack.i.b16 %v5424, %v5424
    %v5513 = vperm.slane %v5512, 0
    %v5515 = vsel %vm784, %v5513, 0
    %v5518 = vsel %vm825, %v5102, 0
    %5520 = vmatpush.bf16.msra.mxu0 0
    %5521 = vmatpush.bf16.msra.mxu0 0
    %5522 = vmatpush.bf16.msra.mxu0 0
    %5523 = vmatpush.bf16.msra.mxu0 0
    %5524 = vmatpush.bf16.msra.mxu0 0
    %5525 = vmatpush.bf16.msra.mxu0 0
    %5526 = vmatpush.bf16.msra.mxu0 0
    %5527 = vmatpush.bf16.msra.mxu0 %v5518
    %5528 = vmatmul.bf16.gmra.mxu0 %v5515
    %v5529 = vpop.f32.mrf.mxu0
    %v5530 = vadd.f32 0.0, %v5529
    %v5531 = vpop.f32.mrf.mxu0
    %5532 = vdwg.mxu0
    %v5533 = vpack.i.b16 %v5425, %v5425
    %v5534 = vperm.slane %v5533, 0
    %v5536 = vsel %vm784, %v5534, 0
    %v5539 = vsel %vm825, %v5103, 0
    %5541 = vmatpush.bf16.msra.mxu0 0
    %5542 = vmatpush.bf16.msra.mxu0 0
    %5543 = vmatpush.bf16.msra.mxu0 0
    %5544 = vmatpush.bf16.msra.mxu0 0
    %5545 = vmatpush.bf16.msra.mxu0 0
    %5546 = vmatpush.bf16.msra.mxu0 0
    %5547 = vmatpush.bf16.msra.mxu0 0
    %5548 = vmatpush.bf16.msra.mxu0 %v5539
    %5549 = vmatmul.bf16.gmra.mxu0 %v5536
    %v5550 = vpop.f32.mrf.mxu0
    %v5551 = vadd.f32 0.0, %v5550
    %v5552 = vpop.f32.mrf.mxu0
    %5553 = vdwg.mxu0
    %v5554 = vpack.i.b16 %v5426, %v5426
    %v5555 = vperm.slane %v5554, 0
    %v5557 = vsel %vm784, %v5555, 0
    %v5560 = vsel %vm825, %v5104, 0
    %5562 = vmatpush.bf16.msra.mxu0 0
    %5563 = vmatpush.bf16.msra.mxu0 0
    %5564 = vmatpush.bf16.msra.mxu0 0
    %5565 = vmatpush.bf16.msra.mxu0 0
    %5566 = vmatpush.bf16.msra.mxu0 0
    %5567 = vmatpush.bf16.msra.mxu0 0
    %5568 = vmatpush.bf16.msra.mxu0 0
    %5569 = vmatpush.bf16.msra.mxu0 %v5560
    %5570 = vmatmul.bf16.gmra.mxu0 %v5557
    %v5571 = vpop.f32.mrf.mxu0
    %v5572 = vadd.f32 0.0, %v5571
    %v5573 = vpop.f32.mrf.mxu0
    %5574 = vdwg.mxu0
    %v5575 = vpack.i.b16 %v5427, %v5427
    %v5576 = vperm.slane %v5575, 0
    %v5578 = vsel %vm784, %v5576, 0
    %v5581 = vsel %vm825, %v5105, 0
    %5583 = vmatpush.bf16.msra.mxu0 0
    %5584 = vmatpush.bf16.msra.mxu0 0
    %5585 = vmatpush.bf16.msra.mxu0 0
    %5586 = vmatpush.bf16.msra.mxu0 0
    %5587 = vmatpush.bf16.msra.mxu0 0
    %5588 = vmatpush.bf16.msra.mxu0 0
    %5589 = vmatpush.bf16.msra.mxu0 0
    %5590 = vmatpush.bf16.msra.mxu0 %v5581
    %5591 = vmatmul.bf16.gmra.mxu0 %v5578
    %v5592 = vpop.f32.mrf.mxu0
    %v5593 = vadd.f32 0.0, %v5592
    %v5594 = vpop.f32.mrf.mxu0
    %5595 = vdwg.mxu0
    %v5596 = vunpack.c.l.b16 %v5161
    %v5597 = vpack.c.b16 %v5596, %v5596
    %5598 = vrot.lane.b32.xlu0 %v5597, 32
    %v5599 = vpop.permute.xlu0 %5598
    %v5601 = vsel %vm392, %v5599, 0
    %5603 = vmatpush.bf16.msra.mxu0 0
    %5604 = vmatpush.bf16.msra.mxu0 0
    %5605 = vmatpush.bf16.msra.mxu0 0
    %5606 = vmatpush.bf16.msra.mxu0 0
    %5607 = vmatpush.bf16.msra.mxu0 0
    %5608 = vmatpush.bf16.msra.mxu0 0
    %5609 = vmatpush.bf16.msra.mxu0 %v5109
    %5610 = vmatpush.bf16.msra.mxu0 %v5108
    %5611 = vmatmul.bf16.gmra.mxu0 %v5601
    %v5612 = vpop.f32.mrf.mxu0
    %v5613 = vadd.f32 0.0, %v5612
    %v5614 = vpop.f32.mrf.mxu0
    %5615 = vdwg.mxu0
    %v5617 = vrot.slane %v5613, 1
    %v5618 = vrot.slane %v5613, 2
    %v5619 = vrot.slane %v5613, 3
    %v5620 = vrot.slane %v5613, 4
    %v5621 = vrot.slane %v5613, 5
    %v5622 = vrot.slane %v5613, 6
    %v5623 = vrot.slane %v5613, 7
    %v5632 = vadd.f32 %v5446, %v5613
    %v5633 = vadd.f32 %v5467, %v5617
    %v5634 = vadd.f32 %v5488, %v5618
    %v5635 = vadd.f32 %v5509, %v5619
    %v5636 = vadd.f32 %v5530, %v5620
    %v5637 = vadd.f32 %v5551, %v5621
    %v5638 = vadd.f32 %v5572, %v5622
    %v5639 = vadd.f32 %v5593, %v5623
    %v5640 = vtanh.pop %v5632
    %v5641 = vtanh.pop %v5633
    %v5642 = vtanh.pop %v5634
    %v5643 = vtanh.pop %v5635
    %v5644 = vtanh.pop %v5636
    %v5645 = vtanh.pop %v5637
    %v5646 = vtanh.pop %v5638
    %v5647 = vtanh.pop %v5639
    %v5648 = vpack.c.bf16 %v5640, %v5640
    %v5649 = vpack.c.bf16 %v5641, %v5641
    %v5650 = vpack.c.bf16 %v5642, %v5642
    %v5651 = vpack.c.bf16 %v5643, %v5643
    %v5652 = vpack.c.bf16 %v5644, %v5644
    %v5653 = vpack.c.bf16 %v5645, %v5645
    %v5654 = vpack.c.bf16 %v5646, %v5646
    %v5655 = vpack.c.bf16 %v5647, %v5647
    %v5664 = vunpack.c.l.b16 %v5648
    %v5665 = vunpack.c.l.b16 %v5649
    %v5666 = vunpack.c.l.b16 %v5650
    %v5667 = vunpack.c.l.b16 %v5651
    %v5668 = vunpack.c.l.b16 %v5652
    %v5669 = vunpack.c.l.b16 %v5653
    %v5670 = vunpack.c.l.b16 %v5654
    %v5671 = vunpack.c.l.b16 %v5655
    %v5672 = vrot.slane %v5665, 7
    %v5673 = vsel %vm552, %v5672, %v5664
    %v5674 = vrot.slane %v5666, 6
    %v5675 = vsel %vm556, %v5674, %v5673
    %v5676 = vrot.slane %v5667, 5
    %v5677 = vsel %vm560, %v5676, %v5675
    %v5678 = vrot.slane %v5668, 4
    %v5679 = vsel %vm771, %v5678, %v5677
    %v5680 = vrot.slane %v5669, 3
    %v5681 = vsel %vm774, %v5680, %v5679
    %v5682 = vrot.slane %v5670, 2
    %v5683 = vsel %vm777, %v5682, %v5681
    %v5684 = vrot.slane %v5671, 1
    %v5685 = vsel %vm780, %v5684, %v5683
    %v5686 = vpack.c.b16 %v5685, %v5685
    %v5688 = vsel %vm392, %v5686, 0
    %5690 = vmatpush.bf16.msra.mxu0 0
    %5691 = vmatpush.bf16.msra.mxu0 0
    %5692 = vmatpush.bf16.msra.mxu0 0
    %5693 = vmatpush.bf16.msra.mxu0 0
    %5694 = vmatpush.bf16.msra.mxu0 0
    %5695 = vmatpush.bf16.msra.mxu0 0
    %5696 = vmatpush.bf16.msra.mxu0 %v5107
    %5697 = vmatpush.bf16.msra.mxu0 %v5106
    %5698 = vmatmul.bf16.gmra.mxu0 %v5688
    %v5699 = vpop.f32.mrf.mxu0
    %v5700 = vadd.f32 0.0, %v5699
    %v5701 = vpop.f32.mrf.mxu0
    %5702 = vdwg.mxu0
    %v5703 = vadd.f32 %v5011, %v5700
    %v5704 = vxor.u32 %v5703, 2147483648
    %v5705 = vmul.f32 %v5704, 1.442695
    %v5706 = vpow.pop %v5705
    %v5707 = vadd.f32 %v5706, 1.0
    %v5708 = vrcp.pop %v5707
    %v5709 = vmul.f32 %v5707, %v5708
    %v5710 = vsub.f32 1.0, %v5709
    %v5711 = vmul.f32 %v5708, %v5710
    %v5712 = vadd.f32 %v5708, %v5711
    %vm5713 = vweird.f32 %v5707
    %vm5714 = vweird.f32 %v5708
    %vm5715 = vmor %vm5713, %vm5714
    %v5716 = vsel %vm5715, %v5708, %v5712
    %v5717 = vand.u32 2147483647, %v5707
    %vm5718 = vcmp.eq.f32.partialorder %v5717, 8.507059e+37
    %v5719 = vand.u32 %v5707, 2147483648
    %v5720 = vor.u32 1.1754944e-38, %v5719
    %v5721 = vsel %vm5718, %v5720, %v5716
    %v5722 = vmul.f32 1.0, %v5721
    %v5723 = vtanh.pop %v5703
    %v5724 = vmul.f32 %v5722, %v5154
    %5726 = vrot.lane.b32.xlu0 %v5723, 64
    %v5727 = vpop.permute.xlu0 %5726
    %v5729 = vmul.f32 %v5722, %v5727
    %5731 = vrot.lane.b32.xlu0 %v5729, 32
    %v5732 = vpop.permute.xlu0 %5731
    %v5734 = vadd.f32 %v5724, %v5732
    %v5735 = vtanh.pop %v5734
    %5737 = vrot.lane.b32.xlu0 %v5735, 64
    %v5738 = vpop.permute.xlu0 %5737
    %v5740 = vmul.f32 %v5722, %v5738
    %v5741 = vpack.c.bf16 %v5740, %v5740
    %v5743 = vrot.slane %v5741, 3
    %v5746 = vsel %vm547, %v5741, %v5743
    %v5748 = vsel %vm552, %v5741, %v5743
    %v5750 = vrot.slane %v5748, 1
    %v5751 = vsel %vm556, %v5741, %v5743
    %v5753 = vrot.slane %v5751, 2
    %v5754 = vsel %vm560, %v5741, %v5743
    %v5756 = vrot.slane %v5754, 3
    %v5757 = vunpack.i.l.s16 %v5746
    %v5758 = vunpack.i.h.s16 %v5746
    %v5759 = vunpack.i.l.s16 %v5750
    %v5760 = vunpack.i.h.s16 %v5750
    %v5761 = vunpack.i.l.s16 %v5753
    %v5762 = vunpack.i.h.s16 %v5753
    %v5763 = vunpack.i.l.s16 %v5756
    %v5764 = vunpack.i.h.s16 %v5756
    %v5765 = vpack.i.b16 %v5757, %v5757
    %v5766 = vperm.slane %v5765, 0
    %5767 = vrot.lane.b32.xlu0 %v5766, 32
    %v5768 = vpop.permute.xlu0 %5767
    %v5770 = vsel %vm392, %v5768, 0
    %5772 = vmatpush.bf16.xpose.msra.mxu0 0
    %5773 = vmatpush.bf16.xpose.msra.mxu0 0
    %5774 = vmatpush.bf16.xpose.msra.mxu0 0
    %5775 = vmatpush.bf16.xpose.msra.mxu0 0
    %5776 = vmatpush.bf16.xpose.msra.mxu0 0
    %5777 = vmatpush.bf16.xpose.msra.mxu0 0
    %5778 = vmatpush.bf16.xpose.msra.mxu0 0
    %5779 = vmatpush.bf16.xpose.msra.mxu0 %v5193
    %5780 = vmatmul.bf16.gmra.mxu0 %v5770
    %v5781 = vpop.f32.mrf.mxu0
    %v5782 = vadd.f32 0.0, %v5781
    %v5783 = vpop.f32.mrf.mxu0
    %5784 = vdwg.mxu0
    %v5785 = vpack.i.b16 %v5758, %v5758
    %v5786 = vperm.slane %v5785, 0
    %5787 = vrot.lane.b32.xlu0 %v5786, 32
    %v5788 = vpop.permute.xlu0 %5787
    %v5790 = vsel %vm392, %v5788, 0
    %5792 = vmatpush.bf16.xpose.msra.mxu0 0
    %5793 = vmatpush.bf16.xpose.msra.mxu0 0
    %5794 = vmatpush.bf16.xpose.msra.mxu0 0
    %5795 = vmatpush.bf16.xpose.msra.mxu0 0
    %5796 = vmatpush.bf16.xpose.msra.mxu0 0
    %5797 = vmatpush.bf16.xpose.msra.mxu0 0
    %5798 = vmatpush.bf16.xpose.msra.mxu0 0
    %5799 = vmatpush.bf16.xpose.msra.mxu0 %v5216
    %5800 = vmatmul.bf16.gmra.mxu0 %v5790
    %v5801 = vpop.f32.mrf.mxu0
    %v5802 = vadd.f32 0.0, %v5801
    %v5803 = vpop.f32.mrf.mxu0
    %5804 = vdwg.mxu0
    %v5805 = vpack.i.b16 %v5759, %v5759
    %v5806 = vperm.slane %v5805, 0
    %5807 = vrot.lane.b32.xlu0 %v5806, 32
    %v5808 = vpop.permute.xlu0 %5807
    %v5810 = vsel %vm392, %v5808, 0
    %5812 = vmatpush.bf16.xpose.msra.mxu0 0
    %5813 = vmatpush.bf16.xpose.msra.mxu0 0
    %5814 = vmatpush.bf16.xpose.msra.mxu0 0
    %5815 = vmatpush.bf16.xpose.msra.mxu0 0
    %5816 = vmatpush.bf16.xpose.msra.mxu0 0
    %5817 = vmatpush.bf16.xpose.msra.mxu0 0
    %5818 = vmatpush.bf16.xpose.msra.mxu0 0
    %5819 = vmatpush.bf16.xpose.msra.mxu0 %v5239
    %5820 = vmatmul.bf16.gmra.mxu0 %v5810
    %v5821 = vpop.f32.mrf.mxu0
    %v5822 = vadd.f32 0.0, %v5821
    %v5823 = vpop.f32.mrf.mxu0
    %5824 = vdwg.mxu0
    %v5825 = vpack.i.b16 %v5760, %v5760
    %v5826 = vperm.slane %v5825, 0
    %5827 = vrot.lane.b32.xlu0 %v5826, 32
    %v5828 = vpop.permute.xlu0 %5827
    %v5830 = vsel %vm392, %v5828, 0
    %5832 = vmatpush.bf16.xpose.msra.mxu0 0
    %5833 = vmatpush.bf16.xpose.msra.mxu0 0
    %5834 = vmatpush.bf16.xpose.msra.mxu0 0
    %5835 = vmatpush.bf16.xpose.msra.mxu0 0
    %5836 = vmatpush.bf16.xpose.msra.mxu0 0
    %5837 = vmatpush.bf16.xpose.msra.mxu0 0
    %5838 = vmatpush.bf16.xpose.msra.mxu0 0
    %5839 = vmatpush.bf16.xpose.msra.mxu0 %v5262
    %5840 = vmatmul.bf16.gmra.mxu0 %v5830
    %v5841 = vpop.f32.mrf.mxu0
    %v5842 = vadd.f32 0.0, %v5841
    %v5843 = vpop.f32.mrf.mxu0
    %5844 = vdwg.mxu0
    %v5845 = vpack.i.b16 %v5761, %v5761
    %v5846 = vperm.slane %v5845, 0
    %5847 = vrot.lane.b32.xlu0 %v5846, 32
    %v5848 = vpop.permute.xlu0 %5847
    %v5850 = vsel %vm392, %v5848, 0
    %5852 = vmatpush.bf16.xpose.msra.mxu0 0
    %5853 = vmatpush.bf16.xpose.msra.mxu0 0
    %5854 = vmatpush.bf16.xpose.msra.mxu0 0
    %5855 = vmatpush.bf16.xpose.msra.mxu0 0
    %5856 = vmatpush.bf16.xpose.msra.mxu0 0
    %5857 = vmatpush.bf16.xpose.msra.mxu0 0
    %5858 = vmatpush.bf16.xpose.msra.mxu0 0
    %5859 = vmatpush.bf16.xpose.msra.mxu0 %v5285
    %5860 = vmatmul.bf16.gmra.mxu0 %v5850
    %v5861 = vpop.f32.mrf.mxu0
    %v5862 = vadd.f32 0.0, %v5861
    %v5863 = vpop.f32.mrf.mxu0
    %5864 = vdwg.mxu0
    %v5865 = vpack.i.b16 %v5762, %v5762
    %v5866 = vperm.slane %v5865, 0
    %5867 = vrot.lane.b32.xlu0 %v5866, 32
    %v5868 = vpop.permute.xlu0 %5867
    %v5870 = vsel %vm392, %v5868, 0
    %5872 = vmatpush.bf16.xpose.msra.mxu0 0
    %5873 = vmatpush.bf16.xpose.msra.mxu0 0
    %5874 = vmatpush.bf16.xpose.msra.mxu0 0
    %5875 = vmatpush.bf16.xpose.msra.mxu0 0
    %5876 = vmatpush.bf16.xpose.msra.mxu0 0
    %5877 = vmatpush.bf16.xpose.msra.mxu0 0
    %5878 = vmatpush.bf16.xpose.msra.mxu0 0
    %5879 = vmatpush.bf16.xpose.msra.mxu0 %v5308
    %5880 = vmatmul.bf16.gmra.mxu0 %v5870
    %v5881 = vpop.f32.mrf.mxu0
    %v5882 = vadd.f32 0.0, %v5881
    %v5883 = vpop.f32.mrf.mxu0
    %5884 = vdwg.mxu0
    %v5885 = vpack.i.b16 %v5763, %v5763
    %v5886 = vperm.slane %v5885, 0
    %5887 = vrot.lane.b32.xlu0 %v5886, 32
    %v5888 = vpop.permute.xlu0 %5887
    %v5890 = vsel %vm392, %v5888, 0
    %5892 = vmatpush.bf16.xpose.msra.mxu0 0
    %5893 = vmatpush.bf16.xpose.msra.mxu0 0
    %5894 = vmatpush.bf16.xpose.msra.mxu0 0
    %5895 = vmatpush.bf16.xpose.msra.mxu0 0
    %5896 = vmatpush.bf16.xpose.msra.mxu0 0
    %5897 = vmatpush.bf16.xpose.msra.mxu0 0
    %5898 = vmatpush.bf16.xpose.msra.mxu0 0
    %5899 = vmatpush.bf16.xpose.msra.mxu0 %v5331
    %5900 = vmatmul.bf16.gmra.mxu0 %v5890
    %v5901 = vpop.f32.mrf.mxu0
    %v5902 = vadd.f32 0.0, %v5901
    %v5903 = vpop.f32.mrf.mxu0
    %5904 = vdwg.mxu0
    %v5905 = vpack.i.b16 %v5764, %v5764
    %v5906 = vperm.slane %v5905, 0
    %5907 = vrot.lane.b32.xlu0 %v5906, 32
    %v5908 = vpop.permute.xlu0 %5907
    %v5910 = vsel %vm392, %v5908, 0
    %5912 = vmatpush.bf16.xpose.msra.mxu0 0
    %5913 = vmatpush.bf16.xpose.msra.mxu0 0
    %5914 = vmatpush.bf16.xpose.msra.mxu0 0
    %5915 = vmatpush.bf16.xpose.msra.mxu0 0
    %5916 = vmatpush.bf16.xpose.msra.mxu0 0
    %5917 = vmatpush.bf16.xpose.msra.mxu0 0
    %5918 = vmatpush.bf16.xpose.msra.mxu0 0
    %5919 = vmatpush.bf16.xpose.msra.mxu0 %v5354
    %5920 = vmatmul.bf16.gmra.mxu0 %v5910
    %v5921 = vpop.f32.mrf.mxu0
    %v5922 = vadd.f32 0.0, %v5921
    %v5923 = vpop.f32.mrf.mxu0
    %5924 = vdwg.mxu0
    %v5933 = vrot.slane %v5802, 7
    %v5934 = vsel %vm552, %v5933, %v5782
    %v5935 = vrot.slane %v5822, 6
    %v5936 = vsel %vm556, %v5935, %v5934
    %v5937 = vrot.slane %v5842, 5
    %v5938 = vsel %vm560, %v5937, %v5936
    %v5939 = vrot.slane %v5862, 4
    %v5940 = vsel %vm771, %v5939, %v5938
    %v5941 = vrot.slane %v5882, 3
    %v5942 = vsel %vm774, %v5941, %v5940
    %v5943 = vrot.slane %v5902, 2
    %v5944 = vsel %vm777, %v5943, %v5942
    %v5945 = vrot.slane %v5922, 1
    %v5946 = vsel %vm780, %v5945, %v5944
    %v5948 = vsel %vm308, -inf, %v5946
    %v5949 = vsel %vm784, %v5948, -inf
    %5950 = vmax.xlane.f32.xlu0 %v5949
    %v5951 = vpop.xlane.xlu0 %5950
    %v5952 = vsub.f32 %v5948, %v5951
    %v5953 = vmul.f32 %v5952, 1.442695
    %v5954 = vpow.pop %v5953
    %v5955 = vsel %vm784, %v5954, 0.0
    %5956 = vadd.xlane.f32.xlu0 %v5955
    %v5957 = vpop.xlane.xlu0 %5956
    %v5958 = vrcp.pop %v5957
    %v5959 = vmul.f32 %v5954, %v5958
    %v5960 = vpack.c.bf16 %v5959, %v5959
    %v5962 = vrot.slane %v5960, 3
    %v5965 = vsel %vm547, %v5960, %v5962
    %v5967 = vsel %vm552, %v5960, %v5962
    %v5969 = vrot.slane %v5967, 1
    %v5970 = vsel %vm556, %v5960, %v5962
    %v5972 = vrot.slane %v5970, 2
    %v5973 = vsel %vm560, %v5960, %v5962
    %v5975 = vrot.slane %v5973, 3
    %v5976 = vunpack.i.l.s16 %v5965
    %v5977 = vunpack.i.h.s16 %v5965
    %v5978 = vunpack.i.l.s16 %v5969
    %v5979 = vunpack.i.h.s16 %v5969
    %v5980 = vunpack.i.l.s16 %v5972
    %v5981 = vunpack.i.h.s16 %v5972
    %v5982 = vunpack.i.l.s16 %v5975
    %v5983 = vunpack.i.h.s16 %v5975
    %v5984 = vpack.i.b16 %v5976, %v5976
    %v5985 = vperm.slane %v5984, 0
    %v5987 = vsel %vm784, %v5985, 0
    %5989 = vmatpush.bf16.msra.mxu0 0
    %5990 = vmatpush.bf16.msra.mxu0 0
    %5991 = vmatpush.bf16.msra.mxu0 0
    %5992 = vmatpush.bf16.msra.mxu0 0
    %5993 = vmatpush.bf16.msra.mxu0 0
    %5994 = vmatpush.bf16.msra.mxu0 0
    %5995 = vmatpush.bf16.msra.mxu0 0
    %5996 = vmatpush.bf16.msra.mxu0 %v5434
    %5997 = vmatmul.bf16.gmra.mxu0 %v5987
    %v5998 = vpop.f32.mrf.mxu0
    %v5999 = vadd.f32 0.0, %v5998
    %v6000 = vpop.f32.mrf.mxu0
    %6001 = vdwg.mxu0
    %v6002 = vpack.i.b16 %v5977, %v5977
    %v6003 = vperm.slane %v6002, 0
    %v6005 = vsel %vm784, %v6003, 0
    %6007 = vmatpush.bf16.msra.mxu0 0
    %6008 = vmatpush.bf16.msra.mxu0 0
    %6009 = vmatpush.bf16.msra.mxu0 0
    %6010 = vmatpush.bf16.msra.mxu0 0
    %6011 = vmatpush.bf16.msra.mxu0 0
    %6012 = vmatpush.bf16.msra.mxu0 0
    %6013 = vmatpush.bf16.msra.mxu0 0
    %6014 = vmatpush.bf16.msra.mxu0 %v5455
    %6015 = vmatmul.bf16.gmra.mxu0 %v6005
    %v6016 = vpop.f32.mrf.mxu0
    %v6017 = vadd.f32 0.0, %v6016
    %v6018 = vpop.f32.mrf.mxu0
    %6019 = vdwg.mxu0
    %v6020 = vpack.i.b16 %v5978, %v5978
    %v6021 = vperm.slane %v6020, 0
    %v6023 = vsel %vm784, %v6021, 0
    %6025 = vmatpush.bf16.msra.mxu0 0
    %6026 = vmatpush.bf16.msra.mxu0 0
    %6027 = vmatpush.bf16.msra.mxu0 0
    %6028 = vmatpush.bf16.msra.mxu0 0
    %6029 = vmatpush.bf16.msra.mxu0 0
    %6030 = vmatpush.bf16.msra.mxu0 0
    %6031 = vmatpush.bf16.msra.mxu0 0
    %6032 = vmatpush.bf16.msra.mxu0 %v5476
    %6033 = vmatmul.bf16.gmra.mxu0 %v6023
    %v6034 = vpop.f32.mrf.mxu0
    %v6035 = vadd.f32 0.0, %v6034
    %v6036 = vpop.f32.mrf.mxu0
    %6037 = vdwg.mxu0
    %v6038 = vpack.i.b16 %v5979, %v5979
    %v6039 = vperm.slane %v6038, 0
    %v6041 = vsel %vm784, %v6039, 0
    %6043 = vmatpush.bf16.msra.mxu0 0
    %6044 = vmatpush.bf16.msra.mxu0 0
    %6045 = vmatpush.bf16.msra.mxu0 0
    %6046 = vmatpush.bf16.msra.mxu0 0
    %6047 = vmatpush.bf16.msra.mxu0 0
    %6048 = vmatpush.bf16.msra.mxu0 0
    %6049 = vmatpush.bf16.msra.mxu0 0
    %6050 = vmatpush.bf16.msra.mxu0 %v5497
    %6051 = vmatmul.bf16.gmra.mxu0 %v6041
    %v6052 = vpop.f32.mrf.mxu0
    %v6053 = vadd.f32 0.0, %v6052
    %v6054 = vpop.f32.mrf.mxu0
    %6055 = vdwg.mxu0
    %v6056 = vpack.i.b16 %v5980, %v5980
    %v6057 = vperm.slane %v6056, 0
    %v6059 = vsel %vm784, %v6057, 0
    %6061 = vmatpush.bf16.msra.mxu0 0
    %6062 = vmatpush.bf16.msra.mxu0 0
    %6063 = vmatpush.bf16.msra.mxu0 0
    %6064 = vmatpush.bf16.msra.mxu0 0
    %6065 = vmatpush.bf16.msra.mxu0 0
    %6066 = vmatpush.bf16.msra.mxu0 0
    %6067 = vmatpush.bf16.msra.mxu0 0
    %6068 = vmatpush.bf16.msra.mxu0 %v5518
    %6069 = vmatmul.bf16.gmra.mxu0 %v6059
    %v6070 = vpop.f32.mrf.mxu0
    %v6071 = vadd.f32 0.0, %v6070
    %v6072 = vpop.f32.mrf.mxu0
    %6073 = vdwg.mxu0
    %v6074 = vpack.i.b16 %v5981, %v5981
    %v6075 = vperm.slane %v6074, 0
    %v6077 = vsel %vm784, %v6075, 0
    %6079 = vmatpush.bf16.msra.mxu0 0
    %6080 = vmatpush.bf16.msra.mxu0 0
    %6081 = vmatpush.bf16.msra.mxu0 0
    %6082 = vmatpush.bf16.msra.mxu0 0
    %6083 = vmatpush.bf16.msra.mxu0 0
    %6084 = vmatpush.bf16.msra.mxu0 0
    %6085 = vmatpush.bf16.msra.mxu0 0
    %6086 = vmatpush.bf16.msra.mxu0 %v5539
    %6087 = vmatmul.bf16.gmra.mxu0 %v6077
    %v6088 = vpop.f32.mrf.mxu0
    %v6089 = vadd.f32 0.0, %v6088
    %v6090 = vpop.f32.mrf.mxu0
    %6091 = vdwg.mxu0
    %v6092 = vpack.i.b16 %v5982, %v5982
    %v6093 = vperm.slane %v6092, 0
    %v6095 = vsel %vm784, %v6093, 0
    %6097 = vmatpush.bf16.msra.mxu0 0
    %6098 = vmatpush.bf16.msra.mxu0 0
    %6099 = vmatpush.bf16.msra.mxu0 0
    %6100 = vmatpush.bf16.msra.mxu0 0
    %6101 = vmatpush.bf16.msra.mxu0 0
    %6102 = vmatpush.bf16.msra.mxu0 0
    %6103 = vmatpush.bf16.msra.mxu0 0
    %6104 = vmatpush.bf16.msra.mxu0 %v5560
    %6105 = vmatmul.bf16.gmra.mxu0 %v6095
    %v6106 = vpop.f32.mrf.mxu0
    %v6107 = vadd.f32 0.0, %v6106
    %v6108 = vpop.f32.mrf.mxu0
    %6109 = vdwg.mxu0
    %v6110 = vpack.i.b16 %v5983, %v5983
    %v6111 = vperm.slane %v6110, 0
    %v6113 = vsel %vm784, %v6111, 0
    %6115 = vmatpush.bf16.msra.mxu0 0
    %6116 = vmatpush.bf16.msra.mxu0 0
    %6117 = vmatpush.bf16.msra.mxu0 0
    %6118 = vmatpush.bf16.msra.mxu0 0
    %6119 = vmatpush.bf16.msra.mxu0 0
    %6120 = vmatpush.bf16.msra.mxu0 0
    %6121 = vmatpush.bf16.msra.mxu0 0
    %6122 = vmatpush.bf16.msra.mxu0 %v5581
    %6123 = vmatmul.bf16.gmra.mxu0 %v6113
    %v6124 = vpop.f32.mrf.mxu0
    %v6125 = vadd.f32 0.0, %v6124
    %v6126 = vpop.f32.mrf.mxu0
    %6127 = vdwg.mxu0
    %v6128 = vunpack.c.l.b16 %v5741
    %v6129 = vpack.c.b16 %v6128, %v6128
    %6130 = vrot.lane.b32.xlu0 %v6129, 32
    %v6131 = vpop.permute.xlu0 %6130
    %v6133 = vsel %vm392, %v6131, 0
    %6135 = vmatpush.bf16.msra.mxu0 0
    %6136 = vmatpush.bf16.msra.mxu0 0
    %6137 = vmatpush.bf16.msra.mxu0 0
    %6138 = vmatpush.bf16.msra.mxu0 0
    %6139 = vmatpush.bf16.msra.mxu0 0
    %6140 = vmatpush.bf16.msra.mxu0 0
    %6141 = vmatpush.bf16.msra.mxu0 %v5109
    %6142 = vmatpush.bf16.msra.mxu0 %v5108
    %6143 = vmatmul.bf16.gmra.mxu0 %v6133
    %v6144 = vpop.f32.mrf.mxu0
    %v6145 = vadd.f32 0.0, %v6144
    %v6146 = vpop.f32.mrf.mxu0
    %6147 = vdwg.mxu0
    %v6149 = vrot.slane %v6145, 1
    %v6150 = vrot.slane %v6145, 2
    %v6151 = vrot.slane %v6145, 3
    %v6152 = vrot.slane %v6145, 4
    %v6153 = vrot.slane %v6145, 5
    %v6154 = vrot.slane %v6145, 6
    %v6155 = vrot.slane %v6145, 7
    %v6164 = vadd.f32 %v5999, %v6145
    %v6165 = vadd.f32 %v6017, %v6149
    %v6166 = vadd.f32 %v6035, %v6150
    %v6167 = vadd.f32 %v6053, %v6151
    %v6168 = vadd.f32 %v6071, %v6152
    %v6169 = vadd.f32 %v6089, %v6153
    %v6170 = vadd.f32 %v6107, %v6154
    %v6171 = vadd.f32 %v6125, %v6155
    %v6172 = vtanh.pop %v6164
    %v6173 = vtanh.pop %v6165
    %v6174 = vtanh.pop %v6166
    %v6175 = vtanh.pop %v6167
    %v6176 = vtanh.pop %v6168
    %v6177 = vtanh.pop %v6169
    %v6178 = vtanh.pop %v6170
    %v6179 = vtanh.pop %v6171
    %v6180 = vpack.c.bf16 %v6172, %v6172
    %v6181 = vpack.c.bf16 %v6173, %v6173
    %v6182 = vpack.c.bf16 %v6174, %v6174
    %v6183 = vpack.c.bf16 %v6175, %v6175
    %v6184 = vpack.c.bf16 %v6176, %v6176
    %v6185 = vpack.c.bf16 %v6177, %v6177
    %v6186 = vpack.c.bf16 %v6178, %v6178
    %v6187 = vpack.c.bf16 %v6179, %v6179
    %v6196 = vunpack.c.l.b16 %v6180
    %v6197 = vunpack.c.l.b16 %v6181
    %v6198 = vunpack.c.l.b16 %v6182
    %v6199 = vunpack.c.l.b16 %v6183
    %v6200 = vunpack.c.l.b16 %v6184
    %v6201 = vunpack.c.l.b16 %v6185
    %v6202 = vunpack.c.l.b16 %v6186
    %v6203 = vunpack.c.l.b16 %v6187
    %v6204 = vrot.slane %v6197, 7
    %v6205 = vsel %vm552, %v6204, %v6196
    %v6206 = vrot.slane %v6198, 6
    %v6207 = vsel %vm556, %v6206, %v6205
    %v6208 = vrot.slane %v6199, 5
    %v6209 = vsel %vm560, %v6208, %v6207
    %v6210 = vrot.slane %v6200, 4
    %v6211 = vsel %vm771, %v6210, %v6209
    %v6212 = vrot.slane %v6201, 3
    %v6213 = vsel %vm774, %v6212, %v6211
    %v6214 = vrot.slane %v6202, 2
    %v6215 = vsel %vm777, %v6214, %v6213
    %v6216 = vrot.slane %v6203, 1
    %v6217 = vsel %vm780, %v6216, %v6215
    %v6218 = vpack.c.b16 %v6217, %v6217
    %v6220 = vsel %vm392, %v6218, 0
    %6222 = vmatpush.bf16.msra.mxu0 0
    %6223 = vmatpush.bf16.msra.mxu0 0
    %6224 = vmatpush.bf16.msra.mxu0 0
    %6225 = vmatpush.bf16.msra.mxu0 0
    %6226 = vmatpush.bf16.msra.mxu0 0
    %6227 = vmatpush.bf16.msra.mxu0 0
    %6228 = vmatpush.bf16.msra.mxu0 %v5107
    %6229 = vmatpush.bf16.msra.mxu0 %v5106
    %6230 = vmatmul.bf16.gmra.mxu0 %v6220
    %v6231 = vpop.f32.mrf.mxu0
    %v6232 = vadd.f32 0.0, %v6231
    %v6233 = vpop.f32.mrf.mxu0
    %6234 = vdwg.mxu0
    %v6235 = vadd.f32 %v5014, %v6232
    %v6236 = vxor.u32 %v6235, 2147483648
    %v6237 = vmul.f32 %v6236, 1.442695
    %v6238 = vpow.pop %v6237
    %v6239 = vadd.f32 %v6238, 1.0
    %v6240 = vrcp.pop %v6239
    %v6241 = vmul.f32 %v6239, %v6240
    %v6242 = vsub.f32 1.0, %v6241
    %v6243 = vmul.f32 %v6240, %v6242
    %v6244 = vadd.f32 %v6240, %v6243
    %vm6245 = vweird.f32 %v6239
    %vm6246 = vweird.f32 %v6240
    %vm6247 = vmor %vm6245, %vm6246
    %v6248 = vsel %vm6247, %v6240, %v6244
    %v6249 = vand.u32 2147483647, %v6239
    %vm6250 = vcmp.eq.f32.partialorder %v6249, 8.507059e+37
    %v6251 = vand.u32 %v6239, 2147483648
    %v6252 = vor.u32 1.1754944e-38, %v6251
    %v6253 = vsel %vm6250, %v6252, %v6248
    %v6254 = vmul.f32 1.0, %v6253
    %v6255 = vtanh.pop %v6235
    %v6256 = vmul.f32 %v6254, %v5734
    %6258 = vrot.lane.b32.xlu0 %v6255, 64
    %v6259 = vpop.permute.xlu0 %6258
    %v6261 = vmul.f32 %v6254, %v6259
    %6263 = vrot.lane.b32.xlu0 %v6261, 32
    %v6264 = vpop.permute.xlu0 %6263
    %v6266 = vadd.f32 %v6256, %v6264
    %v6267 = vtanh.pop %v6266
    %6269 = vrot.lane.b32.xlu0 %v6267, 64
    %v6270 = vpop.permute.xlu0 %6269
    %v6272 = vmul.f32 %v6254, %v6270
    %v6273 = vpack.c.bf16 %v6272, %v6272
    %v6275 = vrot.slane %v6273, 3
    %v6278 = vsel %vm547, %v6273, %v6275
    %v6280 = vsel %vm552, %v6273, %v6275
    %v6282 = vrot.slane %v6280, 1
    %v6283 = vsel %vm556, %v6273, %v6275
    %v6285 = vrot.slane %v6283, 2
    %v6286 = vsel %vm560, %v6273, %v6275
    %v6288 = vrot.slane %v6286, 3
    %v6289 = vunpack.i.l.s16 %v6278
    %v6290 = vunpack.i.h.s16 %v6278
    %v6291 = vunpack.i.l.s16 %v6282
    %v6292 = vunpack.i.h.s16 %v6282
    %v6293 = vunpack.i.l.s16 %v6285
    %v6294 = vunpack.i.h.s16 %v6285
    %v6295 = vunpack.i.l.s16 %v6288
    %v6296 = vunpack.i.h.s16 %v6288
    %v6297 = vpack.i.b16 %v6289, %v6289
    %v6298 = vperm.slane %v6297, 0
    %6299 = vrot.lane.b32.xlu0 %v6298, 32
    %v6300 = vpop.permute.xlu0 %6299
    %v6302 = vsel %vm392, %v6300, 0
    %6304 = vmatpush.bf16.xpose.msra.mxu0 0
    %6305 = vmatpush.bf16.xpose.msra.mxu0 0
    %6306 = vmatpush.bf16.xpose.msra.mxu0 0
    %6307 = vmatpush.bf16.xpose.msra.mxu0 0
    %6308 = vmatpush.bf16.xpose.msra.mxu0 0
    %6309 = vmatpush.bf16.xpose.msra.mxu0 0
    %6310 = vmatpush.bf16.xpose.msra.mxu0 0
    %6311 = vmatpush.bf16.xpose.msra.mxu0 %v5193
    %6312 = vmatmul.bf16.gmra.mxu0 %v6302
    %v6313 = vpop.f32.mrf.mxu0
    %v6314 = vadd.f32 0.0, %v6313
    %v6315 = vpop.f32.mrf.mxu0
    %6316 = vdwg.mxu0
    %v6317 = vpack.i.b16 %v6290, %v6290
    %v6318 = vperm.slane %v6317, 0
    %6319 = vrot.lane.b32.xlu0 %v6318, 32
    %v6320 = vpop.permute.xlu0 %6319
    %v6322 = vsel %vm392, %v6320, 0
    %6324 = vmatpush.bf16.xpose.msra.mxu0 0
    %6325 = vmatpush.bf16.xpose.msra.mxu0 0
    %6326 = vmatpush.bf16.xpose.msra.mxu0 0
    %6327 = vmatpush.bf16.xpose.msra.mxu0 0
    %6328 = vmatpush.bf16.xpose.msra.mxu0 0
    %6329 = vmatpush.bf16.xpose.msra.mxu0 0
    %6330 = vmatpush.bf16.xpose.msra.mxu0 0
    %6331 = vmatpush.bf16.xpose.msra.mxu0 %v5216
    %6332 = vmatmul.bf16.gmra.mxu0 %v6322
    %v6333 = vpop.f32.mrf.mxu0
    %v6334 = vadd.f32 0.0, %v6333
    %v6335 = vpop.f32.mrf.mxu0
    %6336 = vdwg.mxu0
    %v6337 = vpack.i.b16 %v6291, %v6291
    %v6338 = vperm.slane %v6337, 0
    %6339 = vrot.lane.b32.xlu0 %v6338, 32
    %v6340 = vpop.permute.xlu0 %6339
    %v6342 = vsel %vm392, %v6340, 0
    %6344 = vmatpush.bf16.xpose.msra.mxu0 0
    %6345 = vmatpush.bf16.xpose.msra.mxu0 0
    %6346 = vmatpush.bf16.xpose.msra.mxu0 0
    %6347 = vmatpush.bf16.xpose.msra.mxu0 0
    %6348 = vmatpush.bf16.xpose.msra.mxu0 0
    %6349 = vmatpush.bf16.xpose.msra.mxu0 0
    %6350 = vmatpush.bf16.xpose.msra.mxu0 0
    %6351 = vmatpush.bf16.xpose.msra.mxu0 %v5239
    %6352 = vmatmul.bf16.gmra.mxu0 %v6342
    %v6353 = vpop.f32.mrf.mxu0
    %v6354 = vadd.f32 0.0, %v6353
    %v6355 = vpop.f32.mrf.mxu0
    %6356 = vdwg.mxu0
    %v6357 = vpack.i.b16 %v6292, %v6292
    %v6358 = vperm.slane %v6357, 0
    %6359 = vrot.lane.b32.xlu0 %v6358, 32
    %v6360 = vpop.permute.xlu0 %6359
    %v6362 = vsel %vm392, %v6360, 0
    %6364 = vmatpush.bf16.xpose.msra.mxu0 0
    %6365 = vmatpush.bf16.xpose.msra.mxu0 0
    %6366 = vmatpush.bf16.xpose.msra.mxu0 0
    %6367 = vmatpush.bf16.xpose.msra.mxu0 0
    %6368 = vmatpush.bf16.xpose.msra.mxu0 0
    %6369 = vmatpush.bf16.xpose.msra.mxu0 0
    %6370 = vmatpush.bf16.xpose.msra.mxu0 0
    %6371 = vmatpush.bf16.xpose.msra.mxu0 %v5262
    %6372 = vmatmul.bf16.gmra.mxu0 %v6362
    %v6373 = vpop.f32.mrf.mxu0
    %v6374 = vadd.f32 0.0, %v6373
    %v6375 = vpop.f32.mrf.mxu0
    %6376 = vdwg.mxu0
    %v6377 = vpack.i.b16 %v6293, %v6293
    %v6378 = vperm.slane %v6377, 0
    %6379 = vrot.lane.b32.xlu0 %v6378, 32
    %v6380 = vpop.permute.xlu0 %6379
    %v6382 = vsel %vm392, %v6380, 0
    %6384 = vmatpush.bf16.xpose.msra.mxu0 0
    %6385 = vmatpush.bf16.xpose.msra.mxu0 0
    %6386 = vmatpush.bf16.xpose.msra.mxu0 0
    %6387 = vmatpush.bf16.xpose.msra.mxu0 0
    %6388 = vmatpush.bf16.xpose.msra.mxu0 0
    %6389 = vmatpush.bf16.xpose.msra.mxu0 0
    %6390 = vmatpush.bf16.xpose.msra.mxu0 0
    %6391 = vmatpush.bf16.xpose.msra.mxu0 %v5285
    %6392 = vmatmul.bf16.gmra.mxu0 %v6382
    %v6393 = vpop.f32.mrf.mxu0
    %v6394 = vadd.f32 0.0, %v6393
    %v6395 = vpop.f32.mrf.mxu0
    %6396 = vdwg.mxu0
    %v6397 = vpack.i.b16 %v6294, %v6294
    %v6398 = vperm.slane %v6397, 0
    %6399 = vrot.lane.b32.xlu0 %v6398, 32
    %v6400 = vpop.permute.xlu0 %6399
    %v6402 = vsel %vm392, %v6400, 0
    %6404 = vmatpush.bf16.xpose.msra.mxu0 0
    %6405 = vmatpush.bf16.xpose.msra.mxu0 0
    %6406 = vmatpush.bf16.xpose.msra.mxu0 0
    %6407 = vmatpush.bf16.xpose.msra.mxu0 0
    %6408 = vmatpush.bf16.xpose.msra.mxu0 0
    %6409 = vmatpush.bf16.xpose.msra.mxu0 0
    %6410 = vmatpush.bf16.xpose.msra.mxu0 0
    %6411 = vmatpush.bf16.xpose.msra.mxu0 %v5308
    %6412 = vmatmul.bf16.gmra.mxu0 %v6402
    %v6413 = vpop.f32.mrf.mxu0
    %v6414 = vadd.f32 0.0, %v6413
    %v6415 = vpop.f32.mrf.mxu0
    %6416 = vdwg.mxu0
    %v6417 = vpack.i.b16 %v6295, %v6295
    %v6418 = vperm.slane %v6417, 0
    %6419 = vrot.lane.b32.xlu0 %v6418, 32
    %v6420 = vpop.permute.xlu0 %6419
    %v6422 = vsel %vm392, %v6420, 0
    %6424 = vmatpush.bf16.xpose.msra.mxu0 0
    %6425 = vmatpush.bf16.xpose.msra.mxu0 0
    %6426 = vmatpush.bf16.xpose.msra.mxu0 0
    %6427 = vmatpush.bf16.xpose.msra.mxu0 0
    %6428 = vmatpush.bf16.xpose.msra.mxu0 0
    %6429 = vmatpush.bf16.xpose.msra.mxu0 0
    %6430 = vmatpush.bf16.xpose.msra.mxu0 0
    %6431 = vmatpush.bf16.xpose.msra.mxu0 %v5331
    %6432 = vmatmul.bf16.gmra.mxu0 %v6422
    %v6433 = vpop.f32.mrf.mxu0
    %v6434 = vadd.f32 0.0, %v6433
    %v6435 = vpop.f32.mrf.mxu0
    %6436 = vdwg.mxu0
    %v6437 = vpack.i.b16 %v6296, %v6296
    %v6438 = vperm.slane %v6437, 0
    %6439 = vrot.lane.b32.xlu0 %v6438, 32
    %v6440 = vpop.permute.xlu0 %6439
    %v6442 = vsel %vm392, %v6440, 0
    %6444 = vmatpush.bf16.xpose.msra.mxu0 0
    %6445 = vmatpush.bf16.xpose.msra.mxu0 0
    %6446 = vmatpush.bf16.xpose.msra.mxu0 0
    %6447 = vmatpush.bf16.xpose.msra.mxu0 0
    %6448 = vmatpush.bf16.xpose.msra.mxu0 0
    %6449 = vmatpush.bf16.xpose.msra.mxu0 0
    %6450 = vmatpush.bf16.xpose.msra.mxu0 0
    %6451 = vmatpush.bf16.xpose.msra.mxu0 %v5354
    %6452 = vmatmul.bf16.gmra.mxu0 %v6442
    %v6453 = vpop.f32.mrf.mxu0
    %v6454 = vadd.f32 0.0, %v6453
    %v6455 = vpop.f32.mrf.mxu0
    %6456 = vdwg.mxu0
    %v6465 = vrot.slane %v6334, 7
    %v6466 = vsel %vm552, %v6465, %v6314
    %v6467 = vrot.slane %v6354, 6
    %v6468 = vsel %vm556, %v6467, %v6466
    %v6469 = vrot.slane %v6374, 5
    %v6470 = vsel %vm560, %v6469, %v6468
    %v6471 = vrot.slane %v6394, 4
    %v6472 = vsel %vm771, %v6471, %v6470
    %v6473 = vrot.slane %v6414, 3
    %v6474 = vsel %vm774, %v6473, %v6472
    %v6475 = vrot.slane %v6434, 2
    %v6476 = vsel %vm777, %v6475, %v6474
    %v6477 = vrot.slane %v6454, 1
    %v6478 = vsel %vm780, %v6477, %v6476
    %v6480 = vsel %vm308, -inf, %v6478
    %v6481 = vsel %vm784, %v6480, -inf
    %6482 = vmax.xlane.f32.xlu0 %v6481
    %v6483 = vpop.xlane.xlu0 %6482
    %v6484 = vsub.f32 %v6480, %v6483
    %v6485 = vmul.f32 %v6484, 1.442695
    %v6486 = vpow.pop %v6485
    %v6487 = vsel %vm784, %v6486, 0.0
    %6488 = vadd.xlane.f32.xlu0 %v6487
    %v6489 = vpop.xlane.xlu0 %6488
    %v6490 = vrcp.pop %v6489
    %v6491 = vmul.f32 %v6486, %v6490
    %v6492 = vpack.c.bf16 %v6491, %v6491
    %v6494 = vrot.slane %v6492, 3
    %v6497 = vsel %vm547, %v6492, %v6494
    %v6499 = vsel %vm552, %v6492, %v6494
    %v6501 = vrot.slane %v6499, 1
    %v6502 = vsel %vm556, %v6492, %v6494
    %v6504 = vrot.slane %v6502, 2
    %v6505 = vsel %vm560, %v6492, %v6494
    %v6507 = vrot.slane %v6505, 3
    %v6508 = vunpack.i.l.s16 %v6497
    %v6509 = vunpack.i.h.s16 %v6497
    %v6510 = vunpack.i.l.s16 %v6501
    %v6511 = vunpack.i.h.s16 %v6501
    %v6512 = vunpack.i.l.s16 %v6504
    %v6513 = vunpack.i.h.s16 %v6504
    %v6514 = vunpack.i.l.s16 %v6507
    %v6515 = vunpack.i.h.s16 %v6507
    %v6516 = vpack.i.b16 %v6508, %v6508
    %v6517 = vperm.slane %v6516, 0
    %v6519 = vsel %vm784, %v6517, 0
    %6521 = vmatpush.bf16.msra.mxu0 0
    %6522 = vmatpush.bf16.msra.mxu0 0
    %6523 = vmatpush.bf16.msra.mxu0 0
    %6524 = vmatpush.bf16.msra.mxu0 0
    %6525 = vmatpush.bf16.msra.mxu0 0
    %6526 = vmatpush.bf16.msra.mxu0 0
    %6527 = vmatpush.bf16.msra.mxu0 0
    %6528 = vmatpush.bf16.msra.mxu0 %v5434
    %6529 = vmatmul.bf16.gmra.mxu0 %v6519
    %v6530 = vpop.f32.mrf.mxu0
    %v6531 = vadd.f32 0.0, %v6530
    %v6532 = vpop.f32.mrf.mxu0
    %6533 = vdwg.mxu0
    %v6534 = vpack.i.b16 %v6509, %v6509
    %v6535 = vperm.slane %v6534, 0
    %v6537 = vsel %vm784, %v6535, 0
    %6539 = vmatpush.bf16.msra.mxu0 0
    %6540 = vmatpush.bf16.msra.mxu0 0
    %6541 = vmatpush.bf16.msra.mxu0 0
    %6542 = vmatpush.bf16.msra.mxu0 0
    %6543 = vmatpush.bf16.msra.mxu0 0
    %6544 = vmatpush.bf16.msra.mxu0 0
    %6545 = vmatpush.bf16.msra.mxu0 0
    %6546 = vmatpush.bf16.msra.mxu0 %v5455
    %6547 = vmatmul.bf16.gmra.mxu0 %v6537
    %v6548 = vpop.f32.mrf.mxu0
    %v6549 = vadd.f32 0.0, %v6548
    %v6550 = vpop.f32.mrf.mxu0
    %6551 = vdwg.mxu0
    %v6552 = vpack.i.b16 %v6510, %v6510
    %v6553 = vperm.slane %v6552, 0
    %v6555 = vsel %vm784, %v6553, 0
    %6557 = vmatpush.bf16.msra.mxu0 0
    %6558 = vmatpush.bf16.msra.mxu0 0
    %6559 = vmatpush.bf16.msra.mxu0 0
    %6560 = vmatpush.bf16.msra.mxu0 0
    %6561 = vmatpush.bf16.msra.mxu0 0
    %6562 = vmatpush.bf16.msra.mxu0 0
    %6563 = vmatpush.bf16.msra.mxu0 0
    %6564 = vmatpush.bf16.msra.mxu0 %v5476
    %6565 = vmatmul.bf16.gmra.mxu0 %v6555
    %v6566 = vpop.f32.mrf.mxu0
    %v6567 = vadd.f32 0.0, %v6566
    %v6568 = vpop.f32.mrf.mxu0
    %6569 = vdwg.mxu0
    %v6570 = vpack.i.b16 %v6511, %v6511
    %v6571 = vperm.slane %v6570, 0
    %v6573 = vsel %vm784, %v6571, 0
    %6575 = vmatpush.bf16.msra.mxu0 0
    %6576 = vmatpush.bf16.msra.mxu0 0
    %6577 = vmatpush.bf16.msra.mxu0 0
    %6578 = vmatpush.bf16.msra.mxu0 0
    %6579 = vmatpush.bf16.msra.mxu0 0
    %6580 = vmatpush.bf16.msra.mxu0 0
    %6581 = vmatpush.bf16.msra.mxu0 0
    %6582 = vmatpush.bf16.msra.mxu0 %v5497
    %6583 = vmatmul.bf16.gmra.mxu0 %v6573
    %v6584 = vpop.f32.mrf.mxu0
    %v6585 = vadd.f32 0.0, %v6584
    %v6586 = vpop.f32.mrf.mxu0
    %6587 = vdwg.mxu0
    %v6588 = vpack.i.b16 %v6512, %v6512
    %v6589 = vperm.slane %v6588, 0
    %v6591 = vsel %vm784, %v6589, 0
    %6593 = vmatpush.bf16.msra.mxu0 0
    %6594 = vmatpush.bf16.msra.mxu0 0
    %6595 = vmatpush.bf16.msra.mxu0 0
    %6596 = vmatpush.bf16.msra.mxu0 0
    %6597 = vmatpush.bf16.msra.mxu0 0
    %6598 = vmatpush.bf16.msra.mxu0 0
    %6599 = vmatpush.bf16.msra.mxu0 0
    %6600 = vmatpush.bf16.msra.mxu0 %v5518
    %6601 = vmatmul.bf16.gmra.mxu0 %v6591
    %v6602 = vpop.f32.mrf.mxu0
    %v6603 = vadd.f32 0.0, %v6602
    %v6604 = vpop.f32.mrf.mxu0
    %6605 = vdwg.mxu0
    %v6606 = vpack.i.b16 %v6513, %v6513
    %v6607 = vperm.slane %v6606, 0
    %v6609 = vsel %vm784, %v6607, 0
    %6611 = vmatpush.bf16.msra.mxu0 0
    %6612 = vmatpush.bf16.msra.mxu0 0
    %6613 = vmatpush.bf16.msra.mxu0 0
    %6614 = vmatpush.bf16.msra.mxu0 0
    %6615 = vmatpush.bf16.msra.mxu0 0
    %6616 = vmatpush.bf16.msra.mxu0 0
    %6617 = vmatpush.bf16.msra.mxu0 0
    %6618 = vmatpush.bf16.msra.mxu0 %v5539
    %6619 = vmatmul.bf16.gmra.mxu0 %v6609
    %v6620 = vpop.f32.mrf.mxu0
    %v6621 = vadd.f32 0.0, %v6620
    %v6622 = vpop.f32.mrf.mxu0
    %6623 = vdwg.mxu0
    %v6624 = vpack.i.b16 %v6514, %v6514
    %v6625 = vperm.slane %v6624, 0
    %v6627 = vsel %vm784, %v6625, 0
    %6629 = vmatpush.bf16.msra.mxu0 0
    %6630 = vmatpush.bf16.msra.mxu0 0
    %6631 = vmatpush.bf16.msra.mxu0 0
    %6632 = vmatpush.bf16.msra.mxu0 0
    %6633 = vmatpush.bf16.msra.mxu0 0
    %6634 = vmatpush.bf16.msra.mxu0 0
    %6635 = vmatpush.bf16.msra.mxu0 0
    %6636 = vmatpush.bf16.msra.mxu0 %v5560
    %6637 = vmatmul.bf16.gmra.mxu0 %v6627
    %v6638 = vpop.f32.mrf.mxu0
    %v6639 = vadd.f32 0.0, %v6638
    %v6640 = vpop.f32.mrf.mxu0
    %6641 = vdwg.mxu0
    %v6642 = vpack.i.b16 %v6515, %v6515
    %v6643 = vperm.slane %v6642, 0
    %v6645 = vsel %vm784, %v6643, 0
    %6647 = vmatpush.bf16.msra.mxu0 0
    %6648 = vmatpush.bf16.msra.mxu0 0
    %6649 = vmatpush.bf16.msra.mxu0 0
    %6650 = vmatpush.bf16.msra.mxu0 0
    %6651 = vmatpush.bf16.msra.mxu0 0
    %6652 = vmatpush.bf16.msra.mxu0 0
    %6653 = vmatpush.bf16.msra.mxu0 0
    %6654 = vmatpush.bf16.msra.mxu0 %v5581
    %6655 = vmatmul.bf16.gmra.mxu0 %v6645
    %v6656 = vpop.f32.mrf.mxu0
    %v6657 = vadd.f32 0.0, %v6656
    %v6658 = vpop.f32.mrf.mxu0
    %6659 = vdwg.mxu0
    %v6660 = vunpack.c.l.b16 %v6273
    %v6661 = vpack.c.b16 %v6660, %v6660
    %6662 = vrot.lane.b32.xlu0 %v6661, 32
    %v6663 = vpop.permute.xlu0 %6662
    %v6665 = vsel %vm392, %v6663, 0
    %6667 = vmatpush.bf16.msra.mxu0 0
    %6668 = vmatpush.bf16.msra.mxu0 0
    %6669 = vmatpush.bf16.msra.mxu0 0
    %6670 = vmatpush.bf16.msra.mxu0 0
    %6671 = vmatpush.bf16.msra.mxu0 0
    %6672 = vmatpush.bf16.msra.mxu0 0
    %6673 = vmatpush.bf16.msra.mxu0 %v5109
    %6674 = vmatpush.bf16.msra.mxu0 %v5108
    %6675 = vmatmul.bf16.gmra.mxu0 %v6665
    %v6676 = vpop.f32.mrf.mxu0
    %v6677 = vadd.f32 0.0, %v6676
    %v6678 = vpop.f32.mrf.mxu0
    %6679 = vdwg.mxu0
    %v6681 = vrot.slane %v6677, 1
    %v6682 = vrot.slane %v6677, 2
    %v6683 = vrot.slane %v6677, 3
    %v6684 = vrot.slane %v6677, 4
    %v6685 = vrot.slane %v6677, 5
    %v6686 = vrot.slane %v6677, 6
    %v6687 = vrot.slane %v6677, 7
    %v6696 = vadd.f32 %v6531, %v6677
    %v6697 = vadd.f32 %v6549, %v6681
    %v6698 = vadd.f32 %v6567, %v6682
    %v6699 = vadd.f32 %v6585, %v6683
    %v6700 = vadd.f32 %v6603, %v6684
    %v6701 = vadd.f32 %v6621, %v6685
    %v6702 = vadd.f32 %v6639, %v6686
    %v6703 = vadd.f32 %v6657, %v6687
    %v6704 = vtanh.pop %v6696
    %v6705 = vtanh.pop %v6697
    %v6706 = vtanh.pop %v6698
    %v6707 = vtanh.pop %v6699
    %v6708 = vtanh.pop %v6700
    %v6709 = vtanh.pop %v6701
    %v6710 = vtanh.pop %v6702
    %v6711 = vtanh.pop %v6703
    %v6712 = vpack.c.bf16 %v6704, %v6704
    %v6713 = vpack.c.bf16 %v6705, %v6705
    %v6714 = vpack.c.bf16 %v6706, %v6706
    %v6715 = vpack.c.bf16 %v6707, %v6707
    %v6716 = vpack.c.bf16 %v6708, %v6708
    %v6717 = vpack.c.bf16 %v6709, %v6709
    %v6718 = vpack.c.bf16 %v6710, %v6710
    %v6719 = vpack.c.bf16 %v6711, %v6711
    %v6728 = vunpack.c.l.b16 %v6712
    %v6729 = vunpack.c.l.b16 %v6713
    %v6730 = vunpack.c.l.b16 %v6714
    %v6731 = vunpack.c.l.b16 %v6715
    %v6732 = vunpack.c.l.b16 %v6716
    %v6733 = vunpack.c.l.b16 %v6717
    %v6734 = vunpack.c.l.b16 %v6718
    %v6735 = vunpack.c.l.b16 %v6719
    %v6736 = vrot.slane %v6729, 7
    %v6737 = vsel %vm552, %v6736, %v6728
    %v6738 = vrot.slane %v6730, 6
    %v6739 = vsel %vm556, %v6738, %v6737
    %v6740 = vrot.slane %v6731, 5
    %v6741 = vsel %vm560, %v6740, %v6739
    %v6742 = vrot.slane %v6732, 4
    %v6743 = vsel %vm771, %v6742, %v6741
    %v6744 = vrot.slane %v6733, 3
    %v6745 = vsel %vm774, %v6744, %v6743
    %v6746 = vrot.slane %v6734, 2
    %v6747 = vsel %vm777, %v6746, %v6745
    %v6748 = vrot.slane %v6735, 1
    %v6749 = vsel %vm780, %v6748, %v6747
    %v6750 = vpack.c.b16 %v6749, %v6749
    %v6752 = vsel %vm392, %v6750, 0
    %6754 = vmatpush.bf16.msra.mxu0 0
    %6755 = vmatpush.bf16.msra.mxu0 0
    %6756 = vmatpush.bf16.msra.mxu0 0
    %6757 = vmatpush.bf16.msra.mxu0 0
    %6758 = vmatpush.bf16.msra.mxu0 0
    %6759 = vmatpush.bf16.msra.mxu0 0
    %6760 = vmatpush.bf16.msra.mxu0 %v5107
    %6761 = vmatpush.bf16.msra.mxu0 %v5106
    %6762 = vmatmul.bf16.gmra.mxu0 %v6752
    %v6763 = vpop.f32.mrf.mxu0
    %v6764 = vadd.f32 0.0, %v6763
    %v6765 = vpop.f32.mrf.mxu0
    %6766 = vdwg.mxu0
    %v6767 = vadd.f32 %v5016, %v6764
    %v6768 = vxor.u32 %v6767, 2147483648
    %v6769 = vmul.f32 %v6768, 1.442695
    %v6770 = vpow.pop %v6769
    %v6771 = vadd.f32 %v6770, 1.0
    %v6772 = vrcp.pop %v6771
    %v6773 = vmul.f32 %v6771, %v6772
    %v6774 = vsub.f32 1.0, %v6773
    %v6775 = vmul.f32 %v6772, %v6774
    %v6776 = vadd.f32 %v6772, %v6775
    %vm6777 = vweird.f32 %v6771
    %vm6778 = vweird.f32 %v6772
    %vm6779 = vmor %vm6777, %vm6778
    %v6780 = vsel %vm6779, %v6772, %v6776
    %v6781 = vand.u32 2147483647, %v6771
    %vm6782 = vcmp.eq.f32.partialorder %v6781, 8.507059e+37
    %v6783 = vand.u32 %v6771, 2147483648
    %v6784 = vor.u32 1.1754944e-38, %v6783
    %v6785 = vsel %vm6782, %v6784, %v6780
    %v6786 = vmul.f32 1.0, %v6785
    %v6787 = vtanh.pop %v6767
    %v6788 = vmul.f32 %v6786, %v6266
    %6790 = vrot.lane.b32.xlu0 %v6787, 64
    %v6791 = vpop.permute.xlu0 %6790
    %v6793 = vmul.f32 %v6786, %v6791
    %6795 = vrot.lane.b32.xlu0 %v6793, 32
    %v6796 = vpop.permute.xlu0 %6795
    %v6798 = vadd.f32 %v6788, %v6796
    %v6799 = vtanh.pop %v6798
    %6801 = vrot.lane.b32.xlu0 %v6799, 64
    %v6802 = vpop.permute.xlu0 %6801
    %v6804 = vmul.f32 %v6786, %v6802
    %v6805 = vpack.c.bf16 %v6804, %v6804
    %v6807 = vrot.slane %v6805, 3
    %v6810 = vsel %vm547, %v6805, %v6807
    %v6812 = vsel %vm552, %v6805, %v6807
    %v6814 = vrot.slane %v6812, 1
    %v6815 = vsel %vm556, %v6805, %v6807
    %v6817 = vrot.slane %v6815, 2
    %v6818 = vsel %vm560, %v6805, %v6807
    %v6820 = vrot.slane %v6818, 3
    %v6821 = vunpack.i.l.s16 %v6810
    %v6822 = vunpack.i.h.s16 %v6810
    %v6823 = vunpack.i.l.s16 %v6814
    %v6824 = vunpack.i.h.s16 %v6814
    %v6825 = vunpack.i.l.s16 %v6817
    %v6826 = vunpack.i.h.s16 %v6817
    %v6827 = vunpack.i.l.s16 %v6820
    %v6828 = vunpack.i.h.s16 %v6820
    %v6829 = vpack.i.b16 %v6821, %v6821
    %v6830 = vperm.slane %v6829, 0
    %6831 = vrot.lane.b32.xlu0 %v6830, 32
    %v6832 = vpop.permute.xlu0 %6831
    %v6834 = vsel %vm392, %v6832, 0
    %6836 = vmatpush.bf16.xpose.msra.mxu0 0
    %6837 = vmatpush.bf16.xpose.msra.mxu0 0
    %6838 = vmatpush.bf16.xpose.msra.mxu0 0
    %6839 = vmatpush.bf16.xpose.msra.mxu0 0
    %6840 = vmatpush.bf16.xpose.msra.mxu0 0
    %6841 = vmatpush.bf16.xpose.msra.mxu0 0
    %6842 = vmatpush.bf16.xpose.msra.mxu0 0
    %6843 = vmatpush.bf16.xpose.msra.mxu0 %v5193
    %6844 = vmatmul.bf16.gmra.mxu0 %v6834
    %v6845 = vpop.f32.mrf.mxu0
    %v6846 = vadd.f32 0.0, %v6845
    %v6847 = vpop.f32.mrf.mxu0
    %6848 = vdwg.mxu0
    %v6849 = vpack.i.b16 %v6822, %v6822
    %v6850 = vperm.slane %v6849, 0
    %6851 = vrot.lane.b32.xlu0 %v6850, 32
    %v6852 = vpop.permute.xlu0 %6851
    %v6854 = vsel %vm392, %v6852, 0
    %6856 = vmatpush.bf16.xpose.msra.mxu0 0
    %6857 = vmatpush.bf16.xpose.msra.mxu0 0
    %6858 = vmatpush.bf16.xpose.msra.mxu0 0
    %6859 = vmatpush.bf16.xpose.msra.mxu0 0
    %6860 = vmatpush.bf16.xpose.msra.mxu0 0
    %6861 = vmatpush.bf16.xpose.msra.mxu0 0
    %6862 = vmatpush.bf16.xpose.msra.mxu0 0
    %6863 = vmatpush.bf16.xpose.msra.mxu0 %v5216
    %6864 = vmatmul.bf16.gmra.mxu0 %v6854
    %v6865 = vpop.f32.mrf.mxu0
    %v6866 = vadd.f32 0.0, %v6865
    %v6867 = vpop.f32.mrf.mxu0
    %6868 = vdwg.mxu0
    %v6869 = vpack.i.b16 %v6823, %v6823
    %v6870 = vperm.slane %v6869, 0
    %6871 = vrot.lane.b32.xlu0 %v6870, 32
    %v6872 = vpop.permute.xlu0 %6871
    %v6874 = vsel %vm392, %v6872, 0
    %6876 = vmatpush.bf16.xpose.msra.mxu0 0
    %6877 = vmatpush.bf16.xpose.msra.mxu0 0
    %6878 = vmatpush.bf16.xpose.msra.mxu0 0
    %6879 = vmatpush.bf16.xpose.msra.mxu0 0
    %6880 = vmatpush.bf16.xpose.msra.mxu0 0
    %6881 = vmatpush.bf16.xpose.msra.mxu0 0
    %6882 = vmatpush.bf16.xpose.msra.mxu0 0
    %6883 = vmatpush.bf16.xpose.msra.mxu0 %v5239
    %6884 = vmatmul.bf16.gmra.mxu0 %v6874
    %v6885 = vpop.f32.mrf.mxu0
    %v6886 = vadd.f32 0.0, %v6885
    %v6887 = vpop.f32.mrf.mxu0
    %6888 = vdwg.mxu0
    %v6889 = vpack.i.b16 %v6824, %v6824
    %v6890 = vperm.slane %v6889, 0
    %6891 = vrot.lane.b32.xlu0 %v6890, 32
    %v6892 = vpop.permute.xlu0 %6891
    %v6894 = vsel %vm392, %v6892, 0
    %6896 = vmatpush.bf16.xpose.msra.mxu0 0
    %6897 = vmatpush.bf16.xpose.msra.mxu0 0
    %6898 = vmatpush.bf16.xpose.msra.mxu0 0
    %6899 = vmatpush.bf16.xpose.msra.mxu0 0
    %6900 = vmatpush.bf16.xpose.msra.mxu0 0
    %6901 = vmatpush.bf16.xpose.msra.mxu0 0
    %6902 = vmatpush.bf16.xpose.msra.mxu0 0
    %6903 = vmatpush.bf16.xpose.msra.mxu0 %v5262
    %6904 = vmatmul.bf16.gmra.mxu0 %v6894
    %v6905 = vpop.f32.mrf.mxu0
    %v6906 = vadd.f32 0.0, %v6905
    %v6907 = vpop.f32.mrf.mxu0
    %6908 = vdwg.mxu0
    %v6909 = vpack.i.b16 %v6825, %v6825
    %v6910 = vperm.slane %v6909, 0
    %6911 = vrot.lane.b32.xlu0 %v6910, 32
    %v6912 = vpop.permute.xlu0 %6911
    %v6914 = vsel %vm392, %v6912, 0
    %6916 = vmatpush.bf16.xpose.msra.mxu0 0
    %6917 = vmatpush.bf16.xpose.msra.mxu0 0
    %6918 = vmatpush.bf16.xpose.msra.mxu0 0
    %6919 = vmatpush.bf16.xpose.msra.mxu0 0
    %6920 = vmatpush.bf16.xpose.msra.mxu0 0
    %6921 = vmatpush.bf16.xpose.msra.mxu0 0
    %6922 = vmatpush.bf16.xpose.msra.mxu0 0
    %6923 = vmatpush.bf16.xpose.msra.mxu0 %v5285
    %6924 = vmatmul.bf16.gmra.mxu0 %v6914
    %v6925 = vpop.f32.mrf.mxu0
    %v6926 = vadd.f32 0.0, %v6925
    %v6927 = vpop.f32.mrf.mxu0
    %6928 = vdwg.mxu0
    %v6929 = vpack.i.b16 %v6826, %v6826
    %v6930 = vperm.slane %v6929, 0
    %6931 = vrot.lane.b32.xlu0 %v6930, 32
    %v6932 = vpop.permute.xlu0 %6931
    %v6934 = vsel %vm392, %v6932, 0
    %6936 = vmatpush.bf16.xpose.msra.mxu0 0
    %6937 = vmatpush.bf16.xpose.msra.mxu0 0
    %6938 = vmatpush.bf16.xpose.msra.mxu0 0
    %6939 = vmatpush.bf16.xpose.msra.mxu0 0
    %6940 = vmatpush.bf16.xpose.msra.mxu0 0
    %6941 = vmatpush.bf16.xpose.msra.mxu0 0
    %6942 = vmatpush.bf16.xpose.msra.mxu0 0
    %6943 = vmatpush.bf16.xpose.msra.mxu0 %v5308
    %6944 = vmatmul.bf16.gmra.mxu0 %v6934
    %v6945 = vpop.f32.mrf.mxu0
    %v6946 = vadd.f32 0.0, %v6945
    %v6947 = vpop.f32.mrf.mxu0
    %6948 = vdwg.mxu0
    %v6949 = vpack.i.b16 %v6827, %v6827
    %v6950 = vperm.slane %v6949, 0
    %6951 = vrot.lane.b32.xlu0 %v6950, 32
    %v6952 = vpop.permute.xlu0 %6951
    %v6954 = vsel %vm392, %v6952, 0
    %6956 = vmatpush.bf16.xpose.msra.mxu0 0
    %6957 = vmatpush.bf16.xpose.msra.mxu0 0
    %6958 = vmatpush.bf16.xpose.msra.mxu0 0
    %6959 = vmatpush.bf16.xpose.msra.mxu0 0
    %6960 = vmatpush.bf16.xpose.msra.mxu0 0
    %6961 = vmatpush.bf16.xpose.msra.mxu0 0
    %6962 = vmatpush.bf16.xpose.msra.mxu0 0
    %6963 = vmatpush.bf16.xpose.msra.mxu0 %v5331
    %6964 = vmatmul.bf16.gmra.mxu0 %v6954
    %v6965 = vpop.f32.mrf.mxu0
    %v6966 = vadd.f32 0.0, %v6965
    %v6967 = vpop.f32.mrf.mxu0
    %6968 = vdwg.mxu0
    %v6969 = vpack.i.b16 %v6828, %v6828
    %v6970 = vperm.slane %v6969, 0
    %6971 = vrot.lane.b32.xlu0 %v6970, 32
    %v6972 = vpop.permute.xlu0 %6971
    %v6974 = vsel %vm392, %v6972, 0
    %6976 = vmatpush.bf16.xpose.msra.mxu0 0
    %6977 = vmatpush.bf16.xpose.msra.mxu0 0
    %6978 = vmatpush.bf16.xpose.msra.mxu0 0
    %6979 = vmatpush.bf16.xpose.msra.mxu0 0
    %6980 = vmatpush.bf16.xpose.msra.mxu0 0
    %6981 = vmatpush.bf16.xpose.msra.mxu0 0
    %6982 = vmatpush.bf16.xpose.msra.mxu0 0
    %6983 = vmatpush.bf16.xpose.msra.mxu0 %v5354
    %6984 = vmatmul.bf16.gmra.mxu0 %v6974
    %v6985 = vpop.f32.mrf.mxu0
    %v6986 = vadd.f32 0.0, %v6985
    %v6987 = vpop.f32.mrf.mxu0
    %6988 = vdwg.mxu0
    %v6997 = vrot.slane %v6866, 7
    %v6998 = vsel %vm552, %v6997, %v6846
    %v6999 = vrot.slane %v6886, 6
    %v7000 = vsel %vm556, %v6999, %v6998
    %v7001 = vrot.slane %v6906, 5
    %v7002 = vsel %vm560, %v7001, %v7000
    %v7003 = vrot.slane %v6926, 4
    %v7004 = vsel %vm771, %v7003, %v7002
    %v7005 = vrot.slane %v6946, 3
    %v7006 = vsel %vm774, %v7005, %v7004
    %v7007 = vrot.slane %v6966, 2
    %v7008 = vsel %vm777, %v7007, %v7006
    %v7009 = vrot.slane %v6986, 1
    %v7010 = vsel %vm780, %v7009, %v7008
    %v7012 = vsel %vm308, -inf, %v7010
    %v7013 = vsel %vm784, %v7012, -inf
    %7014 = vmax.xlane.f32.xlu0 %v7013
    %v7015 = vpop.xlane.xlu0 %7014
    %v7016 = vsub.f32 %v7012, %v7015
    %v7017 = vmul.f32 %v7016, 1.442695
    %v7018 = vpow.pop %v7017
    %v7019 = vsel %vm784, %v7018, 0.0
    %7020 = vadd.xlane.f32.xlu0 %v7019
    %v7021 = vpop.xlane.xlu0 %7020
    %v7022 = vrcp.pop %v7021
    %v7023 = vmul.f32 %v7018, %v7022
    %v7024 = vpack.c.bf16 %v7023, %v7023
    %v7026 = vrot.slane %v7024, 3
    %v7029 = vsel %vm547, %v7024, %v7026
    %v7031 = vsel %vm552, %v7024, %v7026
    %v7033 = vrot.slane %v7031, 1
    %v7034 = vsel %vm556, %v7024, %v7026
    %v7036 = vrot.slane %v7034, 2
    %v7037 = vsel %vm560, %v7024, %v7026
    %v7039 = vrot.slane %v7037, 3
    %v7040 = vunpack.i.l.s16 %v7029
    %v7041 = vunpack.i.h.s16 %v7029
    %v7042 = vunpack.i.l.s16 %v7033
    %v7043 = vunpack.i.h.s16 %v7033
    %v7044 = vunpack.i.l.s16 %v7036
    %v7045 = vunpack.i.h.s16 %v7036
    %v7046 = vunpack.i.l.s16 %v7039
    %v7047 = vunpack.i.h.s16 %v7039
    %v7048 = vpack.i.b16 %v7040, %v7040
    %v7049 = vperm.slane %v7048, 0
    %v7051 = vsel %vm784, %v7049, 0
    %7053 = vmatpush.bf16.msra.mxu0 0
    %7054 = vmatpush.bf16.msra.mxu0 0
    %7055 = vmatpush.bf16.msra.mxu0 0
    %7056 = vmatpush.bf16.msra.mxu0 0
    %7057 = vmatpush.bf16.msra.mxu0 0
    %7058 = vmatpush.bf16.msra.mxu0 0
    %7059 = vmatpush.bf16.msra.mxu0 0
    %7060 = vmatpush.bf16.msra.mxu0 %v5434
    %7061 = vmatmul.bf16.gmra.mxu0 %v7051
    %v7062 = vpop.f32.mrf.mxu0
    %v7063 = vadd.f32 0.0, %v7062
    %v7064 = vpop.f32.mrf.mxu0
    %7065 = vdwg.mxu0
    %v7066 = vpack.i.b16 %v7041, %v7041
    %v7067 = vperm.slane %v7066, 0
    %v7069 = vsel %vm784, %v7067, 0
    %7071 = vmatpush.bf16.msra.mxu0 0
    %7072 = vmatpush.bf16.msra.mxu0 0
    %7073 = vmatpush.bf16.msra.mxu0 0
    %7074 = vmatpush.bf16.msra.mxu0 0
    %7075 = vmatpush.bf16.msra.mxu0 0
    %7076 = vmatpush.bf16.msra.mxu0 0
    %7077 = vmatpush.bf16.msra.mxu0 0
    %7078 = vmatpush.bf16.msra.mxu0 %v5455
    %7079 = vmatmul.bf16.gmra.mxu0 %v7069
    %v7080 = vpop.f32.mrf.mxu0
    %v7081 = vadd.f32 0.0, %v7080
    %v7082 = vpop.f32.mrf.mxu0
    %7083 = vdwg.mxu0
    %v7084 = vpack.i.b16 %v7042, %v7042
    %v7085 = vperm.slane %v7084, 0
    %v7087 = vsel %vm784, %v7085, 0
    %7089 = vmatpush.bf16.msra.mxu0 0
    %7090 = vmatpush.bf16.msra.mxu0 0
    %7091 = vmatpush.bf16.msra.mxu0 0
    %7092 = vmatpush.bf16.msra.mxu0 0
    %7093 = vmatpush.bf16.msra.mxu0 0
    %7094 = vmatpush.bf16.msra.mxu0 0
    %7095 = vmatpush.bf16.msra.mxu0 0
    %7096 = vmatpush.bf16.msra.mxu0 %v5476
    %7097 = vmatmul.bf16.gmra.mxu0 %v7087
    %v7098 = vpop.f32.mrf.mxu0
    %v7099 = vadd.f32 0.0, %v7098
    %v7100 = vpop.f32.mrf.mxu0
    %7101 = vdwg.mxu0
    %v7102 = vpack.i.b16 %v7043, %v7043
    %v7103 = vperm.slane %v7102, 0
    %v7105 = vsel %vm784, %v7103, 0
    %7107 = vmatpush.bf16.msra.mxu0 0
    %7108 = vmatpush.bf16.msra.mxu0 0
    %7109 = vmatpush.bf16.msra.mxu0 0
    %7110 = vmatpush.bf16.msra.mxu0 0
    %7111 = vmatpush.bf16.msra.mxu0 0
    %7112 = vmatpush.bf16.msra.mxu0 0
    %7113 = vmatpush.bf16.msra.mxu0 0
    %7114 = vmatpush.bf16.msra.mxu0 %v5497
    %7115 = vmatmul.bf16.gmra.mxu0 %v7105
    %v7116 = vpop.f32.mrf.mxu0
    %v7117 = vadd.f32 0.0, %v7116
    %v7118 = vpop.f32.mrf.mxu0
    %7119 = vdwg.mxu0
    %v7120 = vpack.i.b16 %v7044, %v7044
    %v7121 = vperm.slane %v7120, 0
    %v7123 = vsel %vm784, %v7121, 0
    %7125 = vmatpush.bf16.msra.mxu0 0
    %7126 = vmatpush.bf16.msra.mxu0 0
    %7127 = vmatpush.bf16.msra.mxu0 0
    %7128 = vmatpush.bf16.msra.mxu0 0
    %7129 = vmatpush.bf16.msra.mxu0 0
    %7130 = vmatpush.bf16.msra.mxu0 0
    %7131 = vmatpush.bf16.msra.mxu0 0
    %7132 = vmatpush.bf16.msra.mxu0 %v5518
    %7133 = vmatmul.bf16.gmra.mxu0 %v7123
    %v7134 = vpop.f32.mrf.mxu0
    %v7135 = vadd.f32 0.0, %v7134
    %v7136 = vpop.f32.mrf.mxu0
    %7137 = vdwg.mxu0
    %v7138 = vpack.i.b16 %v7045, %v7045
    %v7139 = vperm.slane %v7138, 0
    %v7141 = vsel %vm784, %v7139, 0
    %7143 = vmatpush.bf16.msra.mxu0 0
    %7144 = vmatpush.bf16.msra.mxu0 0
    %7145 = vmatpush.bf16.msra.mxu0 0
    %7146 = vmatpush.bf16.msra.mxu0 0
    %7147 = vmatpush.bf16.msra.mxu0 0
    %7148 = vmatpush.bf16.msra.mxu0 0
    %7149 = vmatpush.bf16.msra.mxu0 0
    %7150 = vmatpush.bf16.msra.mxu0 %v5539
    %7151 = vmatmul.bf16.gmra.mxu0 %v7141
    %v7152 = vpop.f32.mrf.mxu0
    %v7153 = vadd.f32 0.0, %v7152
    %v7154 = vpop.f32.mrf.mxu0
    %7155 = vdwg.mxu0
    %v7156 = vpack.i.b16 %v7046, %v7046
    %v7157 = vperm.slane %v7156, 0
    %v7159 = vsel %vm784, %v7157, 0
    %7161 = vmatpush.bf16.msra.mxu0 0
    %7162 = vmatpush.bf16.msra.mxu0 0
    %7163 = vmatpush.bf16.msra.mxu0 0
    %7164 = vmatpush.bf16.msra.mxu0 0
    %7165 = vmatpush.bf16.msra.mxu0 0
    %7166 = vmatpush.bf16.msra.mxu0 0
    %7167 = vmatpush.bf16.msra.mxu0 0
    %7168 = vmatpush.bf16.msra.mxu0 %v5560
    %7169 = vmatmul.bf16.gmra.mxu0 %v7159
    %v7170 = vpop.f32.mrf.mxu0
    %v7171 = vadd.f32 0.0, %v7170
    %v7172 = vpop.f32.mrf.mxu0
    %7173 = vdwg.mxu0
    %v7174 = vpack.i.b16 %v7047, %v7047
    %v7175 = vperm.slane %v7174, 0
    %v7177 = vsel %vm784, %v7175, 0
    %7179 = vmatpush.bf16.msra.mxu0 0
    %7180 = vmatpush.bf16.msra.mxu0 0
    %7181 = vmatpush.bf16.msra.mxu0 0
    %7182 = vmatpush.bf16.msra.mxu0 0
    %7183 = vmatpush.bf16.msra.mxu0 0
    %7184 = vmatpush.bf16.msra.mxu0 0
    %7185 = vmatpush.bf16.msra.mxu0 0
    %7186 = vmatpush.bf16.msra.mxu0 %v5581
    %7187 = vmatmul.bf16.gmra.mxu0 %v7177
    %v7188 = vpop.f32.mrf.mxu0
    %v7189 = vadd.f32 0.0, %v7188
    %v7190 = vpop.f32.mrf.mxu0
    %7191 = vdwg.mxu0
    %v7192 = vunpack.c.l.b16 %v6805
    %v7193 = vpack.c.b16 %v7192, %v7192
    %7194 = vrot.lane.b32.xlu0 %v7193, 32
    %v7195 = vpop.permute.xlu0 %7194
    %v7197 = vsel %vm392, %v7195, 0
    %7199 = vmatpush.bf16.msra.mxu0 0
    %7200 = vmatpush.bf16.msra.mxu0 0
    %7201 = vmatpush.bf16.msra.mxu0 0
    %7202 = vmatpush.bf16.msra.mxu0 0
    %7203 = vmatpush.bf16.msra.mxu0 0
    %7204 = vmatpush.bf16.msra.mxu0 0
    %7205 = vmatpush.bf16.msra.mxu0 %v5109
    %7206 = vmatpush.bf16.msra.mxu0 %v5108
    %7207 = vmatmul.bf16.gmra.mxu0 %v7197
    %v7208 = vpop.f32.mrf.mxu0
    %v7209 = vadd.f32 0.0, %v7208
    %v7210 = vpop.f32.mrf.mxu0
    %7211 = vdwg.mxu0
    %v7213 = vrot.slane %v7209, 1
    %v7214 = vrot.slane %v7209, 2
    %v7215 = vrot.slane %v7209, 3
    %v7216 = vrot.slane %v7209, 4
    %v7217 = vrot.slane %v7209, 5
    %v7218 = vrot.slane %v7209, 6
    %v7219 = vrot.slane %v7209, 7
    %v7228 = vadd.f32 %v7063, %v7209
    %v7229 = vadd.f32 %v7081, %v7213
    %v7230 = vadd.f32 %v7099, %v7214
    %v7231 = vadd.f32 %v7117, %v7215
    %v7232 = vadd.f32 %v7135, %v7216
    %v7233 = vadd.f32 %v7153, %v7217
    %v7234 = vadd.f32 %v7171, %v7218
    %v7235 = vadd.f32 %v7189, %v7219
    %v7236 = vtanh.pop %v7228
    %v7237 = vtanh.pop %v7229
    %v7238 = vtanh.pop %v7230
    %v7239 = vtanh.pop %v7231
    %v7240 = vtanh.pop %v7232
    %v7241 = vtanh.pop %v7233
    %v7242 = vtanh.pop %v7234
    %v7243 = vtanh.pop %v7235
    %v7244 = vpack.c.bf16 %v7236, %v7236
    %v7245 = vpack.c.bf16 %v7237, %v7237
    %v7246 = vpack.c.bf16 %v7238, %v7238
    %v7247 = vpack.c.bf16 %v7239, %v7239
    %v7248 = vpack.c.bf16 %v7240, %v7240
    %v7249 = vpack.c.bf16 %v7241, %v7241
    %v7250 = vpack.c.bf16 %v7242, %v7242
    %v7251 = vpack.c.bf16 %v7243, %v7243
    %v7260 = vunpack.c.l.b16 %v7244
    %v7261 = vunpack.c.l.b16 %v7245
    %v7262 = vunpack.c.l.b16 %v7246
    %v7263 = vunpack.c.l.b16 %v7247
    %v7264 = vunpack.c.l.b16 %v7248
    %v7265 = vunpack.c.l.b16 %v7249
    %v7266 = vunpack.c.l.b16 %v7250
    %v7267 = vunpack.c.l.b16 %v7251
    %v7268 = vrot.slane %v7261, 7
    %v7269 = vsel %vm552, %v7268, %v7260
    %v7270 = vrot.slane %v7262, 6
    %v7271 = vsel %vm556, %v7270, %v7269
    %v7272 = vrot.slane %v7263, 5
    %v7273 = vsel %vm560, %v7272, %v7271
    %v7274 = vrot.slane %v7264, 4
    %v7275 = vsel %vm771, %v7274, %v7273
    %v7276 = vrot.slane %v7265, 3
    %v7277 = vsel %vm774, %v7276, %v7275
    %v7278 = vrot.slane %v7266, 2
    %v7279 = vsel %vm777, %v7278, %v7277
    %v7280 = vrot.slane %v7267, 1
    %v7281 = vsel %vm780, %v7280, %v7279
    %v7282 = vpack.c.b16 %v7281, %v7281
    %v7284 = vsel %vm392, %v7282, 0
    %7286 = vmatpush.bf16.msra.mxu0 0
    %7287 = vmatpush.bf16.msra.mxu0 0
    %7288 = vmatpush.bf16.msra.mxu0 0
    %7289 = vmatpush.bf16.msra.mxu0 0
    %7290 = vmatpush.bf16.msra.mxu0 0
    %7291 = vmatpush.bf16.msra.mxu0 0
    %7292 = vmatpush.bf16.msra.mxu0 %v5107
    %7293 = vmatpush.bf16.msra.mxu0 %v5106
    %7294 = vmatmul.bf16.gmra.mxu0 %v7284
    %v7295 = vpop.f32.mrf.mxu0
    %v7296 = vadd.f32 0.0, %v7295
    %v7297 = vpop.f32.mrf.mxu0
    %7298 = vdwg.mxu0
    %v7299 = vadd.f32 %v5019, %v7296
    %v7300 = vxor.u32 %v7299, 2147483648
    %v7301 = vmul.f32 %v7300, 1.442695
    %v7302 = vpow.pop %v7301
    %v7303 = vadd.f32 %v7302, 1.0
    %v7304 = vrcp.pop %v7303
    %v7305 = vmul.f32 %v7303, %v7304
    %v7306 = vsub.f32 1.0, %v7305
    %v7307 = vmul.f32 %v7304, %v7306
    %v7308 = vadd.f32 %v7304, %v7307
    %vm7309 = vweird.f32 %v7303
    %vm7310 = vweird.f32 %v7304
    %vm7311 = vmor %vm7309, %vm7310
    %v7312 = vsel %vm7311, %v7304, %v7308
    %v7313 = vand.u32 2147483647, %v7303
    %vm7314 = vcmp.eq.f32.partialorder %v7313, 8.507059e+37
    %v7315 = vand.u32 %v7303, 2147483648
    %v7316 = vor.u32 1.1754944e-38, %v7315
    %v7317 = vsel %vm7314, %v7316, %v7312
    %v7318 = vmul.f32 1.0, %v7317
    %v7319 = vtanh.pop %v7299
    %v7320 = vmul.f32 %v7318, %v6798
    %7322 = vrot.lane.b32.xlu0 %v7319, 64
    %v7323 = vpop.permute.xlu0 %7322
    %v7325 = vmul.f32 %v7318, %v7323
    %7327 = vrot.lane.b32.xlu0 %v7325, 32
    %v7328 = vpop.permute.xlu0 %7327
    %v7330 = vadd.f32 %v7320, %v7328
    %v7331 = vtanh.pop %v7330
    %7333 = vrot.lane.b32.xlu0 %v7331, 64
    %v7334 = vpop.permute.xlu0 %7333
    %v7336 = vmul.f32 %v7318, %v7334
    %v7337 = vpack.c.bf16 %v7336, %v7336
    %v7339 = vrot.slane %v7337, 3
    %v7342 = vsel %vm547, %v7337, %v7339
    %v7344 = vsel %vm552, %v7337, %v7339
    %v7346 = vrot.slane %v7344, 1
    %v7347 = vsel %vm556, %v7337, %v7339
    %v7349 = vrot.slane %v7347, 2
    %v7350 = vsel %vm560, %v7337, %v7339
    %v7352 = vrot.slane %v7350, 3
    %v7353 = vunpack.i.l.s16 %v7342
    %v7354 = vunpack.i.h.s16 %v7342
    %v7355 = vunpack.i.l.s16 %v7346
    %v7356 = vunpack.i.h.s16 %v7346
    %v7357 = vunpack.i.l.s16 %v7349
    %v7358 = vunpack.i.h.s16 %v7349
    %v7359 = vunpack.i.l.s16 %v7352
    %v7360 = vunpack.i.h.s16 %v7352
    %v7361 = vpack.i.b16 %v7353, %v7353
    %v7362 = vperm.slane %v7361, 0
    %7363 = vrot.lane.b32.xlu0 %v7362, 32
    %v7364 = vpop.permute.xlu0 %7363
    %v7366 = vsel %vm392, %v7364, 0
    %7368 = vmatpush.bf16.xpose.msra.mxu0 0
    %7369 = vmatpush.bf16.xpose.msra.mxu0 0
    %7370 = vmatpush.bf16.xpose.msra.mxu0 0
    %7371 = vmatpush.bf16.xpose.msra.mxu0 0
    %7372 = vmatpush.bf16.xpose.msra.mxu0 0
    %7373 = vmatpush.bf16.xpose.msra.mxu0 0
    %7374 = vmatpush.bf16.xpose.msra.mxu0 0
    %7375 = vmatpush.bf16.xpose.msra.mxu0 %v5193
    %7376 = vmatmul.bf16.gmra.mxu0 %v7366
    %v7377 = vpop.f32.mrf.mxu0
    %v7378 = vadd.f32 0.0, %v7377
    %v7379 = vpop.f32.mrf.mxu0
    %7380 = vdwg.mxu0
    %v7381 = vpack.i.b16 %v7354, %v7354
    %v7382 = vperm.slane %v7381, 0
    %7383 = vrot.lane.b32.xlu0 %v7382, 32
    %v7384 = vpop.permute.xlu0 %7383
    %v7386 = vsel %vm392, %v7384, 0
    %7388 = vmatpush.bf16.xpose.msra.mxu0 0
    %7389 = vmatpush.bf16.xpose.msra.mxu0 0
    %7390 = vmatpush.bf16.xpose.msra.mxu0 0
    %7391 = vmatpush.bf16.xpose.msra.mxu0 0
    %7392 = vmatpush.bf16.xpose.msra.mxu0 0
    %7393 = vmatpush.bf16.xpose.msra.mxu0 0
    %7394 = vmatpush.bf16.xpose.msra.mxu0 0
    %7395 = vmatpush.bf16.xpose.msra.mxu0 %v5216
    %7396 = vmatmul.bf16.gmra.mxu0 %v7386
    %v7397 = vpop.f32.mrf.mxu0
    %v7398 = vadd.f32 0.0, %v7397
    %v7399 = vpop.f32.mrf.mxu0
    %7400 = vdwg.mxu0
    %v7401 = vpack.i.b16 %v7355, %v7355
    %v7402 = vperm.slane %v7401, 0
    %7403 = vrot.lane.b32.xlu0 %v7402, 32
    %v7404 = vpop.permute.xlu0 %7403
    %v7406 = vsel %vm392, %v7404, 0
    %7408 = vmatpush.bf16.xpose.msra.mxu0 0
    %7409 = vmatpush.bf16.xpose.msra.mxu0 0
    %7410 = vmatpush.bf16.xpose.msra.mxu0 0
    %7411 = vmatpush.bf16.xpose.msra.mxu0 0
    %7412 = vmatpush.bf16.xpose.msra.mxu0 0
    %7413 = vmatpush.bf16.xpose.msra.mxu0 0
    %7414 = vmatpush.bf16.xpose.msra.mxu0 0
    %7415 = vmatpush.bf16.xpose.msra.mxu0 %v5239
    %7416 = vmatmul.bf16.gmra.mxu0 %v7406
    %v7417 = vpop.f32.mrf.mxu0
    %v7418 = vadd.f32 0.0, %v7417
    %v7419 = vpop.f32.mrf.mxu0
    %7420 = vdwg.mxu0
    %v7421 = vpack.i.b16 %v7356, %v7356
    %v7422 = vperm.slane %v7421, 0
    %7423 = vrot.lane.b32.xlu0 %v7422, 32
    %v7424 = vpop.permute.xlu0 %7423
    %v7426 = vsel %vm392, %v7424, 0
    %7428 = vmatpush.bf16.xpose.msra.mxu0 0
    %7429 = vmatpush.bf16.xpose.msra.mxu0 0
    %7430 = vmatpush.bf16.xpose.msra.mxu0 0
    %7431 = vmatpush.bf16.xpose.msra.mxu0 0
    %7432 = vmatpush.bf16.xpose.msra.mxu0 0
    %7433 = vmatpush.bf16.xpose.msra.mxu0 0
    %7434 = vmatpush.bf16.xpose.msra.mxu0 0
    %7435 = vmatpush.bf16.xpose.msra.mxu0 %v5262
    %7436 = vmatmul.bf16.gmra.mxu0 %v7426
    %v7437 = vpop.f32.mrf.mxu0
    %v7438 = vadd.f32 0.0, %v7437
    %v7439 = vpop.f32.mrf.mxu0
    %7440 = vdwg.mxu0
    %v7441 = vpack.i.b16 %v7357, %v7357
    %v7442 = vperm.slane %v7441, 0
    %7443 = vrot.lane.b32.xlu0 %v7442, 32
    %v7444 = vpop.permute.xlu0 %7443
    %v7446 = vsel %vm392, %v7444, 0
    %7448 = vmatpush.bf16.xpose.msra.mxu0 0
    %7449 = vmatpush.bf16.xpose.msra.mxu0 0
    %7450 = vmatpush.bf16.xpose.msra.mxu0 0
    %7451 = vmatpush.bf16.xpose.msra.mxu0 0
    %7452 = vmatpush.bf16.xpose.msra.mxu0 0
    %7453 = vmatpush.bf16.xpose.msra.mxu0 0
    %7454 = vmatpush.bf16.xpose.msra.mxu0 0
    %7455 = vmatpush.bf16.xpose.msra.mxu0 %v5285
    %7456 = vmatmul.bf16.gmra.mxu0 %v7446
    %v7457 = vpop.f32.mrf.mxu0
    %v7458 = vadd.f32 0.0, %v7457
    %v7459 = vpop.f32.mrf.mxu0
    %7460 = vdwg.mxu0
    %v7461 = vpack.i.b16 %v7358, %v7358
    %v7462 = vperm.slane %v7461, 0
    %7463 = vrot.lane.b32.xlu0 %v7462, 32
    %v7464 = vpop.permute.xlu0 %7463
    %v7466 = vsel %vm392, %v7464, 0
    %7468 = vmatpush.bf16.xpose.msra.mxu0 0
    %7469 = vmatpush.bf16.xpose.msra.mxu0 0
    %7470 = vmatpush.bf16.xpose.msra.mxu0 0
    %7471 = vmatpush.bf16.xpose.msra.mxu0 0
    %7472 = vmatpush.bf16.xpose.msra.mxu0 0
    %7473 = vmatpush.bf16.xpose.msra.mxu0 0
    %7474 = vmatpush.bf16.xpose.msra.mxu0 0
    %7475 = vmatpush.bf16.xpose.msra.mxu0 %v5308
    %7476 = vmatmul.bf16.gmra.mxu0 %v7466
    %v7477 = vpop.f32.mrf.mxu0
    %v7478 = vadd.f32 0.0, %v7477
    %v7479 = vpop.f32.mrf.mxu0
    %7480 = vdwg.mxu0
    %v7481 = vpack.i.b16 %v7359, %v7359
    %v7482 = vperm.slane %v7481, 0
    %7483 = vrot.lane.b32.xlu0 %v7482, 32
    %v7484 = vpop.permute.xlu0 %7483
    %v7486 = vsel %vm392, %v7484, 0
    %7488 = vmatpush.bf16.xpose.msra.mxu0 0
    %7489 = vmatpush.bf16.xpose.msra.mxu0 0
    %7490 = vmatpush.bf16.xpose.msra.mxu0 0
    %7491 = vmatpush.bf16.xpose.msra.mxu0 0
    %7492 = vmatpush.bf16.xpose.msra.mxu0 0
    %7493 = vmatpush.bf16.xpose.msra.mxu0 0
    %7494 = vmatpush.bf16.xpose.msra.mxu0 0
    %7495 = vmatpush.bf16.xpose.msra.mxu0 %v5331
    %7496 = vmatmul.bf16.gmra.mxu0 %v7486
    %v7497 = vpop.f32.mrf.mxu0
    %v7498 = vadd.f32 0.0, %v7497
    %v7499 = vpop.f32.mrf.mxu0
    %7500 = vdwg.mxu0
    %v7501 = vpack.i.b16 %v7360, %v7360
    %v7502 = vperm.slane %v7501, 0
    %7503 = vrot.lane.b32.xlu0 %v7502, 32
    %v7504 = vpop.permute.xlu0 %7503
    %v7506 = vsel %vm392, %v7504, 0
    %7508 = vmatpush.bf16.xpose.msra.mxu0 0
    %7509 = vmatpush.bf16.xpose.msra.mxu0 0
    %7510 = vmatpush.bf16.xpose.msra.mxu0 0
    %7511 = vmatpush.bf16.xpose.msra.mxu0 0
    %7512 = vmatpush.bf16.xpose.msra.mxu0 0
    %7513 = vmatpush.bf16.xpose.msra.mxu0 0
    %7514 = vmatpush.bf16.xpose.msra.mxu0 0
    %7515 = vmatpush.bf16.xpose.msra.mxu0 %v5354
    %7516 = vmatmul.bf16.gmra.mxu0 %v7506
    %v7517 = vpop.f32.mrf.mxu0
    %v7518 = vadd.f32 0.0, %v7517
    %v7519 = vpop.f32.mrf.mxu0
    %7520 = vdwg.mxu0
    %v7529 = vrot.slane %v7398, 7
    %v7530 = vsel %vm552, %v7529, %v7378
    %v7531 = vrot.slane %v7418, 6
    %v7532 = vsel %vm556, %v7531, %v7530
    %v7533 = vrot.slane %v7438, 5
    %v7534 = vsel %vm560, %v7533, %v7532
    %v7535 = vrot.slane %v7458, 4
    %v7536 = vsel %vm771, %v7535, %v7534
    %v7537 = vrot.slane %v7478, 3
    %v7538 = vsel %vm774, %v7537, %v7536
    %v7539 = vrot.slane %v7498, 2
    %v7540 = vsel %vm777, %v7539, %v7538
    %v7541 = vrot.slane %v7518, 1
    %v7542 = vsel %vm780, %v7541, %v7540
    %v7544 = vsel %vm308, -inf, %v7542
    %v7545 = vsel %vm784, %v7544, -inf
    %7546 = vmax.xlane.f32.xlu0 %v7545
    %v7547 = vpop.xlane.xlu0 %7546
    %v7548 = vsub.f32 %v7544, %v7547
    %v7549 = vmul.f32 %v7548, 1.442695
    %v7550 = vpow.pop %v7549
    %v7551 = vsel %vm784, %v7550, 0.0
    %7552 = vadd.xlane.f32.xlu0 %v7551
    %v7553 = vpop.xlane.xlu0 %7552
    %v7554 = vrcp.pop %v7553
    %v7555 = vmul.f32 %v7550, %v7554
    %v7556 = vpack.c.bf16 %v7555, %v7555
    %v7558 = vrot.slane %v7556, 3
    %v7561 = vsel %vm547, %v7556, %v7558
    %v7563 = vsel %vm552, %v7556, %v7558
    %v7565 = vrot.slane %v7563, 1
    %v7566 = vsel %vm556, %v7556, %v7558
    %v7568 = vrot.slane %v7566, 2
    %v7569 = vsel %vm560, %v7556, %v7558
    %v7571 = vrot.slane %v7569, 3
    %v7572 = vunpack.i.l.s16 %v7561
    %v7573 = vunpack.i.h.s16 %v7561
    %v7574 = vunpack.i.l.s16 %v7565
    %v7575 = vunpack.i.h.s16 %v7565
    %v7576 = vunpack.i.l.s16 %v7568
    %v7577 = vunpack.i.h.s16 %v7568
    %v7578 = vunpack.i.l.s16 %v7571
    %v7579 = vunpack.i.h.s16 %v7571
    %v7580 = vpack.i.b16 %v7572, %v7572
    %v7581 = vperm.slane %v7580, 0
    %v7583 = vsel %vm784, %v7581, 0
    %7585 = vmatpush.bf16.msra.mxu0 0
    %7586 = vmatpush.bf16.msra.mxu0 0
    %7587 = vmatpush.bf16.msra.mxu0 0
    %7588 = vmatpush.bf16.msra.mxu0 0
    %7589 = vmatpush.bf16.msra.mxu0 0
    %7590 = vmatpush.bf16.msra.mxu0 0
    %7591 = vmatpush.bf16.msra.mxu0 0
    %7592 = vmatpush.bf16.msra.mxu0 %v5434
    %7593 = vmatmul.bf16.gmra.mxu0 %v7583
    %v7594 = vpop.f32.mrf.mxu0
    %v7595 = vadd.f32 0.0, %v7594
    %v7596 = vpop.f32.mrf.mxu0
    %7597 = vdwg.mxu0
    %v7598 = vpack.i.b16 %v7573, %v7573
    %v7599 = vperm.slane %v7598, 0
    %v7601 = vsel %vm784, %v7599, 0
    %7603 = vmatpush.bf16.msra.mxu0 0
    %7604 = vmatpush.bf16.msra.mxu0 0
    %7605 = vmatpush.bf16.msra.mxu0 0
    %7606 = vmatpush.bf16.msra.mxu0 0
    %7607 = vmatpush.bf16.msra.mxu0 0
    %7608 = vmatpush.bf16.msra.mxu0 0
    %7609 = vmatpush.bf16.msra.mxu0 0
    %7610 = vmatpush.bf16.msra.mxu0 %v5455
    %7611 = vmatmul.bf16.gmra.mxu0 %v7601
    %v7612 = vpop.f32.mrf.mxu0
    %v7613 = vadd.f32 0.0, %v7612
    %v7614 = vpop.f32.mrf.mxu0
    %7615 = vdwg.mxu0
    %v7616 = vpack.i.b16 %v7574, %v7574
    %v7617 = vperm.slane %v7616, 0
    %v7619 = vsel %vm784, %v7617, 0
    %7621 = vmatpush.bf16.msra.mxu0 0
    %7622 = vmatpush.bf16.msra.mxu0 0
    %7623 = vmatpush.bf16.msra.mxu0 0
    %7624 = vmatpush.bf16.msra.mxu0 0
    %7625 = vmatpush.bf16.msra.mxu0 0
    %7626 = vmatpush.bf16.msra.mxu0 0
    %7627 = vmatpush.bf16.msra.mxu0 0
    %7628 = vmatpush.bf16.msra.mxu0 %v5476
    %7629 = vmatmul.bf16.gmra.mxu0 %v7619
    %v7630 = vpop.f32.mrf.mxu0
    %v7631 = vadd.f32 0.0, %v7630
    %v7632 = vpop.f32.mrf.mxu0
    %7633 = vdwg.mxu0
    %v7634 = vpack.i.b16 %v7575, %v7575
    %v7635 = vperm.slane %v7634, 0
    %v7637 = vsel %vm784, %v7635, 0
    %7639 = vmatpush.bf16.msra.mxu0 0
    %7640 = vmatpush.bf16.msra.mxu0 0
    %7641 = vmatpush.bf16.msra.mxu0 0
    %7642 = vmatpush.bf16.msra.mxu0 0
    %7643 = vmatpush.bf16.msra.mxu0 0
    %7644 = vmatpush.bf16.msra.mxu0 0
    %7645 = vmatpush.bf16.msra.mxu0 0
    %7646 = vmatpush.bf16.msra.mxu0 %v5497
    %7647 = vmatmul.bf16.gmra.mxu0 %v7637
    %v7648 = vpop.f32.mrf.mxu0
    %v7649 = vadd.f32 0.0, %v7648
    %v7650 = vpop.f32.mrf.mxu0
    %7651 = vdwg.mxu0
    %v7652 = vpack.i.b16 %v7576, %v7576
    %v7653 = vperm.slane %v7652, 0
    %v7655 = vsel %vm784, %v7653, 0
    %7657 = vmatpush.bf16.msra.mxu0 0
    %7658 = vmatpush.bf16.msra.mxu0 0
    %7659 = vmatpush.bf16.msra.mxu0 0
    %7660 = vmatpush.bf16.msra.mxu0 0
    %7661 = vmatpush.bf16.msra.mxu0 0
    %7662 = vmatpush.bf16.msra.mxu0 0
    %7663 = vmatpush.bf16.msra.mxu0 0
    %7664 = vmatpush.bf16.msra.mxu0 %v5518
    %7665 = vmatmul.bf16.gmra.mxu0 %v7655
    %v7666 = vpop.f32.mrf.mxu0
    %v7667 = vadd.f32 0.0, %v7666
    %v7668 = vpop.f32.mrf.mxu0
    %7669 = vdwg.mxu0
    %v7670 = vpack.i.b16 %v7577, %v7577
    %v7671 = vperm.slane %v7670, 0
    %v7673 = vsel %vm784, %v7671, 0
    %7675 = vmatpush.bf16.msra.mxu0 0
    %7676 = vmatpush.bf16.msra.mxu0 0
    %7677 = vmatpush.bf16.msra.mxu0 0
    %7678 = vmatpush.bf16.msra.mxu0 0
    %7679 = vmatpush.bf16.msra.mxu0 0
    %7680 = vmatpush.bf16.msra.mxu0 0
    %7681 = vmatpush.bf16.msra.mxu0 0
    %7682 = vmatpush.bf16.msra.mxu0 %v5539
    %7683 = vmatmul.bf16.gmra.mxu0 %v7673
    %v7684 = vpop.f32.mrf.mxu0
    %v7685 = vadd.f32 0.0, %v7684
    %v7686 = vpop.f32.mrf.mxu0
    %7687 = vdwg.mxu0
    %v7688 = vpack.i.b16 %v7578, %v7578
    %v7689 = vperm.slane %v7688, 0
    %v7691 = vsel %vm784, %v7689, 0
    %7693 = vmatpush.bf16.msra.mxu0 0
    %7694 = vmatpush.bf16.msra.mxu0 0
    %7695 = vmatpush.bf16.msra.mxu0 0
    %7696 = vmatpush.bf16.msra.mxu0 0
    %7697 = vmatpush.bf16.msra.mxu0 0
    %7698 = vmatpush.bf16.msra.mxu0 0
    %7699 = vmatpush.bf16.msra.mxu0 0
    %7700 = vmatpush.bf16.msra.mxu0 %v5560
    %7701 = vmatmul.bf16.gmra.mxu0 %v7691
    %v7702 = vpop.f32.mrf.mxu0
    %v7703 = vadd.f32 0.0, %v7702
    %v7704 = vpop.f32.mrf.mxu0
    %7705 = vdwg.mxu0
    %v7706 = vpack.i.b16 %v7579, %v7579
    %v7707 = vperm.slane %v7706, 0
    %v7709 = vsel %vm784, %v7707, 0
    %7711 = vmatpush.bf16.msra.mxu0 0
    %7712 = vmatpush.bf16.msra.mxu0 0
    %7713 = vmatpush.bf16.msra.mxu0 0
    %7714 = vmatpush.bf16.msra.mxu0 0
    %7715 = vmatpush.bf16.msra.mxu0 0
    %7716 = vmatpush.bf16.msra.mxu0 0
    %7717 = vmatpush.bf16.msra.mxu0 0
    %7718 = vmatpush.bf16.msra.mxu0 %v5581
    %7719 = vmatmul.bf16.gmra.mxu0 %v7709
    %v7720 = vpop.f32.mrf.mxu0
    %v7721 = vadd.f32 0.0, %v7720
    %v7722 = vpop.f32.mrf.mxu0
    %7723 = vdwg.mxu0
    %v7724 = vunpack.c.l.b16 %v7337
    %v7725 = vpack.c.b16 %v7724, %v7724
    %7726 = vrot.lane.b32.xlu0 %v7725, 32
    %v7727 = vpop.permute.xlu0 %7726
    %v7729 = vsel %vm392, %v7727, 0
    %7731 = vmatpush.bf16.msra.mxu0 0
    %7732 = vmatpush.bf16.msra.mxu0 0
    %7733 = vmatpush.bf16.msra.mxu0 0
    %7734 = vmatpush.bf16.msra.mxu0 0
    %7735 = vmatpush.bf16.msra.mxu0 0
    %7736 = vmatpush.bf16.msra.mxu0 0
    %7737 = vmatpush.bf16.msra.mxu0 %v5109
    %7738 = vmatpush.bf16.msra.mxu0 %v5108
    %7739 = vmatmul.bf16.gmra.mxu0 %v7729
    %v7740 = vpop.f32.mrf.mxu0
    %v7741 = vadd.f32 0.0, %v7740
    %v7742 = vpop.f32.mrf.mxu0
    %7743 = vdwg.mxu0
    %v7745 = vrot.slane %v7741, 1
    %v7746 = vrot.slane %v7741, 2
    %v7747 = vrot.slane %v7741, 3
    %v7748 = vrot.slane %v7741, 4
    %v7749 = vrot.slane %v7741, 5
    %v7750 = vrot.slane %v7741, 6
    %v7751 = vrot.slane %v7741, 7
    %v7760 = vadd.f32 %v7595, %v7741
    %v7761 = vadd.f32 %v7613, %v7745
    %v7762 = vadd.f32 %v7631, %v7746
    %v7763 = vadd.f32 %v7649, %v7747
    %v7764 = vadd.f32 %v7667, %v7748
    %v7765 = vadd.f32 %v7685, %v7749
    %v7766 = vadd.f32 %v7703, %v7750
    %v7767 = vadd.f32 %v7721, %v7751
    %v7768 = vtanh.pop %v7760
    %v7769 = vtanh.pop %v7761
    %v7770 = vtanh.pop %v7762
    %v7771 = vtanh.pop %v7763
    %v7772 = vtanh.pop %v7764
    %v7773 = vtanh.pop %v7765
    %v7774 = vtanh.pop %v7766
    %v7775 = vtanh.pop %v7767
    %v7776 = vpack.c.bf16 %v7768, %v7768
    %v7777 = vpack.c.bf16 %v7769, %v7769
    %v7778 = vpack.c.bf16 %v7770, %v7770
    %v7779 = vpack.c.bf16 %v7771, %v7771
    %v7780 = vpack.c.bf16 %v7772, %v7772
    %v7781 = vpack.c.bf16 %v7773, %v7773
    %v7782 = vpack.c.bf16 %v7774, %v7774
    %v7783 = vpack.c.bf16 %v7775, %v7775
    %v7792 = vunpack.c.l.b16 %v7776
    %v7793 = vunpack.c.l.b16 %v7777
    %v7794 = vunpack.c.l.b16 %v7778
    %v7795 = vunpack.c.l.b16 %v7779
    %v7796 = vunpack.c.l.b16 %v7780
    %v7797 = vunpack.c.l.b16 %v7781
    %v7798 = vunpack.c.l.b16 %v7782
    %v7799 = vunpack.c.l.b16 %v7783
    %v7800 = vrot.slane %v7793, 7
    %v7801 = vsel %vm552, %v7800, %v7792
    %v7802 = vrot.slane %v7794, 6
    %v7803 = vsel %vm556, %v7802, %v7801
    %v7804 = vrot.slane %v7795, 5
    %v7805 = vsel %vm560, %v7804, %v7803
    %v7806 = vrot.slane %v7796, 4
    %v7807 = vsel %vm771, %v7806, %v7805
    %v7808 = vrot.slane %v7797, 3
    %v7809 = vsel %vm774, %v7808, %v7807
    %v7810 = vrot.slane %v7798, 2
    %v7811 = vsel %vm777, %v7810, %v7809
    %v7812 = vrot.slane %v7799, 1
    %v7813 = vsel %vm780, %v7812, %v7811
    %v7814 = vpack.c.b16 %v7813, %v7813
    %v7816 = vsel %vm392, %v7814, 0
    %7818 = vmatpush.bf16.msra.mxu0 0
    %7819 = vmatpush.bf16.msra.mxu0 0
    %7820 = vmatpush.bf16.msra.mxu0 0
    %7821 = vmatpush.bf16.msra.mxu0 0
    %7822 = vmatpush.bf16.msra.mxu0 0
    %7823 = vmatpush.bf16.msra.mxu0 0
    %7824 = vmatpush.bf16.msra.mxu0 %v5107
    %7825 = vmatpush.bf16.msra.mxu0 %v5106
    %7826 = vmatmul.bf16.gmra.mxu0 %v7816
    %v7827 = vpop.f32.mrf.mxu0
    %v7828 = vadd.f32 0.0, %v7827
    %v7829 = vpop.f32.mrf.mxu0
    %7830 = vdwg.mxu0
    %v7831 = vadd.f32 %v5021, %v7828
    %v7832 = vxor.u32 %v7831, 2147483648
    %v7833 = vmul.f32 %v7832, 1.442695
    %v7834 = vpow.pop %v7833
    %v7835 = vadd.f32 %v7834, 1.0
    %v7836 = vrcp.pop %v7835
    %v7837 = vmul.f32 %v7835, %v7836
    %v7838 = vsub.f32 1.0, %v7837
    %v7839 = vmul.f32 %v7836, %v7838
    %v7840 = vadd.f32 %v7836, %v7839
    %vm7841 = vweird.f32 %v7835
    %vm7842 = vweird.f32 %v7836
    %vm7843 = vmor %vm7841, %vm7842
    %v7844 = vsel %vm7843, %v7836, %v7840
    %v7845 = vand.u32 2147483647, %v7835
    %vm7846 = vcmp.eq.f32.partialorder %v7845, 8.507059e+37
    %v7847 = vand.u32 %v7835, 2147483648
    %v7848 = vor.u32 1.1754944e-38, %v7847
    %v7849 = vsel %vm7846, %v7848, %v7844
    %v7850 = vmul.f32 1.0, %v7849
    %v7851 = vtanh.pop %v7831
    %v7852 = vmul.f32 %v7850, %v7330
    %7854 = vrot.lane.b32.xlu0 %v7851, 64
    %v7855 = vpop.permute.xlu0 %7854
    %v7857 = vmul.f32 %v7850, %v7855
    %7859 = vrot.lane.b32.xlu0 %v7857, 32
    %v7860 = vpop.permute.xlu0 %7859
    %v7862 = vadd.f32 %v7852, %v7860
    %v7863 = vtanh.pop %v7862
    %7865 = vrot.lane.b32.xlu0 %v7863, 64
    %v7866 = vpop.permute.xlu0 %7865
    %v7868 = vmul.f32 %v7850, %v7866
    %v7869 = vpack.c.bf16 %v7868, %v7868
    %v7871 = vrot.slane %v7869, 3
    %v7874 = vsel %vm547, %v7869, %v7871
    %v7876 = vsel %vm552, %v7869, %v7871
    %v7878 = vrot.slane %v7876, 1
    %v7879 = vsel %vm556, %v7869, %v7871
    %v7881 = vrot.slane %v7879, 2
    %v7882 = vsel %vm560, %v7869, %v7871
    %v7884 = vrot.slane %v7882, 3
    %v7885 = vunpack.i.l.s16 %v7874
    %v7886 = vunpack.i.h.s16 %v7874
    %v7887 = vunpack.i.l.s16 %v7878
    %v7888 = vunpack.i.h.s16 %v7878
    %v7889 = vunpack.i.l.s16 %v7881
    %v7890 = vunpack.i.h.s16 %v7881
    %v7891 = vunpack.i.l.s16 %v7884
    %v7892 = vunpack.i.h.s16 %v7884
    %v7893 = vpack.i.b16 %v7885, %v7885
    %v7894 = vperm.slane %v7893, 0
    %7895 = vrot.lane.b32.xlu0 %v7894, 32
    %v7896 = vpop.permute.xlu0 %7895
    %v7898 = vsel %vm392, %v7896, 0
    %7900 = vmatpush.bf16.xpose.msra.mxu0 0
    %7901 = vmatpush.bf16.xpose.msra.mxu0 0
    %7902 = vmatpush.bf16.xpose.msra.mxu0 0
    %7903 = vmatpush.bf16.xpose.msra.mxu0 0
    %7904 = vmatpush.bf16.xpose.msra.mxu0 0
    %7905 = vmatpush.bf16.xpose.msra.mxu0 0
    %7906 = vmatpush.bf16.xpose.msra.mxu0 0
    %7907 = vmatpush.bf16.xpose.msra.mxu0 %v5193
    %7908 = vmatmul.bf16.gmra.mxu0 %v7898
    %v7909 = vpop.f32.mrf.mxu0
    %v7910 = vadd.f32 0.0, %v7909
    %v7911 = vpop.f32.mrf.mxu0
    %7912 = vdwg.mxu0
    %v7913 = vpack.i.b16 %v7886, %v7886
    %v7914 = vperm.slane %v7913, 0
    %7915 = vrot.lane.b32.xlu0 %v7914, 32
    %v7916 = vpop.permute.xlu0 %7915
    %v7918 = vsel %vm392, %v7916, 0
    %7920 = vmatpush.bf16.xpose.msra.mxu0 0
    %7921 = vmatpush.bf16.xpose.msra.mxu0 0
    %7922 = vmatpush.bf16.xpose.msra.mxu0 0
    %7923 = vmatpush.bf16.xpose.msra.mxu0 0
    %7924 = vmatpush.bf16.xpose.msra.mxu0 0
    %7925 = vmatpush.bf16.xpose.msra.mxu0 0
    %7926 = vmatpush.bf16.xpose.msra.mxu0 0
    %7927 = vmatpush.bf16.xpose.msra.mxu0 %v5216
    %7928 = vmatmul.bf16.gmra.mxu0 %v7918
    %v7929 = vpop.f32.mrf.mxu0
    %v7930 = vadd.f32 0.0, %v7929
    %v7931 = vpop.f32.mrf.mxu0
    %7932 = vdwg.mxu0
    %v7933 = vpack.i.b16 %v7887, %v7887
    %v7934 = vperm.slane %v7933, 0
    %7935 = vrot.lane.b32.xlu0 %v7934, 32
    %v7936 = vpop.permute.xlu0 %7935
    %v7938 = vsel %vm392, %v7936, 0
    %7940 = vmatpush.bf16.xpose.msra.mxu0 0
    %7941 = vmatpush.bf16.xpose.msra.mxu0 0
    %7942 = vmatpush.bf16.xpose.msra.mxu0 0
    %7943 = vmatpush.bf16.xpose.msra.mxu0 0
    %7944 = vmatpush.bf16.xpose.msra.mxu0 0
    %7945 = vmatpush.bf16.xpose.msra.mxu0 0
    %7946 = vmatpush.bf16.xpose.msra.mxu0 0
    %7947 = vmatpush.bf16.xpose.msra.mxu0 %v5239
    %7948 = vmatmul.bf16.gmra.mxu0 %v7938
    %v7949 = vpop.f32.mrf.mxu0
    %v7950 = vadd.f32 0.0, %v7949
    %v7951 = vpop.f32.mrf.mxu0
    %7952 = vdwg.mxu0
    %v7953 = vpack.i.b16 %v7888, %v7888
    %v7954 = vperm.slane %v7953, 0
    %7955 = vrot.lane.b32.xlu0 %v7954, 32
    %v7956 = vpop.permute.xlu0 %7955
    %v7958 = vsel %vm392, %v7956, 0
    %7960 = vmatpush.bf16.xpose.msra.mxu0 0
    %7961 = vmatpush.bf16.xpose.msra.mxu0 0
    %7962 = vmatpush.bf16.xpose.msra.mxu0 0
    %7963 = vmatpush.bf16.xpose.msra.mxu0 0
    %7964 = vmatpush.bf16.xpose.msra.mxu0 0
    %7965 = vmatpush.bf16.xpose.msra.mxu0 0
    %7966 = vmatpush.bf16.xpose.msra.mxu0 0
    %7967 = vmatpush.bf16.xpose.msra.mxu0 %v5262
    %7968 = vmatmul.bf16.gmra.mxu0 %v7958
    %v7969 = vpop.f32.mrf.mxu0
    %v7970 = vadd.f32 0.0, %v7969
    %v7971 = vpop.f32.mrf.mxu0
    %7972 = vdwg.mxu0
    %v7973 = vpack.i.b16 %v7889, %v7889
    %v7974 = vperm.slane %v7973, 0
    %7975 = vrot.lane.b32.xlu0 %v7974, 32
    %v7976 = vpop.permute.xlu0 %7975
    %v7978 = vsel %vm392, %v7976, 0
    %7980 = vmatpush.bf16.xpose.msra.mxu0 0
    %7981 = vmatpush.bf16.xpose.msra.mxu0 0
    %7982 = vmatpush.bf16.xpose.msra.mxu0 0
    %7983 = vmatpush.bf16.xpose.msra.mxu0 0
    %7984 = vmatpush.bf16.xpose.msra.mxu0 0
    %7985 = vmatpush.bf16.xpose.msra.mxu0 0
    %7986 = vmatpush.bf16.xpose.msra.mxu0 0
    %7987 = vmatpush.bf16.xpose.msra.mxu0 %v5285
    %7988 = vmatmul.bf16.gmra.mxu0 %v7978
    %v7989 = vpop.f32.mrf.mxu0
    %v7990 = vadd.f32 0.0, %v7989
    %v7991 = vpop.f32.mrf.mxu0
    %7992 = vdwg.mxu0
    %v7993 = vpack.i.b16 %v7890, %v7890
    %v7994 = vperm.slane %v7993, 0
    %7995 = vrot.lane.b32.xlu0 %v7994, 32
    %v7996 = vpop.permute.xlu0 %7995
    %v7998 = vsel %vm392, %v7996, 0
    %8000 = vmatpush.bf16.xpose.msra.mxu0 0
    %8001 = vmatpush.bf16.xpose.msra.mxu0 0
    %8002 = vmatpush.bf16.xpose.msra.mxu0 0
    %8003 = vmatpush.bf16.xpose.msra.mxu0 0
    %8004 = vmatpush.bf16.xpose.msra.mxu0 0
    %8005 = vmatpush.bf16.xpose.msra.mxu0 0
    %8006 = vmatpush.bf16.xpose.msra.mxu0 0
    %8007 = vmatpush.bf16.xpose.msra.mxu0 %v5308
    %8008 = vmatmul.bf16.gmra.mxu0 %v7998
    %v8009 = vpop.f32.mrf.mxu0
    %v8010 = vadd.f32 0.0, %v8009
    %v8011 = vpop.f32.mrf.mxu0
    %8012 = vdwg.mxu0
    %v8013 = vpack.i.b16 %v7891, %v7891
    %v8014 = vperm.slane %v8013, 0
    %8015 = vrot.lane.b32.xlu0 %v8014, 32
    %v8016 = vpop.permute.xlu0 %8015
    %v8018 = vsel %vm392, %v8016, 0
    %8020 = vmatpush.bf16.xpose.msra.mxu0 0
    %8021 = vmatpush.bf16.xpose.msra.mxu0 0
    %8022 = vmatpush.bf16.xpose.msra.mxu0 0
    %8023 = vmatpush.bf16.xpose.msra.mxu0 0
    %8024 = vmatpush.bf16.xpose.msra.mxu0 0
    %8025 = vmatpush.bf16.xpose.msra.mxu0 0
    %8026 = vmatpush.bf16.xpose.msra.mxu0 0
    %8027 = vmatpush.bf16.xpose.msra.mxu0 %v5331
    %8028 = vmatmul.bf16.gmra.mxu0 %v8018
    %v8029 = vpop.f32.mrf.mxu0
    %v8030 = vadd.f32 0.0, %v8029
    %v8031 = vpop.f32.mrf.mxu0
    %8032 = vdwg.mxu0
    %v8033 = vpack.i.b16 %v7892, %v7892
    %v8034 = vperm.slane %v8033, 0
    %8035 = vrot.lane.b32.xlu0 %v8034, 32
    %v8036 = vpop.permute.xlu0 %8035
    %v8038 = vsel %vm392, %v8036, 0
    %8040 = vmatpush.bf16.xpose.msra.mxu0 0
    %8041 = vmatpush.bf16.xpose.msra.mxu0 0
    %8042 = vmatpush.bf16.xpose.msra.mxu0 0
    %8043 = vmatpush.bf16.xpose.msra.mxu0 0
    %8044 = vmatpush.bf16.xpose.msra.mxu0 0
    %8045 = vmatpush.bf16.xpose.msra.mxu0 0
    %8046 = vmatpush.bf16.xpose.msra.mxu0 0
    %8047 = vmatpush.bf16.xpose.msra.mxu0 %v5354
    %8048 = vmatmul.bf16.gmra.mxu0 %v8038
    %v8049 = vpop.f32.mrf.mxu0
    %v8050 = vadd.f32 0.0, %v8049
    %v8051 = vpop.f32.mrf.mxu0
    %8052 = vdwg.mxu0
    %v8061 = vrot.slane %v7930, 7
    %v8062 = vsel %vm552, %v8061, %v7910
    %v8063 = vrot.slane %v7950, 6
    %v8064 = vsel %vm556, %v8063, %v8062
    %v8065 = vrot.slane %v7970, 5
    %v8066 = vsel %vm560, %v8065, %v8064
    %v8067 = vrot.slane %v7990, 4
    %v8068 = vsel %vm771, %v8067, %v8066
    %v8069 = vrot.slane %v8010, 3
    %v8070 = vsel %vm774, %v8069, %v8068
    %v8071 = vrot.slane %v8030, 2
    %v8072 = vsel %vm777, %v8071, %v8070
    %v8073 = vrot.slane %v8050, 1
    %v8074 = vsel %vm780, %v8073, %v8072
    %v8076 = vsel %vm308, -inf, %v8074
    %v8077 = vsel %vm784, %v8076, -inf
    %8078 = vmax.xlane.f32.xlu0 %v8077
    %v8079 = vpop.xlane.xlu0 %8078
    %v8080 = vsub.f32 %v8076, %v8079
    %v8081 = vmul.f32 %v8080, 1.442695
    %v8082 = vpow.pop %v8081
    %v8083 = vsel %vm784, %v8082, 0.0
    %8084 = vadd.xlane.f32.xlu0 %v8083
    %v8085 = vpop.xlane.xlu0 %8084
    %v8086 = vrcp.pop %v8085
    %v8087 = vmul.f32 %v8082, %v8086
    %v8088 = vpack.c.bf16 %v8087, %v8087
    %v8090 = vrot.slane %v8088, 3
    %v8093 = vsel %vm547, %v8088, %v8090
    %v8095 = vsel %vm552, %v8088, %v8090
    %v8097 = vrot.slane %v8095, 1
    %v8098 = vsel %vm556, %v8088, %v8090
    %v8100 = vrot.slane %v8098, 2
    %v8101 = vsel %vm560, %v8088, %v8090
    %v8103 = vrot.slane %v8101, 3
    %v8104 = vunpack.i.l.s16 %v8093
    %v8105 = vunpack.i.h.s16 %v8093
    %v8106 = vunpack.i.l.s16 %v8097
    %v8107 = vunpack.i.h.s16 %v8097
    %v8108 = vunpack.i.l.s16 %v8100
    %v8109 = vunpack.i.h.s16 %v8100
    %v8110 = vunpack.i.l.s16 %v8103
    %v8111 = vunpack.i.h.s16 %v8103
    %v8112 = vpack.i.b16 %v8104, %v8104
    %v8113 = vperm.slane %v8112, 0
    %v8115 = vsel %vm784, %v8113, 0
    %8117 = vmatpush.bf16.msra.mxu0 0
    %8118 = vmatpush.bf16.msra.mxu0 0
    %8119 = vmatpush.bf16.msra.mxu0 0
    %8120 = vmatpush.bf16.msra.mxu0 0
    %8121 = vmatpush.bf16.msra.mxu0 0
    %8122 = vmatpush.bf16.msra.mxu0 0
    %8123 = vmatpush.bf16.msra.mxu0 0
    %8124 = vmatpush.bf16.msra.mxu0 %v5434
    %8125 = vmatmul.bf16.gmra.mxu0 %v8115
    %v8126 = vpop.f32.mrf.mxu0
    %v8127 = vadd.f32 0.0, %v8126
    %v8128 = vpop.f32.mrf.mxu0
    %8129 = vdwg.mxu0
    %v8130 = vpack.i.b16 %v8105, %v8105
    %v8131 = vperm.slane %v8130, 0
    %v8133 = vsel %vm784, %v8131, 0
    %8135 = vmatpush.bf16.msra.mxu0 0
    %8136 = vmatpush.bf16.msra.mxu0 0
    %8137 = vmatpush.bf16.msra.mxu0 0
    %8138 = vmatpush.bf16.msra.mxu0 0
    %8139 = vmatpush.bf16.msra.mxu0 0
    %8140 = vmatpush.bf16.msra.mxu0 0
    %8141 = vmatpush.bf16.msra.mxu0 0
    %8142 = vmatpush.bf16.msra.mxu0 %v5455
    %8143 = vmatmul.bf16.gmra.mxu0 %v8133
    %v8144 = vpop.f32.mrf.mxu0
    %v8145 = vadd.f32 0.0, %v8144
    %v8146 = vpop.f32.mrf.mxu0
    %8147 = vdwg.mxu0
    %v8148 = vpack.i.b16 %v8106, %v8106
    %v8149 = vperm.slane %v8148, 0
    %v8151 = vsel %vm784, %v8149, 0
    %8153 = vmatpush.bf16.msra.mxu0 0
    %8154 = vmatpush.bf16.msra.mxu0 0
    %8155 = vmatpush.bf16.msra.mxu0 0
    %8156 = vmatpush.bf16.msra.mxu0 0
    %8157 = vmatpush.bf16.msra.mxu0 0
    %8158 = vmatpush.bf16.msra.mxu0 0
    %8159 = vmatpush.bf16.msra.mxu0 0
    %8160 = vmatpush.bf16.msra.mxu0 %v5476
    %8161 = vmatmul.bf16.gmra.mxu0 %v8151
    %v8162 = vpop.f32.mrf.mxu0
    %v8163 = vadd.f32 0.0, %v8162
    %v8164 = vpop.f32.mrf.mxu0
    %8165 = vdwg.mxu0
    %v8166 = vpack.i.b16 %v8107, %v8107
    %v8167 = vperm.slane %v8166, 0
    %v8169 = vsel %vm784, %v8167, 0
    %8171 = vmatpush.bf16.msra.mxu0 0
    %8172 = vmatpush.bf16.msra.mxu0 0
    %8173 = vmatpush.bf16.msra.mxu0 0
    %8174 = vmatpush.bf16.msra.mxu0 0
    %8175 = vmatpush.bf16.msra.mxu0 0
    %8176 = vmatpush.bf16.msra.mxu0 0
    %8177 = vmatpush.bf16.msra.mxu0 0
    %8178 = vmatpush.bf16.msra.mxu0 %v5497
    %8179 = vmatmul.bf16.gmra.mxu0 %v8169
    %v8180 = vpop.f32.mrf.mxu0
    %v8181 = vadd.f32 0.0, %v8180
    %v8182 = vpop.f32.mrf.mxu0
    %8183 = vdwg.mxu0
    %v8184 = vpack.i.b16 %v8108, %v8108
    %v8185 = vperm.slane %v8184, 0
    %v8187 = vsel %vm784, %v8185, 0
    %8189 = vmatpush.bf16.msra.mxu0 0
    %8190 = vmatpush.bf16.msra.mxu0 0
    %8191 = vmatpush.bf16.msra.mxu0 0
    %8192 = vmatpush.bf16.msra.mxu0 0
    %8193 = vmatpush.bf16.msra.mxu0 0
    %8194 = vmatpush.bf16.msra.mxu0 0
    %8195 = vmatpush.bf16.msra.mxu0 0
    %8196 = vmatpush.bf16.msra.mxu0 %v5518
    %8197 = vmatmul.bf16.gmra.mxu0 %v8187
    %v8198 = vpop.f32.mrf.mxu0
    %v8199 = vadd.f32 0.0, %v8198
    %v8200 = vpop.f32.mrf.mxu0
    %8201 = vdwg.mxu0
    %v8202 = vpack.i.b16 %v8109, %v8109
    %v8203 = vperm.slane %v8202, 0
    %v8205 = vsel %vm784, %v8203, 0
    %8207 = vmatpush.bf16.msra.mxu0 0
    %8208 = vmatpush.bf16.msra.mxu0 0
    %8209 = vmatpush.bf16.msra.mxu0 0
    %8210 = vmatpush.bf16.msra.mxu0 0
    %8211 = vmatpush.bf16.msra.mxu0 0
    %8212 = vmatpush.bf16.msra.mxu0 0
    %8213 = vmatpush.bf16.msra.mxu0 0
    %8214 = vmatpush.bf16.msra.mxu0 %v5539
    %8215 = vmatmul.bf16.gmra.mxu0 %v8205
    %v8216 = vpop.f32.mrf.mxu0
    %v8217 = vadd.f32 0.0, %v8216
    %v8218 = vpop.f32.mrf.mxu0
    %8219 = vdwg.mxu0
    %v8220 = vpack.i.b16 %v8110, %v8110
    %v8221 = vperm.slane %v8220, 0
    %v8223 = vsel %vm784, %v8221, 0
    %8225 = vmatpush.bf16.msra.mxu0 0
    %8226 = vmatpush.bf16.msra.mxu0 0
    %8227 = vmatpush.bf16.msra.mxu0 0
    %8228 = vmatpush.bf16.msra.mxu0 0
    %8229 = vmatpush.bf16.msra.mxu0 0
    %8230 = vmatpush.bf16.msra.mxu0 0
    %8231 = vmatpush.bf16.msra.mxu0 0
    %8232 = vmatpush.bf16.msra.mxu0 %v5560
    %8233 = vmatmul.bf16.gmra.mxu0 %v8223
    %v8234 = vpop.f32.mrf.mxu0
    %v8235 = vadd.f32 0.0, %v8234
    %v8236 = vpop.f32.mrf.mxu0
    %8237 = vdwg.mxu0
    %v8238 = vpack.i.b16 %v8111, %v8111
    %v8239 = vperm.slane %v8238, 0
    %v8241 = vsel %vm784, %v8239, 0
    %8243 = vmatpush.bf16.msra.mxu0 0
    %8244 = vmatpush.bf16.msra.mxu0 0
    %8245 = vmatpush.bf16.msra.mxu0 0
    %8246 = vmatpush.bf16.msra.mxu0 0
    %8247 = vmatpush.bf16.msra.mxu0 0
    %8248 = vmatpush.bf16.msra.mxu0 0
    %8249 = vmatpush.bf16.msra.mxu0 0
    %8250 = vmatpush.bf16.msra.mxu0 %v5581
    %8251 = vmatmul.bf16.gmra.mxu0 %v8241
    %v8252 = vpop.f32.mrf.mxu0
    %v8253 = vadd.f32 0.0, %v8252
    %v8254 = vpop.f32.mrf.mxu0
    %8255 = vdwg.mxu0
    %v8256 = vunpack.c.l.b16 %v7869
    %v8257 = vpack.c.b16 %v8256, %v8256
    %8258 = vrot.lane.b32.xlu0 %v8257, 32
    %v8259 = vpop.permute.xlu0 %8258
    %v8261 = vsel %vm392, %v8259, 0
    %8263 = vmatpush.bf16.msra.mxu0 0
    %8264 = vmatpush.bf16.msra.mxu0 0
    %8265 = vmatpush.bf16.msra.mxu0 0
    %8266 = vmatpush.bf16.msra.mxu0 0
    %8267 = vmatpush.bf16.msra.mxu0 0
    %8268 = vmatpush.bf16.msra.mxu0 0
    %8269 = vmatpush.bf16.msra.mxu0 %v5109
    %8270 = vmatpush.bf16.msra.mxu0 %v5108
    %8271 = vmatmul.bf16.gmra.mxu0 %v8261
    %v8272 = vpop.f32.mrf.mxu0
    %v8273 = vadd.f32 0.0, %v8272
    %v8274 = vpop.f32.mrf.mxu0
    %8275 = vdwg.mxu0
    %v8277 = vrot.slane %v8273, 1
    %v8278 = vrot.slane %v8273, 2
    %v8279 = vrot.slane %v8273, 3
    %v8280 = vrot.slane %v8273, 4
    %v8281 = vrot.slane %v8273, 5
    %v8282 = vrot.slane %v8273, 6
    %v8283 = vrot.slane %v8273, 7
    %v8292 = vadd.f32 %v8127, %v8273
    %v8293 = vadd.f32 %v8145, %v8277
    %v8294 = vadd.f32 %v8163, %v8278
    %v8295 = vadd.f32 %v8181, %v8279
    %v8296 = vadd.f32 %v8199, %v8280
    %v8297 = vadd.f32 %v8217, %v8281
    %v8298 = vadd.f32 %v8235, %v8282
    %v8299 = vadd.f32 %v8253, %v8283
    %v8300 = vtanh.pop %v8292
    %v8301 = vtanh.pop %v8293
    %v8302 = vtanh.pop %v8294
    %v8303 = vtanh.pop %v8295
    %v8304 = vtanh.pop %v8296
    %v8305 = vtanh.pop %v8297
    %v8306 = vtanh.pop %v8298
    %v8307 = vtanh.pop %v8299
    %v8308 = vpack.c.bf16 %v8300, %v8300
    %v8309 = vpack.c.bf16 %v8301, %v8301
    %v8310 = vpack.c.bf16 %v8302, %v8302
    %v8311 = vpack.c.bf16 %v8303, %v8303
    %v8312 = vpack.c.bf16 %v8304, %v8304
    %v8313 = vpack.c.bf16 %v8305, %v8305
    %v8314 = vpack.c.bf16 %v8306, %v8306
    %v8315 = vpack.c.bf16 %v8307, %v8307
    %v8324 = vunpack.c.l.b16 %v8308
    %v8325 = vunpack.c.l.b16 %v8309
    %v8326 = vunpack.c.l.b16 %v8310
    %v8327 = vunpack.c.l.b16 %v8311
    %v8328 = vunpack.c.l.b16 %v8312
    %v8329 = vunpack.c.l.b16 %v8313
    %v8330 = vunpack.c.l.b16 %v8314
    %v8331 = vunpack.c.l.b16 %v8315
    %v8332 = vrot.slane %v8325, 7
    %v8333 = vsel %vm552, %v8332, %v8324
    %v8334 = vrot.slane %v8326, 6
    %v8335 = vsel %vm556, %v8334, %v8333
    %v8336 = vrot.slane %v8327, 5
    %v8337 = vsel %vm560, %v8336, %v8335
    %v8338 = vrot.slane %v8328, 4
    %v8339 = vsel %vm771, %v8338, %v8337
    %v8340 = vrot.slane %v8329, 3
    %v8341 = vsel %vm774, %v8340, %v8339
    %v8342 = vrot.slane %v8330, 2
    %v8343 = vsel %vm777, %v8342, %v8341
    %v8344 = vrot.slane %v8331, 1
    %v8345 = vsel %vm780, %v8344, %v8343
    %v8346 = vpack.c.b16 %v8345, %v8345
    %v8348 = vsel %vm392, %v8346, 0
    %8350 = vmatpush.bf16.msra.mxu0 0
    %8351 = vmatpush.bf16.msra.mxu0 0
    %8352 = vmatpush.bf16.msra.mxu0 0
    %8353 = vmatpush.bf16.msra.mxu0 0
    %8354 = vmatpush.bf16.msra.mxu0 0
    %8355 = vmatpush.bf16.msra.mxu0 0
    %8356 = vmatpush.bf16.msra.mxu0 %v5107
    %8357 = vmatpush.bf16.msra.mxu0 %v5106
    %8358 = vmatmul.bf16.gmra.mxu0 %v8348
    %v8359 = vpop.f32.mrf.mxu0
    %v8360 = vadd.f32 0.0, %v8359
    %v8361 = vpop.f32.mrf.mxu0
    %8362 = vdwg.mxu0
    %v8363 = vadd.f32 %v5024, %v8360
    %v8364 = vxor.u32 %v8363, 2147483648
    %v8365 = vmul.f32 %v8364, 1.442695
    %v8366 = vpow.pop %v8365
    %v8367 = vadd.f32 %v8366, 1.0
    %v8368 = vrcp.pop %v8367
    %v8369 = vmul.f32 %v8367, %v8368
    %v8370 = vsub.f32 1.0, %v8369
    %v8371 = vmul.f32 %v8368, %v8370
    %v8372 = vadd.f32 %v8368, %v8371
    %vm8373 = vweird.f32 %v8367
    %vm8374 = vweird.f32 %v8368
    %vm8375 = vmor %vm8373, %vm8374
    %v8376 = vsel %vm8375, %v8368, %v8372
    %v8377 = vand.u32 2147483647, %v8367
    %vm8378 = vcmp.eq.f32.partialorder %v8377, 8.507059e+37
    %v8379 = vand.u32 %v8367, 2147483648
    %v8380 = vor.u32 1.1754944e-38, %v8379
    %v8381 = vsel %vm8378, %v8380, %v8376
    %v8382 = vmul.f32 1.0, %v8381
    %v8383 = vtanh.pop %v8363
    %v8384 = vmul.f32 %v8382, %v7862
    %8386 = vrot.lane.b32.xlu0 %v8383, 64
    %v8387 = vpop.permute.xlu0 %8386
    %v8389 = vmul.f32 %v8382, %v8387
    %8391 = vrot.lane.b32.xlu0 %v8389, 32
    %v8392 = vpop.permute.xlu0 %8391
    %v8394 = vadd.f32 %v8384, %v8392
    %v8395 = vtanh.pop %v8394
    %8397 = vrot.lane.b32.xlu0 %v8395, 64
    %v8398 = vpop.permute.xlu0 %8397
    %v8400 = vmul.f32 %v8382, %v8398
    %v8401 = vpack.c.bf16 %v8400, %v8400
    %v8403 = vrot.slane %v8401, 3
    %v8406 = vsel %vm547, %v8401, %v8403
    %v8408 = vsel %vm552, %v8401, %v8403
    %v8410 = vrot.slane %v8408, 1
    %v8411 = vsel %vm556, %v8401, %v8403
    %v8413 = vrot.slane %v8411, 2
    %v8414 = vsel %vm560, %v8401, %v8403
    %v8416 = vrot.slane %v8414, 3
    %v8417 = vunpack.i.l.s16 %v8406
    %v8418 = vunpack.i.h.s16 %v8406
    %v8419 = vunpack.i.l.s16 %v8410
    %v8420 = vunpack.i.h.s16 %v8410
    %v8421 = vunpack.i.l.s16 %v8413
    %v8422 = vunpack.i.h.s16 %v8413
    %v8423 = vunpack.i.l.s16 %v8416
    %v8424 = vunpack.i.h.s16 %v8416
    %v8425 = vpack.i.b16 %v8417, %v8417
    %v8426 = vperm.slane %v8425, 0
    %8427 = vrot.lane.b32.xlu0 %v8426, 32
    %v8428 = vpop.permute.xlu0 %8427
    %v8430 = vsel %vm392, %v8428, 0
    %8432 = vmatpush.bf16.xpose.msra.mxu0 0
    %8433 = vmatpush.bf16.xpose.msra.mxu0 0
    %8434 = vmatpush.bf16.xpose.msra.mxu0 0
    %8435 = vmatpush.bf16.xpose.msra.mxu0 0
    %8436 = vmatpush.bf16.xpose.msra.mxu0 0
    %8437 = vmatpush.bf16.xpose.msra.mxu0 0
    %8438 = vmatpush.bf16.xpose.msra.mxu0 0
    %8439 = vmatpush.bf16.xpose.msra.mxu0 %v5193
    %8440 = vmatmul.bf16.gmra.mxu0 %v8430
    %v8441 = vpop.f32.mrf.mxu0
    %v8442 = vadd.f32 0.0, %v8441
    %v8443 = vpop.f32.mrf.mxu0
    %8444 = vdwg.mxu0
    %v8445 = vpack.i.b16 %v8418, %v8418
    %v8446 = vperm.slane %v8445, 0
    %8447 = vrot.lane.b32.xlu0 %v8446, 32
    %v8448 = vpop.permute.xlu0 %8447
    %v8450 = vsel %vm392, %v8448, 0
    %8452 = vmatpush.bf16.xpose.msra.mxu0 0
    %8453 = vmatpush.bf16.xpose.msra.mxu0 0
    %8454 = vmatpush.bf16.xpose.msra.mxu0 0
    %8455 = vmatpush.bf16.xpose.msra.mxu0 0
    %8456 = vmatpush.bf16.xpose.msra.mxu0 0
    %8457 = vmatpush.bf16.xpose.msra.mxu0 0
    %8458 = vmatpush.bf16.xpose.msra.mxu0 0
    %8459 = vmatpush.bf16.xpose.msra.mxu0 %v5216
    %8460 = vmatmul.bf16.gmra.mxu0 %v8450
    %v8461 = vpop.f32.mrf.mxu0
    %v8462 = vadd.f32 0.0, %v8461
    %v8463 = vpop.f32.mrf.mxu0
    %8464 = vdwg.mxu0
    %v8465 = vpack.i.b16 %v8419, %v8419
    %v8466 = vperm.slane %v8465, 0
    %8467 = vrot.lane.b32.xlu0 %v8466, 32
    %v8468 = vpop.permute.xlu0 %8467
    %v8470 = vsel %vm392, %v8468, 0
    %8472 = vmatpush.bf16.xpose.msra.mxu0 0
    %8473 = vmatpush.bf16.xpose.msra.mxu0 0
    %8474 = vmatpush.bf16.xpose.msra.mxu0 0
    %8475 = vmatpush.bf16.xpose.msra.mxu0 0
    %8476 = vmatpush.bf16.xpose.msra.mxu0 0
    %8477 = vmatpush.bf16.xpose.msra.mxu0 0
    %8478 = vmatpush.bf16.xpose.msra.mxu0 0
    %8479 = vmatpush.bf16.xpose.msra.mxu0 %v5239
    %8480 = vmatmul.bf16.gmra.mxu0 %v8470
    %v8481 = vpop.f32.mrf.mxu0
    %v8482 = vadd.f32 0.0, %v8481
    %v8483 = vpop.f32.mrf.mxu0
    %8484 = vdwg.mxu0
    %v8485 = vpack.i.b16 %v8420, %v8420
    %v8486 = vperm.slane %v8485, 0
    %8487 = vrot.lane.b32.xlu0 %v8486, 32
    %v8488 = vpop.permute.xlu0 %8487
    %v8490 = vsel %vm392, %v8488, 0
    %8492 = vmatpush.bf16.xpose.msra.mxu0 0
    %8493 = vmatpush.bf16.xpose.msra.mxu0 0
    %8494 = vmatpush.bf16.xpose.msra.mxu0 0
    %8495 = vmatpush.bf16.xpose.msra.mxu0 0
    %8496 = vmatpush.bf16.xpose.msra.mxu0 0
    %8497 = vmatpush.bf16.xpose.msra.mxu0 0
    %8498 = vmatpush.bf16.xpose.msra.mxu0 0
    %8499 = vmatpush.bf16.xpose.msra.mxu0 %v5262
    %8500 = vmatmul.bf16.gmra.mxu0 %v8490
    %v8501 = vpop.f32.mrf.mxu0
    %v8502 = vadd.f32 0.0, %v8501
    %v8503 = vpop.f32.mrf.mxu0
    %8504 = vdwg.mxu0
    %v8505 = vpack.i.b16 %v8421, %v8421
    %v8506 = vperm.slane %v8505, 0
    %8507 = vrot.lane.b32.xlu0 %v8506, 32
    %v8508 = vpop.permute.xlu0 %8507
    %v8510 = vsel %vm392, %v8508, 0
    %8512 = vmatpush.bf16.xpose.msra.mxu0 0
    %8513 = vmatpush.bf16.xpose.msra.mxu0 0
    %8514 = vmatpush.bf16.xpose.msra.mxu0 0
    %8515 = vmatpush.bf16.xpose.msra.mxu0 0
    %8516 = vmatpush.bf16.xpose.msra.mxu0 0
    %8517 = vmatpush.bf16.xpose.msra.mxu0 0
    %8518 = vmatpush.bf16.xpose.msra.mxu0 0
    %8519 = vmatpush.bf16.xpose.msra.mxu0 %v5285
    %8520 = vmatmul.bf16.gmra.mxu0 %v8510
    %v8521 = vpop.f32.mrf.mxu0
    %v8522 = vadd.f32 0.0, %v8521
    %v8523 = vpop.f32.mrf.mxu0
    %8524 = vdwg.mxu0
    %v8525 = vpack.i.b16 %v8422, %v8422
    %v8526 = vperm.slane %v8525, 0
    %8527 = vrot.lane.b32.xlu0 %v8526, 32
    %v8528 = vpop.permute.xlu0 %8527
    %v8530 = vsel %vm392, %v8528, 0
    %8532 = vmatpush.bf16.xpose.msra.mxu0 0
    %8533 = vmatpush.bf16.xpose.msra.mxu0 0
    %8534 = vmatpush.bf16.xpose.msra.mxu0 0
    %8535 = vmatpush.bf16.xpose.msra.mxu0 0
    %8536 = vmatpush.bf16.xpose.msra.mxu0 0
    %8537 = vmatpush.bf16.xpose.msra.mxu0 0
    %8538 = vmatpush.bf16.xpose.msra.mxu0 0
    %8539 = vmatpush.bf16.xpose.msra.mxu0 %v5308
    %8540 = vmatmul.bf16.gmra.mxu0 %v8530
    %v8541 = vpop.f32.mrf.mxu0
    %v8542 = vadd.f32 0.0, %v8541
    %v8543 = vpop.f32.mrf.mxu0
    %8544 = vdwg.mxu0
    %v8545 = vpack.i.b16 %v8423, %v8423
    %v8546 = vperm.slane %v8545, 0
    %8547 = vrot.lane.b32.xlu0 %v8546, 32
    %v8548 = vpop.permute.xlu0 %8547
    %v8550 = vsel %vm392, %v8548, 0
    %8552 = vmatpush.bf16.xpose.msra.mxu0 0
    %8553 = vmatpush.bf16.xpose.msra.mxu0 0
    %8554 = vmatpush.bf16.xpose.msra.mxu0 0
    %8555 = vmatpush.bf16.xpose.msra.mxu0 0
    %8556 = vmatpush.bf16.xpose.msra.mxu0 0
    %8557 = vmatpush.bf16.xpose.msra.mxu0 0
    %8558 = vmatpush.bf16.xpose.msra.mxu0 0
    %8559 = vmatpush.bf16.xpose.msra.mxu0 %v5331
    %8560 = vmatmul.bf16.gmra.mxu0 %v8550
    %v8561 = vpop.f32.mrf.mxu0
    %v8562 = vadd.f32 0.0, %v8561
    %v8563 = vpop.f32.mrf.mxu0
    %8564 = vdwg.mxu0
    %v8565 = vpack.i.b16 %v8424, %v8424
    %v8566 = vperm.slane %v8565, 0
    %8567 = vrot.lane.b32.xlu0 %v8566, 32
    %v8568 = vpop.permute.xlu0 %8567
    %v8570 = vsel %vm392, %v8568, 0
    %8572 = vmatpush.bf16.xpose.msra.mxu0 0
    %8573 = vmatpush.bf16.xpose.msra.mxu0 0
    %8574 = vmatpush.bf16.xpose.msra.mxu0 0
    %8575 = vmatpush.bf16.xpose.msra.mxu0 0
    %8576 = vmatpush.bf16.xpose.msra.mxu0 0
    %8577 = vmatpush.bf16.xpose.msra.mxu0 0
    %8578 = vmatpush.bf16.xpose.msra.mxu0 0
    %8579 = vmatpush.bf16.xpose.msra.mxu0 %v5354
    %8580 = vmatmul.bf16.gmra.mxu0 %v8570
    %v8581 = vpop.f32.mrf.mxu0
    %v8582 = vadd.f32 0.0, %v8581
    %v8583 = vpop.f32.mrf.mxu0
    %8584 = vdwg.mxu0
    %v8593 = vrot.slane %v8462, 7
    %v8594 = vsel %vm552, %v8593, %v8442
    %v8595 = vrot.slane %v8482, 6
    %v8596 = vsel %vm556, %v8595, %v8594
    %v8597 = vrot.slane %v8502, 5
    %v8598 = vsel %vm560, %v8597, %v8596
    %v8599 = vrot.slane %v8522, 4
    %v8600 = vsel %vm771, %v8599, %v8598
    %v8601 = vrot.slane %v8542, 3
    %v8602 = vsel %vm774, %v8601, %v8600
    %v8603 = vrot.slane %v8562, 2
    %v8604 = vsel %vm777, %v8603, %v8602
    %v8605 = vrot.slane %v8582, 1
    %v8606 = vsel %vm780, %v8605, %v8604
    %v8608 = vsel %vm308, -inf, %v8606
    %v8609 = vsel %vm784, %v8608, -inf
    %8610 = vmax.xlane.f32.xlu0 %v8609
    %v8611 = vpop.xlane.xlu0 %8610
    %v8612 = vsub.f32 %v8608, %v8611
    %v8613 = vmul.f32 %v8612, 1.442695
    %v8614 = vpow.pop %v8613
    %v8615 = vsel %vm784, %v8614, 0.0
    %8616 = vadd.xlane.f32.xlu0 %v8615
    %v8617 = vpop.xlane.xlu0 %8616
    %v8618 = vrcp.pop %v8617
    %v8619 = vmul.f32 %v8614, %v8618
    %v8620 = vpack.c.bf16 %v8619, %v8619
    %v8622 = vrot.slane %v8620, 3
    %v8625 = vsel %vm547, %v8620, %v8622
    %v8627 = vsel %vm552, %v8620, %v8622
    %v8629 = vrot.slane %v8627, 1
    %v8630 = vsel %vm556, %v8620, %v8622
    %v8632 = vrot.slane %v8630, 2
    %v8633 = vsel %vm560, %v8620, %v8622
    %v8635 = vrot.slane %v8633, 3
    %v8636 = vunpack.i.l.s16 %v8625
    %v8637 = vunpack.i.h.s16 %v8625
    %v8638 = vunpack.i.l.s16 %v8629
    %v8639 = vunpack.i.h.s16 %v8629
    %v8640 = vunpack.i.l.s16 %v8632
    %v8641 = vunpack.i.h.s16 %v8632
    %v8642 = vunpack.i.l.s16 %v8635
    %v8643 = vunpack.i.h.s16 %v8635
    %v8644 = vpack.i.b16 %v8636, %v8636
    %v8645 = vperm.slane %v8644, 0
    %v8647 = vsel %vm784, %v8645, 0
    %8649 = vmatpush.bf16.msra.mxu0 0
    %8650 = vmatpush.bf16.msra.mxu0 0
    %8651 = vmatpush.bf16.msra.mxu0 0
    %8652 = vmatpush.bf16.msra.mxu0 0
    %8653 = vmatpush.bf16.msra.mxu0 0
    %8654 = vmatpush.bf16.msra.mxu0 0
    %8655 = vmatpush.bf16.msra.mxu0 0
    %8656 = vmatpush.bf16.msra.mxu0 %v5434
    %8657 = vmatmul.bf16.gmra.mxu0 %v8647
    %v8658 = vpop.f32.mrf.mxu0
    %v8659 = vadd.f32 0.0, %v8658
    %v8660 = vpop.f32.mrf.mxu0
    %8661 = vdwg.mxu0
    %v8662 = vpack.i.b16 %v8637, %v8637
    %v8663 = vperm.slane %v8662, 0
    %v8665 = vsel %vm784, %v8663, 0
    %8667 = vmatpush.bf16.msra.mxu0 0
    %8668 = vmatpush.bf16.msra.mxu0 0
    %8669 = vmatpush.bf16.msra.mxu0 0
    %8670 = vmatpush.bf16.msra.mxu0 0
    %8671 = vmatpush.bf16.msra.mxu0 0
    %8672 = vmatpush.bf16.msra.mxu0 0
    %8673 = vmatpush.bf16.msra.mxu0 0
    %8674 = vmatpush.bf16.msra.mxu0 %v5455
    %8675 = vmatmul.bf16.gmra.mxu0 %v8665
    %v8676 = vpop.f32.mrf.mxu0
    %v8677 = vadd.f32 0.0, %v8676
    %v8678 = vpop.f32.mrf.mxu0
    %8679 = vdwg.mxu0
    %v8680 = vpack.i.b16 %v8638, %v8638
    %v8681 = vperm.slane %v8680, 0
    %v8683 = vsel %vm784, %v8681, 0
    %8685 = vmatpush.bf16.msra.mxu0 0
    %8686 = vmatpush.bf16.msra.mxu0 0
    %8687 = vmatpush.bf16.msra.mxu0 0
    %8688 = vmatpush.bf16.msra.mxu0 0
    %8689 = vmatpush.bf16.msra.mxu0 0
    %8690 = vmatpush.bf16.msra.mxu0 0
    %8691 = vmatpush.bf16.msra.mxu0 0
    %8692 = vmatpush.bf16.msra.mxu0 %v5476
    %8693 = vmatmul.bf16.gmra.mxu0 %v8683
    %v8694 = vpop.f32.mrf.mxu0
    %v8695 = vadd.f32 0.0, %v8694
    %v8696 = vpop.f32.mrf.mxu0
    %8697 = vdwg.mxu0
    %v8698 = vpack.i.b16 %v8639, %v8639
    %v8699 = vperm.slane %v8698, 0
    %v8701 = vsel %vm784, %v8699, 0
    %8703 = vmatpush.bf16.msra.mxu0 0
    %8704 = vmatpush.bf16.msra.mxu0 0
    %8705 = vmatpush.bf16.msra.mxu0 0
    %8706 = vmatpush.bf16.msra.mxu0 0
    %8707 = vmatpush.bf16.msra.mxu0 0
    %8708 = vmatpush.bf16.msra.mxu0 0
    %8709 = vmatpush.bf16.msra.mxu0 0
    %8710 = vmatpush.bf16.msra.mxu0 %v5497
    %8711 = vmatmul.bf16.gmra.mxu0 %v8701
    %v8712 = vpop.f32.mrf.mxu0
    %v8713 = vadd.f32 0.0, %v8712
    %v8714 = vpop.f32.mrf.mxu0
    %8715 = vdwg.mxu0
    %v8716 = vpack.i.b16 %v8640, %v8640
    %v8717 = vperm.slane %v8716, 0
    %v8719 = vsel %vm784, %v8717, 0
    %8721 = vmatpush.bf16.msra.mxu0 0
    %8722 = vmatpush.bf16.msra.mxu0 0
    %8723 = vmatpush.bf16.msra.mxu0 0
    %8724 = vmatpush.bf16.msra.mxu0 0
    %8725 = vmatpush.bf16.msra.mxu0 0
    %8726 = vmatpush.bf16.msra.mxu0 0
    %8727 = vmatpush.bf16.msra.mxu0 0
    %8728 = vmatpush.bf16.msra.mxu0 %v5518
    %8729 = vmatmul.bf16.gmra.mxu0 %v8719
    %v8730 = vpop.f32.mrf.mxu0
    %v8731 = vadd.f32 0.0, %v8730
    %v8732 = vpop.f32.mrf.mxu0
    %8733 = vdwg.mxu0
    %v8734 = vpack.i.b16 %v8641, %v8641
    %v8735 = vperm.slane %v8734, 0
    %v8737 = vsel %vm784, %v8735, 0
    %8739 = vmatpush.bf16.msra.mxu0 0
    %8740 = vmatpush.bf16.msra.mxu0 0
    %8741 = vmatpush.bf16.msra.mxu0 0
    %8742 = vmatpush.bf16.msra.mxu0 0
    %8743 = vmatpush.bf16.msra.mxu0 0
    %8744 = vmatpush.bf16.msra.mxu0 0
    %8745 = vmatpush.bf16.msra.mxu0 0
    %8746 = vmatpush.bf16.msra.mxu0 %v5539
    %8747 = vmatmul.bf16.gmra.mxu0 %v8737
    %v8748 = vpop.f32.mrf.mxu0
    %v8749 = vadd.f32 0.0, %v8748
    %v8750 = vpop.f32.mrf.mxu0
    %8751 = vdwg.mxu0
    %v8752 = vpack.i.b16 %v8642, %v8642
    %v8753 = vperm.slane %v8752, 0
    %v8755 = vsel %vm784, %v8753, 0
    %8757 = vmatpush.bf16.msra.mxu0 0
    %8758 = vmatpush.bf16.msra.mxu0 0
    %8759 = vmatpush.bf16.msra.mxu0 0
    %8760 = vmatpush.bf16.msra.mxu0 0
    %8761 = vmatpush.bf16.msra.mxu0 0
    %8762 = vmatpush.bf16.msra.mxu0 0
    %8763 = vmatpush.bf16.msra.mxu0 0
    %8764 = vmatpush.bf16.msra.mxu0 %v5560
    %8765 = vmatmul.bf16.gmra.mxu0 %v8755
    %v8766 = vpop.f32.mrf.mxu0
    %v8767 = vadd.f32 0.0, %v8766
    %v8768 = vpop.f32.mrf.mxu0
    %8769 = vdwg.mxu0
    %v8770 = vpack.i.b16 %v8643, %v8643
    %v8771 = vperm.slane %v8770, 0
    %v8773 = vsel %vm784, %v8771, 0
    %8775 = vmatpush.bf16.msra.mxu0 0
    %8776 = vmatpush.bf16.msra.mxu0 0
    %8777 = vmatpush.bf16.msra.mxu0 0
    %8778 = vmatpush.bf16.msra.mxu0 0
    %8779 = vmatpush.bf16.msra.mxu0 0
    %8780 = vmatpush.bf16.msra.mxu0 0
    %8781 = vmatpush.bf16.msra.mxu0 0
    %8782 = vmatpush.bf16.msra.mxu0 %v5581
    %8783 = vmatmul.bf16.gmra.mxu0 %v8773
    %v8784 = vpop.f32.mrf.mxu0
    %v8785 = vadd.f32 0.0, %v8784
    %v8786 = vpop.f32.mrf.mxu0
    %8787 = vdwg.mxu0
    %v8788 = vunpack.c.l.b16 %v8401
    %v8789 = vpack.c.b16 %v8788, %v8788
    %8790 = vrot.lane.b32.xlu0 %v8789, 32
    %v8791 = vpop.permute.xlu0 %8790
    %v8793 = vsel %vm392, %v8791, 0
    %8795 = vmatpush.bf16.msra.mxu0 0
    %8796 = vmatpush.bf16.msra.mxu0 0
    %8797 = vmatpush.bf16.msra.mxu0 0
    %8798 = vmatpush.bf16.msra.mxu0 0
    %8799 = vmatpush.bf16.msra.mxu0 0
    %8800 = vmatpush.bf16.msra.mxu0 0
    %8801 = vmatpush.bf16.msra.mxu0 %v5109
    %8802 = vmatpush.bf16.msra.mxu0 %v5108
    %8803 = vmatmul.bf16.gmra.mxu0 %v8793
    %v8804 = vpop.f32.mrf.mxu0
    %v8805 = vadd.f32 0.0, %v8804
    %v8806 = vpop.f32.mrf.mxu0
    %8807 = vdwg.mxu0
    %v8809 = vrot.slane %v8805, 1
    %v8810 = vrot.slane %v8805, 2
    %v8811 = vrot.slane %v8805, 3
    %v8812 = vrot.slane %v8805, 4
    %v8813 = vrot.slane %v8805, 5
    %v8814 = vrot.slane %v8805, 6
    %v8815 = vrot.slane %v8805, 7
    %v8824 = vadd.f32 %v8659, %v8805
    %v8825 = vadd.f32 %v8677, %v8809
    %v8826 = vadd.f32 %v8695, %v8810
    %v8827 = vadd.f32 %v8713, %v8811
    %v8828 = vadd.f32 %v8731, %v8812
    %v8829 = vadd.f32 %v8749, %v8813
    %v8830 = vadd.f32 %v8767, %v8814
    %v8831 = vadd.f32 %v8785, %v8815
    %v8832 = vtanh.pop %v8824
    %v8833 = vtanh.pop %v8825
    %v8834 = vtanh.pop %v8826
    %v8835 = vtanh.pop %v8827
    %v8836 = vtanh.pop %v8828
    %v8837 = vtanh.pop %v8829
    %v8838 = vtanh.pop %v8830
    %v8839 = vtanh.pop %v8831
    %v8840 = vpack.c.bf16 %v8832, %v8832
    %v8841 = vpack.c.bf16 %v8833, %v8833
    %v8842 = vpack.c.bf16 %v8834, %v8834
    %v8843 = vpack.c.bf16 %v8835, %v8835
    %v8844 = vpack.c.bf16 %v8836, %v8836
    %v8845 = vpack.c.bf16 %v8837, %v8837
    %v8846 = vpack.c.bf16 %v8838, %v8838
    %v8847 = vpack.c.bf16 %v8839, %v8839
    %v8856 = vunpack.c.l.b16 %v8840
    %v8857 = vunpack.c.l.b16 %v8841
    %v8858 = vunpack.c.l.b16 %v8842
    %v8859 = vunpack.c.l.b16 %v8843
    %v8860 = vunpack.c.l.b16 %v8844
    %v8861 = vunpack.c.l.b16 %v8845
    %v8862 = vunpack.c.l.b16 %v8846
    %v8863 = vunpack.c.l.b16 %v8847
    %v8864 = vrot.slane %v8857, 7
    %v8865 = vsel %vm552, %v8864, %v8856
    %v8866 = vrot.slane %v8858, 6
    %v8867 = vsel %vm556, %v8866, %v8865
    %v8868 = vrot.slane %v8859, 5
    %v8869 = vsel %vm560, %v8868, %v8867
    %v8870 = vrot.slane %v8860, 4
    %v8871 = vsel %vm771, %v8870, %v8869
    %v8872 = vrot.slane %v8861, 3
    %v8873 = vsel %vm774, %v8872, %v8871
    %v8874 = vrot.slane %v8862, 2
    %v8875 = vsel %vm777, %v8874, %v8873
    %v8876 = vrot.slane %v8863, 1
    %v8877 = vsel %vm780, %v8876, %v8875
    %v8878 = vpack.c.b16 %v8877, %v8877
    %v8880 = vsel %vm392, %v8878, 0
    %8882 = vmatpush.bf16.msra.mxu0 0
    %8883 = vmatpush.bf16.msra.mxu0 0
    %8884 = vmatpush.bf16.msra.mxu0 0
    %8885 = vmatpush.bf16.msra.mxu0 0
    %8886 = vmatpush.bf16.msra.mxu0 0
    %8887 = vmatpush.bf16.msra.mxu0 0
    %8888 = vmatpush.bf16.msra.mxu0 %v5107
    %8889 = vmatpush.bf16.msra.mxu0 %v5106
    %8890 = vmatmul.bf16.gmra.mxu0 %v8880
    %v8891 = vpop.f32.mrf.mxu0
    %v8892 = vadd.f32 0.0, %v8891
    %v8893 = vpop.f32.mrf.mxu0
    %8894 = vdwg.mxu0
    %v8895 = vadd.f32 %v5026, %v8892
    %v8896 = vxor.u32 %v8895, 2147483648
    %v8897 = vmul.f32 %v8896, 1.442695
    %v8898 = vpow.pop %v8897
    %v8899 = vadd.f32 %v8898, 1.0
    %v8900 = vrcp.pop %v8899
    %v8901 = vmul.f32 %v8899, %v8900
    %v8902 = vsub.f32 1.0, %v8901
    %v8903 = vmul.f32 %v8900, %v8902
    %v8904 = vadd.f32 %v8900, %v8903
    %vm8905 = vweird.f32 %v8899
    %vm8906 = vweird.f32 %v8900
    %vm8907 = vmor %vm8905, %vm8906
    %v8908 = vsel %vm8907, %v8900, %v8904
    %v8909 = vand.u32 2147483647, %v8899
    %vm8910 = vcmp.eq.f32.partialorder %v8909, 8.507059e+37
    %v8911 = vand.u32 %v8899, 2147483648
    %v8912 = vor.u32 1.1754944e-38, %v8911
    %v8913 = vsel %vm8910, %v8912, %v8908
    %v8914 = vmul.f32 1.0, %v8913
    %v8915 = vtanh.pop %v8895
    %v8916 = vmul.f32 %v8914, %v8394
    %8918 = vrot.lane.b32.xlu0 %v8915, 64
    %v8919 = vpop.permute.xlu0 %8918
    %v8921 = vmul.f32 %v8914, %v8919
    %8923 = vrot.lane.b32.xlu0 %v8921, 32
    %v8924 = vpop.permute.xlu0 %8923
    %v8926 = vadd.f32 %v8916, %v8924
    %v8927 = vtanh.pop %v8926
    %8929 = vrot.lane.b32.xlu0 %v8927, 64
    %v8930 = vpop.permute.xlu0 %8929
    %v8932 = vmul.f32 %v8914, %v8930
    %v8933 = vpack.c.bf16 %v8932, %v8932
    %v8935 = vrot.slane %v8933, 3
    %v8938 = vsel %vm547, %v8933, %v8935
    %v8940 = vsel %vm552, %v8933, %v8935
    %v8942 = vrot.slane %v8940, 1
    %v8943 = vsel %vm556, %v8933, %v8935
    %v8945 = vrot.slane %v8943, 2
    %v8946 = vsel %vm560, %v8933, %v8935
    %v8948 = vrot.slane %v8946, 3
    %v8949 = vunpack.i.l.s16 %v8938
    %v8950 = vunpack.i.h.s16 %v8938
    %v8951 = vunpack.i.l.s16 %v8942
    %v8952 = vunpack.i.h.s16 %v8942
    %v8953 = vunpack.i.l.s16 %v8945
    %v8954 = vunpack.i.h.s16 %v8945
    %v8955 = vunpack.i.l.s16 %v8948
    %v8956 = vunpack.i.h.s16 %v8948
    %v8957 = vpack.i.b16 %v8949, %v8949
    %v8958 = vperm.slane %v8957, 0
    %8959 = vrot.lane.b32.xlu0 %v8958, 32
    %v8960 = vpop.permute.xlu0 %8959
    %v8962 = vsel %vm392, %v8960, 0
    %8964 = vmatpush.bf16.xpose.msra.mxu0 0
    %8965 = vmatpush.bf16.xpose.msra.mxu0 0
    %8966 = vmatpush.bf16.xpose.msra.mxu0 0
    %8967 = vmatpush.bf16.xpose.msra.mxu0 0
    %8968 = vmatpush.bf16.xpose.msra.mxu0 0
    %8969 = vmatpush.bf16.xpose.msra.mxu0 0
    %8970 = vmatpush.bf16.xpose.msra.mxu0 0
    %8971 = vmatpush.bf16.xpose.msra.mxu0 %v5193
    %8972 = vmatmul.bf16.gmra.mxu0 %v8962
    %v8973 = vpop.f32.mrf.mxu0
    %v8974 = vadd.f32 0.0, %v8973
    %v8975 = vpop.f32.mrf.mxu0
    %8976 = vdwg.mxu0
    %v8977 = vpack.i.b16 %v8950, %v8950
    %v8978 = vperm.slane %v8977, 0
    %8979 = vrot.lane.b32.xlu0 %v8978, 32
    %v8980 = vpop.permute.xlu0 %8979
    %v8982 = vsel %vm392, %v8980, 0
    %8984 = vmatpush.bf16.xpose.msra.mxu0 0
    %8985 = vmatpush.bf16.xpose.msra.mxu0 0
    %8986 = vmatpush.bf16.xpose.msra.mxu0 0
    %8987 = vmatpush.bf16.xpose.msra.mxu0 0
    %8988 = vmatpush.bf16.xpose.msra.mxu0 0
    %8989 = vmatpush.bf16.xpose.msra.mxu0 0
    %8990 = vmatpush.bf16.xpose.msra.mxu0 0
    %8991 = vmatpush.bf16.xpose.msra.mxu0 %v5216
    %8992 = vmatmul.bf16.gmra.mxu0 %v8982
    %v8993 = vpop.f32.mrf.mxu0
    %v8994 = vadd.f32 0.0, %v8993
    %v8995 = vpop.f32.mrf.mxu0
    %8996 = vdwg.mxu0
    %v8997 = vpack.i.b16 %v8951, %v8951
    %v8998 = vperm.slane %v8997, 0
    %8999 = vrot.lane.b32.xlu0 %v8998, 32
    %v9000 = vpop.permute.xlu0 %8999
    %v9002 = vsel %vm392, %v9000, 0
    %9004 = vmatpush.bf16.xpose.msra.mxu0 0
    %9005 = vmatpush.bf16.xpose.msra.mxu0 0
    %9006 = vmatpush.bf16.xpose.msra.mxu0 0
    %9007 = vmatpush.bf16.xpose.msra.mxu0 0
    %9008 = vmatpush.bf16.xpose.msra.mxu0 0
    %9009 = vmatpush.bf16.xpose.msra.mxu0 0
    %9010 = vmatpush.bf16.xpose.msra.mxu0 0
    %9011 = vmatpush.bf16.xpose.msra.mxu0 %v5239
    %9012 = vmatmul.bf16.gmra.mxu0 %v9002
    %v9013 = vpop.f32.mrf.mxu0
    %v9014 = vadd.f32 0.0, %v9013
    %v9015 = vpop.f32.mrf.mxu0
    %9016 = vdwg.mxu0
    %v9017 = vpack.i.b16 %v8952, %v8952
    %v9018 = vperm.slane %v9017, 0
    %9019 = vrot.lane.b32.xlu0 %v9018, 32
    %v9020 = vpop.permute.xlu0 %9019
    %v9022 = vsel %vm392, %v9020, 0
    %9024 = vmatpush.bf16.xpose.msra.mxu0 0
    %9025 = vmatpush.bf16.xpose.msra.mxu0 0
    %9026 = vmatpush.bf16.xpose.msra.mxu0 0
    %9027 = vmatpush.bf16.xpose.msra.mxu0 0
    %9028 = vmatpush.bf16.xpose.msra.mxu0 0
    %9029 = vmatpush.bf16.xpose.msra.mxu0 0
    %9030 = vmatpush.bf16.xpose.msra.mxu0 0
    %9031 = vmatpush.bf16.xpose.msra.mxu0 %v5262
    %9032 = vmatmul.bf16.gmra.mxu0 %v9022
    %v9033 = vpop.f32.mrf.mxu0
    %v9034 = vadd.f32 0.0, %v9033
    %v9035 = vpop.f32.mrf.mxu0
    %9036 = vdwg.mxu0
    %v9037 = vpack.i.b16 %v8953, %v8953
    %v9038 = vperm.slane %v9037, 0
    %9039 = vrot.lane.b32.xlu0 %v9038, 32
    %v9040 = vpop.permute.xlu0 %9039
    %v9042 = vsel %vm392, %v9040, 0
    %9044 = vmatpush.bf16.xpose.msra.mxu0 0
    %9045 = vmatpush.bf16.xpose.msra.mxu0 0
    %9046 = vmatpush.bf16.xpose.msra.mxu0 0
    %9047 = vmatpush.bf16.xpose.msra.mxu0 0
    %9048 = vmatpush.bf16.xpose.msra.mxu0 0
    %9049 = vmatpush.bf16.xpose.msra.mxu0 0
    %9050 = vmatpush.bf16.xpose.msra.mxu0 0
    %9051 = vmatpush.bf16.xpose.msra.mxu0 %v5285
    %9052 = vmatmul.bf16.gmra.mxu0 %v9042
    %v9053 = vpop.f32.mrf.mxu0
    %v9054 = vadd.f32 0.0, %v9053
    %v9055 = vpop.f32.mrf.mxu0
    %9056 = vdwg.mxu0
    %v9057 = vpack.i.b16 %v8954, %v8954
    %v9058 = vperm.slane %v9057, 0
    %9059 = vrot.lane.b32.xlu0 %v9058, 32
    %v9060 = vpop.permute.xlu0 %9059
    %v9062 = vsel %vm392, %v9060, 0
    %9064 = vmatpush.bf16.xpose.msra.mxu0 0
    %9065 = vmatpush.bf16.xpose.msra.mxu0 0
    %9066 = vmatpush.bf16.xpose.msra.mxu0 0
    %9067 = vmatpush.bf16.xpose.msra.mxu0 0
    %9068 = vmatpush.bf16.xpose.msra.mxu0 0
    %9069 = vmatpush.bf16.xpose.msra.mxu0 0
    %9070 = vmatpush.bf16.xpose.msra.mxu0 0
    %9071 = vmatpush.bf16.xpose.msra.mxu0 %v5308
    %9072 = vmatmul.bf16.gmra.mxu0 %v9062
    %v9073 = vpop.f32.mrf.mxu0
    %v9074 = vadd.f32 0.0, %v9073
    %v9075 = vpop.f32.mrf.mxu0
    %9076 = vdwg.mxu0
    %v9077 = vpack.i.b16 %v8955, %v8955
    %v9078 = vperm.slane %v9077, 0
    %9079 = vrot.lane.b32.xlu0 %v9078, 32
    %v9080 = vpop.permute.xlu0 %9079
    %v9082 = vsel %vm392, %v9080, 0
    %9084 = vmatpush.bf16.xpose.msra.mxu0 0
    %9085 = vmatpush.bf16.xpose.msra.mxu0 0
    %9086 = vmatpush.bf16.xpose.msra.mxu0 0
    %9087 = vmatpush.bf16.xpose.msra.mxu0 0
    %9088 = vmatpush.bf16.xpose.msra.mxu0 0
    %9089 = vmatpush.bf16.xpose.msra.mxu0 0
    %9090 = vmatpush.bf16.xpose.msra.mxu0 0
    %9091 = vmatpush.bf16.xpose.msra.mxu0 %v5331
    %9092 = vmatmul.bf16.gmra.mxu0 %v9082
    %v9093 = vpop.f32.mrf.mxu0
    %v9094 = vadd.f32 0.0, %v9093
    %v9095 = vpop.f32.mrf.mxu0
    %9096 = vdwg.mxu0
    %v9097 = vpack.i.b16 %v8956, %v8956
    %v9098 = vperm.slane %v9097, 0
    %9099 = vrot.lane.b32.xlu0 %v9098, 32
    %v9100 = vpop.permute.xlu0 %9099
    %v9102 = vsel %vm392, %v9100, 0
    %9104 = vmatpush.bf16.xpose.msra.mxu0 0
    %9105 = vmatpush.bf16.xpose.msra.mxu0 0
    %9106 = vmatpush.bf16.xpose.msra.mxu0 0
    %9107 = vmatpush.bf16.xpose.msra.mxu0 0
    %9108 = vmatpush.bf16.xpose.msra.mxu0 0
    %9109 = vmatpush.bf16.xpose.msra.mxu0 0
    %9110 = vmatpush.bf16.xpose.msra.mxu0 0
    %9111 = vmatpush.bf16.xpose.msra.mxu0 %v5354
    %9112 = vmatmul.bf16.gmra.mxu0 %v9102
    %v9113 = vpop.f32.mrf.mxu0
    %v9114 = vadd.f32 0.0, %v9113
    %v9115 = vpop.f32.mrf.mxu0
    %9116 = vdwg.mxu0
    %v9125 = vrot.slane %v8994, 7
    %v9126 = vsel %vm552, %v9125, %v8974
    %v9127 = vrot.slane %v9014, 6
    %v9128 = vsel %vm556, %v9127, %v9126
    %v9129 = vrot.slane %v9034, 5
    %v9130 = vsel %vm560, %v9129, %v9128
    %v9131 = vrot.slane %v9054, 4
    %v9132 = vsel %vm771, %v9131, %v9130
    %v9133 = vrot.slane %v9074, 3
    %v9134 = vsel %vm774, %v9133, %v9132
    %v9135 = vrot.slane %v9094, 2
    %v9136 = vsel %vm777, %v9135, %v9134
    %v9137 = vrot.slane %v9114, 1
    %v9138 = vsel %vm780, %v9137, %v9136
    %v9140 = vsel %vm308, -inf, %v9138
    %v9141 = vsel %vm784, %v9140, -inf
    %9142 = vmax.xlane.f32.xlu0 %v9141
    %v9143 = vpop.xlane.xlu0 %9142
    %v9144 = vsub.f32 %v9140, %v9143
    %v9145 = vmul.f32 %v9144, 1.442695
    %v9146 = vpow.pop %v9145
    %v9147 = vsel %vm784, %v9146, 0.0
    %9148 = vadd.xlane.f32.xlu0 %v9147
    %v9149 = vpop.xlane.xlu0 %9148
    %v9150 = vrcp.pop %v9149
    %v9151 = vmul.f32 %v9146, %v9150
    %v9152 = vpack.c.bf16 %v9151, %v9151
    %v9154 = vrot.slane %v9152, 3
    %v9157 = vsel %vm547, %v9152, %v9154
    %v9159 = vsel %vm552, %v9152, %v9154
    %v9161 = vrot.slane %v9159, 1
    %v9162 = vsel %vm556, %v9152, %v9154
    %v9164 = vrot.slane %v9162, 2
    %v9165 = vsel %vm560, %v9152, %v9154
    %v9167 = vrot.slane %v9165, 3
    %v9168 = vunpack.i.l.s16 %v9157
    %v9169 = vunpack.i.h.s16 %v9157
    %v9170 = vunpack.i.l.s16 %v9161
    %v9171 = vunpack.i.h.s16 %v9161
    %v9172 = vunpack.i.l.s16 %v9164
    %v9173 = vunpack.i.h.s16 %v9164
    %v9174 = vunpack.i.l.s16 %v9167
    %v9175 = vunpack.i.h.s16 %v9167
    %v9176 = vpack.i.b16 %v9168, %v9168
    %v9177 = vperm.slane %v9176, 0
    %v9179 = vsel %vm784, %v9177, 0
    %9181 = vmatpush.bf16.msra.mxu0 0
    %9182 = vmatpush.bf16.msra.mxu0 0
    %9183 = vmatpush.bf16.msra.mxu0 0
    %9184 = vmatpush.bf16.msra.mxu0 0
    %9185 = vmatpush.bf16.msra.mxu0 0
    %9186 = vmatpush.bf16.msra.mxu0 0
    %9187 = vmatpush.bf16.msra.mxu0 0
    %9188 = vmatpush.bf16.msra.mxu0 %v5434
    %9189 = vmatmul.bf16.gmra.mxu0 %v9179
    %v9190 = vpop.f32.mrf.mxu0
    %v9191 = vadd.f32 0.0, %v9190
    %v9192 = vpop.f32.mrf.mxu0
    %9193 = vdwg.mxu0
    %v9194 = vpack.i.b16 %v9169, %v9169
    %v9195 = vperm.slane %v9194, 0
    %v9197 = vsel %vm784, %v9195, 0
    %9199 = vmatpush.bf16.msra.mxu0 0
    %9200 = vmatpush.bf16.msra.mxu0 0
    %9201 = vmatpush.bf16.msra.mxu0 0
    %9202 = vmatpush.bf16.msra.mxu0 0
    %9203 = vmatpush.bf16.msra.mxu0 0
    %9204 = vmatpush.bf16.msra.mxu0 0
    %9205 = vmatpush.bf16.msra.mxu0 0
    %9206 = vmatpush.bf16.msra.mxu0 %v5455
    %9207 = vmatmul.bf16.gmra.mxu0 %v9197
    %v9208 = vpop.f32.mrf.mxu0
    %v9209 = vadd.f32 0.0, %v9208
    %v9210 = vpop.f32.mrf.mxu0
    %9211 = vdwg.mxu0
    %v9212 = vpack.i.b16 %v9170, %v9170
    %v9213 = vperm.slane %v9212, 0
    %v9215 = vsel %vm784, %v9213, 0
    %9217 = vmatpush.bf16.msra.mxu0 0
    %9218 = vmatpush.bf16.msra.mxu0 0
    %9219 = vmatpush.bf16.msra.mxu0 0
    %9220 = vmatpush.bf16.msra.mxu0 0
    %9221 = vmatpush.bf16.msra.mxu0 0
    %9222 = vmatpush.bf16.msra.mxu0 0
    %9223 = vmatpush.bf16.msra.mxu0 0
    %9224 = vmatpush.bf16.msra.mxu0 %v5476
    %9225 = vmatmul.bf16.gmra.mxu0 %v9215
    %v9226 = vpop.f32.mrf.mxu0
    %v9227 = vadd.f32 0.0, %v9226
    %v9228 = vpop.f32.mrf.mxu0
    %9229 = vdwg.mxu0
    %v9230 = vpack.i.b16 %v9171, %v9171
    %v9231 = vperm.slane %v9230, 0
    %v9233 = vsel %vm784, %v9231, 0
    %9235 = vmatpush.bf16.msra.mxu0 0
    %9236 = vmatpush.bf16.msra.mxu0 0
    %9237 = vmatpush.bf16.msra.mxu0 0
    %9238 = vmatpush.bf16.msra.mxu0 0
    %9239 = vmatpush.bf16.msra.mxu0 0
    %9240 = vmatpush.bf16.msra.mxu0 0
    %9241 = vmatpush.bf16.msra.mxu0 0
    %9242 = vmatpush.bf16.msra.mxu0 %v5497
    %9243 = vmatmul.bf16.gmra.mxu0 %v9233
    %v9244 = vpop.f32.mrf.mxu0
    %v9245 = vadd.f32 0.0, %v9244
    %v9246 = vpop.f32.mrf.mxu0
    %9247 = vdwg.mxu0
    %v9248 = vpack.i.b16 %v9172, %v9172
    %v9249 = vperm.slane %v9248, 0
    %v9251 = vsel %vm784, %v9249, 0
    %9253 = vmatpush.bf16.msra.mxu0 0
    %9254 = vmatpush.bf16.msra.mxu0 0
    %9255 = vmatpush.bf16.msra.mxu0 0
    %9256 = vmatpush.bf16.msra.mxu0 0
    %9257 = vmatpush.bf16.msra.mxu0 0
    %9258 = vmatpush.bf16.msra.mxu0 0
    %9259 = vmatpush.bf16.msra.mxu0 0
    %9260 = vmatpush.bf16.msra.mxu0 %v5518
    %9261 = vmatmul.bf16.gmra.mxu0 %v9251
    %v9262 = vpop.f32.mrf.mxu0
    %v9263 = vadd.f32 0.0, %v9262
    %v9264 = vpop.f32.mrf.mxu0
    %9265 = vdwg.mxu0
    %v9266 = vpack.i.b16 %v9173, %v9173
    %v9267 = vperm.slane %v9266, 0
    %v9269 = vsel %vm784, %v9267, 0
    %9271 = vmatpush.bf16.msra.mxu0 0
    %9272 = vmatpush.bf16.msra.mxu0 0
    %9273 = vmatpush.bf16.msra.mxu0 0
    %9274 = vmatpush.bf16.msra.mxu0 0
    %9275 = vmatpush.bf16.msra.mxu0 0
    %9276 = vmatpush.bf16.msra.mxu0 0
    %9277 = vmatpush.bf16.msra.mxu0 0
    %9278 = vmatpush.bf16.msra.mxu0 %v5539
    %9279 = vmatmul.bf16.gmra.mxu0 %v9269
    %v9280 = vpop.f32.mrf.mxu0
    %v9281 = vadd.f32 0.0, %v9280
    %v9282 = vpop.f32.mrf.mxu0
    %9283 = vdwg.mxu0
    %v9284 = vpack.i.b16 %v9174, %v9174
    %v9285 = vperm.slane %v9284, 0
    %v9287 = vsel %vm784, %v9285, 0
    %9289 = vmatpush.bf16.msra.mxu0 0
    %9290 = vmatpush.bf16.msra.mxu0 0
    %9291 = vmatpush.bf16.msra.mxu0 0
    %9292 = vmatpush.bf16.msra.mxu0 0
    %9293 = vmatpush.bf16.msra.mxu0 0
    %9294 = vmatpush.bf16.msra.mxu0 0
    %9295 = vmatpush.bf16.msra.mxu0 0
    %9296 = vmatpush.bf16.msra.mxu0 %v5560
    %9297 = vmatmul.bf16.gmra.mxu0 %v9287
    %v9298 = vpop.f32.mrf.mxu0
    %v9299 = vadd.f32 0.0, %v9298
    %v9300 = vpop.f32.mrf.mxu0
    %9301 = vdwg.mxu0
    %v9302 = vpack.i.b16 %v9175, %v9175
    %v9303 = vperm.slane %v9302, 0
    %v9305 = vsel %vm784, %v9303, 0
    %9307 = vmatpush.bf16.msra.mxu0 0
    %9308 = vmatpush.bf16.msra.mxu0 0
    %9309 = vmatpush.bf16.msra.mxu0 0
    %9310 = vmatpush.bf16.msra.mxu0 0
    %9311 = vmatpush.bf16.msra.mxu0 0
    %9312 = vmatpush.bf16.msra.mxu0 0
    %9313 = vmatpush.bf16.msra.mxu0 0
    %9314 = vmatpush.bf16.msra.mxu0 %v5581
    %9315 = vmatmul.bf16.gmra.mxu0 %v9305
    %v9316 = vpop.f32.mrf.mxu0
    %v9317 = vadd.f32 0.0, %v9316
    %v9318 = vpop.f32.mrf.mxu0
    %9319 = vdwg.mxu0
    %v9320 = vunpack.c.l.b16 %v8933
    %v9321 = vpack.c.b16 %v9320, %v9320
    %9322 = vrot.lane.b32.xlu0 %v9321, 32
    %v9323 = vpop.permute.xlu0 %9322
    %v9325 = vsel %vm392, %v9323, 0
    %9327 = vmatpush.bf16.msra.mxu0 0
    %9328 = vmatpush.bf16.msra.mxu0 0
    %9329 = vmatpush.bf16.msra.mxu0 0
    %9330 = vmatpush.bf16.msra.mxu0 0
    %9331 = vmatpush.bf16.msra.mxu0 0
    %9332 = vmatpush.bf16.msra.mxu0 0
    %9333 = vmatpush.bf16.msra.mxu0 %v5109
    %9334 = vmatpush.bf16.msra.mxu0 %v5108
    %9335 = vmatmul.bf16.gmra.mxu0 %v9325
    %v9336 = vpop.f32.mrf.mxu0
    %v9337 = vadd.f32 0.0, %v9336
    %v9338 = vpop.f32.mrf.mxu0
    %9339 = vdwg.mxu0
    %v9341 = vrot.slane %v9337, 1
    %v9342 = vrot.slane %v9337, 2
    %v9343 = vrot.slane %v9337, 3
    %v9344 = vrot.slane %v9337, 4
    %v9345 = vrot.slane %v9337, 5
    %v9346 = vrot.slane %v9337, 6
    %v9347 = vrot.slane %v9337, 7
    %v9356 = vadd.f32 %v9191, %v9337
    %v9357 = vadd.f32 %v9209, %v9341
    %v9358 = vadd.f32 %v9227, %v9342
    %v9359 = vadd.f32 %v9245, %v9343
    %v9360 = vadd.f32 %v9263, %v9344
    %v9361 = vadd.f32 %v9281, %v9345
    %v9362 = vadd.f32 %v9299, %v9346
    %v9363 = vadd.f32 %v9317, %v9347
    %v9364 = vtanh.pop %v9356
    %v9365 = vtanh.pop %v9357
    %v9366 = vtanh.pop %v9358
    %v9367 = vtanh.pop %v9359
    %v9368 = vtanh.pop %v9360
    %v9369 = vtanh.pop %v9361
    %v9370 = vtanh.pop %v9362
    %v9371 = vtanh.pop %v9363
    %v9380 = vrot.slane %v9365, 7
    %v9381 = vsel %vm552, %v9380, %v9364
    %v9382 = vrot.slane %v9366, 6
    %v9383 = vsel %vm556, %v9382, %v9381
    %v9384 = vrot.slane %v9367, 5
    %v9385 = vsel %vm560, %v9384, %v9383
    %v9386 = vrot.slane %v9368, 4
    %v9387 = vsel %vm771, %v9386, %v9385
    %v9388 = vrot.slane %v9369, 3
    %v9389 = vsel %vm774, %v9388, %v9387
    %v9390 = vrot.slane %v9370, 2
    %v9391 = vsel %vm777, %v9390, %v9389
    %v9392 = vrot.slane %v9371, 1
    %v9393 = vsel %vm780, %v9392, %v9391
    %s9395 = scalar_lea.vmem [#allocation27], 8
    %9396 = vst.msk [vmem:[%s9395] sm:$0xff] %vm392, %v9393
    %9398 = vrot.lane.b32.xlu0 %v8926, 96
    %v9399 = vpop.permute.xlu0 %9398
    %s9401 = scalar_lea.vmem [#allocation29], 8
    %9402 = vst.msk [vmem:[%s9401] sm:$0xff] %vm392, %v9399
    %v9411 = vrot.slane %v5641, 7
    %v9412 = vsel %vm552, %v9411, %v5640
    %v9413 = vrot.slane %v5642, 6
    %v9414 = vsel %vm556, %v9413, %v9412
    %v9415 = vrot.slane %v5643, 5
    %v9416 = vsel %vm560, %v9415, %v9414
    %v9417 = vrot.slane %v5644, 4
    %v9418 = vsel %vm771, %v9417, %v9416
    %v9419 = vrot.slane %v5645, 3
    %v9420 = vsel %vm774, %v9419, %v9418
    %v9421 = vrot.slane %v5646, 2
    %v9422 = vsel %vm777, %v9421, %v9420
    %v9423 = vrot.slane %v5647, 1
    %v9424 = vsel %vm780, %v9423, %v9422
    %v9434 = vrot.slane %v6173, 7
    %v9435 = vsel %vm552, %v9434, %v6172
    %v9436 = vrot.slane %v6174, 6
    %v9437 = vsel %vm556, %v9436, %v9435
    %v9438 = vrot.slane %v6175, 5
    %v9439 = vsel %vm560, %v9438, %v9437
    %v9440 = vrot.slane %v6176, 4
    %v9441 = vsel %vm771, %v9440, %v9439
    %v9442 = vrot.slane %v6177, 3
    %v9443 = vsel %vm774, %v9442, %v9441
    %v9444 = vrot.slane %v6178, 2
    %v9445 = vsel %vm777, %v9444, %v9443
    %v9446 = vrot.slane %v6179, 1
    %v9447 = vsel %vm780, %v9446, %v9445
    %9448 = vrot.lane.b32.xlu0 %v9447, 32
    %v9449 = vpop.permute.xlu0 %9448
    %v9459 = vrot.slane %v6705, 7
    %v9460 = vsel %vm552, %v9459, %v6704
    %v9461 = vrot.slane %v6706, 6
    %v9462 = vsel %vm556, %v9461, %v9460
    %v9463 = vrot.slane %v6707, 5
    %v9464 = vsel %vm560, %v9463, %v9462
    %v9465 = vrot.slane %v6708, 4
    %v9466 = vsel %vm771, %v9465, %v9464
    %v9467 = vrot.slane %v6709, 3
    %v9468 = vsel %vm774, %v9467, %v9466
    %v9469 = vrot.slane %v6710, 2
    %v9470 = vsel %vm777, %v9469, %v9468
    %v9471 = vrot.slane %v6711, 1
    %v9472 = vsel %vm780, %v9471, %v9470
    %9473 = vrot.lane.b32.xlu0 %v9472, 64
    %v9474 = vpop.permute.xlu0 %9473
    %v9484 = vrot.slane %v7237, 7
    %v9485 = vsel %vm552, %v9484, %v7236
    %v9486 = vrot.slane %v7238, 6
    %v9487 = vsel %vm556, %v9486, %v9485
    %v9488 = vrot.slane %v7239, 5
    %v9489 = vsel %vm560, %v9488, %v9487
    %v9490 = vrot.slane %v7240, 4
    %v9491 = vsel %vm771, %v9490, %v9489
    %v9492 = vrot.slane %v7241, 3
    %v9493 = vsel %vm774, %v9492, %v9491
    %v9494 = vrot.slane %v7242, 2
    %v9495 = vsel %vm777, %v9494, %v9493
    %v9496 = vrot.slane %v7243, 1
    %v9497 = vsel %vm780, %v9496, %v9495
    %9498 = vrot.lane.b32.xlu0 %v9497, 96
    %v9499 = vpop.permute.xlu0 %9498
    %v9509 = vrot.slane %v7769, 7
    %v9510 = vsel %vm552, %v9509, %v7768
    %v9511 = vrot.slane %v7770, 6
    %v9512 = vsel %vm556, %v9511, %v9510
    %v9513 = vrot.slane %v7771, 5
    %v9514 = vsel %vm560, %v9513, %v9512
    %v9515 = vrot.slane %v7772, 4
    %v9516 = vsel %vm771, %v9515, %v9514
    %v9517 = vrot.slane %v7773, 3
    %v9518 = vsel %vm774, %v9517, %v9516
    %v9519 = vrot.slane %v7774, 2
    %v9520 = vsel %vm777, %v9519, %v9518
    %v9521 = vrot.slane %v7775, 1
    %v9522 = vsel %vm780, %v9521, %v9520
    %v9532 = vrot.slane %v8301, 7
    %v9533 = vsel %vm552, %v9532, %v8300
    %v9534 = vrot.slane %v8302, 6
    %v9535 = vsel %vm556, %v9534, %v9533
    %v9536 = vrot.slane %v8303, 5
    %v9537 = vsel %vm560, %v9536, %v9535
    %v9538 = vrot.slane %v8304, 4
    %v9539 = vsel %vm771, %v9538, %v9537
    %v9540 = vrot.slane %v8305, 3
    %v9541 = vsel %vm774, %v9540, %v9539
    %v9542 = vrot.slane %v8306, 2
    %v9543 = vsel %vm777, %v9542, %v9541
    %v9544 = vrot.slane %v8307, 1
    %v9545 = vsel %vm780, %v9544, %v9543
    %9546 = vrot.lane.b32.xlu0 %v9545, 32
    %v9547 = vpop.permute.xlu0 %9546
    %v9557 = vrot.slane %v8833, 7
    %v9558 = vsel %vm552, %v9557, %v8832
    %v9559 = vrot.slane %v8834, 6
    %v9560 = vsel %vm556, %v9559, %v9558
    %v9561 = vrot.slane %v8835, 5
    %v9562 = vsel %vm560, %v9561, %v9560
    %v9563 = vrot.slane %v8836, 4
    %v9564 = vsel %vm771, %v9563, %v9562
    %v9565 = vrot.slane %v8837, 3
    %v9566 = vsel %vm774, %v9565, %v9564
    %v9567 = vrot.slane %v8838, 2
    %v9568 = vsel %vm777, %v9567, %v9566
    %v9569 = vrot.slane %v8839, 1
    %v9570 = vsel %vm780, %v9569, %v9568
    %9571 = vrot.lane.b32.xlu0 %v9570, 64
    %v9572 = vpop.permute.xlu0 %9571
    %9574 = vrot.lane.b32.xlu0 %v9393, 96
    %v9575 = vpop.permute.xlu0 %9574
    %v9577 = vsel %vm392, %v9424, %v9449
    %vm9578 = vcmask 523264
    %v9579 = vsel %vm9578, %v9577, %v9474
    %vm9580 = vcmask 785408
    %v9581 = vsel %vm9580, %v9579, %v9499
    %v9582 = vsel %vm392, %v9522, %v9547
    %v9583 = vsel %vm9578, %v9582, %v9572
    %v9584 = vsel %vm9580, %v9583, %v9575
    %9585 = vst [vmem:[#allocation26] sm:$0xff] %v9581
    %9586 = vst [vmem:[#allocation26 + $0x8] sm:$0xff] %v9584
    // Predicated region
    $region138: #{tpu_custom_call.1} parent=1 // pred_check
      _
    $region139: #{tpu_custom_call.1} parent=1 // pred_check_branch
      %9588 = sbr.rel (0) target = $region141
    $region140: #{tpu_custom_call.1} parent=1 // pred_region
      %9590 = vsyncadd [#allocation4], 0
      %s9592 = sshll.u32 [#allocation26], 4
      %s9593 = int_to_ptr.vmem [resolvable:$true] %s9592
      %s9594 = sshll.u32 %s19, 4
      %s9595 = int_to_ptr.hbm [resolvable:$true] %s9594
      %9597 = dma.vmem_to_hbm [thread:$0]  %s9593, 256, %s9595, [#allocation4]
    $region141: #{tpu_custom_call.1} parent=1 // pred_fallthru
      _
    // Predicated region
    $region142: #{tpu_custom_call.1} parent=1 // pred_check
      _
    $region143: #{tpu_custom_call.1} parent=1 // pred_check_branch
      %9599 = sbr.rel (0) target = $region145
    $region144: #{tpu_custom_call.1} parent=1 // pred_region
      %9601 = vsyncadd [#allocation28], 0
      %s9602 = sshll.u32 [#allocation27], 4
      %s9603 = int_to_ptr.vmem [resolvable:$true] %s9602
      %s9604 = sshll.u32 %s20, 4
      %s9605 = int_to_ptr.hbm [resolvable:$true] %s9604
      %9610 = dma.vmem_to_hbm [thread:$0]  %s9603, 256, %s9605, [#allocation28], 128, 128, 8
    $region145: #{tpu_custom_call.1} parent=1 // pred_fallthru
      _
    // Predicated region
    $region146: #{tpu_custom_call.1} parent=1 // pred_check
      _
    $region147: #{tpu_custom_call.1} parent=1 // pred_check_branch
      %9612 = sbr.rel (0) target = $region149
    $region148: #{tpu_custom_call.1} parent=1 // pred_region
      %9614 = vsyncadd [#allocation28], 0
      %s9615 = sshll.u32 [#allocation29], 4
      %s9616 = int_to_ptr.vmem [resolvable:$true] %s9615
      %s9617 = sshll.u32 %s21, 4
      %s9618 = int_to_ptr.hbm [resolvable:$true] %s9617
      %9623 = dma.vmem_to_hbm [thread:$0]  %s9616, 256, %s9618, [#allocation28], 128, 128, 8
    $region149: #{tpu_custom_call.1} parent=1 // pred_fallthru
      _
    // Predicated region
    $region150: #{tpu_custom_call.1} parent=1 // pred_check
      _
    $region151: #{tpu_custom_call.1} parent=1 // pred_check_branch
      %9625 = sbr.rel (0) target = $region153
    $region152: #{tpu_custom_call.1} parent=1 // pred_region
      %9627 = dma.done [#allocation4], 256
    $region153: #{tpu_custom_call.1} parent=1 // pred_fallthru
      _
    // Predicated region
    $region154: #{tpu_custom_call.1} parent=1 // pred_check
      _
    $region155: #{tpu_custom_call.1} parent=1 // pred_check_branch
      %9629 = sbr.rel (0) target = $region157
    $region156: #{tpu_custom_call.1} parent=1 // pred_region
      %9631 = dma.done [#allocation28], 256
    $region157: #{tpu_custom_call.1} parent=1 // pred_fallthru
      _
    // Predicated region
    $region158: #{tpu_custom_call.1} parent=1 // pred_check
      _
    $region159: #{tpu_custom_call.1} parent=1 // pred_check_branch
      %9633 = sbr.rel (0) target = $region161
    $region160: #{tpu_custom_call.1} parent=1 // pred_region
      %9635 = dma.done [#allocation28], 256
    $region161: #{tpu_custom_call.1} parent=1 // pred_fallthru
      _
    %9636 = vsyncpa [#allocation3], 1
    %9637 = vsyncpa [#allocation6], 1
    %9638 = vsyncpa [#allocation9], 1
    %9639 = vsyncpa [#allocation12], 1
    %9640 = vsyncpa [#allocation15], 1
    %9641 = vsyncpa [#allocation18], 1
    %9642 = vsyncpa [#allocation21], 1
    %9643 = vsyncpa [#allocation24], 1
    %9644 = vsyncpa [#allocation4], 1
    %9645 = vsyncpa [#allocation28], 1

</llo_original>
